<compile_context>
chip_gen: v7x
topology: tpu7x:2x2x1
jax: 0.10.0
libtpu: 0.0.40
codegen_flags: <defaults>
</compile_context>

<pallas_src>
import jax
import jax.numpy as jnp
from jax.experimental import pallas as pl
from jax.experimental.pallas import tpu as pltpu

# ---------------- model config (small, lane-dense synthetic shapes) ----------
MODEL_DIM = 128          # D  (= vreg lane width -> lane-dense blocks)
NUM_HEADS = 4            # H
HEAD_DIM = MODEL_DIM // NUM_HEADS   # 32 (lane-aligned head slices)
FFN_DIM = 256            # F
SEQ_LEN = 16             # S  (token sequence length)
NUM_CLS = 8              # Ncls (sentences per doc, padded/stacked; 8 = sublane tile)
VOCAB = 64
NUM_ENC_LAYERS = 2       # phase1_bert depth
NUM_DEC_LAYERS = 2       # phase2_decoder depth
NUM_LAYERS = NUM_ENC_LAYERS + NUM_DEC_LAYERS
NEG_INF = -1e9

assert NUM_HEADS * HEAD_DIM == MODEL_DIM


# ======================= fused Pallas kernel =======================

def _layer_norm(x, gamma, beta, eps=1e-5):
    mu = jnp.mean(x, axis=-1, keepdims=True)
    var = jnp.mean((x - mu) ** 2, axis=-1, keepdims=True)
    return (x - mu) * jax.lax.rsqrt(var + eps) * gamma + beta


def _transformer_block(x2d, bsz, seq, add_mask, layer_idx,
                       wqkv_ref, bqkv_ref, wo_ref, w1_ref, b1_ref, w2_ref,
                       vec_ref):
    """One post-norm transformer block on [bsz*seq, D] activations.

    add_mask: [bsz, seq] additive key mask (0 or NEG_INF).
    Weights are read from stacked refs at static layer_idx.
    """
    d = x2d.shape[-1]
    wqkv = wqkv_ref[layer_idx]            # [D, 3D]
    bqkv = bqkv_ref[layer_idx]            # [1, 3D]
    wo = wo_ref[layer_idx]                # [D, D]
    w1 = w1_ref[layer_idx]                # [D, F]
    b1 = b1_ref[layer_idx]                # [1, F]
    w2 = w2_ref[layer_idx]                # [F, D]
    vec = vec_ref[layer_idx]              # [6, D] rows: bo,ln1_g,ln1_b,b2,ln2_g,ln2_b
    bo, ln1_g, ln1_b, b2, ln2_g, ln2_b = (vec[i:i + 1, :] for i in range(6))

    # Fused QKV projection on the whole (batch-folded) activation slab.
    qkv = jnp.dot(x2d, wqkv, preferred_element_type=jnp.float32) + bqkv
    q = qkv[:, 0 * d:1 * d].reshape(bsz, seq, d)
    k = qkv[:, 1 * d:2 * d].reshape(bsz, seq, d)
    v = qkv[:, 2 * d:3 * d].reshape(bsz, seq, d)

    mask3 = add_mask[:, None, :]          # [bsz, 1, seq] (hoisted out of head loop)
    scale = 1.0 / (HEAD_DIM ** 0.5)

    # Multi-head attention, batched over B via einsum; heads accumulate
    # straight through W_o row-slices (no lane concatenate).
    attn = None
    for h in range(NUM_HEADS):
        sl = slice(h * HEAD_DIM, (h + 1) * HEAD_DIM)
        s = jnp.einsum('bqd,bkd->bqk', q[..., sl], k[..., sl],
                       preferred_element_type=jnp.float32) * scale
        s = s + mask3
        s = s - jnp.max(s, axis=-1, keepdims=True)
        p = jnp.exp(s)
        p = p * pl.reciprocal(jnp.sum(p, axis=-1, keepdims=True), approx=True)
        ctx = jnp.einsum('bqk,bkd->bqd', p, v[..., sl],
                         preferred_element_type=jnp.float32)
        part = jnp.dot(ctx.reshape(bsz * seq, HEAD_DIM), wo[sl, :],
                       preferred_element_type=jnp.float32)
        attn = part if attn is None else attn + part
    attn = attn + bo

    h1 = _layer_norm(x2d + attn, ln1_g, ln1_b)
    f = jnp.dot(h1, w1, preferred_element_type=jnp.float32) + b1
    f = jnp.maximum(f, 0.0)
    f = jnp.dot(f, w2, preferred_element_type=jnp.float32) + b2
    return _layer_norm(h1 + f, ln2_g, ln2_b)


def ext_bert_summ_kernel(x_ref, enc_mask_ref, cls_onehot_ref, dec_mask_ref,
                         wqkv_ref, bqkv_ref, wo_ref, w1_ref, b1_ref, w2_ref,
                         vec_ref, cls_w_ref, cls_b_ref, o_ref):
    bsz, seq = enc_mask_ref.shape
    ncls = dec_mask_ref.shape[1]
    d = x_ref.shape[-1]

    wrefs = (wqkv_ref, bqkv_ref, wo_ref, w1_ref, b1_ref, w2_ref, vec_ref)

    # ---- phase1_bert: transformer encoder over tokens ----
    x = x_ref[...]                                         # [B*S, D]
    enc_mask = enc_mask_ref[...]                           # [B, S]
    for layer in range(NUM_ENC_LAYERS):
        x = _transformer_block(x, bsz, seq, enc_mask, layer, *wrefs)

    # ---- get_cls_embed + padding_and_stack_cls: one-hot MXU gather ----
    cls = jnp.einsum('bns,bsd->bnd', cls_onehot_ref[...], x.reshape(bsz, seq, d),
                     preferred_element_type=jnp.float32)   # [B, Ncls, D]
    y = cls.reshape(bsz * ncls, d)                         # padded slots are 0

    # ---- phase2_decoder: transformer over sentence embeddings ----
    dec_mask = dec_mask_ref[...]                           # [B, Ncls]
    for layer in range(NUM_ENC_LAYERS, NUM_ENC_LAYERS + NUM_DEC_LAYERS):
        y = _transformer_block(y, bsz, ncls, dec_mask, layer, *wrefs)

    # ---- sent_classifier Linear(D, 1): VPU multiply + lane reduce ----
    logit = jnp.sum(y * cls_w_ref[...], axis=-1, keepdims=True) + cls_b_ref[...]
    o_ref[...] = jnp.broadcast_to(logit, (bsz * ncls, d))  # lane-dense store


# ======================= wrapper (glue + single pallas_call) =======================

def ext_bert_summ_forward(params, src_ids, src_pad_mask, src_token_type,
                          src_cls_pos):
    B, S = src_ids.shape
    NCLS = src_cls_pos.shape[1]
    D = params["tok_emb"].shape[1]

    # Embedding lookups (pure index glue, stays in JAX).
    x = (params["tok_emb"][src_ids]
         + params["type_emb"][src_token_type]
         + params["pos_emb"][None, :S, :]).astype(jnp.float32)      # [B, S, D]
    x2d = x.reshape(B * S, D)

    enc_mask = (1.0 - src_pad_mask.astype(jnp.float32)) * NEG_INF   # [B, S]

    pos = jnp.clip(src_cls_pos, 0, S - 1)                           # [B, Ncls]
    valid = (src_cls_pos >= 0).astype(jnp.float32)                  # [B, Ncls]
    cls_onehot = jax.nn.one_hot(pos, S, dtype=jnp.float32) * valid[..., None]
    dec_mask = (1.0 - valid) * NEG_INF                              # [B, Ncls]

    operands = (x2d, enc_mask, cls_onehot, dec_mask,
                params["wqkv"], params["bqkv"], params["wo"],
                params["w1"], params["b1"], params["w2"], params["vec"],
                params["cls_w"], params["cls_b"])

    out = pl.pallas_call(
        ext_bert_summ_kernel,
        out_shape=jax.ShapeDtypeStruct((B * NCLS, D), jnp.float32),
        in_specs=[pl.BlockSpec(memory_space=pltpu.MemorySpace.VMEM)] * len(operands),
        out_specs=pl.BlockSpec(memory_space=pltpu.MemorySpace.VMEM),
    )(*operands)

    # logit is replicated across lanes; take lane 0.
    return out[:, 0:1].reshape(B, NCLS, 1)


# ======================= parameter init (synthetic weights) =======================

def init_params(key):
    keys = jax.random.split(key, 8)
    s = 0.02
    L, D, F = NUM_LAYERS, MODEL_DIM, FFN_DIM
    vec = jnp.zeros((L, 6, D), jnp.float32)      # rows: bo,ln1_g,ln1_b,b2,ln2_g,ln2_b
    vec = vec.at[:, 1, :].set(1.0)               # ln1_gamma
    vec = vec.at[:, 4, :].set(1.0)               # ln2_gamma
    return {
        "tok_emb": s * jax.random.normal(keys[0], (VOCAB, D), jnp.float32),
        "type_emb": s * jax.random.normal(keys[1], (2, D), jnp.float32),
        "pos_emb": s * jax.random.normal(keys[2], (SEQ_LEN, D), jnp.float32),
        "wqkv": s * jax.random.normal(keys[3], (L, D, 3 * D), jnp.float32),
        "bqkv": jnp.zeros((L, 1, 3 * D), jnp.float32),
        "wo": s * jax.random.normal(keys[4], (L, D, D), jnp.float32),
        "w1": s * jax.random.normal(keys[5], (L, D, F), jnp.float32),
        "b1": jnp.zeros((L, 1, F), jnp.float32),
        "w2": s * jax.random.normal(keys[6], (L, F, D), jnp.float32),
        "vec": vec,
        "cls_w": s * jax.random.normal(keys[7], (1, D), jnp.float32),
        "cls_b": jnp.zeros((1, 1), jnp.float32),
    }


# ======================= main =======================

if __name__ == "__main__":
    key = jax.random.PRNGKey(0)
    k_param, k_ids = jax.random.split(key)

    params = init_params(k_param)

    B = 2
    src_ids = jax.random.randint(k_ids, (B, SEQ_LEN), 0, VOCAB, dtype=jnp.int32)
    src_pad_mask = jnp.array(
        [[1] * SEQ_LEN,
         [1] * (SEQ_LEN - 3) + [0] * 3], dtype=jnp.int32)                # [B, S]
    src_token_type = jnp.concatenate(
        [jnp.zeros((B, SEQ_LEN // 2), jnp.int32),
         jnp.ones((B, SEQ_LEN // 2), jnp.int32)], axis=1)                # [B, S]
    src_cls_pos = jnp.array(
        [[0, 2, 4, 6, 8, 10, 12, 14],
         [0, 3, 6, 9, 12, -1, -1, -1]], dtype=jnp.int32)                 # [B, Ncls], -1 = pad

    fwd = jax.jit(ext_bert_summ_forward)
    logits = fwd(params, src_ids, src_pad_mask, src_token_type, src_cls_pos)
    jax.block_until_ready(logits)

    assert logits.shape == (B, NUM_CLS, 1), logits.shape
    assert bool(jnp.all(jnp.isfinite(logits)))
    print("KERNEL_OK")
</pallas_src>

<mosaic_0001>
module attributes {stable_mosaic.version = 11 : i64} {
  func.func @ext_bert_summ_kernel(%arg0: memref<32x128xf32, #tpu.memory_space<vmem>>, %arg1: memref<2x16xf32, #tpu.memory_space<vmem>>, %arg2: memref<2x8x16xf32, #tpu.memory_space<vmem>>, %arg3: memref<2x8xf32, #tpu.memory_space<vmem>>, %arg4: memref<4x128x384xf32, #tpu.memory_space<vmem>>, %arg5: memref<4x1x384xf32, #tpu.memory_space<vmem>>, %arg6: memref<4x128x128xf32, #tpu.memory_space<vmem>>, %arg7: memref<4x128x256xf32, #tpu.memory_space<vmem>>, %arg8: memref<4x1x256xf32, #tpu.memory_space<vmem>>, %arg9: memref<4x256x128xf32, #tpu.memory_space<vmem>>, %arg10: memref<4x6x128xf32, #tpu.memory_space<vmem>>, %arg11: memref<1x128xf32, #tpu.memory_space<vmem>>, %arg12: memref<1x1xf32, #tpu.memory_space<vmem>>, %arg13: memref<16x128xf32, #tpu.memory_space<vmem>>) attributes {dimension_semantics = [], scalar_prefetch = 0 : i64, scratch_operands = 0 : i64, tpu.core_type = #tpu.core_type<tc>} {
    %c0 = arith.constant 0 : index
    %c0_0 = arith.constant 0 : index
    %0 = vector.load %arg0[%c0, %c0_0] : memref<32x128xf32, #tpu.memory_space<vmem>>, vector<32x128xf32>
    %c0_1 = arith.constant 0 : index
    %c0_2 = arith.constant 0 : index
    %1 = vector.load %arg1[%c0_1, %c0_2] : memref<2x16xf32, #tpu.memory_space<vmem>>, vector<2x16xf32>
    %c0_3 = arith.constant 0 : index
    %c0_4 = arith.constant 0 : index
    %c0_5 = arith.constant 0 : index
    %2 = vector.load %arg4[%c0_3, %c0_4, %c0_5] : memref<4x128x384xf32, #tpu.memory_space<vmem>>, vector<1x128x384xf32>
    %3 = vector.shape_cast %2 : vector<1x128x384xf32> to vector<128x384xf32>
    %c0_6 = arith.constant 0 : index
    %c0_7 = arith.constant 0 : index
    %c0_8 = arith.constant 0 : index
    %4 = vector.load %arg5[%c0_6, %c0_7, %c0_8] : memref<4x1x384xf32, #tpu.memory_space<vmem>>, vector<1x1x384xf32>
    %5 = vector.shape_cast %4 : vector<1x1x384xf32> to vector<1x384xf32>
    %c0_9 = arith.constant 0 : index
    %c0_10 = arith.constant 0 : index
    %c0_11 = arith.constant 0 : index
    %6 = vector.load %arg6[%c0_9, %c0_10, %c0_11] : memref<4x128x128xf32, #tpu.memory_space<vmem>>, vector<1x128x128xf32>
    %7 = vector.shape_cast %6 : vector<1x128x128xf32> to vector<128x128xf32>
    %c0_12 = arith.constant 0 : index
    %c0_13 = arith.constant 0 : index
    %c0_14 = arith.constant 0 : index
    %8 = vector.load %arg7[%c0_12, %c0_13, %c0_14] : memref<4x128x256xf32, #tpu.memory_space<vmem>>, vector<1x128x256xf32>
    %9 = vector.shape_cast %8 : vector<1x128x256xf32> to vector<128x256xf32>
    %c0_15 = arith.constant 0 : index
    %c0_16 = arith.constant 0 : index
    %c0_17 = arith.constant 0 : index
    %10 = vector.load %arg8[%c0_15, %c0_16, %c0_17] : memref<4x1x256xf32, #tpu.memory_space<vmem>>, vector<1x1x256xf32>
    %11 = vector.shape_cast %10 : vector<1x1x256xf32> to vector<1x256xf32>
    %c0_18 = arith.constant 0 : index
    %c0_19 = arith.constant 0 : index
    %c0_20 = arith.constant 0 : index
    %12 = vector.load %arg9[%c0_18, %c0_19, %c0_20] : memref<4x256x128xf32, #tpu.memory_space<vmem>>, vector<1x256x128xf32>
    %13 = vector.shape_cast %12 : vector<1x256x128xf32> to vector<256x128xf32>
    %c0_21 = arith.constant 0 : index
    %c0_22 = arith.constant 0 : index
    %c0_23 = arith.constant 0 : index
    %14 = vector.load %arg10[%c0_21, %c0_22, %c0_23] : memref<4x6x128xf32, #tpu.memory_space<vmem>>, vector<1x6x128xf32>
    %15 = vector.shape_cast %14 : vector<1x6x128xf32> to vector<6x128xf32>
    %16 = vector.extract_strided_slice %15 {offsets = [0, 0], sizes = [1, 128], strides = [1, 1]} : vector<6x128xf32> to vector<1x128xf32>
    %17 = vector.extract_strided_slice %15 {offsets = [1, 0], sizes = [1, 128], strides = [1, 1]} : vector<6x128xf32> to vector<1x128xf32>
    %18 = vector.extract_strided_slice %15 {offsets = [2, 0], sizes = [1, 128], strides = [1, 1]} : vector<6x128xf32> to vector<1x128xf32>
    %19 = vector.extract_strided_slice %15 {offsets = [3, 0], sizes = [1, 128], strides = [1, 1]} : vector<6x128xf32> to vector<1x128xf32>
    %20 = vector.extract_strided_slice %15 {offsets = [4, 0], sizes = [1, 128], strides = [1, 1]} : vector<6x128xf32> to vector<1x128xf32>
    %21 = vector.extract_strided_slice %15 {offsets = [5, 0], sizes = [1, 128], strides = [1, 1]} : vector<6x128xf32> to vector<1x128xf32>
    %cst = arith.constant dense<0.000000e+00> : vector<32x384xf32>
    %22 = tpu.matmul %0, %3, %cst {dimension_numbers = #tpu.dot_dimension_numbers<[1], [0], [0], [1], [0, 0, 1, 1], [], []>} : vector<32x128xf32>, vector<128x384xf32>, vector<32x384xf32> -> vector<32x384xf32>
    %23 = vector.broadcast %5 : vector<1x384xf32> to vector<32x384xf32>
    %24 = arith.addf %22, %23 : vector<32x384xf32>
    %25 = vector.extract_strided_slice %24 {offsets = [0, 0], sizes = [32, 128], strides = [1, 1]} : vector<32x384xf32> to vector<32x128xf32>
    %26 = vector.shape_cast %25 : vector<32x128xf32> to vector<2x16x128xf32>
    %27 = vector.extract_strided_slice %24 {offsets = [0, 128], sizes = [32, 128], strides = [1, 1]} : vector<32x384xf32> to vector<32x128xf32>
    %28 = vector.shape_cast %27 : vector<32x128xf32> to vector<2x16x128xf32>
    %29 = vector.extract_strided_slice %24 {offsets = [0, 256], sizes = [32, 128], strides = [1, 1]} : vector<32x384xf32> to vector<32x128xf32>
    %30 = vector.shape_cast %29 : vector<32x128xf32> to vector<2x16x128xf32>
    %31 = vector.shape_cast %1 : vector<2x16xf32> to vector<2x1x16xf32>
    %32 = vector.extract_strided_slice %26 {offsets = [0, 0, 0], sizes = [2, 16, 32], strides = [1, 1, 1]} : vector<2x16x128xf32> to vector<2x16x32xf32>
    %33 = vector.extract_strided_slice %28 {offsets = [0, 0, 0], sizes = [2, 16, 32], strides = [1, 1, 1]} : vector<2x16x128xf32> to vector<2x16x32xf32>
    "tpu.trace_start"() <{level = 10 : i32, message = "bqd,bkd->bqk"}> : () -> ()
    %cst_24 = arith.constant dense<0.000000e+00> : vector<2x16x16xf32>
    %34 = tpu.matmul %32, %33, %cst_24 {dimension_numbers = #tpu.dot_dimension_numbers<[2], [2], [1], [1], [0, 0, 0, 1, 1, 1], [0], [0]>} : vector<2x16x32xf32>, vector<2x16x32xf32>, vector<2x16x16xf32> -> vector<2x16x16xf32>
    "tpu.trace_stop"() : () -> ()
    %cst_25 = arith.constant 0.176776692 : f32
    %35 = vector.broadcast %cst_25 : f32 to vector<2x16x16xf32>
    %36 = arith.mulf %34, %35 : vector<2x16x16xf32>
    %37 = vector.broadcast %31 : vector<2x1x16xf32> to vector<2x16x16xf32>
    %38 = arith.addf %36, %37 : vector<2x16x16xf32>
    %cst_26 = arith.constant dense<0xFF800000> : vector<2x16xf32>
    %39 = vector.multi_reduction <maximumf>, %38, %cst_26 [2] : vector<2x16x16xf32> to vector<2x16xf32>
    %40 = vector.shape_cast %39 : vector<2x16xf32> to vector<2x16x1xf32>
    %41 = vector.broadcast %40 : vector<2x16x1xf32> to vector<2x16x16xf32>
    %42 = arith.subf %38, %41 : vector<2x16x16xf32>
    %43 = math.exp %42 : vector<2x16x16xf32>
    %cst_27 = arith.constant dense<0.000000e+00> : vector<2x16xf32>
    %44 = vector.multi_reduction <add>, %43, %cst_27 [2] : vector<2x16x16xf32> to vector<2x16xf32>
    %45 = vector.shape_cast %44 : vector<2x16xf32> to vector<2x16x1xf32>
    %46 = tpu.reciprocal %45 {approx = true} : vector<2x16x1xf32> -> vector<2x16x1xf32>
    %47 = vector.broadcast %46 : vector<2x16x1xf32> to vector<2x16x16xf32>
    %48 = arith.mulf %43, %47 : vector<2x16x16xf32>
    %49 = vector.extract_strided_slice %30 {offsets = [0, 0, 0], sizes = [2, 16, 32], strides = [1, 1, 1]} : vector<2x16x128xf32> to vector<2x16x32xf32>
    "tpu.trace_start"() <{level = 10 : i32, message = "bqk,bkd->bqd"}> : () -> ()
    %cst_28 = arith.constant dense<0.000000e+00> : vector<2x16x32xf32>
    %50 = tpu.matmul %48, %49, %cst_28 {dimension_numbers = #tpu.dot_dimension_numbers<[2], [1], [1], [2], [0, 0, 0, 1, 1, 2], [0], [0]>} : vector<2x16x16xf32>, vector<2x16x32xf32>, vector<2x16x32xf32> -> vector<2x16x32xf32>
    "tpu.trace_stop"() : () -> ()
    %51 = vector.shape_cast %50 : vector<2x16x32xf32> to vector<32x32xf32>
    %52 = vector.extract_strided_slice %7 {offsets = [0, 0], sizes = [32, 128], strides = [1, 1]} : vector<128x128xf32> to vector<32x128xf32>
    %cst_29 = arith.constant dense<0.000000e+00> : vector<32x128xf32>
    %53 = tpu.matmul %51, %52, %cst_29 {dimension_numbers = #tpu.dot_dimension_numbers<[1], [0], [0], [1], [0, 0, 1, 1], [], []>} : vector<32x32xf32>, vector<32x128xf32>, vector<32x128xf32> -> vector<32x128xf32>
    %54 = vector.extract_strided_slice %26 {offsets = [0, 0, 32], sizes = [2, 16, 32], strides = [1, 1, 1]} : vector<2x16x128xf32> to vector<2x16x32xf32>
    %55 = vector.extract_strided_slice %28 {offsets = [0, 0, 32], sizes = [2, 16, 32], strides = [1, 1, 1]} : vector<2x16x128xf32> to vector<2x16x32xf32>
    "tpu.trace_start"() <{level = 10 : i32, message = "bqd,bkd->bqk"}> : () -> ()
    %cst_30 = arith.constant dense<0.000000e+00> : vector<2x16x16xf32>
    %56 = tpu.matmul %54, %55, %cst_30 {dimension_numbers = #tpu.dot_dimension_numbers<[2], [2], [1], [1], [0, 0, 0, 1, 1, 1], [0], [0]>} : vector<2x16x32xf32>, vector<2x16x32xf32>, vector<2x16x16xf32> -> vector<2x16x16xf32>
    "tpu.trace_stop"() : () -> ()
    %cst_31 = arith.constant 0.176776692 : f32
    %57 = vector.broadcast %cst_31 : f32 to vector<2x16x16xf32>
    %58 = arith.mulf %56, %57 : vector<2x16x16xf32>
    %59 = vector.broadcast %31 : vector<2x1x16xf32> to vector<2x16x16xf32>
    %60 = arith.addf %58, %59 : vector<2x16x16xf32>
    %cst_32 = arith.constant dense<0xFF800000> : vector<2x16xf32>
    %61 = vector.multi_reduction <maximumf>, %60, %cst_32 [2] : vector<2x16x16xf32> to vector<2x16xf32>
    %62 = vector.shape_cast %61 : vector<2x16xf32> to vector<2x16x1xf32>
    %63 = vector.broadcast %62 : vector<2x16x1xf32> to vector<2x16x16xf32>
    %64 = arith.subf %60, %63 : vector<2x16x16xf32>
    %65 = math.exp %64 : vector<2x16x16xf32>
    %cst_33 = arith.constant dense<0.000000e+00> : vector<2x16xf32>
    %66 = vector.multi_reduction <add>, %65, %cst_33 [2] : vector<2x16x16xf32> to vector<2x16xf32>
    %67 = vector.shape_cast %66 : vector<2x16xf32> to vector<2x16x1xf32>
    %68 = tpu.reciprocal %67 {approx = true} : vector<2x16x1xf32> -> vector<2x16x1xf32>
    %69 = vector.broadcast %68 : vector<2x16x1xf32> to vector<2x16x16xf32>
    %70 = arith.mulf %65, %69 : vector<2x16x16xf32>
    %71 = vector.extract_strided_slice %30 {offsets = [0, 0, 32], sizes = [2, 16, 32], strides = [1, 1, 1]} : vector<2x16x128xf32> to vector<2x16x32xf32>
    "tpu.trace_start"() <{level = 10 : i32, message = "bqk,bkd->bqd"}> : () -> ()
    %cst_34 = arith.constant dense<0.000000e+00> : vector<2x16x32xf32>
    %72 = tpu.matmul %70, %71, %cst_34 {dimension_numbers = #tpu.dot_dimension_numbers<[2], [1], [1], [2], [0, 0, 0, 1, 1, 2], [0], [0]>} : vector<2x16x16xf32>, vector<2x16x32xf32>, vector<2x16x32xf32> -> vector<2x16x32xf32>
    "tpu.trace_stop"() : () -> ()
    %73 = vector.shape_cast %72 : vector<2x16x32xf32> to vector<32x32xf32>
    %74 = vector.extract_strided_slice %7 {offsets = [32, 0], sizes = [32, 128], strides = [1, 1]} : vector<128x128xf32> to vector<32x128xf32>
    %cst_35 = arith.constant dense<0.000000e+00> : vector<32x128xf32>
    %75 = tpu.matmul %73, %74, %cst_35 {dimension_numbers = #tpu.dot_dimension_numbers<[1], [0], [0], [1], [0, 0, 1, 1], [], []>} : vector<32x32xf32>, vector<32x128xf32>, vector<32x128xf32> -> vector<32x128xf32>
    %76 = arith.addf %53, %75 : vector<32x128xf32>
    %77 = vector.extract_strided_slice %26 {offsets = [0, 0, 64], sizes = [2, 16, 32], strides = [1, 1, 1]} : vector<2x16x128xf32> to vector<2x16x32xf32>
    %78 = vector.extract_strided_slice %28 {offsets = [0, 0, 64], sizes = [2, 16, 32], strides = [1, 1, 1]} : vector<2x16x128xf32> to vector<2x16x32xf32>
    "tpu.trace_start"() <{level = 10 : i32, message = "bqd,bkd->bqk"}> : () -> ()
    %cst_36 = arith.constant dense<0.000000e+00> : vector<2x16x16xf32>
    %79 = tpu.matmul %77, %78, %cst_36 {dimension_numbers = #tpu.dot_dimension_numbers<[2], [2], [1], [1], [0, 0, 0, 1, 1, 1], [0], [0]>} : vector<2x16x32xf32>, vector<2x16x32xf32>, vector<2x16x16xf32> -> vector<2x16x16xf32>
    "tpu.trace_stop"() : () -> ()
    %cst_37 = arith.constant 0.176776692 : f32
    %80 = vector.broadcast %cst_37 : f32 to vector<2x16x16xf32>
    %81 = arith.mulf %79, %80 : vector<2x16x16xf32>
    %82 = vector.broadcast %31 : vector<2x1x16xf32> to vector<2x16x16xf32>
    %83 = arith.addf %81, %82 : vector<2x16x16xf32>
    %cst_38 = arith.constant dense<0xFF800000> : vector<2x16xf32>
    %84 = vector.multi_reduction <maximumf>, %83, %cst_38 [2] : vector<2x16x16xf32> to vector<2x16xf32>
    %85 = vector.shape_cast %84 : vector<2x16xf32> to vector<2x16x1xf32>
    %86 = vector.broadcast %85 : vector<2x16x1xf32> to vector<2x16x16xf32>
    %87 = arith.subf %83, %86 : vector<2x16x16xf32>
    %88 = math.exp %87 : vector<2x16x16xf32>
    %cst_39 = arith.constant dense<0.000000e+00> : vector<2x16xf32>
    %89 = vector.multi_reduction <add>, %88, %cst_39 [2] : vector<2x16x16xf32> to vector<2x16xf32>
    %90 = vector.shape_cast %89 : vector<2x16xf32> to vector<2x16x1xf32>
    %91 = tpu.reciprocal %90 {approx = true} : vector<2x16x1xf32> -> vector<2x16x1xf32>
    %92 = vector.broadcast %91 : vector<2x16x1xf32> to vector<2x16x16xf32>
    %93 = arith.mulf %88, %92 : vector<2x16x16xf32>
    %94 = vector.extract_strided_slice %30 {offsets = [0, 0, 64], sizes = [2, 16, 32], strides = [1, 1, 1]} : vector<2x16x128xf32> to vector<2x16x32xf32>
    "tpu.trace_start"() <{level = 10 : i32, message = "bqk,bkd->bqd"}> : () -> ()
    %cst_40 = arith.constant dense<0.000000e+00> : vector<2x16x32xf32>
    %95 = tpu.matmul %93, %94, %cst_40 {dimension_numbers = #tpu.dot_dimension_numbers<[2], [1], [1], [2], [0, 0, 0, 1, 1, 2], [0], [0]>} : vector<2x16x16xf32>, vector<2x16x32xf32>, vector<2x16x32xf32> -> vector<2x16x32xf32>
    "tpu.trace_stop"() : () -> ()
    %96 = vector.shape_cast %95 : vector<2x16x32xf32> to vector<32x32xf32>
    %97 = vector.extract_strided_slice %7 {offsets = [64, 0], sizes = [32, 128], strides = [1, 1]} : vector<128x128xf32> to vector<32x128xf32>
    %cst_41 = arith.constant dense<0.000000e+00> : vector<32x128xf32>
    %98 = tpu.matmul %96, %97, %cst_41 {dimension_numbers = #tpu.dot_dimension_numbers<[1], [0], [0], [1], [0, 0, 1, 1], [], []>} : vector<32x32xf32>, vector<32x128xf32>, vector<32x128xf32> -> vector<32x128xf32>
    %99 = arith.addf %76, %98 : vector<32x128xf32>
    %100 = vector.extract_strided_slice %26 {offsets = [0, 0, 96], sizes = [2, 16, 32], strides = [1, 1, 1]} : vector<2x16x128xf32> to vector<2x16x32xf32>
    %101 = vector.extract_strided_slice %28 {offsets = [0, 0, 96], sizes = [2, 16, 32], strides = [1, 1, 1]} : vector<2x16x128xf32> to vector<2x16x32xf32>
    "tpu.trace_start"() <{level = 10 : i32, message = "bqd,bkd->bqk"}> : () -> ()
    %cst_42 = arith.constant dense<0.000000e+00> : vector<2x16x16xf32>
    %102 = tpu.matmul %100, %101, %cst_42 {dimension_numbers = #tpu.dot_dimension_numbers<[2], [2], [1], [1], [0, 0, 0, 1, 1, 1], [0], [0]>} : vector<2x16x32xf32>, vector<2x16x32xf32>, vector<2x16x16xf32> -> vector<2x16x16xf32>
    "tpu.trace_stop"() : () -> ()
    %cst_43 = arith.constant 0.176776692 : f32
    %103 = vector.broadcast %cst_43 : f32 to vector<2x16x16xf32>
    %104 = arith.mulf %102, %103 : vector<2x16x16xf32>
    %105 = vector.broadcast %31 : vector<2x1x16xf32> to vector<2x16x16xf32>
    %106 = arith.addf %104, %105 : vector<2x16x16xf32>
    %cst_44 = arith.constant dense<0xFF800000> : vector<2x16xf32>
    %107 = vector.multi_reduction <maximumf>, %106, %cst_44 [2] : vector<2x16x16xf32> to vector<2x16xf32>
    %108 = vector.shape_cast %107 : vector<2x16xf32> to vector<2x16x1xf32>
    %109 = vector.broadcast %108 : vector<2x16x1xf32> to vector<2x16x16xf32>
    %110 = arith.subf %106, %109 : vector<2x16x16xf32>
    %111 = math.exp %110 : vector<2x16x16xf32>
    %cst_45 = arith.constant dense<0.000000e+00> : vector<2x16xf32>
    %112 = vector.multi_reduction <add>, %111, %cst_45 [2] : vector<2x16x16xf32> to vector<2x16xf32>
    %113 = vector.shape_cast %112 : vector<2x16xf32> to vector<2x16x1xf32>
    %114 = tpu.reciprocal %113 {approx = true} : vector<2x16x1xf32> -> vector<2x16x1xf32>
    %115 = vector.broadcast %114 : vector<2x16x1xf32> to vector<2x16x16xf32>
    %116 = arith.mulf %111, %115 : vector<2x16x16xf32>
    %117 = vector.extract_strided_slice %30 {offsets = [0, 0, 96], sizes = [2, 16, 32], strides = [1, 1, 1]} : vector<2x16x128xf32> to vector<2x16x32xf32>
    "tpu.trace_start"() <{level = 10 : i32, message = "bqk,bkd->bqd"}> : () -> ()
    %cst_46 = arith.constant dense<0.000000e+00> : vector<2x16x32xf32>
    %118 = tpu.matmul %116, %117, %cst_46 {dimension_numbers = #tpu.dot_dimension_numbers<[2], [1], [1], [2], [0, 0, 0, 1, 1, 2], [0], [0]>} : vector<2x16x16xf32>, vector<2x16x32xf32>, vector<2x16x32xf32> -> vector<2x16x32xf32>
    "tpu.trace_stop"() : () -> ()
    %119 = vector.shape_cast %118 : vector<2x16x32xf32> to vector<32x32xf32>
    %120 = vector.extract_strided_slice %7 {offsets = [96, 0], sizes = [32, 128], strides = [1, 1]} : vector<128x128xf32> to vector<32x128xf32>
    %cst_47 = arith.constant dense<0.000000e+00> : vector<32x128xf32>
    %121 = tpu.matmul %119, %120, %cst_47 {dimension_numbers = #tpu.dot_dimension_numbers<[1], [0], [0], [1], [0, 0, 1, 1], [], []>} : vector<32x32xf32>, vector<32x128xf32>, vector<32x128xf32> -> vector<32x128xf32>
    %122 = arith.addf %99, %121 : vector<32x128xf32>
    %123 = vector.broadcast %16 : vector<1x128xf32> to vector<32x128xf32>
    %124 = arith.addf %122, %123 : vector<32x128xf32>
    %125 = arith.addf %0, %124 : vector<32x128xf32>
    %cst_48 = arith.constant dense<0.000000e+00> : vector<32xf32>
    %126 = vector.multi_reduction <add>, %125, %cst_48 [1] : vector<32x128xf32> to vector<32xf32>
    %127 = vector.shape_cast %126 : vector<32xf32> to vector<32x1xf32>
    %cst_49 = arith.constant 1.280000e+02 : f32
    %128 = vector.broadcast %cst_49 : f32 to vector<32x1xf32>
    %129 = arith.divf %127, %128 : vector<32x1xf32>
    %130 = vector.broadcast %129 : vector<32x1xf32> to vector<32x128xf32>
    %131 = arith.subf %125, %130 : vector<32x128xf32>
    %132 = arith.mulf %131, %131 : vector<32x128xf32>
    %cst_50 = arith.constant dense<0.000000e+00> : vector<32xf32>
    %133 = vector.multi_reduction <add>, %132, %cst_50 [1] : vector<32x128xf32> to vector<32xf32>
    %134 = vector.shape_cast %133 : vector<32xf32> to vector<32x1xf32>
    %cst_51 = arith.constant 1.280000e+02 : f32
    %135 = vector.broadcast %cst_51 : f32 to vector<32x1xf32>
    %136 = arith.divf %134, %135 : vector<32x1xf32>
    %137 = vector.broadcast %129 : vector<32x1xf32> to vector<32x128xf32>
    %138 = arith.subf %125, %137 : vector<32x128xf32>
    %cst_52 = arith.constant 9.99999974E-6 : f32
    %139 = vector.broadcast %cst_52 : f32 to vector<32x1xf32>
    %140 = arith.addf %136, %139 : vector<32x1xf32>
    %141 = math.rsqrt %140 : vector<32x1xf32>
    %142 = vector.broadcast %141 : vector<32x1xf32> to vector<32x128xf32>
    %143 = arith.mulf %138, %142 : vector<32x128xf32>
    %144 = vector.broadcast %17 : vector<1x128xf32> to vector<32x128xf32>
    %145 = arith.mulf %143, %144 : vector<32x128xf32>
    %146 = vector.broadcast %18 : vector<1x128xf32> to vector<32x128xf32>
    %147 = arith.addf %145, %146 : vector<32x128xf32>
    %cst_53 = arith.constant dense<0.000000e+00> : vector<32x256xf32>
    %148 = tpu.matmul %147, %9, %cst_53 {dimension_numbers = #tpu.dot_dimension_numbers<[1], [0], [0], [1], [0, 0, 1, 1], [], []>} : vector<32x128xf32>, vector<128x256xf32>, vector<32x256xf32> -> vector<32x256xf32>
    %149 = vector.broadcast %11 : vector<1x256xf32> to vector<32x256xf32>
    %150 = arith.addf %148, %149 : vector<32x256xf32>
    %cst_54 = arith.constant 0.000000e+00 : f32
    %151 = vector.broadcast %cst_54 : f32 to vector<32x256xf32>
    %152 = arith.maximumf %150, %151 : vector<32x256xf32>
    %cst_55 = arith.constant dense<0.000000e+00> : vector<32x128xf32>
    %153 = tpu.matmul %152, %13, %cst_55 {dimension_numbers = #tpu.dot_dimension_numbers<[1], [0], [0], [1], [0, 0, 1, 1], [], []>} : vector<32x256xf32>, vector<256x128xf32>, vector<32x128xf32> -> vector<32x128xf32>
    %154 = vector.broadcast %19 : vector<1x128xf32> to vector<32x128xf32>
    %155 = arith.addf %153, %154 : vector<32x128xf32>
    %156 = arith.addf %147, %155 : vector<32x128xf32>
    %cst_56 = arith.constant dense<0.000000e+00> : vector<32xf32>
    %157 = vector.multi_reduction <add>, %156, %cst_56 [1] : vector<32x128xf32> to vector<32xf32>
    %158 = vector.shape_cast %157 : vector<32xf32> to vector<32x1xf32>
    %cst_57 = arith.constant 1.280000e+02 : f32
    %159 = vector.broadcast %cst_57 : f32 to vector<32x1xf32>
    %160 = arith.divf %158, %159 : vector<32x1xf32>
    %161 = vector.broadcast %160 : vector<32x1xf32> to vector<32x128xf32>
    %162 = arith.subf %156, %161 : vector<32x128xf32>
    %163 = arith.mulf %162, %162 : vector<32x128xf32>
    %cst_58 = arith.constant dense<0.000000e+00> : vector<32xf32>
    %164 = vector.multi_reduction <add>, %163, %cst_58 [1] : vector<32x128xf32> to vector<32xf32>
    %165 = vector.shape_cast %164 : vector<32xf32> to vector<32x1xf32>
    %cst_59 = arith.constant 1.280000e+02 : f32
    %166 = vector.broadcast %cst_59 : f32 to vector<32x1xf32>
    %167 = arith.divf %165, %166 : vector<32x1xf32>
    %168 = vector.broadcast %160 : vector<32x1xf32> to vector<32x128xf32>
    %169 = arith.subf %156, %168 : vector<32x128xf32>
    %cst_60 = arith.constant 9.99999974E-6 : f32
    %170 = vector.broadcast %cst_60 : f32 to vector<32x1xf32>
    %171 = arith.addf %167, %170 : vector<32x1xf32>
    %172 = math.rsqrt %171 : vector<32x1xf32>
    %173 = vector.broadcast %172 : vector<32x1xf32> to vector<32x128xf32>
    %174 = arith.mulf %169, %173 : vector<32x128xf32>
    %175 = vector.broadcast %20 : vector<1x128xf32> to vector<32x128xf32>
    %176 = arith.mulf %174, %175 : vector<32x128xf32>
    %177 = vector.broadcast %21 : vector<1x128xf32> to vector<32x128xf32>
    %178 = arith.addf %176, %177 : vector<32x128xf32>
    %c1 = arith.constant 1 : index
    %c0_61 = arith.constant 0 : index
    %c0_62 = arith.constant 0 : index
    %179 = vector.load %arg4[%c1, %c0_61, %c0_62] : memref<4x128x384xf32, #tpu.memory_space<vmem>>, vector<1x128x384xf32>
    %180 = vector.shape_cast %179 : vector<1x128x384xf32> to vector<128x384xf32>
    %c1_63 = arith.constant 1 : index
    %c0_64 = arith.constant 0 : index
    %c0_65 = arith.constant 0 : index
    %181 = vector.load %arg5[%c1_63, %c0_64, %c0_65] : memref<4x1x384xf32, #tpu.memory_space<vmem>>, vector<1x1x384xf32>
    %182 = vector.shape_cast %181 : vector<1x1x384xf32> to vector<1x384xf32>
    %c1_66 = arith.constant 1 : index
    %c0_67 = arith.constant 0 : index
    %c0_68 = arith.constant 0 : index
    %183 = vector.load %arg6[%c1_66, %c0_67, %c0_68] : memref<4x128x128xf32, #tpu.memory_space<vmem>>, vector<1x128x128xf32>
    %184 = vector.shape_cast %183 : vector<1x128x128xf32> to vector<128x128xf32>
    %c1_69 = arith.constant 1 : index
    %c0_70 = arith.constant 0 : index
    %c0_71 = arith.constant 0 : index
    %185 = vector.load %arg7[%c1_69, %c0_70, %c0_71] : memref<4x128x256xf32, #tpu.memory_space<vmem>>, vector<1x128x256xf32>
    %186 = vector.shape_cast %185 : vector<1x128x256xf32> to vector<128x256xf32>
    %c1_72 = arith.constant 1 : index
    %c0_73 = arith.constant 0 : index
    %c0_74 = arith.constant 0 : index
    %187 = vector.load %arg8[%c1_72, %c0_73, %c0_74] : memref<4x1x256xf32, #tpu.memory_space<vmem>>, vector<1x1x256xf32>
    %188 = vector.shape_cast %187 : vector<1x1x256xf32> to vector<1x256xf32>
    %c1_75 = arith.constant 1 : index
    %c0_76 = arith.constant 0 : index
    %c0_77 = arith.constant 0 : index
    %189 = vector.load %arg9[%c1_75, %c0_76, %c0_77] : memref<4x256x128xf32, #tpu.memory_space<vmem>>, vector<1x256x128xf32>
    %190 = vector.shape_cast %189 : vector<1x256x128xf32> to vector<256x128xf32>
    %c1_78 = arith.constant 1 : index
    %c0_79 = arith.constant 0 : index
    %c0_80 = arith.constant 0 : index
    %191 = vector.load %arg10[%c1_78, %c0_79, %c0_80] : memref<4x6x128xf32, #tpu.memory_space<vmem>>, vector<1x6x128xf32>
    %192 = vector.shape_cast %191 : vector<1x6x128xf32> to vector<6x128xf32>
    %193 = vector.extract_strided_slice %192 {offsets = [0, 0], sizes = [1, 128], strides = [1, 1]} : vector<6x128xf32> to vector<1x128xf32>
    %194 = vector.extract_strided_slice %192 {offsets = [1, 0], sizes = [1, 128], strides = [1, 1]} : vector<6x128xf32> to vector<1x128xf32>
    %195 = vector.extract_strided_slice %192 {offsets = [2, 0], sizes = [1, 128], strides = [1, 1]} : vector<6x128xf32> to vector<1x128xf32>
    %196 = vector.extract_strided_slice %192 {offsets = [3, 0], sizes = [1, 128], strides = [1, 1]} : vector<6x128xf32> to vector<1x128xf32>
    %197 = vector.extract_strided_slice %192 {offsets = [4, 0], sizes = [1, 128], strides = [1, 1]} : vector<6x128xf32> to vector<1x128xf32>
    %198 = vector.extract_strided_slice %192 {offsets = [5, 0], sizes = [1, 128], strides = [1, 1]} : vector<6x128xf32> to vector<1x128xf32>
    %cst_81 = arith.constant dense<0.000000e+00> : vector<32x384xf32>
    %199 = tpu.matmul %178, %180, %cst_81 {dimension_numbers = #tpu.dot_dimension_numbers<[1], [0], [0], [1], [0, 0, 1, 1], [], []>} : vector<32x128xf32>, vector<128x384xf32>, vector<32x384xf32> -> vector<32x384xf32>
    %200 = vector.broadcast %182 : vector<1x384xf32> to vector<32x384xf32>
    %201 = arith.addf %199, %200 : vector<32x384xf32>
    %202 = vector.extract_strided_slice %201 {offsets = [0, 0], sizes = [32, 128], strides = [1, 1]} : vector<32x384xf32> to vector<32x128xf32>
    %203 = vector.shape_cast %202 : vector<32x128xf32> to vector<2x16x128xf32>
    %204 = vector.extract_strided_slice %201 {offsets = [0, 128], sizes = [32, 128], strides = [1, 1]} : vector<32x384xf32> to vector<32x128xf32>
    %205 = vector.shape_cast %204 : vector<32x128xf32> to vector<2x16x128xf32>
    %206 = vector.extract_strided_slice %201 {offsets = [0, 256], sizes = [32, 128], strides = [1, 1]} : vector<32x384xf32> to vector<32x128xf32>
    %207 = vector.shape_cast %206 : vector<32x128xf32> to vector<2x16x128xf32>
    %208 = vector.shape_cast %1 : vector<2x16xf32> to vector<2x1x16xf32>
    %209 = vector.extract_strided_slice %203 {offsets = [0, 0, 0], sizes = [2, 16, 32], strides = [1, 1, 1]} : vector<2x16x128xf32> to vector<2x16x32xf32>
    %210 = vector.extract_strided_slice %205 {offsets = [0, 0, 0], sizes = [2, 16, 32], strides = [1, 1, 1]} : vector<2x16x128xf32> to vector<2x16x32xf32>
    "tpu.trace_start"() <{level = 10 : i32, message = "bqd,bkd->bqk"}> : () -> ()
    %cst_82 = arith.constant dense<0.000000e+00> : vector<2x16x16xf32>
    %211 = tpu.matmul %209, %210, %cst_82 {dimension_numbers = #tpu.dot_dimension_numbers<[2], [2], [1], [1], [0, 0, 0, 1, 1, 1], [0], [0]>} : vector<2x16x32xf32>, vector<2x16x32xf32>, vector<2x16x16xf32> -> vector<2x16x16xf32>
    "tpu.trace_stop"() : () -> ()
    %cst_83 = arith.constant 0.176776692 : f32
    %212 = vector.broadcast %cst_83 : f32 to vector<2x16x16xf32>
    %213 = arith.mulf %211, %212 : vector<2x16x16xf32>
    %214 = vector.broadcast %208 : vector<2x1x16xf32> to vector<2x16x16xf32>
    %215 = arith.addf %213, %214 : vector<2x16x16xf32>
    %cst_84 = arith.constant dense<0xFF800000> : vector<2x16xf32>
    %216 = vector.multi_reduction <maximumf>, %215, %cst_84 [2] : vector<2x16x16xf32> to vector<2x16xf32>
    %217 = vector.shape_cast %216 : vector<2x16xf32> to vector<2x16x1xf32>
    %218 = vector.broadcast %217 : vector<2x16x1xf32> to vector<2x16x16xf32>
    %219 = arith.subf %215, %218 : vector<2x16x16xf32>
    %220 = math.exp %219 : vector<2x16x16xf32>
    %cst_85 = arith.constant dense<0.000000e+00> : vector<2x16xf32>
    %221 = vector.multi_reduction <add>, %220, %cst_85 [2] : vector<2x16x16xf32> to vector<2x16xf32>
    %222 = vector.shape_cast %221 : vector<2x16xf32> to vector<2x16x1xf32>
    %223 = tpu.reciprocal %222 {approx = true} : vector<2x16x1xf32> -> vector<2x16x1xf32>
    %224 = vector.broadcast %223 : vector<2x16x1xf32> to vector<2x16x16xf32>
    %225 = arith.mulf %220, %224 : vector<2x16x16xf32>
    %226 = vector.extract_strided_slice %207 {offsets = [0, 0, 0], sizes = [2, 16, 32], strides = [1, 1, 1]} : vector<2x16x128xf32> to vector<2x16x32xf32>
    "tpu.trace_start"() <{level = 10 : i32, message = "bqk,bkd->bqd"}> : () -> ()
    %cst_86 = arith.constant dense<0.000000e+00> : vector<2x16x32xf32>
    %227 = tpu.matmul %225, %226, %cst_86 {dimension_numbers = #tpu.dot_dimension_numbers<[2], [1], [1], [2], [0, 0, 0, 1, 1, 2], [0], [0]>} : vector<2x16x16xf32>, vector<2x16x32xf32>, vector<2x16x32xf32> -> vector<2x16x32xf32>
    "tpu.trace_stop"() : () -> ()
    %228 = vector.shape_cast %227 : vector<2x16x32xf32> to vector<32x32xf32>
    %229 = vector.extract_strided_slice %184 {offsets = [0, 0], sizes = [32, 128], strides = [1, 1]} : vector<128x128xf32> to vector<32x128xf32>
    %cst_87 = arith.constant dense<0.000000e+00> : vector<32x128xf32>
    %230 = tpu.matmul %228, %229, %cst_87 {dimension_numbers = #tpu.dot_dimension_numbers<[1], [0], [0], [1], [0, 0, 1, 1], [], []>} : vector<32x32xf32>, vector<32x128xf32>, vector<32x128xf32> -> vector<32x128xf32>
    %231 = vector.extract_strided_slice %203 {offsets = [0, 0, 32], sizes = [2, 16, 32], strides = [1, 1, 1]} : vector<2x16x128xf32> to vector<2x16x32xf32>
    %232 = vector.extract_strided_slice %205 {offsets = [0, 0, 32], sizes = [2, 16, 32], strides = [1, 1, 1]} : vector<2x16x128xf32> to vector<2x16x32xf32>
    "tpu.trace_start"() <{level = 10 : i32, message = "bqd,bkd->bqk"}> : () -> ()
    %cst_88 = arith.constant dense<0.000000e+00> : vector<2x16x16xf32>
    %233 = tpu.matmul %231, %232, %cst_88 {dimension_numbers = #tpu.dot_dimension_numbers<[2], [2], [1], [1], [0, 0, 0, 1, 1, 1], [0], [0]>} : vector<2x16x32xf32>, vector<2x16x32xf32>, vector<2x16x16xf32> -> vector<2x16x16xf32>
    "tpu.trace_stop"() : () -> ()
    %cst_89 = arith.constant 0.176776692 : f32
    %234 = vector.broadcast %cst_89 : f32 to vector<2x16x16xf32>
    %235 = arith.mulf %233, %234 : vector<2x16x16xf32>
    %236 = vector.broadcast %208 : vector<2x1x16xf32> to vector<2x16x16xf32>
    %237 = arith.addf %235, %236 : vector<2x16x16xf32>
    %cst_90 = arith.constant dense<0xFF800000> : vector<2x16xf32>
    %238 = vector.multi_reduction <maximumf>, %237, %cst_90 [2] : vector<2x16x16xf32> to vector<2x16xf32>
    %239 = vector.shape_cast %238 : vector<2x16xf32> to vector<2x16x1xf32>
    %240 = vector.broadcast %239 : vector<2x16x1xf32> to vector<2x16x16xf32>
    %241 = arith.subf %237, %240 : vector<2x16x16xf32>
    %242 = math.exp %241 : vector<2x16x16xf32>
    %cst_91 = arith.constant dense<0.000000e+00> : vector<2x16xf32>
    %243 = vector.multi_reduction <add>, %242, %cst_91 [2] : vector<2x16x16xf32> to vector<2x16xf32>
    %244 = vector.shape_cast %243 : vector<2x16xf32> to vector<2x16x1xf32>
    %245 = tpu.reciprocal %244 {approx = true} : vector<2x16x1xf32> -> vector<2x16x1xf32>
    %246 = vector.broadcast %245 : vector<2x16x1xf32> to vector<2x16x16xf32>
    %247 = arith.mulf %242, %246 : vector<2x16x16xf32>
    %248 = vector.extract_strided_slice %207 {offsets = [0, 0, 32], sizes = [2, 16, 32], strides = [1, 1, 1]} : vector<2x16x128xf32> to vector<2x16x32xf32>
    "tpu.trace_start"() <{level = 10 : i32, message = "bqk,bkd->bqd"}> : () -> ()
    %cst_92 = arith.constant dense<0.000000e+00> : vector<2x16x32xf32>
    %249 = tpu.matmul %247, %248, %cst_92 {dimension_numbers = #tpu.dot_dimension_numbers<[2], [1], [1], [2], [0, 0, 0, 1, 1, 2], [0], [0]>} : vector<2x16x16xf32>, vector<2x16x32xf32>, vector<2x16x32xf32> -> vector<2x16x32xf32>
    "tpu.trace_stop"() : () -> ()
    %250 = vector.shape_cast %249 : vector<2x16x32xf32> to vector<32x32xf32>
    %251 = vector.extract_strided_slice %184 {offsets = [32, 0], sizes = [32, 128], strides = [1, 1]} : vector<128x128xf32> to vector<32x128xf32>
    %cst_93 = arith.constant dense<0.000000e+00> : vector<32x128xf32>
    %252 = tpu.matmul %250, %251, %cst_93 {dimension_numbers = #tpu.dot_dimension_numbers<[1], [0], [0], [1], [0, 0, 1, 1], [], []>} : vector<32x32xf32>, vector<32x128xf32>, vector<32x128xf32> -> vector<32x128xf32>
    %253 = arith.addf %230, %252 : vector<32x128xf32>
    %254 = vector.extract_strided_slice %203 {offsets = [0, 0, 64], sizes = [2, 16, 32], strides = [1, 1, 1]} : vector<2x16x128xf32> to vector<2x16x32xf32>
    %255 = vector.extract_strided_slice %205 {offsets = [0, 0, 64], sizes = [2, 16, 32], strides = [1, 1, 1]} : vector<2x16x128xf32> to vector<2x16x32xf32>
    "tpu.trace_start"() <{level = 10 : i32, message = "bqd,bkd->bqk"}> : () -> ()
    %cst_94 = arith.constant dense<0.000000e+00> : vector<2x16x16xf32>
    %256 = tpu.matmul %254, %255, %cst_94 {dimension_numbers = #tpu.dot_dimension_numbers<[2], [2], [1], [1], [0, 0, 0, 1, 1, 1], [0], [0]>} : vector<2x16x32xf32>, vector<2x16x32xf32>, vector<2x16x16xf32> -> vector<2x16x16xf32>
    "tpu.trace_stop"() : () -> ()
    %cst_95 = arith.constant 0.176776692 : f32
    %257 = vector.broadcast %cst_95 : f32 to vector<2x16x16xf32>
    %258 = arith.mulf %256, %257 : vector<2x16x16xf32>
    %259 = vector.broadcast %208 : vector<2x1x16xf32> to vector<2x16x16xf32>
    %260 = arith.addf %258, %259 : vector<2x16x16xf32>
    %cst_96 = arith.constant dense<0xFF800000> : vector<2x16xf32>
    %261 = vector.multi_reduction <maximumf>, %260, %cst_96 [2] : vector<2x16x16xf32> to vector<2x16xf32>
    %262 = vector.shape_cast %261 : vector<2x16xf32> to vector<2x16x1xf32>
    %263 = vector.broadcast %262 : vector<2x16x1xf32> to vector<2x16x16xf32>
    %264 = arith.subf %260, %263 : vector<2x16x16xf32>
    %265 = math.exp %264 : vector<2x16x16xf32>
    %cst_97 = arith.constant dense<0.000000e+00> : vector<2x16xf32>
    %266 = vector.multi_reduction <add>, %265, %cst_97 [2] : vector<2x16x16xf32> to vector<2x16xf32>
    %267 = vector.shape_cast %266 : vector<2x16xf32> to vector<2x16x1xf32>
    %268 = tpu.reciprocal %267 {approx = true} : vector<2x16x1xf32> -> vector<2x16x1xf32>
    %269 = vector.broadcast %268 : vector<2x16x1xf32> to vector<2x16x16xf32>
    %270 = arith.mulf %265, %269 : vector<2x16x16xf32>
    %271 = vector.extract_strided_slice %207 {offsets = [0, 0, 64], sizes = [2, 16, 32], strides = [1, 1, 1]} : vector<2x16x128xf32> to vector<2x16x32xf32>
    "tpu.trace_start"() <{level = 10 : i32, message = "bqk,bkd->bqd"}> : () -> ()
    %cst_98 = arith.constant dense<0.000000e+00> : vector<2x16x32xf32>
    %272 = tpu.matmul %270, %271, %cst_98 {dimension_numbers = #tpu.dot_dimension_numbers<[2], [1], [1], [2], [0, 0, 0, 1, 1, 2], [0], [0]>} : vector<2x16x16xf32>, vector<2x16x32xf32>, vector<2x16x32xf32> -> vector<2x16x32xf32>
    "tpu.trace_stop"() : () -> ()
    %273 = vector.shape_cast %272 : vector<2x16x32xf32> to vector<32x32xf32>
    %274 = vector.extract_strided_slice %184 {offsets = [64, 0], sizes = [32, 128], strides = [1, 1]} : vector<128x128xf32> to vector<32x128xf32>
    %cst_99 = arith.constant dense<0.000000e+00> : vector<32x128xf32>
    %275 = tpu.matmul %273, %274, %cst_99 {dimension_numbers = #tpu.dot_dimension_numbers<[1], [0], [0], [1], [0, 0, 1, 1], [], []>} : vector<32x32xf32>, vector<32x128xf32>, vector<32x128xf32> -> vector<32x128xf32>
    %276 = arith.addf %253, %275 : vector<32x128xf32>
    %277 = vector.extract_strided_slice %203 {offsets = [0, 0, 96], sizes = [2, 16, 32], strides = [1, 1, 1]} : vector<2x16x128xf32> to vector<2x16x32xf32>
    %278 = vector.extract_strided_slice %205 {offsets = [0, 0, 96], sizes = [2, 16, 32], strides = [1, 1, 1]} : vector<2x16x128xf32> to vector<2x16x32xf32>
    "tpu.trace_start"() <{level = 10 : i32, message = "bqd,bkd->bqk"}> : () -> ()
    %cst_100 = arith.constant dense<0.000000e+00> : vector<2x16x16xf32>
    %279 = tpu.matmul %277, %278, %cst_100 {dimension_numbers = #tpu.dot_dimension_numbers<[2], [2], [1], [1], [0, 0, 0, 1, 1, 1], [0], [0]>} : vector<2x16x32xf32>, vector<2x16x32xf32>, vector<2x16x16xf32> -> vector<2x16x16xf32>
    "tpu.trace_stop"() : () -> ()
    %cst_101 = arith.constant 0.176776692 : f32
    %280 = vector.broadcast %cst_101 : f32 to vector<2x16x16xf32>
    %281 = arith.mulf %279, %280 : vector<2x16x16xf32>
    %282 = vector.broadcast %208 : vector<2x1x16xf32> to vector<2x16x16xf32>
    %283 = arith.addf %281, %282 : vector<2x16x16xf32>
    %cst_102 = arith.constant dense<0xFF800000> : vector<2x16xf32>
    %284 = vector.multi_reduction <maximumf>, %283, %cst_102 [2] : vector<2x16x16xf32> to vector<2x16xf32>
    %285 = vector.shape_cast %284 : vector<2x16xf32> to vector<2x16x1xf32>
    %286 = vector.broadcast %285 : vector<2x16x1xf32> to vector<2x16x16xf32>
    %287 = arith.subf %283, %286 : vector<2x16x16xf32>
    %288 = math.exp %287 : vector<2x16x16xf32>
    %cst_103 = arith.constant dense<0.000000e+00> : vector<2x16xf32>
    %289 = vector.multi_reduction <add>, %288, %cst_103 [2] : vector<2x16x16xf32> to vector<2x16xf32>
    %290 = vector.shape_cast %289 : vector<2x16xf32> to vector<2x16x1xf32>
    %291 = tpu.reciprocal %290 {approx = true} : vector<2x16x1xf32> -> vector<2x16x1xf32>
    %292 = vector.broadcast %291 : vector<2x16x1xf32> to vector<2x16x16xf32>
    %293 = arith.mulf %288, %292 : vector<2x16x16xf32>
    %294 = vector.extract_strided_slice %207 {offsets = [0, 0, 96], sizes = [2, 16, 32], strides = [1, 1, 1]} : vector<2x16x128xf32> to vector<2x16x32xf32>
    "tpu.trace_start"() <{level = 10 : i32, message = "bqk,bkd->bqd"}> : () -> ()
    %cst_104 = arith.constant dense<0.000000e+00> : vector<2x16x32xf32>
    %295 = tpu.matmul %293, %294, %cst_104 {dimension_numbers = #tpu.dot_dimension_numbers<[2], [1], [1], [2], [0, 0, 0, 1, 1, 2], [0], [0]>} : vector<2x16x16xf32>, vector<2x16x32xf32>, vector<2x16x32xf32> -> vector<2x16x32xf32>
    "tpu.trace_stop"() : () -> ()
    %296 = vector.shape_cast %295 : vector<2x16x32xf32> to vector<32x32xf32>
    %297 = vector.extract_strided_slice %184 {offsets = [96, 0], sizes = [32, 128], strides = [1, 1]} : vector<128x128xf32> to vector<32x128xf32>
    %cst_105 = arith.constant dense<0.000000e+00> : vector<32x128xf32>
    %298 = tpu.matmul %296, %297, %cst_105 {dimension_numbers = #tpu.dot_dimension_numbers<[1], [0], [0], [1], [0, 0, 1, 1], [], []>} : vector<32x32xf32>, vector<32x128xf32>, vector<32x128xf32> -> vector<32x128xf32>
    %299 = arith.addf %276, %298 : vector<32x128xf32>
    %300 = vector.broadcast %193 : vector<1x128xf32> to vector<32x128xf32>
    %301 = arith.addf %299, %300 : vector<32x128xf32>
    %302 = arith.addf %178, %301 : vector<32x128xf32>
    %cst_106 = arith.constant dense<0.000000e+00> : vector<32xf32>
    %303 = vector.multi_reduction <add>, %302, %cst_106 [1] : vector<32x128xf32> to vector<32xf32>
    %304 = vector.shape_cast %303 : vector<32xf32> to vector<32x1xf32>
    %cst_107 = arith.constant 1.280000e+02 : f32
    %305 = vector.broadcast %cst_107 : f32 to vector<32x1xf32>
    %306 = arith.divf %304, %305 : vector<32x1xf32>
    %307 = vector.broadcast %306 : vector<32x1xf32> to vector<32x128xf32>
    %308 = arith.subf %302, %307 : vector<32x128xf32>
    %309 = arith.mulf %308, %308 : vector<32x128xf32>
    %cst_108 = arith.constant dense<0.000000e+00> : vector<32xf32>
    %310 = vector.multi_reduction <add>, %309, %cst_108 [1] : vector<32x128xf32> to vector<32xf32>
    %311 = vector.shape_cast %310 : vector<32xf32> to vector<32x1xf32>
    %cst_109 = arith.constant 1.280000e+02 : f32
    %312 = vector.broadcast %cst_109 : f32 to vector<32x1xf32>
    %313 = arith.divf %311, %312 : vector<32x1xf32>
    %314 = vector.broadcast %306 : vector<32x1xf32> to vector<32x128xf32>
    %315 = arith.subf %302, %314 : vector<32x128xf32>
    %cst_110 = arith.constant 9.99999974E-6 : f32
    %316 = vector.broadcast %cst_110 : f32 to vector<32x1xf32>
    %317 = arith.addf %313, %316 : vector<32x1xf32>
    %318 = math.rsqrt %317 : vector<32x1xf32>
    %319 = vector.broadcast %318 : vector<32x1xf32> to vector<32x128xf32>
    %320 = arith.mulf %315, %319 : vector<32x128xf32>
    %321 = vector.broadcast %194 : vector<1x128xf32> to vector<32x128xf32>
    %322 = arith.mulf %320, %321 : vector<32x128xf32>
    %323 = vector.broadcast %195 : vector<1x128xf32> to vector<32x128xf32>
    %324 = arith.addf %322, %323 : vector<32x128xf32>
    %cst_111 = arith.constant dense<0.000000e+00> : vector<32x256xf32>
    %325 = tpu.matmul %324, %186, %cst_111 {dimension_numbers = #tpu.dot_dimension_numbers<[1], [0], [0], [1], [0, 0, 1, 1], [], []>} : vector<32x128xf32>, vector<128x256xf32>, vector<32x256xf32> -> vector<32x256xf32>
    %326 = vector.broadcast %188 : vector<1x256xf32> to vector<32x256xf32>
    %327 = arith.addf %325, %326 : vector<32x256xf32>
    %cst_112 = arith.constant 0.000000e+00 : f32
    %328 = vector.broadcast %cst_112 : f32 to vector<32x256xf32>
    %329 = arith.maximumf %327, %328 : vector<32x256xf32>
    %cst_113 = arith.constant dense<0.000000e+00> : vector<32x128xf32>
    %330 = tpu.matmul %329, %190, %cst_113 {dimension_numbers = #tpu.dot_dimension_numbers<[1], [0], [0], [1], [0, 0, 1, 1], [], []>} : vector<32x256xf32>, vector<256x128xf32>, vector<32x128xf32> -> vector<32x128xf32>
    %331 = vector.broadcast %196 : vector<1x128xf32> to vector<32x128xf32>
    %332 = arith.addf %330, %331 : vector<32x128xf32>
    %333 = arith.addf %324, %332 : vector<32x128xf32>
    %cst_114 = arith.constant dense<0.000000e+00> : vector<32xf32>
    %334 = vector.multi_reduction <add>, %333, %cst_114 [1] : vector<32x128xf32> to vector<32xf32>
    %335 = vector.shape_cast %334 : vector<32xf32> to vector<32x1xf32>
    %cst_115 = arith.constant 1.280000e+02 : f32
    %336 = vector.broadcast %cst_115 : f32 to vector<32x1xf32>
    %337 = arith.divf %335, %336 : vector<32x1xf32>
    %338 = vector.broadcast %337 : vector<32x1xf32> to vector<32x128xf32>
    %339 = arith.subf %333, %338 : vector<32x128xf32>
    %340 = arith.mulf %339, %339 : vector<32x128xf32>
    %cst_116 = arith.constant dense<0.000000e+00> : vector<32xf32>
    %341 = vector.multi_reduction <add>, %340, %cst_116 [1] : vector<32x128xf32> to vector<32xf32>
    %342 = vector.shape_cast %341 : vector<32xf32> to vector<32x1xf32>
    %cst_117 = arith.constant 1.280000e+02 : f32
    %343 = vector.broadcast %cst_117 : f32 to vector<32x1xf32>
    %344 = arith.divf %342, %343 : vector<32x1xf32>
    %345 = vector.broadcast %337 : vector<32x1xf32> to vector<32x128xf32>
    %346 = arith.subf %333, %345 : vector<32x128xf32>
    %cst_118 = arith.constant 9.99999974E-6 : f32
    %347 = vector.broadcast %cst_118 : f32 to vector<32x1xf32>
    %348 = arith.addf %344, %347 : vector<32x1xf32>
    %349 = math.rsqrt %348 : vector<32x1xf32>
    %350 = vector.broadcast %349 : vector<32x1xf32> to vector<32x128xf32>
    %351 = arith.mulf %346, %350 : vector<32x128xf32>
    %352 = vector.broadcast %197 : vector<1x128xf32> to vector<32x128xf32>
    %353 = arith.mulf %351, %352 : vector<32x128xf32>
    %354 = vector.broadcast %198 : vector<1x128xf32> to vector<32x128xf32>
    %355 = arith.addf %353, %354 : vector<32x128xf32>
    %c0_119 = arith.constant 0 : index
    %c0_120 = arith.constant 0 : index
    %c0_121 = arith.constant 0 : index
    %356 = vector.load %arg2[%c0_119, %c0_120, %c0_121] : memref<2x8x16xf32, #tpu.memory_space<vmem>>, vector<2x8x16xf32>
    %357 = vector.shape_cast %355 : vector<32x128xf32> to vector<2x16x128xf32>
    "tpu.trace_start"() <{level = 10 : i32, message = "bns,bsd->bnd"}> : () -> ()
    %cst_122 = arith.constant dense<0.000000e+00> : vector<2x8x128xf32>
    %358 = tpu.matmul %356, %357, %cst_122 {dimension_numbers = #tpu.dot_dimension_numbers<[2], [1], [1], [2], [0, 0, 0, 1, 1, 2], [0], [0]>} : vector<2x8x16xf32>, vector<2x16x128xf32>, vector<2x8x128xf32> -> vector<2x8x128xf32>
    "tpu.trace_stop"() : () -> ()
    %359 = vector.shape_cast %358 : vector<2x8x128xf32> to vector<16x128xf32>
    %c0_123 = arith.constant 0 : index
    %c0_124 = arith.constant 0 : index
    %360 = vector.load %arg3[%c0_123, %c0_124] : memref<2x8xf32, #tpu.memory_space<vmem>>, vector<2x8xf32>
    %c2 = arith.constant 2 : index
    %c0_125 = arith.constant 0 : index
    %c0_126 = arith.constant 0 : index
    %361 = vector.load %arg4[%c2, %c0_125, %c0_126] : memref<4x128x384xf32, #tpu.memory_space<vmem>>, vector<1x128x384xf32>
    %362 = vector.shape_cast %361 : vector<1x128x384xf32> to vector<128x384xf32>
    %c2_127 = arith.constant 2 : index
    %c0_128 = arith.constant 0 : index
    %c0_129 = arith.constant 0 : index
    %363 = vector.load %arg5[%c2_127, %c0_128, %c0_129] : memref<4x1x384xf32, #tpu.memory_space<vmem>>, vector<1x1x384xf32>
    %364 = vector.shape_cast %363 : vector<1x1x384xf32> to vector<1x384xf32>
    %c2_130 = arith.constant 2 : index
    %c0_131 = arith.constant 0 : index
    %c0_132 = arith.constant 0 : index
    %365 = vector.load %arg6[%c2_130, %c0_131, %c0_132] : memref<4x128x128xf32, #tpu.memory_space<vmem>>, vector<1x128x128xf32>
    %366 = vector.shape_cast %365 : vector<1x128x128xf32> to vector<128x128xf32>
    %c2_133 = arith.constant 2 : index
    %c0_134 = arith.constant 0 : index
    %c0_135 = arith.constant 0 : index
    %367 = vector.load %arg7[%c2_133, %c0_134, %c0_135] : memref<4x128x256xf32, #tpu.memory_space<vmem>>, vector<1x128x256xf32>
    %368 = vector.shape_cast %367 : vector<1x128x256xf32> to vector<128x256xf32>
    %c2_136 = arith.constant 2 : index
    %c0_137 = arith.constant 0 : index
    %c0_138 = arith.constant 0 : index
    %369 = vector.load %arg8[%c2_136, %c0_137, %c0_138] : memref<4x1x256xf32, #tpu.memory_space<vmem>>, vector<1x1x256xf32>
    %370 = vector.shape_cast %369 : vector<1x1x256xf32> to vector<1x256xf32>
    %c2_139 = arith.constant 2 : index
    %c0_140 = arith.constant 0 : index
    %c0_141 = arith.constant 0 : index
    %371 = vector.load %arg9[%c2_139, %c0_140, %c0_141] : memref<4x256x128xf32, #tpu.memory_space<vmem>>, vector<1x256x128xf32>
    %372 = vector.shape_cast %371 : vector<1x256x128xf32> to vector<256x128xf32>
    %c2_142 = arith.constant 2 : index
    %c0_143 = arith.constant 0 : index
    %c0_144 = arith.constant 0 : index
    %373 = vector.load %arg10[%c2_142, %c0_143, %c0_144] : memref<4x6x128xf32, #tpu.memory_space<vmem>>, vector<1x6x128xf32>
    %374 = vector.shape_cast %373 : vector<1x6x128xf32> to vector<6x128xf32>
    %375 = vector.extract_strided_slice %374 {offsets = [0, 0], sizes = [1, 128], strides = [1, 1]} : vector<6x128xf32> to vector<1x128xf32>
    %376 = vector.extract_strided_slice %374 {offsets = [1, 0], sizes = [1, 128], strides = [1, 1]} : vector<6x128xf32> to vector<1x128xf32>
    %377 = vector.extract_strided_slice %374 {offsets = [2, 0], sizes = [1, 128], strides = [1, 1]} : vector<6x128xf32> to vector<1x128xf32>
    %378 = vector.extract_strided_slice %374 {offsets = [3, 0], sizes = [1, 128], strides = [1, 1]} : vector<6x128xf32> to vector<1x128xf32>
    %379 = vector.extract_strided_slice %374 {offsets = [4, 0], sizes = [1, 128], strides = [1, 1]} : vector<6x128xf32> to vector<1x128xf32>
    %380 = vector.extract_strided_slice %374 {offsets = [5, 0], sizes = [1, 128], strides = [1, 1]} : vector<6x128xf32> to vector<1x128xf32>
    %cst_145 = arith.constant dense<0.000000e+00> : vector<16x384xf32>
    %381 = tpu.matmul %359, %362, %cst_145 {dimension_numbers = #tpu.dot_dimension_numbers<[1], [0], [0], [1], [0, 0, 1, 1], [], []>} : vector<16x128xf32>, vector<128x384xf32>, vector<16x384xf32> -> vector<16x384xf32>
    %382 = vector.broadcast %364 : vector<1x384xf32> to vector<16x384xf32>
    %383 = arith.addf %381, %382 : vector<16x384xf32>
    %384 = vector.extract_strided_slice %383 {offsets = [0, 0], sizes = [16, 128], strides = [1, 1]} : vector<16x384xf32> to vector<16x128xf32>
    %385 = vector.shape_cast %384 : vector<16x128xf32> to vector<2x8x128xf32>
    %386 = vector.extract_strided_slice %383 {offsets = [0, 128], sizes = [16, 128], strides = [1, 1]} : vector<16x384xf32> to vector<16x128xf32>
    %387 = vector.shape_cast %386 : vector<16x128xf32> to vector<2x8x128xf32>
    %388 = vector.extract_strided_slice %383 {offsets = [0, 256], sizes = [16, 128], strides = [1, 1]} : vector<16x384xf32> to vector<16x128xf32>
    %389 = vector.shape_cast %388 : vector<16x128xf32> to vector<2x8x128xf32>
    %390 = vector.shape_cast %360 : vector<2x8xf32> to vector<2x1x8xf32>
    %391 = vector.extract_strided_slice %385 {offsets = [0, 0, 0], sizes = [2, 8, 32], strides = [1, 1, 1]} : vector<2x8x128xf32> to vector<2x8x32xf32>
    %392 = vector.extract_strided_slice %387 {offsets = [0, 0, 0], sizes = [2, 8, 32], strides = [1, 1, 1]} : vector<2x8x128xf32> to vector<2x8x32xf32>
    "tpu.trace_start"() <{level = 10 : i32, message = "bqd,bkd->bqk"}> : () -> ()
    %cst_146 = arith.constant dense<0.000000e+00> : vector<2x8x8xf32>
    %393 = tpu.matmul %391, %392, %cst_146 {dimension_numbers = #tpu.dot_dimension_numbers<[2], [2], [1], [1], [0, 0, 0, 1, 1, 1], [0], [0]>} : vector<2x8x32xf32>, vector<2x8x32xf32>, vector<2x8x8xf32> -> vector<2x8x8xf32>
    "tpu.trace_stop"() : () -> ()
    %cst_147 = arith.constant 0.176776692 : f32
    %394 = vector.broadcast %cst_147 : f32 to vector<2x8x8xf32>
    %395 = arith.mulf %393, %394 : vector<2x8x8xf32>
    %396 = vector.broadcast %390 : vector<2x1x8xf32> to vector<2x8x8xf32>
    %397 = arith.addf %395, %396 : vector<2x8x8xf32>
    %cst_148 = arith.constant dense<0xFF800000> : vector<2x8xf32>
    %398 = vector.multi_reduction <maximumf>, %397, %cst_148 [2] : vector<2x8x8xf32> to vector<2x8xf32>
    %399 = vector.shape_cast %398 : vector<2x8xf32> to vector<2x8x1xf32>
    %400 = vector.broadcast %399 : vector<2x8x1xf32> to vector<2x8x8xf32>
    %401 = arith.subf %397, %400 : vector<2x8x8xf32>
    %402 = math.exp %401 : vector<2x8x8xf32>
    %cst_149 = arith.constant dense<0.000000e+00> : vector<2x8xf32>
    %403 = vector.multi_reduction <add>, %402, %cst_149 [2] : vector<2x8x8xf32> to vector<2x8xf32>
    %404 = vector.shape_cast %403 : vector<2x8xf32> to vector<2x8x1xf32>
    %405 = tpu.reciprocal %404 {approx = true} : vector<2x8x1xf32> -> vector<2x8x1xf32>
    %406 = vector.broadcast %405 : vector<2x8x1xf32> to vector<2x8x8xf32>
    %407 = arith.mulf %402, %406 : vector<2x8x8xf32>
    %408 = vector.extract_strided_slice %389 {offsets = [0, 0, 0], sizes = [2, 8, 32], strides = [1, 1, 1]} : vector<2x8x128xf32> to vector<2x8x32xf32>
    "tpu.trace_start"() <{level = 10 : i32, message = "bqk,bkd->bqd"}> : () -> ()
    %cst_150 = arith.constant dense<0.000000e+00> : vector<2x8x32xf32>
    %409 = tpu.matmul %407, %408, %cst_150 {dimension_numbers = #tpu.dot_dimension_numbers<[2], [1], [1], [2], [0, 0, 0, 1, 1, 2], [0], [0]>} : vector<2x8x8xf32>, vector<2x8x32xf32>, vector<2x8x32xf32> -> vector<2x8x32xf32>
    "tpu.trace_stop"() : () -> ()
    %410 = vector.shape_cast %409 : vector<2x8x32xf32> to vector<16x32xf32>
    %411 = vector.extract_strided_slice %366 {offsets = [0, 0], sizes = [32, 128], strides = [1, 1]} : vector<128x128xf32> to vector<32x128xf32>
    %cst_151 = arith.constant dense<0.000000e+00> : vector<16x128xf32>
    %412 = tpu.matmul %410, %411, %cst_151 {dimension_numbers = #tpu.dot_dimension_numbers<[1], [0], [0], [1], [0, 0, 1, 1], [], []>} : vector<16x32xf32>, vector<32x128xf32>, vector<16x128xf32> -> vector<16x128xf32>
    %413 = vector.extract_strided_slice %385 {offsets = [0, 0, 32], sizes = [2, 8, 32], strides = [1, 1, 1]} : vector<2x8x128xf32> to vector<2x8x32xf32>
    %414 = vector.extract_strided_slice %387 {offsets = [0, 0, 32], sizes = [2, 8, 32], strides = [1, 1, 1]} : vector<2x8x128xf32> to vector<2x8x32xf32>
    "tpu.trace_start"() <{level = 10 : i32, message = "bqd,bkd->bqk"}> : () -> ()
    %cst_152 = arith.constant dense<0.000000e+00> : vector<2x8x8xf32>
    %415 = tpu.matmul %413, %414, %cst_152 {dimension_numbers = #tpu.dot_dimension_numbers<[2], [2], [1], [1], [0, 0, 0, 1, 1, 1], [0], [0]>} : vector<2x8x32xf32>, vector<2x8x32xf32>, vector<2x8x8xf32> -> vector<2x8x8xf32>
    "tpu.trace_stop"() : () -> ()
    %cst_153 = arith.constant 0.176776692 : f32
    %416 = vector.broadcast %cst_153 : f32 to vector<2x8x8xf32>
    %417 = arith.mulf %415, %416 : vector<2x8x8xf32>
    %418 = vector.broadcast %390 : vector<2x1x8xf32> to vector<2x8x8xf32>
    %419 = arith.addf %417, %418 : vector<2x8x8xf32>
    %cst_154 = arith.constant dense<0xFF800000> : vector<2x8xf32>
    %420 = vector.multi_reduction <maximumf>, %419, %cst_154 [2] : vector<2x8x8xf32> to vector<2x8xf32>
    %421 = vector.shape_cast %420 : vector<2x8xf32> to vector<2x8x1xf32>
    %422 = vector.broadcast %421 : vector<2x8x1xf32> to vector<2x8x8xf32>
    %423 = arith.subf %419, %422 : vector<2x8x8xf32>
    %424 = math.exp %423 : vector<2x8x8xf32>
    %cst_155 = arith.constant dense<0.000000e+00> : vector<2x8xf32>
    %425 = vector.multi_reduction <add>, %424, %cst_155 [2] : vector<2x8x8xf32> to vector<2x8xf32>
    %426 = vector.shape_cast %425 : vector<2x8xf32> to vector<2x8x1xf32>
    %427 = tpu.reciprocal %426 {approx = true} : vector<2x8x1xf32> -> vector<2x8x1xf32>
    %428 = vector.broadcast %427 : vector<2x8x1xf32> to vector<2x8x8xf32>
    %429 = arith.mulf %424, %428 : vector<2x8x8xf32>
    %430 = vector.extract_strided_slice %389 {offsets = [0, 0, 32], sizes = [2, 8, 32], strides = [1, 1, 1]} : vector<2x8x128xf32> to vector<2x8x32xf32>
    "tpu.trace_start"() <{level = 10 : i32, message = "bqk,bkd->bqd"}> : () -> ()
    %cst_156 = arith.constant dense<0.000000e+00> : vector<2x8x32xf32>
    %431 = tpu.matmul %429, %430, %cst_156 {dimension_numbers = #tpu.dot_dimension_numbers<[2], [1], [1], [2], [0, 0, 0, 1, 1, 2], [0], [0]>} : vector<2x8x8xf32>, vector<2x8x32xf32>, vector<2x8x32xf32> -> vector<2x8x32xf32>
    "tpu.trace_stop"() : () -> ()
    %432 = vector.shape_cast %431 : vector<2x8x32xf32> to vector<16x32xf32>
    %433 = vector.extract_strided_slice %366 {offsets = [32, 0], sizes = [32, 128], strides = [1, 1]} : vector<128x128xf32> to vector<32x128xf32>
    %cst_157 = arith.constant dense<0.000000e+00> : vector<16x128xf32>
    %434 = tpu.matmul %432, %433, %cst_157 {dimension_numbers = #tpu.dot_dimension_numbers<[1], [0], [0], [1], [0, 0, 1, 1], [], []>} : vector<16x32xf32>, vector<32x128xf32>, vector<16x128xf32> -> vector<16x128xf32>
    %435 = arith.addf %412, %434 : vector<16x128xf32>
    %436 = vector.extract_strided_slice %385 {offsets = [0, 0, 64], sizes = [2, 8, 32], strides = [1, 1, 1]} : vector<2x8x128xf32> to vector<2x8x32xf32>
    %437 = vector.extract_strided_slice %387 {offsets = [0, 0, 64], sizes = [2, 8, 32], strides = [1, 1, 1]} : vector<2x8x128xf32> to vector<2x8x32xf32>
    "tpu.trace_start"() <{level = 10 : i32, message = "bqd,bkd->bqk"}> : () -> ()
    %cst_158 = arith.constant dense<0.000000e+00> : vector<2x8x8xf32>
    %438 = tpu.matmul %436, %437, %cst_158 {dimension_numbers = #tpu.dot_dimension_numbers<[2], [2], [1], [1], [0, 0, 0, 1, 1, 1], [0], [0]>} : vector<2x8x32xf32>, vector<2x8x32xf32>, vector<2x8x8xf32> -> vector<2x8x8xf32>
    "tpu.trace_stop"() : () -> ()
    %cst_159 = arith.constant 0.176776692 : f32
    %439 = vector.broadcast %cst_159 : f32 to vector<2x8x8xf32>
    %440 = arith.mulf %438, %439 : vector<2x8x8xf32>
    %441 = vector.broadcast %390 : vector<2x1x8xf32> to vector<2x8x8xf32>
    %442 = arith.addf %440, %441 : vector<2x8x8xf32>
    %cst_160 = arith.constant dense<0xFF800000> : vector<2x8xf32>
    %443 = vector.multi_reduction <maximumf>, %442, %cst_160 [2] : vector<2x8x8xf32> to vector<2x8xf32>
    %444 = vector.shape_cast %443 : vector<2x8xf32> to vector<2x8x1xf32>
    %445 = vector.broadcast %444 : vector<2x8x1xf32> to vector<2x8x8xf32>
    %446 = arith.subf %442, %445 : vector<2x8x8xf32>
    %447 = math.exp %446 : vector<2x8x8xf32>
    %cst_161 = arith.constant dense<0.000000e+00> : vector<2x8xf32>
    %448 = vector.multi_reduction <add>, %447, %cst_161 [2] : vector<2x8x8xf32> to vector<2x8xf32>
    %449 = vector.shape_cast %448 : vector<2x8xf32> to vector<2x8x1xf32>
    %450 = tpu.reciprocal %449 {approx = true} : vector<2x8x1xf32> -> vector<2x8x1xf32>
    %451 = vector.broadcast %450 : vector<2x8x1xf32> to vector<2x8x8xf32>
    %452 = arith.mulf %447, %451 : vector<2x8x8xf32>
    %453 = vector.extract_strided_slice %389 {offsets = [0, 0, 64], sizes = [2, 8, 32], strides = [1, 1, 1]} : vector<2x8x128xf32> to vector<2x8x32xf32>
    "tpu.trace_start"() <{level = 10 : i32, message = "bqk,bkd->bqd"}> : () -> ()
    %cst_162 = arith.constant dense<0.000000e+00> : vector<2x8x32xf32>
    %454 = tpu.matmul %452, %453, %cst_162 {dimension_numbers = #tpu.dot_dimension_numbers<[2], [1], [1], [2], [0, 0, 0, 1, 1, 2], [0], [0]>} : vector<2x8x8xf32>, vector<2x8x32xf32>, vector<2x8x32xf32> -> vector<2x8x32xf32>
    "tpu.trace_stop"() : () -> ()
    %455 = vector.shape_cast %454 : vector<2x8x32xf32> to vector<16x32xf32>
    %456 = vector.extract_strided_slice %366 {offsets = [64, 0], sizes = [32, 128], strides = [1, 1]} : vector<128x128xf32> to vector<32x128xf32>
    %cst_163 = arith.constant dense<0.000000e+00> : vector<16x128xf32>
    %457 = tpu.matmul %455, %456, %cst_163 {dimension_numbers = #tpu.dot_dimension_numbers<[1], [0], [0], [1], [0, 0, 1, 1], [], []>} : vector<16x32xf32>, vector<32x128xf32>, vector<16x128xf32> -> vector<16x128xf32>
    %458 = arith.addf %435, %457 : vector<16x128xf32>
    %459 = vector.extract_strided_slice %385 {offsets = [0, 0, 96], sizes = [2, 8, 32], strides = [1, 1, 1]} : vector<2x8x128xf32> to vector<2x8x32xf32>
    %460 = vector.extract_strided_slice %387 {offsets = [0, 0, 96], sizes = [2, 8, 32], strides = [1, 1, 1]} : vector<2x8x128xf32> to vector<2x8x32xf32>
    "tpu.trace_start"() <{level = 10 : i32, message = "bqd,bkd->bqk"}> : () -> ()
    %cst_164 = arith.constant dense<0.000000e+00> : vector<2x8x8xf32>
    %461 = tpu.matmul %459, %460, %cst_164 {dimension_numbers = #tpu.dot_dimension_numbers<[2], [2], [1], [1], [0, 0, 0, 1, 1, 1], [0], [0]>} : vector<2x8x32xf32>, vector<2x8x32xf32>, vector<2x8x8xf32> -> vector<2x8x8xf32>
    "tpu.trace_stop"() : () -> ()
    %cst_165 = arith.constant 0.176776692 : f32
    %462 = vector.broadcast %cst_165 : f32 to vector<2x8x8xf32>
    %463 = arith.mulf %461, %462 : vector<2x8x8xf32>
    %464 = vector.broadcast %390 : vector<2x1x8xf32> to vector<2x8x8xf32>
    %465 = arith.addf %463, %464 : vector<2x8x8xf32>
    %cst_166 = arith.constant dense<0xFF800000> : vector<2x8xf32>
    %466 = vector.multi_reduction <maximumf>, %465, %cst_166 [2] : vector<2x8x8xf32> to vector<2x8xf32>
    %467 = vector.shape_cast %466 : vector<2x8xf32> to vector<2x8x1xf32>
    %468 = vector.broadcast %467 : vector<2x8x1xf32> to vector<2x8x8xf32>
    %469 = arith.subf %465, %468 : vector<2x8x8xf32>
    %470 = math.exp %469 : vector<2x8x8xf32>
    %cst_167 = arith.constant dense<0.000000e+00> : vector<2x8xf32>
    %471 = vector.multi_reduction <add>, %470, %cst_167 [2] : vector<2x8x8xf32> to vector<2x8xf32>
    %472 = vector.shape_cast %471 : vector<2x8xf32> to vector<2x8x1xf32>
    %473 = tpu.reciprocal %472 {approx = true} : vector<2x8x1xf32> -> vector<2x8x1xf32>
    %474 = vector.broadcast %473 : vector<2x8x1xf32> to vector<2x8x8xf32>
    %475 = arith.mulf %470, %474 : vector<2x8x8xf32>
    %476 = vector.extract_strided_slice %389 {offsets = [0, 0, 96], sizes = [2, 8, 32], strides = [1, 1, 1]} : vector<2x8x128xf32> to vector<2x8x32xf32>
    "tpu.trace_start"() <{level = 10 : i32, message = "bqk,bkd->bqd"}> : () -> ()
    %cst_168 = arith.constant dense<0.000000e+00> : vector<2x8x32xf32>
    %477 = tpu.matmul %475, %476, %cst_168 {dimension_numbers = #tpu.dot_dimension_numbers<[2], [1], [1], [2], [0, 0, 0, 1, 1, 2], [0], [0]>} : vector<2x8x8xf32>, vector<2x8x32xf32>, vector<2x8x32xf32> -> vector<2x8x32xf32>
    "tpu.trace_stop"() : () -> ()
    %478 = vector.shape_cast %477 : vector<2x8x32xf32> to vector<16x32xf32>
    %479 = vector.extract_strided_slice %366 {offsets = [96, 0], sizes = [32, 128], strides = [1, 1]} : vector<128x128xf32> to vector<32x128xf32>
    %cst_169 = arith.constant dense<0.000000e+00> : vector<16x128xf32>
    %480 = tpu.matmul %478, %479, %cst_169 {dimension_numbers = #tpu.dot_dimension_numbers<[1], [0], [0], [1], [0, 0, 1, 1], [], []>} : vector<16x32xf32>, vector<32x128xf32>, vector<16x128xf32> -> vector<16x128xf32>
    %481 = arith.addf %458, %480 : vector<16x128xf32>
    %482 = vector.broadcast %375 : vector<1x128xf32> to vector<16x128xf32>
    %483 = arith.addf %481, %482 : vector<16x128xf32>
    %484 = arith.addf %359, %483 : vector<16x128xf32>
    %cst_170 = arith.constant dense<0.000000e+00> : vector<16xf32>
    %485 = vector.multi_reduction <add>, %484, %cst_170 [1] : vector<16x128xf32> to vector<16xf32>
    %486 = vector.shape_cast %485 : vector<16xf32> to vector<16x1xf32>
    %cst_171 = arith.constant 1.280000e+02 : f32
    %487 = vector.broadcast %cst_171 : f32 to vector<16x1xf32>
    %488 = arith.divf %486, %487 : vector<16x1xf32>
    %489 = vector.broadcast %488 : vector<16x1xf32> to vector<16x128xf32>
    %490 = arith.subf %484, %489 : vector<16x128xf32>
    %491 = arith.mulf %490, %490 : vector<16x128xf32>
    %cst_172 = arith.constant dense<0.000000e+00> : vector<16xf32>
    %492 = vector.multi_reduction <add>, %491, %cst_172 [1] : vector<16x128xf32> to vector<16xf32>
    %493 = vector.shape_cast %492 : vector<16xf32> to vector<16x1xf32>
    %cst_173 = arith.constant 1.280000e+02 : f32
    %494 = vector.broadcast %cst_173 : f32 to vector<16x1xf32>
    %495 = arith.divf %493, %494 : vector<16x1xf32>
    %496 = vector.broadcast %488 : vector<16x1xf32> to vector<16x128xf32>
    %497 = arith.subf %484, %496 : vector<16x128xf32>
    %cst_174 = arith.constant 9.99999974E-6 : f32
    %498 = vector.broadcast %cst_174 : f32 to vector<16x1xf32>
    %499 = arith.addf %495, %498 : vector<16x1xf32>
    %500 = math.rsqrt %499 : vector<16x1xf32>
    %501 = vector.broadcast %500 : vector<16x1xf32> to vector<16x128xf32>
    %502 = arith.mulf %497, %501 : vector<16x128xf32>
    %503 = vector.broadcast %376 : vector<1x128xf32> to vector<16x128xf32>
    %504 = arith.mulf %502, %503 : vector<16x128xf32>
    %505 = vector.broadcast %377 : vector<1x128xf32> to vector<16x128xf32>
    %506 = arith.addf %504, %505 : vector<16x128xf32>
    %cst_175 = arith.constant dense<0.000000e+00> : vector<16x256xf32>
    %507 = tpu.matmul %506, %368, %cst_175 {dimension_numbers = #tpu.dot_dimension_numbers<[1], [0], [0], [1], [0, 0, 1, 1], [], []>} : vector<16x128xf32>, vector<128x256xf32>, vector<16x256xf32> -> vector<16x256xf32>
    %508 = vector.broadcast %370 : vector<1x256xf32> to vector<16x256xf32>
    %509 = arith.addf %507, %508 : vector<16x256xf32>
    %cst_176 = arith.constant 0.000000e+00 : f32
    %510 = vector.broadcast %cst_176 : f32 to vector<16x256xf32>
    %511 = arith.maximumf %509, %510 : vector<16x256xf32>
    %cst_177 = arith.constant dense<0.000000e+00> : vector<16x128xf32>
    %512 = tpu.matmul %511, %372, %cst_177 {dimension_numbers = #tpu.dot_dimension_numbers<[1], [0], [0], [1], [0, 0, 1, 1], [], []>} : vector<16x256xf32>, vector<256x128xf32>, vector<16x128xf32> -> vector<16x128xf32>
    %513 = vector.broadcast %378 : vector<1x128xf32> to vector<16x128xf32>
    %514 = arith.addf %512, %513 : vector<16x128xf32>
    %515 = arith.addf %506, %514 : vector<16x128xf32>
    %cst_178 = arith.constant dense<0.000000e+00> : vector<16xf32>
    %516 = vector.multi_reduction <add>, %515, %cst_178 [1] : vector<16x128xf32> to vector<16xf32>
    %517 = vector.shape_cast %516 : vector<16xf32> to vector<16x1xf32>
    %cst_179 = arith.constant 1.280000e+02 : f32
    %518 = vector.broadcast %cst_179 : f32 to vector<16x1xf32>
    %519 = arith.divf %517, %518 : vector<16x1xf32>
    %520 = vector.broadcast %519 : vector<16x1xf32> to vector<16x128xf32>
    %521 = arith.subf %515, %520 : vector<16x128xf32>
    %522 = arith.mulf %521, %521 : vector<16x128xf32>
    %cst_180 = arith.constant dense<0.000000e+00> : vector<16xf32>
    %523 = vector.multi_reduction <add>, %522, %cst_180 [1] : vector<16x128xf32> to vector<16xf32>
    %524 = vector.shape_cast %523 : vector<16xf32> to vector<16x1xf32>
    %cst_181 = arith.constant 1.280000e+02 : f32
    %525 = vector.broadcast %cst_181 : f32 to vector<16x1xf32>
    %526 = arith.divf %524, %525 : vector<16x1xf32>
    %527 = vector.broadcast %519 : vector<16x1xf32> to vector<16x128xf32>
    %528 = arith.subf %515, %527 : vector<16x128xf32>
    %cst_182 = arith.constant 9.99999974E-6 : f32
    %529 = vector.broadcast %cst_182 : f32 to vector<16x1xf32>
    %530 = arith.addf %526, %529 : vector<16x1xf32>
    %531 = math.rsqrt %530 : vector<16x1xf32>
    %532 = vector.broadcast %531 : vector<16x1xf32> to vector<16x128xf32>
    %533 = arith.mulf %528, %532 : vector<16x128xf32>
    %534 = vector.broadcast %379 : vector<1x128xf32> to vector<16x128xf32>
    %535 = arith.mulf %533, %534 : vector<16x128xf32>
    %536 = vector.broadcast %380 : vector<1x128xf32> to vector<16x128xf32>
    %537 = arith.addf %535, %536 : vector<16x128xf32>
    %c3 = arith.constant 3 : index
    %c0_183 = arith.constant 0 : index
    %c0_184 = arith.constant 0 : index
    %538 = vector.load %arg4[%c3, %c0_183, %c0_184] : memref<4x128x384xf32, #tpu.memory_space<vmem>>, vector<1x128x384xf32>
    %539 = vector.shape_cast %538 : vector<1x128x384xf32> to vector<128x384xf32>
    %c3_185 = arith.constant 3 : index
    %c0_186 = arith.constant 0 : index
    %c0_187 = arith.constant 0 : index
    %540 = vector.load %arg5[%c3_185, %c0_186, %c0_187] : memref<4x1x384xf32, #tpu.memory_space<vmem>>, vector<1x1x384xf32>
    %541 = vector.shape_cast %540 : vector<1x1x384xf32> to vector<1x384xf32>
    %c3_188 = arith.constant 3 : index
    %c0_189 = arith.constant 0 : index
    %c0_190 = arith.constant 0 : index
    %542 = vector.load %arg6[%c3_188, %c0_189, %c0_190] : memref<4x128x128xf32, #tpu.memory_space<vmem>>, vector<1x128x128xf32>
    %543 = vector.shape_cast %542 : vector<1x128x128xf32> to vector<128x128xf32>
    %c3_191 = arith.constant 3 : index
    %c0_192 = arith.constant 0 : index
    %c0_193 = arith.constant 0 : index
    %544 = vector.load %arg7[%c3_191, %c0_192, %c0_193] : memref<4x128x256xf32, #tpu.memory_space<vmem>>, vector<1x128x256xf32>
    %545 = vector.shape_cast %544 : vector<1x128x256xf32> to vector<128x256xf32>
    %c3_194 = arith.constant 3 : index
    %c0_195 = arith.constant 0 : index
    %c0_196 = arith.constant 0 : index
    %546 = vector.load %arg8[%c3_194, %c0_195, %c0_196] : memref<4x1x256xf32, #tpu.memory_space<vmem>>, vector<1x1x256xf32>
    %547 = vector.shape_cast %546 : vector<1x1x256xf32> to vector<1x256xf32>
    %c3_197 = arith.constant 3 : index
    %c0_198 = arith.constant 0 : index
    %c0_199 = arith.constant 0 : index
    %548 = vector.load %arg9[%c3_197, %c0_198, %c0_199] : memref<4x256x128xf32, #tpu.memory_space<vmem>>, vector<1x256x128xf32>
    %549 = vector.shape_cast %548 : vector<1x256x128xf32> to vector<256x128xf32>
    %c3_200 = arith.constant 3 : index
    %c0_201 = arith.constant 0 : index
    %c0_202 = arith.constant 0 : index
    %550 = vector.load %arg10[%c3_200, %c0_201, %c0_202] : memref<4x6x128xf32, #tpu.memory_space<vmem>>, vector<1x6x128xf32>
    %551 = vector.shape_cast %550 : vector<1x6x128xf32> to vector<6x128xf32>
    %552 = vector.extract_strided_slice %551 {offsets = [0, 0], sizes = [1, 128], strides = [1, 1]} : vector<6x128xf32> to vector<1x128xf32>
    %553 = vector.extract_strided_slice %551 {offsets = [1, 0], sizes = [1, 128], strides = [1, 1]} : vector<6x128xf32> to vector<1x128xf32>
    %554 = vector.extract_strided_slice %551 {offsets = [2, 0], sizes = [1, 128], strides = [1, 1]} : vector<6x128xf32> to vector<1x128xf32>
    %555 = vector.extract_strided_slice %551 {offsets = [3, 0], sizes = [1, 128], strides = [1, 1]} : vector<6x128xf32> to vector<1x128xf32>
    %556 = vector.extract_strided_slice %551 {offsets = [4, 0], sizes = [1, 128], strides = [1, 1]} : vector<6x128xf32> to vector<1x128xf32>
    %557 = vector.extract_strided_slice %551 {offsets = [5, 0], sizes = [1, 128], strides = [1, 1]} : vector<6x128xf32> to vector<1x128xf32>
    %cst_203 = arith.constant dense<0.000000e+00> : vector<16x384xf32>
    %558 = tpu.matmul %537, %539, %cst_203 {dimension_numbers = #tpu.dot_dimension_numbers<[1], [0], [0], [1], [0, 0, 1, 1], [], []>} : vector<16x128xf32>, vector<128x384xf32>, vector<16x384xf32> -> vector<16x384xf32>
    %559 = vector.broadcast %541 : vector<1x384xf32> to vector<16x384xf32>
    %560 = arith.addf %558, %559 : vector<16x384xf32>
    %561 = vector.extract_strided_slice %560 {offsets = [0, 0], sizes = [16, 128], strides = [1, 1]} : vector<16x384xf32> to vector<16x128xf32>
    %562 = vector.shape_cast %561 : vector<16x128xf32> to vector<2x8x128xf32>
    %563 = vector.extract_strided_slice %560 {offsets = [0, 128], sizes = [16, 128], strides = [1, 1]} : vector<16x384xf32> to vector<16x128xf32>
    %564 = vector.shape_cast %563 : vector<16x128xf32> to vector<2x8x128xf32>
    %565 = vector.extract_strided_slice %560 {offsets = [0, 256], sizes = [16, 128], strides = [1, 1]} : vector<16x384xf32> to vector<16x128xf32>
    %566 = vector.shape_cast %565 : vector<16x128xf32> to vector<2x8x128xf32>
    %567 = vector.shape_cast %360 : vector<2x8xf32> to vector<2x1x8xf32>
    %568 = vector.extract_strided_slice %562 {offsets = [0, 0, 0], sizes = [2, 8, 32], strides = [1, 1, 1]} : vector<2x8x128xf32> to vector<2x8x32xf32>
    %569 = vector.extract_strided_slice %564 {offsets = [0, 0, 0], sizes = [2, 8, 32], strides = [1, 1, 1]} : vector<2x8x128xf32> to vector<2x8x32xf32>
    "tpu.trace_start"() <{level = 10 : i32, message = "bqd,bkd->bqk"}> : () -> ()
    %cst_204 = arith.constant dense<0.000000e+00> : vector<2x8x8xf32>
    %570 = tpu.matmul %568, %569, %cst_204 {dimension_numbers = #tpu.dot_dimension_numbers<[2], [2], [1], [1], [0, 0, 0, 1, 1, 1], [0], [0]>} : vector<2x8x32xf32>, vector<2x8x32xf32>, vector<2x8x8xf32> -> vector<2x8x8xf32>
    "tpu.trace_stop"() : () -> ()
    %cst_205 = arith.constant 0.176776692 : f32
    %571 = vector.broadcast %cst_205 : f32 to vector<2x8x8xf32>
    %572 = arith.mulf %570, %571 : vector<2x8x8xf32>
    %573 = vector.broadcast %567 : vector<2x1x8xf32> to vector<2x8x8xf32>
    %574 = arith.addf %572, %573 : vector<2x8x8xf32>
    %cst_206 = arith.constant dense<0xFF800000> : vector<2x8xf32>
    %575 = vector.multi_reduction <maximumf>, %574, %cst_206 [2] : vector<2x8x8xf32> to vector<2x8xf32>
    %576 = vector.shape_cast %575 : vector<2x8xf32> to vector<2x8x1xf32>
    %577 = vector.broadcast %576 : vector<2x8x1xf32> to vector<2x8x8xf32>
    %578 = arith.subf %574, %577 : vector<2x8x8xf32>
    %579 = math.exp %578 : vector<2x8x8xf32>
    %cst_207 = arith.constant dense<0.000000e+00> : vector<2x8xf32>
    %580 = vector.multi_reduction <add>, %579, %cst_207 [2] : vector<2x8x8xf32> to vector<2x8xf32>
    %581 = vector.shape_cast %580 : vector<2x8xf32> to vector<2x8x1xf32>
    %582 = tpu.reciprocal %581 {approx = true} : vector<2x8x1xf32> -> vector<2x8x1xf32>
    %583 = vector.broadcast %582 : vector<2x8x1xf32> to vector<2x8x8xf32>
    %584 = arith.mulf %579, %583 : vector<2x8x8xf32>
    %585 = vector.extract_strided_slice %566 {offsets = [0, 0, 0], sizes = [2, 8, 32], strides = [1, 1, 1]} : vector<2x8x128xf32> to vector<2x8x32xf32>
    "tpu.trace_start"() <{level = 10 : i32, message = "bqk,bkd->bqd"}> : () -> ()
    %cst_208 = arith.constant dense<0.000000e+00> : vector<2x8x32xf32>
    %586 = tpu.matmul %584, %585, %cst_208 {dimension_numbers = #tpu.dot_dimension_numbers<[2], [1], [1], [2], [0, 0, 0, 1, 1, 2], [0], [0]>} : vector<2x8x8xf32>, vector<2x8x32xf32>, vector<2x8x32xf32> -> vector<2x8x32xf32>
    "tpu.trace_stop"() : () -> ()
    %587 = vector.shape_cast %586 : vector<2x8x32xf32> to vector<16x32xf32>
    %588 = vector.extract_strided_slice %543 {offsets = [0, 0], sizes = [32, 128], strides = [1, 1]} : vector<128x128xf32> to vector<32x128xf32>
    %cst_209 = arith.constant dense<0.000000e+00> : vector<16x128xf32>
    %589 = tpu.matmul %587, %588, %cst_209 {dimension_numbers = #tpu.dot_dimension_numbers<[1], [0], [0], [1], [0, 0, 1, 1], [], []>} : vector<16x32xf32>, vector<32x128xf32>, vector<16x128xf32> -> vector<16x128xf32>
    %590 = vector.extract_strided_slice %562 {offsets = [0, 0, 32], sizes = [2, 8, 32], strides = [1, 1, 1]} : vector<2x8x128xf32> to vector<2x8x32xf32>
    %591 = vector.extract_strided_slice %564 {offsets = [0, 0, 32], sizes = [2, 8, 32], strides = [1, 1, 1]} : vector<2x8x128xf32> to vector<2x8x32xf32>
    "tpu.trace_start"() <{level = 10 : i32, message = "bqd,bkd->bqk"}> : () -> ()
    %cst_210 = arith.constant dense<0.000000e+00> : vector<2x8x8xf32>
    %592 = tpu.matmul %590, %591, %cst_210 {dimension_numbers = #tpu.dot_dimension_numbers<[2], [2], [1], [1], [0, 0, 0, 1, 1, 1], [0], [0]>} : vector<2x8x32xf32>, vector<2x8x32xf32>, vector<2x8x8xf32> -> vector<2x8x8xf32>
    "tpu.trace_stop"() : () -> ()
    %cst_211 = arith.constant 0.176776692 : f32
    %593 = vector.broadcast %cst_211 : f32 to vector<2x8x8xf32>
    %594 = arith.mulf %592, %593 : vector<2x8x8xf32>
    %595 = vector.broadcast %567 : vector<2x1x8xf32> to vector<2x8x8xf32>
    %596 = arith.addf %594, %595 : vector<2x8x8xf32>
    %cst_212 = arith.constant dense<0xFF800000> : vector<2x8xf32>
    %597 = vector.multi_reduction <maximumf>, %596, %cst_212 [2] : vector<2x8x8xf32> to vector<2x8xf32>
    %598 = vector.shape_cast %597 : vector<2x8xf32> to vector<2x8x1xf32>
    %599 = vector.broadcast %598 : vector<2x8x1xf32> to vector<2x8x8xf32>
    %600 = arith.subf %596, %599 : vector<2x8x8xf32>
    %601 = math.exp %600 : vector<2x8x8xf32>
    %cst_213 = arith.constant dense<0.000000e+00> : vector<2x8xf32>
    %602 = vector.multi_reduction <add>, %601, %cst_213 [2] : vector<2x8x8xf32> to vector<2x8xf32>
    %603 = vector.shape_cast %602 : vector<2x8xf32> to vector<2x8x1xf32>
    %604 = tpu.reciprocal %603 {approx = true} : vector<2x8x1xf32> -> vector<2x8x1xf32>
    %605 = vector.broadcast %604 : vector<2x8x1xf32> to vector<2x8x8xf32>
    %606 = arith.mulf %601, %605 : vector<2x8x8xf32>
    %607 = vector.extract_strided_slice %566 {offsets = [0, 0, 32], sizes = [2, 8, 32], strides = [1, 1, 1]} : vector<2x8x128xf32> to vector<2x8x32xf32>
    "tpu.trace_start"() <{level = 10 : i32, message = "bqk,bkd->bqd"}> : () -> ()
    %cst_214 = arith.constant dense<0.000000e+00> : vector<2x8x32xf32>
    %608 = tpu.matmul %606, %607, %cst_214 {dimension_numbers = #tpu.dot_dimension_numbers<[2], [1], [1], [2], [0, 0, 0, 1, 1, 2], [0], [0]>} : vector<2x8x8xf32>, vector<2x8x32xf32>, vector<2x8x32xf32> -> vector<2x8x32xf32>
    "tpu.trace_stop"() : () -> ()
    %609 = vector.shape_cast %608 : vector<2x8x32xf32> to vector<16x32xf32>
    %610 = vector.extract_strided_slice %543 {offsets = [32, 0], sizes = [32, 128], strides = [1, 1]} : vector<128x128xf32> to vector<32x128xf32>
    %cst_215 = arith.constant dense<0.000000e+00> : vector<16x128xf32>
    %611 = tpu.matmul %609, %610, %cst_215 {dimension_numbers = #tpu.dot_dimension_numbers<[1], [0], [0], [1], [0, 0, 1, 1], [], []>} : vector<16x32xf32>, vector<32x128xf32>, vector<16x128xf32> -> vector<16x128xf32>
    %612 = arith.addf %589, %611 : vector<16x128xf32>
    %613 = vector.extract_strided_slice %562 {offsets = [0, 0, 64], sizes = [2, 8, 32], strides = [1, 1, 1]} : vector<2x8x128xf32> to vector<2x8x32xf32>
    %614 = vector.extract_strided_slice %564 {offsets = [0, 0, 64], sizes = [2, 8, 32], strides = [1, 1, 1]} : vector<2x8x128xf32> to vector<2x8x32xf32>
    "tpu.trace_start"() <{level = 10 : i32, message = "bqd,bkd->bqk"}> : () -> ()
    %cst_216 = arith.constant dense<0.000000e+00> : vector<2x8x8xf32>
    %615 = tpu.matmul %613, %614, %cst_216 {dimension_numbers = #tpu.dot_dimension_numbers<[2], [2], [1], [1], [0, 0, 0, 1, 1, 1], [0], [0]>} : vector<2x8x32xf32>, vector<2x8x32xf32>, vector<2x8x8xf32> -> vector<2x8x8xf32>
    "tpu.trace_stop"() : () -> ()
    %cst_217 = arith.constant 0.176776692 : f32
    %616 = vector.broadcast %cst_217 : f32 to vector<2x8x8xf32>
    %617 = arith.mulf %615, %616 : vector<2x8x8xf32>
    %618 = vector.broadcast %567 : vector<2x1x8xf32> to vector<2x8x8xf32>
    %619 = arith.addf %617, %618 : vector<2x8x8xf32>
    %cst_218 = arith.constant dense<0xFF800000> : vector<2x8xf32>
    %620 = vector.multi_reduction <maximumf>, %619, %cst_218 [2] : vector<2x8x8xf32> to vector<2x8xf32>
    %621 = vector.shape_cast %620 : vector<2x8xf32> to vector<2x8x1xf32>
    %622 = vector.broadcast %621 : vector<2x8x1xf32> to vector<2x8x8xf32>
    %623 = arith.subf %619, %622 : vector<2x8x8xf32>
    %624 = math.exp %623 : vector<2x8x8xf32>
    %cst_219 = arith.constant dense<0.000000e+00> : vector<2x8xf32>
    %625 = vector.multi_reduction <add>, %624, %cst_219 [2] : vector<2x8x8xf32> to vector<2x8xf32>
    %626 = vector.shape_cast %625 : vector<2x8xf32> to vector<2x8x1xf32>
    %627 = tpu.reciprocal %626 {approx = true} : vector<2x8x1xf32> -> vector<2x8x1xf32>
    %628 = vector.broadcast %627 : vector<2x8x1xf32> to vector<2x8x8xf32>
    %629 = arith.mulf %624, %628 : vector<2x8x8xf32>
    %630 = vector.extract_strided_slice %566 {offsets = [0, 0, 64], sizes = [2, 8, 32], strides = [1, 1, 1]} : vector<2x8x128xf32> to vector<2x8x32xf32>
    "tpu.trace_start"() <{level = 10 : i32, message = "bqk,bkd->bqd"}> : () -> ()
    %cst_220 = arith.constant dense<0.000000e+00> : vector<2x8x32xf32>
    %631 = tpu.matmul %629, %630, %cst_220 {dimension_numbers = #tpu.dot_dimension_numbers<[2], [1], [1], [2], [0, 0, 0, 1, 1, 2], [0], [0]>} : vector<2x8x8xf32>, vector<2x8x32xf32>, vector<2x8x32xf32> -> vector<2x8x32xf32>
    "tpu.trace_stop"() : () -> ()
    %632 = vector.shape_cast %631 : vector<2x8x32xf32> to vector<16x32xf32>
    %633 = vector.extract_strided_slice %543 {offsets = [64, 0], sizes = [32, 128], strides = [1, 1]} : vector<128x128xf32> to vector<32x128xf32>
    %cst_221 = arith.constant dense<0.000000e+00> : vector<16x128xf32>
    %634 = tpu.matmul %632, %633, %cst_221 {dimension_numbers = #tpu.dot_dimension_numbers<[1], [0], [0], [1], [0, 0, 1, 1], [], []>} : vector<16x32xf32>, vector<32x128xf32>, vector<16x128xf32> -> vector<16x128xf32>
    %635 = arith.addf %612, %634 : vector<16x128xf32>
    %636 = vector.extract_strided_slice %562 {offsets = [0, 0, 96], sizes = [2, 8, 32], strides = [1, 1, 1]} : vector<2x8x128xf32> to vector<2x8x32xf32>
    %637 = vector.extract_strided_slice %564 {offsets = [0, 0, 96], sizes = [2, 8, 32], strides = [1, 1, 1]} : vector<2x8x128xf32> to vector<2x8x32xf32>
    "tpu.trace_start"() <{level = 10 : i32, message = "bqd,bkd->bqk"}> : () -> ()
    %cst_222 = arith.constant dense<0.000000e+00> : vector<2x8x8xf32>
    %638 = tpu.matmul %636, %637, %cst_222 {dimension_numbers = #tpu.dot_dimension_numbers<[2], [2], [1], [1], [0, 0, 0, 1, 1, 1], [0], [0]>} : vector<2x8x32xf32>, vector<2x8x32xf32>, vector<2x8x8xf32> -> vector<2x8x8xf32>
    "tpu.trace_stop"() : () -> ()
    %cst_223 = arith.constant 0.176776692 : f32
    %639 = vector.broadcast %cst_223 : f32 to vector<2x8x8xf32>
    %640 = arith.mulf %638, %639 : vector<2x8x8xf32>
    %641 = vector.broadcast %567 : vector<2x1x8xf32> to vector<2x8x8xf32>
    %642 = arith.addf %640, %641 : vector<2x8x8xf32>
    %cst_224 = arith.constant dense<0xFF800000> : vector<2x8xf32>
    %643 = vector.multi_reduction <maximumf>, %642, %cst_224 [2] : vector<2x8x8xf32> to vector<2x8xf32>
    %644 = vector.shape_cast %643 : vector<2x8xf32> to vector<2x8x1xf32>
    %645 = vector.broadcast %644 : vector<2x8x1xf32> to vector<2x8x8xf32>
    %646 = arith.subf %642, %645 : vector<2x8x8xf32>
    %647 = math.exp %646 : vector<2x8x8xf32>
    %cst_225 = arith.constant dense<0.000000e+00> : vector<2x8xf32>
    %648 = vector.multi_reduction <add>, %647, %cst_225 [2] : vector<2x8x8xf32> to vector<2x8xf32>
    %649 = vector.shape_cast %648 : vector<2x8xf32> to vector<2x8x1xf32>
    %650 = tpu.reciprocal %649 {approx = true} : vector<2x8x1xf32> -> vector<2x8x1xf32>
    %651 = vector.broadcast %650 : vector<2x8x1xf32> to vector<2x8x8xf32>
    %652 = arith.mulf %647, %651 : vector<2x8x8xf32>
    %653 = vector.extract_strided_slice %566 {offsets = [0, 0, 96], sizes = [2, 8, 32], strides = [1, 1, 1]} : vector<2x8x128xf32> to vector<2x8x32xf32>
    "tpu.trace_start"() <{level = 10 : i32, message = "bqk,bkd->bqd"}> : () -> ()
    %cst_226 = arith.constant dense<0.000000e+00> : vector<2x8x32xf32>
    %654 = tpu.matmul %652, %653, %cst_226 {dimension_numbers = #tpu.dot_dimension_numbers<[2], [1], [1], [2], [0, 0, 0, 1, 1, 2], [0], [0]>} : vector<2x8x8xf32>, vector<2x8x32xf32>, vector<2x8x32xf32> -> vector<2x8x32xf32>
    "tpu.trace_stop"() : () -> ()
    %655 = vector.shape_cast %654 : vector<2x8x32xf32> to vector<16x32xf32>
    %656 = vector.extract_strided_slice %543 {offsets = [96, 0], sizes = [32, 128], strides = [1, 1]} : vector<128x128xf32> to vector<32x128xf32>
    %cst_227 = arith.constant dense<0.000000e+00> : vector<16x128xf32>
    %657 = tpu.matmul %655, %656, %cst_227 {dimension_numbers = #tpu.dot_dimension_numbers<[1], [0], [0], [1], [0, 0, 1, 1], [], []>} : vector<16x32xf32>, vector<32x128xf32>, vector<16x128xf32> -> vector<16x128xf32>
    %658 = arith.addf %635, %657 : vector<16x128xf32>
    %659 = vector.broadcast %552 : vector<1x128xf32> to vector<16x128xf32>
    %660 = arith.addf %658, %659 : vector<16x128xf32>
    %661 = arith.addf %537, %660 : vector<16x128xf32>
    %cst_228 = arith.constant dense<0.000000e+00> : vector<16xf32>
    %662 = vector.multi_reduction <add>, %661, %cst_228 [1] : vector<16x128xf32> to vector<16xf32>
    %663 = vector.shape_cast %662 : vector<16xf32> to vector<16x1xf32>
    %cst_229 = arith.constant 1.280000e+02 : f32
    %664 = vector.broadcast %cst_229 : f32 to vector<16x1xf32>
    %665 = arith.divf %663, %664 : vector<16x1xf32>
    %666 = vector.broadcast %665 : vector<16x1xf32> to vector<16x128xf32>
    %667 = arith.subf %661, %666 : vector<16x128xf32>
    %668 = arith.mulf %667, %667 : vector<16x128xf32>
    %cst_230 = arith.constant dense<0.000000e+00> : vector<16xf32>
    %669 = vector.multi_reduction <add>, %668, %cst_230 [1] : vector<16x128xf32> to vector<16xf32>
    %670 = vector.shape_cast %669 : vector<16xf32> to vector<16x1xf32>
    %cst_231 = arith.constant 1.280000e+02 : f32
    %671 = vector.broadcast %cst_231 : f32 to vector<16x1xf32>
    %672 = arith.divf %670, %671 : vector<16x1xf32>
    %673 = vector.broadcast %665 : vector<16x1xf32> to vector<16x128xf32>
    %674 = arith.subf %661, %673 : vector<16x128xf32>
    %cst_232 = arith.constant 9.99999974E-6 : f32
    %675 = vector.broadcast %cst_232 : f32 to vector<16x1xf32>
    %676 = arith.addf %672, %675 : vector<16x1xf32>
    %677 = math.rsqrt %676 : vector<16x1xf32>
    %678 = vector.broadcast %677 : vector<16x1xf32> to vector<16x128xf32>
    %679 = arith.mulf %674, %678 : vector<16x128xf32>
    %680 = vector.broadcast %553 : vector<1x128xf32> to vector<16x128xf32>
    %681 = arith.mulf %679, %680 : vector<16x128xf32>
    %682 = vector.broadcast %554 : vector<1x128xf32> to vector<16x128xf32>
    %683 = arith.addf %681, %682 : vector<16x128xf32>
    %cst_233 = arith.constant dense<0.000000e+00> : vector<16x256xf32>
    %684 = tpu.matmul %683, %545, %cst_233 {dimension_numbers = #tpu.dot_dimension_numbers<[1], [0], [0], [1], [0, 0, 1, 1], [], []>} : vector<16x128xf32>, vector<128x256xf32>, vector<16x256xf32> -> vector<16x256xf32>
    %685 = vector.broadcast %547 : vector<1x256xf32> to vector<16x256xf32>
    %686 = arith.addf %684, %685 : vector<16x256xf32>
    %cst_234 = arith.constant 0.000000e+00 : f32
    %687 = vector.broadcast %cst_234 : f32 to vector<16x256xf32>
    %688 = arith.maximumf %686, %687 : vector<16x256xf32>
    %cst_235 = arith.constant dense<0.000000e+00> : vector<16x128xf32>
    %689 = tpu.matmul %688, %549, %cst_235 {dimension_numbers = #tpu.dot_dimension_numbers<[1], [0], [0], [1], [0, 0, 1, 1], [], []>} : vector<16x256xf32>, vector<256x128xf32>, vector<16x128xf32> -> vector<16x128xf32>
    %690 = vector.broadcast %555 : vector<1x128xf32> to vector<16x128xf32>
    %691 = arith.addf %689, %690 : vector<16x128xf32>
    %692 = arith.addf %683, %691 : vector<16x128xf32>
    %cst_236 = arith.constant dense<0.000000e+00> : vector<16xf32>
    %693 = vector.multi_reduction <add>, %692, %cst_236 [1] : vector<16x128xf32> to vector<16xf32>
    %694 = vector.shape_cast %693 : vector<16xf32> to vector<16x1xf32>
    %cst_237 = arith.constant 1.280000e+02 : f32
    %695 = vector.broadcast %cst_237 : f32 to vector<16x1xf32>
    %696 = arith.divf %694, %695 : vector<16x1xf32>
    %697 = vector.broadcast %696 : vector<16x1xf32> to vector<16x128xf32>
    %698 = arith.subf %692, %697 : vector<16x128xf32>
    %699 = arith.mulf %698, %698 : vector<16x128xf32>
    %cst_238 = arith.constant dense<0.000000e+00> : vector<16xf32>
    %700 = vector.multi_reduction <add>, %699, %cst_238 [1] : vector<16x128xf32> to vector<16xf32>
    %701 = vector.shape_cast %700 : vector<16xf32> to vector<16x1xf32>
    %cst_239 = arith.constant 1.280000e+02 : f32
    %702 = vector.broadcast %cst_239 : f32 to vector<16x1xf32>
    %703 = arith.divf %701, %702 : vector<16x1xf32>
    %704 = vector.broadcast %696 : vector<16x1xf32> to vector<16x128xf32>
    %705 = arith.subf %692, %704 : vector<16x128xf32>
    %cst_240 = arith.constant 9.99999974E-6 : f32
    %706 = vector.broadcast %cst_240 : f32 to vector<16x1xf32>
    %707 = arith.addf %703, %706 : vector<16x1xf32>
    %708 = math.rsqrt %707 : vector<16x1xf32>
    %709 = vector.broadcast %708 : vector<16x1xf32> to vector<16x128xf32>
    %710 = arith.mulf %705, %709 : vector<16x128xf32>
    %711 = vector.broadcast %556 : vector<1x128xf32> to vector<16x128xf32>
    %712 = arith.mulf %710, %711 : vector<16x128xf32>
    %713 = vector.broadcast %557 : vector<1x128xf32> to vector<16x128xf32>
    %714 = arith.addf %712, %713 : vector<16x128xf32>
    %c0_241 = arith.constant 0 : index
    %c0_242 = arith.constant 0 : index
    %715 = vector.load %arg11[%c0_241, %c0_242] : memref<1x128xf32, #tpu.memory_space<vmem>>, vector<1x128xf32>
    %716 = vector.broadcast %715 : vector<1x128xf32> to vector<16x128xf32>
    %717 = arith.mulf %714, %716 : vector<16x128xf32>
    %cst_243 = arith.constant dense<0.000000e+00> : vector<16xf32>
    %718 = vector.multi_reduction <add>, %717, %cst_243 [1] : vector<16x128xf32> to vector<16xf32>
    %719 = vector.shape_cast %718 : vector<16xf32> to vector<16x1xf32>
    %c0_244 = arith.constant 0 : index
    %c0_245 = arith.constant 0 : index
    %720 = vector.load %arg12[%c0_244, %c0_245] : memref<1x1xf32, #tpu.memory_space<vmem>>, vector<1x1xf32>
    %721 = vector.broadcast %720 : vector<1x1xf32> to vector<16x1xf32>
    %722 = arith.addf %719, %721 : vector<16x1xf32>
    %723 = vector.shape_cast %722 : vector<16x1xf32> to vector<16x1xf32>
    %724 = vector.broadcast %723 : vector<16x1xf32> to vector<16x128xf32>
    %c0_246 = arith.constant 0 : index
    %c0_247 = arith.constant 0 : index
    %725 = vector.load %arg13[%c0_246, %c0_247] : memref<16x128xf32, #tpu.memory_space<vmem>>, vector<16x128xf32>
    tpu.vector_store %arg13[%c0_246, %c0_247], %724 {strides = array<i32>} : memref<16x128xf32, #tpu.memory_space<vmem>>, vector<16x128xf32>,
    return
  }
}

</mosaic_0001>

<llo_original>
// kernel: ext_bert_summ_forward.1
$region0: #{ext_bert_summ_forward.1}
  #allocation0 [shape = 'u32[]', space=smem, size = 0x4, offset = 0x4, fixed_abs, tag = 'smem constant byte address 0x4 - core index']
  #allocation1 [shape = 'u32[144,128]{1,0:T(1,128)}', space=vmem, size = 0x12000, scoped, tag = 'internal scratch']
  #allocation2 [shape = 'f32[1,1]{1,0:T(1,128)S(1)}', space=vmem, size = 0x200, scoped, tag = 'scoped memory for ext_bert_summ_forward.1']
  %s0 = inlined_call_operand.vmem [shape: f32[32,128], index: 0, kind: input, shape index: {}]
  %s1 = inlined_call_operand.vmem [shape: f32[2,16], index: 1, kind: input, shape index: {}]
  %s2 = inlined_call_operand.vmem [shape: f32[2,8,16], index: 2, kind: input, shape index: {}]
  %s3 = inlined_call_operand.vmem [shape: f32[2,8], index: 3, kind: input, shape index: {}]
  %s4 = inlined_call_operand.hbm [shape: f32[4,128,384], index: 4, kind: input, shape index: {}]
  %s5 = inlined_call_operand.vmem [shape: f32[4,1,384], index: 5, kind: input, shape index: {}]
  %s6 = inlined_call_operand.vmem [shape: f32[4,128,128], index: 6, kind: input, shape index: {}]
  %s7 = inlined_call_operand.hbm [shape: f32[4,128,256], index: 7, kind: input, shape index: {}]
  %s8 = inlined_call_operand.vmem [shape: f32[4,1,256], index: 8, kind: input, shape index: {}]
  %s9 = inlined_call_operand.hbm [shape: f32[4,256,128], index: 9, kind: input, shape index: {}]
  %s10 = inlined_call_operand.vmem [shape: f32[4,6,128], index: 10, kind: input, shape index: {}]
  %s11 = inlined_call_operand.vmem [shape: f32[1,128], index: 11, kind: input, shape index: {}]
  %s12 = inlined_call_operand.<no memory space> [shape: f32[1,1], index: 12, kind: input, shape index: {}]
  %s13 = inlined_call_operand.vmem [shape: f32[16,128], index: 13, kind: output, shape index: {}]
  %s14 = sld [smem:[#allocation0]]
  $region74: #{ext_bert_summ_forward.1} parent=0
    _
  %s16 = ssub.s32 1, %s14
  %s17 = scalar_select 0, %s16, %s14
  %v18 = vstv %s12
  %19 = vst [vmem:[#allocation2] sm:$0x1] %v18
  $region1: #{ext_bert_summ_forward.1} parent=0
    #allocation3 [shape = 'u8[786432]{0}', space=vmem, size = 0xc0000, scoped, tag = 'input window, operand 4, single buffered']
    #allocation4 [shape = 's32[1]{0}', space=sflag, size = 0x4, scoped, tag = 'scoped memory for ext_bert_summ_forward.1']
    #allocation5 [shape = 'u8[524288]{0}', space=vmem, size = 0x80000, scoped, tag = 'input window, operand 7, single buffered']
    #allocation6 [shape = 's32[1]{0}', space=sflag, size = 0x4, scoped, tag = 'scoped memory for ext_bert_summ_forward.1']
    #allocation7 [shape = 'u8[524288]{0}', space=vmem, size = 0x80000, scoped, tag = 'input window, operand 9, single buffered']
    %20 = vsyncpa [#allocation4], 0
    %21 = vsyncpa [#allocation6], 0
    // Predicated region
    $region2: #{ext_bert_summ_forward.1} parent=1 // pred_check
      _
    $region3: #{ext_bert_summ_forward.1} parent=1 // pred_check_branch
      %23 = sbr.rel (0) target = $region5
    $region4: #{ext_bert_summ_forward.1} parent=1 // pred_region
      _
    $region5: #{ext_bert_summ_forward.1} parent=1 // pred_fallthru
      _
    // Predicated region
    $region6: #{ext_bert_summ_forward.1} parent=1 // pred_check
      _
    $region7: #{ext_bert_summ_forward.1} parent=1 // pred_check_branch
      %25 = sbr.rel (0) target = $region9
    $region8: #{ext_bert_summ_forward.1} parent=1 // pred_region
      _
    $region9: #{ext_bert_summ_forward.1} parent=1 // pred_fallthru
      _
    // Predicated region
    $region10: #{ext_bert_summ_forward.1} parent=1 // pred_check
      _
    $region11: #{ext_bert_summ_forward.1} parent=1 // pred_check_branch
      %27 = sbr.rel (0) target = $region13
    $region12: #{ext_bert_summ_forward.1} parent=1 // pred_region
      _
    $region13: #{ext_bert_summ_forward.1} parent=1 // pred_fallthru
      _
    // Predicated region
    $region14: #{ext_bert_summ_forward.1} parent=1 // pred_check
      _
    $region15: #{ext_bert_summ_forward.1} parent=1 // pred_check_branch
      %29 = sbr.rel (0) target = $region17
    $region16: #{ext_bert_summ_forward.1} parent=1 // pred_region
      _
    $region17: #{ext_bert_summ_forward.1} parent=1 // pred_fallthru
      _
    // Predicated region
    $region18: #{ext_bert_summ_forward.1} parent=1 // pred_check
      _
    $region19: #{ext_bert_summ_forward.1} parent=1 // pred_check_branch
      %31 = sbr.rel (0) target = $region21
    $region20: #{ext_bert_summ_forward.1} parent=1 // pred_region
      %s33 = ssub.s32 24576, 24576
      %34 = vsyncadd [#allocation4], %s33
      %s35 = sshll.u32 [#allocation3], 4
      %s36 = int_to_ptr.vmem [resolvable:$true] %s35
      %41 = dma.hbm_to_vmem [thread:$0]  %s4, 24576, %s36, [#allocation4], 384, 384, 24
    $region21: #{ext_bert_summ_forward.1} parent=1 // pred_fallthru
      _
    // Predicated region
    $region22: #{ext_bert_summ_forward.1} parent=1 // pred_check
      _
    $region23: #{ext_bert_summ_forward.1} parent=1 // pred_check_branch
      %43 = sbr.rel (0) target = $region25
    $region24: #{ext_bert_summ_forward.1} parent=1 // pred_region
      _
    $region25: #{ext_bert_summ_forward.1} parent=1 // pred_fallthru
      _
    // Predicated region
    $region26: #{ext_bert_summ_forward.1} parent=1 // pred_check
      _
    $region27: #{ext_bert_summ_forward.1} parent=1 // pred_check_branch
      %45 = sbr.rel (0) target = $region29
    $region28: #{ext_bert_summ_forward.1} parent=1 // pred_region
      _
    $region29: #{ext_bert_summ_forward.1} parent=1 // pred_fallthru
      _
    // Predicated region
    $region30: #{ext_bert_summ_forward.1} parent=1 // pred_check
      _
    $region31: #{ext_bert_summ_forward.1} parent=1 // pred_check_branch
      %47 = sbr.rel (0) target = $region33
    $region32: #{ext_bert_summ_forward.1} parent=1 // pred_region
      %s49 = ssub.s32 16384, 16384
      %50 = vsyncadd [#allocation6], %s49
      %s51 = sshll.u32 [#allocation5], 4
      %s52 = int_to_ptr.vmem [resolvable:$true] %s51
      %57 = dma.hbm_to_vmem [thread:$0]  %s7, 16384, %s52, [#allocation6], 256, 256, 16
    $region33: #{ext_bert_summ_forward.1} parent=1 // pred_fallthru
      _
    // Predicated region
    $region34: #{ext_bert_summ_forward.1} parent=1 // pred_check
      _
    $region35: #{ext_bert_summ_forward.1} parent=1 // pred_check_branch
      %59 = sbr.rel (0) target = $region37
    $region36: #{ext_bert_summ_forward.1} parent=1 // pred_region
      _
    $region37: #{ext_bert_summ_forward.1} parent=1 // pred_fallthru
      _
    // Predicated region
    $region38: #{ext_bert_summ_forward.1} parent=1 // pred_check
      _
    $region39: #{ext_bert_summ_forward.1} parent=1 // pred_check_branch
      %61 = sbr.rel (0) target = $region41
    $region40: #{ext_bert_summ_forward.1} parent=1 // pred_region
      %s63 = ssub.s32 16384, 16384
      %64 = vsyncadd [#allocation6], %s63
      %s65 = sshll.u32 [#allocation7], 4
      %s66 = int_to_ptr.vmem [resolvable:$true] %s65
      %71 = dma.hbm_to_vmem [thread:$0]  %s9, 16384, %s66, [#allocation6], 128, 128, 8
    $region41: #{ext_bert_summ_forward.1} parent=1 // pred_fallthru
      _
    // Predicated region
    $region42: #{ext_bert_summ_forward.1} parent=1 // pred_check
      _
    $region43: #{ext_bert_summ_forward.1} parent=1 // pred_check_branch
      %73 = sbr.rel (0) target = $region45
    $region44: #{ext_bert_summ_forward.1} parent=1 // pred_region
      _
    $region45: #{ext_bert_summ_forward.1} parent=1 // pred_fallthru
      _
    // Predicated region
    $region46: #{ext_bert_summ_forward.1} parent=1 // pred_check
      _
    $region47: #{ext_bert_summ_forward.1} parent=1 // pred_check_branch
      %75 = sbr.rel (0) target = $region49
    $region48: #{ext_bert_summ_forward.1} parent=1 // pred_region
      _
    $region49: #{ext_bert_summ_forward.1} parent=1 // pred_fallthru
      _
    // Predicated region
    $region50: #{ext_bert_summ_forward.1} parent=1 // pred_check
      _
    $region51: #{ext_bert_summ_forward.1} parent=1 // pred_check_branch
      %77 = sbr.rel (0) target = $region53
    $region52: #{ext_bert_summ_forward.1} parent=1 // pred_region
      _
    $region53: #{ext_bert_summ_forward.1} parent=1 // pred_fallthru
      _
    // Predicated region
    $region54: #{ext_bert_summ_forward.1} parent=1 // pred_check
      _
    $region55: #{ext_bert_summ_forward.1} parent=1 // pred_check_branch
      %79 = sbr.rel (0) target = $region57
    $region56: #{ext_bert_summ_forward.1} parent=1 // pred_region
      %80 = dma.done [#allocation4], 24576
    $region57: #{ext_bert_summ_forward.1} parent=1 // pred_fallthru
      _
    // Predicated region
    $region58: #{ext_bert_summ_forward.1} parent=1 // pred_check
      _
    $region59: #{ext_bert_summ_forward.1} parent=1 // pred_check_branch
      %82 = sbr.rel (0) target = $region61
    $region60: #{ext_bert_summ_forward.1} parent=1 // pred_region
      %83 = dma.done [#allocation6], 16384
    $region61: #{ext_bert_summ_forward.1} parent=1 // pred_fallthru
      _
    // Predicated region
    $region62: #{ext_bert_summ_forward.1} parent=1 // pred_check
      _
    $region63: #{ext_bert_summ_forward.1} parent=1 // pred_check_branch
      %85 = sbr.rel (0) target = $region65
    $region64: #{ext_bert_summ_forward.1} parent=1 // pred_region
      %86 = dma.done [#allocation6], 16384
    $region65: #{ext_bert_summ_forward.1} parent=1 // pred_fallthru
      _
    %v87 = vld [vmem:[%s0] sm:$0xff]
    %v88 = vld [vmem:[%s0 + $0x8] sm:$0xff]
    %v89 = vld [vmem:[%s0 + $0x10] sm:$0xff]
    %v90 = vld [vmem:[%s0 + $0x18] sm:$0xff]
    %v91 = vld [vmem:[%s1] sm:$0x3]
    %v92 = vld [vmem:[#allocation3] sm:$0xff]
    %v93 = vld [vmem:[#allocation3 + $0x8] sm:$0xff]
    %v94 = vld [vmem:[#allocation3 + $0x10] sm:$0xff]
    %v95 = vld [vmem:[#allocation3 + $0x18] sm:$0xff]
    %v96 = vld [vmem:[#allocation3 + $0x20] sm:$0xff]
    %v97 = vld [vmem:[#allocation3 + $0x28] sm:$0xff]
    %v98 = vld [vmem:[#allocation3 + $0x30] sm:$0xff]
    %v99 = vld [vmem:[#allocation3 + $0x38] sm:$0xff]
    %v100 = vld [vmem:[#allocation3 + $0x40] sm:$0xff]
    %v101 = vld [vmem:[#allocation3 + $0x48] sm:$0xff]
    %v102 = vld [vmem:[#allocation3 + $0x50] sm:$0xff]
    %v103 = vld [vmem:[#allocation3 + $0x58] sm:$0xff]
    %v104 = vld [vmem:[#allocation3 + $0x60] sm:$0xff]
    %v105 = vld [vmem:[#allocation3 + $0x68] sm:$0xff]
    %v106 = vld [vmem:[#allocation3 + $0x70] sm:$0xff]
    %v107 = vld [vmem:[#allocation3 + $0x78] sm:$0xff]
    %v108 = vld [vmem:[#allocation3 + $0x80] sm:$0xff]
    %v109 = vld [vmem:[#allocation3 + $0x88] sm:$0xff]
    %v110 = vld [vmem:[#allocation3 + $0x90] sm:$0xff]
    %v111 = vld [vmem:[#allocation3 + $0x98] sm:$0xff]
    %v112 = vld [vmem:[#allocation3 + $0xa0] sm:$0xff]
    %v113 = vld [vmem:[#allocation3 + $0xa8] sm:$0xff]
    %v114 = vld [vmem:[#allocation3 + $0xb0] sm:$0xff]
    %v115 = vld [vmem:[#allocation3 + $0xb8] sm:$0xff]
    %v116 = vld [vmem:[#allocation3 + $0xc0] sm:$0xff]
    %v117 = vld [vmem:[#allocation3 + $0xc8] sm:$0xff]
    %v118 = vld [vmem:[#allocation3 + $0xd0] sm:$0xff]
    %v119 = vld [vmem:[#allocation3 + $0xd8] sm:$0xff]
    %v120 = vld [vmem:[#allocation3 + $0xe0] sm:$0xff]
    %v121 = vld [vmem:[#allocation3 + $0xe8] sm:$0xff]
    %v122 = vld [vmem:[#allocation3 + $0xf0] sm:$0xff]
    %v123 = vld [vmem:[#allocation3 + $0xf8] sm:$0xff]
    %v124 = vld [vmem:[#allocation3 + $0x100] sm:$0xff]
    %v125 = vld [vmem:[#allocation3 + $0x108] sm:$0xff]
    %v126 = vld [vmem:[#allocation3 + $0x110] sm:$0xff]
    %v127 = vld [vmem:[#allocation3 + $0x118] sm:$0xff]
    %v128 = vld [vmem:[#allocation3 + $0x120] sm:$0xff]
    %v129 = vld [vmem:[#allocation3 + $0x128] sm:$0xff]
    %v130 = vld [vmem:[#allocation3 + $0x130] sm:$0xff]
    %v131 = vld [vmem:[#allocation3 + $0x138] sm:$0xff]
    %v132 = vld [vmem:[#allocation3 + $0x140] sm:$0xff]
    %v133 = vld [vmem:[#allocation3 + $0x148] sm:$0xff]
    %v134 = vld [vmem:[#allocation3 + $0x150] sm:$0xff]
    %v135 = vld [vmem:[#allocation3 + $0x158] sm:$0xff]
    %v136 = vld [vmem:[#allocation3 + $0x160] sm:$0xff]
    %v137 = vld [vmem:[#allocation3 + $0x168] sm:$0xff]
    %v138 = vld [vmem:[#allocation3 + $0x170] sm:$0xff]
    %v139 = vld [vmem:[#allocation3 + $0x178] sm:$0xff]
    %v140 = vld [vmem:[%s5] sm:$0x7]
    %v141 = vld [vmem:[%s6] sm:$0xff]
    %v142 = vld [vmem:[%s6 + $0x8] sm:$0xff]
    %v143 = vld [vmem:[%s6 + $0x10] sm:$0xff]
    %v144 = vld [vmem:[%s6 + $0x18] sm:$0xff]
    %v145 = vld [vmem:[%s6 + $0x20] sm:$0xff]
    %v146 = vld [vmem:[%s6 + $0x28] sm:$0xff]
    %v147 = vld [vmem:[%s6 + $0x30] sm:$0xff]
    %v148 = vld [vmem:[%s6 + $0x38] sm:$0xff]
    %v149 = vld [vmem:[%s6 + $0x40] sm:$0xff]
    %v150 = vld [vmem:[%s6 + $0x48] sm:$0xff]
    %v151 = vld [vmem:[%s6 + $0x50] sm:$0xff]
    %v152 = vld [vmem:[%s6 + $0x58] sm:$0xff]
    %v153 = vld [vmem:[%s6 + $0x60] sm:$0xff]
    %v154 = vld [vmem:[%s6 + $0x68] sm:$0xff]
    %v155 = vld [vmem:[%s6 + $0x70] sm:$0xff]
    %v156 = vld [vmem:[%s6 + $0x78] sm:$0xff]
    %v157 = vld [vmem:[#allocation5] sm:$0xff]
    %v158 = vld [vmem:[#allocation5 + $0x8] sm:$0xff]
    %v159 = vld [vmem:[#allocation5 + $0x10] sm:$0xff]
    %v160 = vld [vmem:[#allocation5 + $0x18] sm:$0xff]
    %v161 = vld [vmem:[#allocation5 + $0x20] sm:$0xff]
    %v162 = vld [vmem:[#allocation5 + $0x28] sm:$0xff]
    %v163 = vld [vmem:[#allocation5 + $0x30] sm:$0xff]
    %v164 = vld [vmem:[#allocation5 + $0x38] sm:$0xff]
    %v165 = vld [vmem:[#allocation5 + $0x40] sm:$0xff]
    %v166 = vld [vmem:[#allocation5 + $0x48] sm:$0xff]
    %v167 = vld [vmem:[#allocation5 + $0x50] sm:$0xff]
    %v168 = vld [vmem:[#allocation5 + $0x58] sm:$0xff]
    %v169 = vld [vmem:[#allocation5 + $0x60] sm:$0xff]
    %v170 = vld [vmem:[#allocation5 + $0x68] sm:$0xff]
    %v171 = vld [vmem:[#allocation5 + $0x70] sm:$0xff]
    %v172 = vld [vmem:[#allocation5 + $0x78] sm:$0xff]
    %v173 = vld [vmem:[#allocation5 + $0x80] sm:$0xff]
    %v174 = vld [vmem:[#allocation5 + $0x88] sm:$0xff]
    %v175 = vld [vmem:[#allocation5 + $0x90] sm:$0xff]
    %v176 = vld [vmem:[#allocation5 + $0x98] sm:$0xff]
    %v177 = vld [vmem:[#allocation5 + $0xa0] sm:$0xff]
    %v178 = vld [vmem:[#allocation5 + $0xa8] sm:$0xff]
    %v179 = vld [vmem:[#allocation5 + $0xb0] sm:$0xff]
    %v180 = vld [vmem:[#allocation5 + $0xb8] sm:$0xff]
    %v181 = vld [vmem:[#allocation5 + $0xc0] sm:$0xff]
    %v182 = vld [vmem:[#allocation5 + $0xc8] sm:$0xff]
    %v183 = vld [vmem:[#allocation5 + $0xd0] sm:$0xff]
    %v184 = vld [vmem:[#allocation5 + $0xd8] sm:$0xff]
    %v185 = vld [vmem:[#allocation5 + $0xe0] sm:$0xff]
    %v186 = vld [vmem:[#allocation5 + $0xe8] sm:$0xff]
    %v187 = vld [vmem:[#allocation5 + $0xf0] sm:$0xff]
    %v188 = vld [vmem:[#allocation5 + $0xf8] sm:$0xff]
    %v189 = vld [vmem:[%s8] sm:$0x3]
    %v190 = vld [vmem:[#allocation7] sm:$0xff]
    %v191 = vld [vmem:[#allocation7 + $0x8] sm:$0xff]
    %v192 = vld [vmem:[#allocation7 + $0x10] sm:$0xff]
    %v193 = vld [vmem:[#allocation7 + $0x18] sm:$0xff]
    %v194 = vld [vmem:[#allocation7 + $0x20] sm:$0xff]
    %v195 = vld [vmem:[#allocation7 + $0x28] sm:$0xff]
    %v196 = vld [vmem:[#allocation7 + $0x30] sm:$0xff]
    %v197 = vld [vmem:[#allocation7 + $0x38] sm:$0xff]
    %v198 = vld [vmem:[#allocation7 + $0x40] sm:$0xff]
    %v199 = vld [vmem:[#allocation7 + $0x48] sm:$0xff]
    %v200 = vld [vmem:[#allocation7 + $0x50] sm:$0xff]
    %v201 = vld [vmem:[#allocation7 + $0x58] sm:$0xff]
    %v202 = vld [vmem:[#allocation7 + $0x60] sm:$0xff]
    %v203 = vld [vmem:[#allocation7 + $0x68] sm:$0xff]
    %v204 = vld [vmem:[#allocation7 + $0x70] sm:$0xff]
    %v205 = vld [vmem:[#allocation7 + $0x78] sm:$0xff]
    %v206 = vld [vmem:[#allocation7 + $0x80] sm:$0xff]
    %v207 = vld [vmem:[#allocation7 + $0x88] sm:$0xff]
    %v208 = vld [vmem:[#allocation7 + $0x90] sm:$0xff]
    %v209 = vld [vmem:[#allocation7 + $0x98] sm:$0xff]
    %v210 = vld [vmem:[#allocation7 + $0xa0] sm:$0xff]
    %v211 = vld [vmem:[#allocation7 + $0xa8] sm:$0xff]
    %v212 = vld [vmem:[#allocation7 + $0xb0] sm:$0xff]
    %v213 = vld [vmem:[#allocation7 + $0xb8] sm:$0xff]
    %v214 = vld [vmem:[#allocation7 + $0xc0] sm:$0xff]
    %v215 = vld [vmem:[#allocation7 + $0xc8] sm:$0xff]
    %v216 = vld [vmem:[#allocation7 + $0xd0] sm:$0xff]
    %v217 = vld [vmem:[#allocation7 + $0xd8] sm:$0xff]
    %v218 = vld [vmem:[#allocation7 + $0xe0] sm:$0xff]
    %v219 = vld [vmem:[#allocation7 + $0xe8] sm:$0xff]
    %v220 = vld [vmem:[#allocation7 + $0xf0] sm:$0xff]
    %v221 = vld [vmem:[#allocation7 + $0xf8] sm:$0xff]
    %v222 = vld [vmem:[%s10] sm:$0x3f]
    %v224 = vlaneseq
    %v225 = vshrl.u32 %v224, 7
    %v226 = vsub.s32 0, %v225
    %v227 = vrot.slane %v140, %v226
    %v228 = vlaneseq
    %v229 = vshrl.u32 %v228, 7
    %v230 = vsub.s32 1, %v229
    %v231 = vrot.slane %v140, %v230
    %v232 = vlaneseq
    %v233 = vshrl.u32 %v232, 7
    %v234 = vsub.s32 2, %v233
    %v235 = vrot.slane %v140, %v234
    %239 = vmatprep.subr.mxu0 %v93
    %240 = vmatpush1.msra.mxu0 %v92
    %241 = vmatprep.subr.mxu0 %v96
    %242 = vmatpush1.msra.mxu0 %v95
    %243 = vmatprep.subr.mxu0 %v99
    %244 = vmatpush1.msra.mxu0 %v98
    %245 = vmatprep.subr.mxu0 %v102
    %246 = vmatpush1.msra.mxu0 %v101
    %247 = vmatprep.subr.mxu0 %v105
    %248 = vmatpush1.msra.mxu0 %v104
    %249 = vmatprep.subr.mxu0 %v108
    %250 = vmatpush1.msra.mxu0 %v107
    %251 = vmatprep.subr.mxu0 %v111
    %252 = vmatpush1.msra.mxu0 %v110
    %253 = vmatprep.subr.mxu0 %v114
    %254 = vmatpush1.msra.mxu0 %v113
    %255 = vmatprep.subr.mxu0 %v117
    %256 = vmatpush1.msra.mxu0 %v116
    %257 = vmatprep.subr.mxu0 %v120
    %258 = vmatpush1.msra.mxu0 %v119
    %259 = vmatprep.subr.mxu0 %v123
    %260 = vmatpush1.msra.mxu0 %v122
    %261 = vmatprep.subr.mxu0 %v126
    %262 = vmatpush1.msra.mxu0 %v125
    %263 = vmatprep.subr.mxu0 %v129
    %264 = vmatpush1.msra.mxu0 %v128
    %265 = vmatprep.subr.mxu0 %v132
    %266 = vmatpush1.msra.mxu0 %v131
    %267 = vmatprep.subr.mxu0 %v135
    %268 = vmatpush1.msra.mxu0 %v134
    %269 = vmatprep.subr.mxu0 %v138
    %270 = vmatpush1.msra.mxu0 %v137
    %271 = vmatprep.subr.mxu0 0.0
    %272 = vmatpush1.msra.mxu0 0.0
    %273 = vmatprep.subr.mxu0 0.0
    %274 = vmatpush1.msra.mxu0 0.0
    %275 = vmatprep.subr.mxu0 0.0
    %276 = vmatpush1.msra.mxu0 0.0
    %277 = vmatprep.subr.mxu0 0.0
    %278 = vmatpush1.msra.mxu0 0.0
    %279 = vmatprep.subr.mxu0 0.0
    %280 = vmatpush1.msra.mxu0 0.0
    %281 = vmatprep.subr.mxu0 0.0
    %282 = vmatpush1.msra.mxu0 0.0
    %283 = vmatprep.subr.mxu0 0.0
    %284 = vmatpush1.msra.mxu0 0.0
    %285 = vmatprep.subr.mxu0 0.0
    %286 = vmatpush1.msra.mxu0 0.0
    %287 = vmatprep.subr.mxu0 0.0
    %288 = vmatpush1.msra.mxu0 0.0
    %289 = vmatprep.subr.mxu0 0.0
    %290 = vmatpush1.msra.mxu0 0.0
    %291 = vmatprep.subr.mxu0 0.0
    %292 = vmatpush1.msra.mxu0 0.0
    %293 = vmatprep.subr.mxu0 0.0
    %294 = vmatpush1.msra.mxu0 0.0
    %295 = vmatprep.subr.mxu0 0.0
    %296 = vmatpush1.msra.mxu0 0.0
    %297 = vmatprep.subr.mxu0 0.0
    %298 = vmatpush1.msra.mxu0 0.0
    %299 = vmatprep.subr.mxu0 0.0
    %300 = vmatpush1.msra.mxu0 0.0
    %301 = vmatprep.subr.mxu0 0.0
    %302 = vmatpush1.msra.mxu0 0.0
    %303 = vmatprep.mubr.f32.mxu0 0.0
    %304 = vmatmul.mubr.f32.gmra.mrb[0].mxu0 %v87
    %v305 = vpop.f32.mrb[0].mxu0
    %v306 = vadd.f32 %v227, %v305
    %v307 = vpop.f32.mrb[0].mxu0
    %v308 = vadd.f32 %v231, %v307
    %309 = vmatprep.mubr.f32.mxu0 0.0
    %310 = vmatmul.mubr.f32.gmra.mrb[0].mxu0 %v88
    %v311 = vpop.f32.mrb[0].mxu0
    %v312 = vadd.f32 %v227, %v311
    %v313 = vpop.f32.mrb[0].mxu0
    %v314 = vadd.f32 %v231, %v313
    %315 = vmatprep.mubr.f32.mxu0 0.0
    %316 = vmatmul.mubr.f32.gmra.mrb[0].mxu0 %v89
    %v317 = vpop.f32.mrb[0].mxu0
    %v318 = vadd.f32 %v227, %v317
    %v319 = vpop.f32.mrb[0].mxu0
    %v320 = vadd.f32 %v231, %v319
    %321 = vmatprep.mubr.f32.mxu0 0.0
    %322 = vmatmul.mubr.f32.gmra.mrb[0].mxu0 %v90
    %v323 = vpop.f32.mrb[0].mxu0
    %v324 = vadd.f32 %v227, %v323
    %v325 = vpop.f32.mrb[0].mxu0
    %v326 = vadd.f32 %v231, %v325
    %327 = vdwg.mxu0
    %328 = vmatprep.subr.mxu0 0.0
    %329 = vmatpush1.msra.mxu0 %v94
    %330 = vmatprep.subr.mxu0 0.0
    %331 = vmatpush1.msra.mxu0 %v97
    %332 = vmatprep.subr.mxu0 0.0
    %333 = vmatpush1.msra.mxu0 %v100
    %334 = vmatprep.subr.mxu0 0.0
    %335 = vmatpush1.msra.mxu0 %v103
    %336 = vmatprep.subr.mxu0 0.0
    %337 = vmatpush1.msra.mxu0 %v106
    %338 = vmatprep.subr.mxu0 0.0
    %339 = vmatpush1.msra.mxu0 %v109
    %340 = vmatprep.subr.mxu0 0.0
    %341 = vmatpush1.msra.mxu0 %v112
    %342 = vmatprep.subr.mxu0 0.0
    %343 = vmatpush1.msra.mxu0 %v115
    %344 = vmatprep.subr.mxu0 0.0
    %345 = vmatpush1.msra.mxu0 %v118
    %346 = vmatprep.subr.mxu0 0.0
    %347 = vmatpush1.msra.mxu0 %v121
    %348 = vmatprep.subr.mxu0 0.0
    %349 = vmatpush1.msra.mxu0 %v124
    %350 = vmatprep.subr.mxu0 0.0
    %351 = vmatpush1.msra.mxu0 %v127
    %352 = vmatprep.subr.mxu0 0.0
    %353 = vmatpush1.msra.mxu0 %v130
    %354 = vmatprep.subr.mxu0 0.0
    %355 = vmatpush1.msra.mxu0 %v133
    %356 = vmatprep.subr.mxu0 0.0
    %357 = vmatpush1.msra.mxu0 %v136
    %358 = vmatprep.subr.mxu0 0.0
    %359 = vmatpush1.msra.mxu0 %v139
    %360 = vmatprep.subr.mxu0 0.0
    %361 = vmatpush1.msra.mxu0 0.0
    %362 = vmatprep.subr.mxu0 0.0
    %363 = vmatpush1.msra.mxu0 0.0
    %364 = vmatprep.subr.mxu0 0.0
    %365 = vmatpush1.msra.mxu0 0.0
    %366 = vmatprep.subr.mxu0 0.0
    %367 = vmatpush1.msra.mxu0 0.0
    %368 = vmatprep.subr.mxu0 0.0
    %369 = vmatpush1.msra.mxu0 0.0
    %370 = vmatprep.subr.mxu0 0.0
    %371 = vmatpush1.msra.mxu0 0.0
    %372 = vmatprep.subr.mxu0 0.0
    %373 = vmatpush1.msra.mxu0 0.0
    %374 = vmatprep.subr.mxu0 0.0
    %375 = vmatpush1.msra.mxu0 0.0
    %376 = vmatprep.subr.mxu0 0.0
    %377 = vmatpush1.msra.mxu0 0.0
    %378 = vmatprep.subr.mxu0 0.0
    %379 = vmatpush1.msra.mxu0 0.0
    %380 = vmatprep.subr.mxu0 0.0
    %381 = vmatpush1.msra.mxu0 0.0
    %382 = vmatprep.subr.mxu0 0.0
    %383 = vmatpush1.msra.mxu0 0.0
    %384 = vmatprep.subr.mxu0 0.0
    %385 = vmatpush1.msra.mxu0 0.0
    %386 = vmatprep.subr.mxu0 0.0
    %387 = vmatpush1.msra.mxu0 0.0
    %388 = vmatprep.subr.mxu0 0.0
    %389 = vmatpush1.msra.mxu0 0.0
    %390 = vmatprep.subr.mxu0 0.0
    %391 = vmatpush1.msra.mxu0 0.0
    %392 = vmatprep.mubr.f32.mxu0 0.0
    %393 = vmatmul.mubr.f32.gmra.mrb[0].mxu0 %v87
    %v394 = vpop.f32.mrb[0].mxu0
    %v395 = vadd.f32 %v235, %v394
    %v396 = vpop.f32.mrb[0].mxu0
    %397 = vmatprep.mubr.f32.mxu0 0.0
    %398 = vmatmul.mubr.f32.gmra.mrb[0].mxu0 %v88
    %v399 = vpop.f32.mrb[0].mxu0
    %v400 = vadd.f32 %v235, %v399
    %v401 = vpop.f32.mrb[0].mxu0
    %402 = vmatprep.mubr.f32.mxu0 0.0
    %403 = vmatmul.mubr.f32.gmra.mrb[0].mxu0 %v89
    %v404 = vpop.f32.mrb[0].mxu0
    %v405 = vadd.f32 %v235, %v404
    %v406 = vpop.f32.mrb[0].mxu0
    %407 = vmatprep.mubr.f32.mxu0 0.0
    %408 = vmatmul.mubr.f32.gmra.mrb[0].mxu0 %v90
    %v409 = vpop.f32.mrb[0].mxu0
    %v410 = vadd.f32 %v235, %v409
    %v411 = vpop.f32.mrb[0].mxu0
    %412 = vdwg.mxu0
    %v415 = vunpack.c.l.s4 1966171168
    %v416 = vunpack.c.0.s8 %v415
    %v417 = vlaneseq
    %v418 = vshrl.u32 %v417, 7
    %v419 = vsub.s32 %v416, %v418
    %v420 = vrot.slane %v91, %v419
    %v421 = vcombine.high %v420, %v420
    %v423 = vunpack.c.l.s4 1966171168
    %v424 = vunpack.c.0.s8 %v423
    %v425 = vlaneseq
    %v426 = vshrl.u32 %v425, 7
    %v427 = vsub.s32 %v424, %v426
    %v428 = vrot.slane %v420, %v427
    %v430 = vunpack.c.l.s4 1966171168
    %v431 = vunpack.c.0.s8 %v430
    %v432 = vlaneseq
    %v433 = vshrl.u32 %v432, 7
    %v434 = vsub.s32 %v431, %v433
    %v435 = vrot.slane %v421, %v434
    %vm436 = vcmask 261120
    %v438 = vsel %vm436, %v306, 0
    %v441 = vsel %vm436, %v312, 0
    %v444 = vsel %vm436, %v308, 0
    %v447 = vsel %vm436, %v314, 0
    %449 = vmatprep.subr.mxu0 0.0
    %450 = vmatpush1.xpose.msra.mxu0 %v444
    %451 = vmatprep.subr.mxu0 0.0
    %452 = vmatpush1.xpose.msra.mxu0 %v447
    %453 = vmatprep.subr.mxu0 0.0
    %454 = vmatpush1.xpose.msra.mxu0 0.0
    %455 = vmatprep.subr.mxu0 0.0
    %456 = vmatpush1.xpose.msra.mxu0 0.0
    %457 = vmatprep.subr.mxu0 0.0
    %458 = vmatpush1.xpose.msra.mxu0 0.0
    %459 = vmatprep.subr.mxu0 0.0
    %460 = vmatpush1.xpose.msra.mxu0 0.0
    %461 = vmatprep.subr.mxu0 0.0
    %462 = vmatpush1.xpose.msra.mxu0 0.0
    %463 = vmatprep.subr.mxu0 0.0
    %464 = vmatpush1.xpose.msra.mxu0 0.0
    %465 = vmatprep.subr.mxu0 0.0
    %466 = vmatpush1.xpose.msra.mxu0 0.0
    %467 = vmatprep.subr.mxu0 0.0
    %468 = vmatpush1.xpose.msra.mxu0 0.0
    %469 = vmatprep.subr.mxu0 0.0
    %470 = vmatpush1.xpose.msra.mxu0 0.0
    %471 = vmatprep.subr.mxu0 0.0
    %472 = vmatpush1.xpose.msra.mxu0 0.0
    %473 = vmatprep.subr.mxu0 0.0
    %474 = vmatpush1.xpose.msra.mxu0 0.0
    %475 = vmatprep.subr.mxu0 0.0
    %476 = vmatpush1.xpose.msra.mxu0 0.0
    %477 = vmatprep.subr.mxu0 0.0
    %478 = vmatpush1.xpose.msra.mxu0 0.0
    %479 = vmatprep.subr.mxu0 0.0
    %480 = vmatpush1.xpose.msra.mxu0 0.0
    %481 = vmatprep.subr.mxu0 0.0
    %482 = vmatpush1.xpose.msra.mxu0 0.0
    %483 = vmatprep.subr.mxu0 0.0
    %484 = vmatpush1.xpose.msra.mxu0 0.0
    %485 = vmatprep.subr.mxu0 0.0
    %486 = vmatpush1.xpose.msra.mxu0 0.0
    %487 = vmatprep.subr.mxu0 0.0
    %488 = vmatpush1.xpose.msra.mxu0 0.0
    %489 = vmatprep.subr.mxu0 0.0
    %490 = vmatpush1.xpose.msra.mxu0 0.0
    %491 = vmatprep.subr.mxu0 0.0
    %492 = vmatpush1.xpose.msra.mxu0 0.0
    %493 = vmatprep.subr.mxu0 0.0
    %494 = vmatpush1.xpose.msra.mxu0 0.0
    %495 = vmatprep.subr.mxu0 0.0
    %496 = vmatpush1.xpose.msra.mxu0 0.0
    %497 = vmatprep.subr.mxu0 0.0
    %498 = vmatpush1.xpose.msra.mxu0 0.0
    %499 = vmatprep.subr.mxu0 0.0
    %500 = vmatpush1.xpose.msra.mxu0 0.0
    %501 = vmatprep.subr.mxu0 0.0
    %502 = vmatpush1.xpose.msra.mxu0 0.0
    %503 = vmatprep.subr.mxu0 0.0
    %504 = vmatpush1.xpose.msra.mxu0 0.0
    %505 = vmatprep.subr.mxu0 0.0
    %506 = vmatpush1.xpose.msra.mxu0 0.0
    %507 = vmatprep.subr.mxu0 0.0
    %508 = vmatpush1.xpose.msra.mxu0 0.0
    %509 = vmatprep.subr.mxu0 0.0
    %510 = vmatpush1.xpose.msra.mxu0 0.0
    %511 = vmatprep.subr.mxu0 0.0
    %512 = vmatpush1.xpose.msra.mxu0 0.0
    %513 = vmatprep.mubr.f32.mxu0 0.0
    %514 = vmatmul.mubr.f32.gmra.mrb[0].mxu0 %v438
    %v515 = vpop.f32.mrb[0].mxu0
    %v516 = vadd.f32 0.0, %v515
    %v517 = vpop.f32.mrb[0].mxu0
    %518 = vmatprep.mubr.f32.mxu0 0.0
    %519 = vmatmul.mubr.f32.gmra.mrb[0].mxu0 %v441
    %v520 = vpop.f32.mrb[0].mxu0
    %v521 = vadd.f32 0.0, %v520
    %v522 = vpop.f32.mrb[0].mxu0
    %523 = vdwg.mxu0
    %v525 = vsel %vm436, %v318, 0
    %v528 = vsel %vm436, %v324, 0
    %v531 = vsel %vm436, %v320, 0
    %v534 = vsel %vm436, %v326, 0
    %536 = vmatprep.subr.mxu0 0.0
    %537 = vmatpush1.xpose.msra.mxu0 %v531
    %538 = vmatprep.subr.mxu0 0.0
    %539 = vmatpush1.xpose.msra.mxu0 %v534
    %540 = vmatprep.subr.mxu0 0.0
    %541 = vmatpush1.xpose.msra.mxu0 0.0
    %542 = vmatprep.subr.mxu0 0.0
    %543 = vmatpush1.xpose.msra.mxu0 0.0
    %544 = vmatprep.subr.mxu0 0.0
    %545 = vmatpush1.xpose.msra.mxu0 0.0
    %546 = vmatprep.subr.mxu0 0.0
    %547 = vmatpush1.xpose.msra.mxu0 0.0
    %548 = vmatprep.subr.mxu0 0.0
    %549 = vmatpush1.xpose.msra.mxu0 0.0
    %550 = vmatprep.subr.mxu0 0.0
    %551 = vmatpush1.xpose.msra.mxu0 0.0
    %552 = vmatprep.subr.mxu0 0.0
    %553 = vmatpush1.xpose.msra.mxu0 0.0
    %554 = vmatprep.subr.mxu0 0.0
    %555 = vmatpush1.xpose.msra.mxu0 0.0
    %556 = vmatprep.subr.mxu0 0.0
    %557 = vmatpush1.xpose.msra.mxu0 0.0
    %558 = vmatprep.subr.mxu0 0.0
    %559 = vmatpush1.xpose.msra.mxu0 0.0
    %560 = vmatprep.subr.mxu0 0.0
    %561 = vmatpush1.xpose.msra.mxu0 0.0
    %562 = vmatprep.subr.mxu0 0.0
    %563 = vmatpush1.xpose.msra.mxu0 0.0
    %564 = vmatprep.subr.mxu0 0.0
    %565 = vmatpush1.xpose.msra.mxu0 0.0
    %566 = vmatprep.subr.mxu0 0.0
    %567 = vmatpush1.xpose.msra.mxu0 0.0
    %568 = vmatprep.subr.mxu0 0.0
    %569 = vmatpush1.xpose.msra.mxu0 0.0
    %570 = vmatprep.subr.mxu0 0.0
    %571 = vmatpush1.xpose.msra.mxu0 0.0
    %572 = vmatprep.subr.mxu0 0.0
    %573 = vmatpush1.xpose.msra.mxu0 0.0
    %574 = vmatprep.subr.mxu0 0.0
    %575 = vmatpush1.xpose.msra.mxu0 0.0
    %576 = vmatprep.subr.mxu0 0.0
    %577 = vmatpush1.xpose.msra.mxu0 0.0
    %578 = vmatprep.subr.mxu0 0.0
    %579 = vmatpush1.xpose.msra.mxu0 0.0
    %580 = vmatprep.subr.mxu0 0.0
    %581 = vmatpush1.xpose.msra.mxu0 0.0
    %582 = vmatprep.subr.mxu0 0.0
    %583 = vmatpush1.xpose.msra.mxu0 0.0
    %584 = vmatprep.subr.mxu0 0.0
    %585 = vmatpush1.xpose.msra.mxu0 0.0
    %586 = vmatprep.subr.mxu0 0.0
    %587 = vmatpush1.xpose.msra.mxu0 0.0
    %588 = vmatprep.subr.mxu0 0.0
    %589 = vmatpush1.xpose.msra.mxu0 0.0
    %590 = vmatprep.subr.mxu0 0.0
    %591 = vmatpush1.xpose.msra.mxu0 0.0
    %592 = vmatprep.subr.mxu0 0.0
    %593 = vmatpush1.xpose.msra.mxu0 0.0
    %594 = vmatprep.subr.mxu0 0.0
    %595 = vmatpush1.xpose.msra.mxu0 0.0
    %596 = vmatprep.subr.mxu0 0.0
    %597 = vmatpush1.xpose.msra.mxu0 0.0
    %598 = vmatprep.subr.mxu0 0.0
    %599 = vmatpush1.xpose.msra.mxu0 0.0
    %600 = vmatprep.mubr.f32.mxu0 0.0
    %601 = vmatmul.mubr.f32.gmra.mrb[0].mxu0 %v525
    %v602 = vpop.f32.mrb[0].mxu0
    %v603 = vadd.f32 0.0, %v602
    %v604 = vpop.f32.mrb[0].mxu0
    %605 = vmatprep.mubr.f32.mxu0 0.0
    %606 = vmatmul.mubr.f32.gmra.mrb[0].mxu0 %v528
    %v607 = vpop.f32.mrb[0].mxu0
    %v608 = vadd.f32 0.0, %v607
    %v609 = vpop.f32.mrb[0].mxu0
    %610 = vdwg.mxu0
    %v611 = vmul.f32 %v516, 0.17677669
    %v612 = vmul.f32 %v521, 0.17677669
    %v613 = vmul.f32 %v603, 0.17677669
    %v614 = vmul.f32 %v608, 0.17677669
    %v615 = vlaneseq
    %v616 = vshrl.u32 %v615, 7
    %v617 = vsub.s32 0, %v616
    %v618 = vrot.slane %v428, %v617
    %v619 = vlaneseq
    %v620 = vshrl.u32 %v619, 7
    %v621 = vsub.s32 0, %v620
    %v622 = vrot.slane %v435, %v621
    %v625 = vadd.f32 %v611, %v618
    %v626 = vadd.f32 %v612, %v618
    %v627 = vadd.f32 %v613, %v622
    %v628 = vadd.f32 %v614, %v622
    %vm629 = vcmask 130048
    %v630 = vsel %vm629, %v625, -inf
    %631 = vmax.xlane.f32.xlu0 %v630
    %v632 = vpop.xlane.xlu0 %631
    %v633 = vsel %vm629, %v626, -inf
    %634 = vmax.xlane.f32.xlu0 %v633
    %v635 = vpop.xlane.xlu0 %634
    %v636 = vsel %vm629, %v627, -inf
    %637 = vmax.xlane.f32.xlu0 %v636
    %v638 = vpop.xlane.xlu0 %637
    %v639 = vsel %vm629, %v628, -inf
    %640 = vmax.xlane.f32.xlu0 %v639
    %v641 = vpop.xlane.xlu0 %640
    %v642 = vsub.f32 %v625, %v632
    %v643 = vsub.f32 %v626, %v635
    %v644 = vsub.f32 %v627, %v638
    %v645 = vsub.f32 %v628, %v641
    %v646 = vmul.f32 %v642, 1.442695
    %v647 = vpow.pop %v646
    %v648 = vmul.f32 %v643, 1.442695
    %v649 = vpow.pop %v648
    %v650 = vmul.f32 %v644, 1.442695
    %v651 = vpow.pop %v650
    %v652 = vmul.f32 %v645, 1.442695
    %v653 = vpow.pop %v652
    %v654 = vsel %vm629, %v647, 0.0
    %655 = vadd.xlane.f32.xlu0 %v654
    %v656 = vpop.xlane.xlu0 %655
    %v657 = vsel %vm629, %v649, 0.0
    %658 = vadd.xlane.f32.xlu0 %v657
    %v659 = vpop.xlane.xlu0 %658
    %v660 = vsel %vm629, %v651, 0.0
    %661 = vadd.xlane.f32.xlu0 %v660
    %v662 = vpop.xlane.xlu0 %661
    %v663 = vsel %vm629, %v653, 0.0
    %664 = vadd.xlane.f32.xlu0 %v663
    %v665 = vpop.xlane.xlu0 %664
    %v666 = vrcp.pop %v656
    %v667 = vrcp.pop %v659
    %v668 = vrcp.pop %v662
    %v669 = vrcp.pop %v665
    %v670 = vmul.f32 %v647, %v666
    %v671 = vmul.f32 %v649, %v667
    %v672 = vmul.f32 %v651, %v668
    %v673 = vmul.f32 %v653, %v669
    %v675 = vsel %vm629, %v670, 0
    %v678 = vsel %vm629, %v671, 0
    %680 = vmatprep.subr.mxu0 0.0
    %681 = vmatpush1.msra.mxu0 %v395
    %682 = vmatprep.subr.mxu0 0.0
    %683 = vmatpush1.msra.mxu0 %v400
    %684 = vmatprep.subr.mxu0 0.0
    %685 = vmatpush1.msra.mxu0 0.0
    %686 = vmatprep.subr.mxu0 0.0
    %687 = vmatpush1.msra.mxu0 0.0
    %688 = vmatprep.subr.mxu0 0.0
    %689 = vmatpush1.msra.mxu0 0.0
    %690 = vmatprep.subr.mxu0 0.0
    %691 = vmatpush1.msra.mxu0 0.0
    %692 = vmatprep.subr.mxu0 0.0
    %693 = vmatpush1.msra.mxu0 0.0
    %694 = vmatprep.subr.mxu0 0.0
    %695 = vmatpush1.msra.mxu0 0.0
    %696 = vmatprep.subr.mxu0 0.0
    %697 = vmatpush1.msra.mxu0 0.0
    %698 = vmatprep.subr.mxu0 0.0
    %699 = vmatpush1.msra.mxu0 0.0
    %700 = vmatprep.subr.mxu0 0.0
    %701 = vmatpush1.msra.mxu0 0.0
    %702 = vmatprep.subr.mxu0 0.0
    %703 = vmatpush1.msra.mxu0 0.0
    %704 = vmatprep.subr.mxu0 0.0
    %705 = vmatpush1.msra.mxu0 0.0
    %706 = vmatprep.subr.mxu0 0.0
    %707 = vmatpush1.msra.mxu0 0.0
    %708 = vmatprep.subr.mxu0 0.0
    %709 = vmatpush1.msra.mxu0 0.0
    %710 = vmatprep.subr.mxu0 0.0
    %711 = vmatpush1.msra.mxu0 0.0
    %712 = vmatprep.subr.mxu0 0.0
    %713 = vmatpush1.msra.mxu0 0.0
    %714 = vmatprep.subr.mxu0 0.0
    %715 = vmatpush1.msra.mxu0 0.0
    %716 = vmatprep.subr.mxu0 0.0
    %717 = vmatpush1.msra.mxu0 0.0
    %718 = vmatprep.subr.mxu0 0.0
    %719 = vmatpush1.msra.mxu0 0.0
    %720 = vmatprep.subr.mxu0 0.0
    %721 = vmatpush1.msra.mxu0 0.0
    %722 = vmatprep.subr.mxu0 0.0
    %723 = vmatpush1.msra.mxu0 0.0
    %724 = vmatprep.subr.mxu0 0.0
    %725 = vmatpush1.msra.mxu0 0.0
    %726 = vmatprep.subr.mxu0 0.0
    %727 = vmatpush1.msra.mxu0 0.0
    %728 = vmatprep.subr.mxu0 0.0
    %729 = vmatpush1.msra.mxu0 0.0
    %730 = vmatprep.subr.mxu0 0.0
    %731 = vmatpush1.msra.mxu0 0.0
    %732 = vmatprep.subr.mxu0 0.0
    %733 = vmatpush1.msra.mxu0 0.0
    %734 = vmatprep.subr.mxu0 0.0
    %735 = vmatpush1.msra.mxu0 0.0
    %736 = vmatprep.subr.mxu0 0.0
    %737 = vmatpush1.msra.mxu0 0.0
    %738 = vmatprep.subr.mxu0 0.0
    %739 = vmatpush1.msra.mxu0 0.0
    %740 = vmatprep.subr.mxu0 0.0
    %741 = vmatpush1.msra.mxu0 0.0
    %742 = vmatprep.subr.mxu0 0.0
    %743 = vmatpush1.msra.mxu0 0.0
    %744 = vmatprep.mubr.f32.mxu0 0.0
    %745 = vmatmul.mubr.f32.gmra.mrb[0].mxu0 %v675
    %v746 = vpop.f32.mrb[0].mxu0
    %v747 = vadd.f32 0.0, %v746
    %v748 = vpop.f32.mrb[0].mxu0
    %749 = vmatprep.mubr.f32.mxu0 0.0
    %750 = vmatmul.mubr.f32.gmra.mrb[0].mxu0 %v678
    %v751 = vpop.f32.mrb[0].mxu0
    %v752 = vadd.f32 0.0, %v751
    %v753 = vpop.f32.mrb[0].mxu0
    %754 = vdwg.mxu0
    %v756 = vsel %vm629, %v672, 0
    %v759 = vsel %vm629, %v673, 0
    %761 = vmatprep.subr.mxu0 0.0
    %762 = vmatpush1.msra.mxu0 %v405
    %763 = vmatprep.subr.mxu0 0.0
    %764 = vmatpush1.msra.mxu0 %v410
    %765 = vmatprep.subr.mxu0 0.0
    %766 = vmatpush1.msra.mxu0 0.0
    %767 = vmatprep.subr.mxu0 0.0
    %768 = vmatpush1.msra.mxu0 0.0
    %769 = vmatprep.subr.mxu0 0.0
    %770 = vmatpush1.msra.mxu0 0.0
    %771 = vmatprep.subr.mxu0 0.0
    %772 = vmatpush1.msra.mxu0 0.0
    %773 = vmatprep.subr.mxu0 0.0
    %774 = vmatpush1.msra.mxu0 0.0
    %775 = vmatprep.subr.mxu0 0.0
    %776 = vmatpush1.msra.mxu0 0.0
    %777 = vmatprep.subr.mxu0 0.0
    %778 = vmatpush1.msra.mxu0 0.0
    %779 = vmatprep.subr.mxu0 0.0
    %780 = vmatpush1.msra.mxu0 0.0
    %781 = vmatprep.subr.mxu0 0.0
    %782 = vmatpush1.msra.mxu0 0.0
    %783 = vmatprep.subr.mxu0 0.0
    %784 = vmatpush1.msra.mxu0 0.0
    %785 = vmatprep.subr.mxu0 0.0
    %786 = vmatpush1.msra.mxu0 0.0
    %787 = vmatprep.subr.mxu0 0.0
    %788 = vmatpush1.msra.mxu0 0.0
    %789 = vmatprep.subr.mxu0 0.0
    %790 = vmatpush1.msra.mxu0 0.0
    %791 = vmatprep.subr.mxu0 0.0
    %792 = vmatpush1.msra.mxu0 0.0
    %793 = vmatprep.subr.mxu0 0.0
    %794 = vmatpush1.msra.mxu0 0.0
    %795 = vmatprep.subr.mxu0 0.0
    %796 = vmatpush1.msra.mxu0 0.0
    %797 = vmatprep.subr.mxu0 0.0
    %798 = vmatpush1.msra.mxu0 0.0
    %799 = vmatprep.subr.mxu0 0.0
    %800 = vmatpush1.msra.mxu0 0.0
    %801 = vmatprep.subr.mxu0 0.0
    %802 = vmatpush1.msra.mxu0 0.0
    %803 = vmatprep.subr.mxu0 0.0
    %804 = vmatpush1.msra.mxu0 0.0
    %805 = vmatprep.subr.mxu0 0.0
    %806 = vmatpush1.msra.mxu0 0.0
    %807 = vmatprep.subr.mxu0 0.0
    %808 = vmatpush1.msra.mxu0 0.0
    %809 = vmatprep.subr.mxu0 0.0
    %810 = vmatpush1.msra.mxu0 0.0
    %811 = vmatprep.subr.mxu0 0.0
    %812 = vmatpush1.msra.mxu0 0.0
    %813 = vmatprep.subr.mxu0 0.0
    %814 = vmatpush1.msra.mxu0 0.0
    %815 = vmatprep.subr.mxu0 0.0
    %816 = vmatpush1.msra.mxu0 0.0
    %817 = vmatprep.subr.mxu0 0.0
    %818 = vmatpush1.msra.mxu0 0.0
    %819 = vmatprep.subr.mxu0 0.0
    %820 = vmatpush1.msra.mxu0 0.0
    %821 = vmatprep.subr.mxu0 0.0
    %822 = vmatpush1.msra.mxu0 0.0
    %823 = vmatprep.subr.mxu0 0.0
    %824 = vmatpush1.msra.mxu0 0.0
    %825 = vmatprep.mubr.f32.mxu0 0.0
    %826 = vmatmul.mubr.f32.gmra.mrb[0].mxu0 %v756
    %v827 = vpop.f32.mrb[0].mxu0
    %v828 = vadd.f32 0.0, %v827
    %v829 = vpop.f32.mrb[0].mxu0
    %830 = vmatprep.mubr.f32.mxu0 0.0
    %831 = vmatmul.mubr.f32.gmra.mrb[0].mxu0 %v759
    %v832 = vpop.f32.mrb[0].mxu0
    %v833 = vadd.f32 0.0, %v832
    %v834 = vpop.f32.mrb[0].mxu0
    %835 = vdwg.mxu0
    %836 = vrot.lane.b32.xlu0 %v306, 96
    %v837 = vpop.permute.xlu0 %836
    %838 = vrot.lane.b32.xlu0 %v312, 96
    %v839 = vpop.permute.xlu0 %838
    %840 = vrot.lane.b32.xlu0 %v308, 96
    %v841 = vpop.permute.xlu0 %840
    %842 = vrot.lane.b32.xlu0 %v314, 96
    %v843 = vpop.permute.xlu0 %842
    %v844 = vsel %vm436, %v837, 0
    %v846 = vsel %vm436, %v839, 0
    %v848 = vsel %vm436, %v841, 0
    %v850 = vsel %vm436, %v843, 0
    %852 = vmatprep.subr.mxu0 0.0
    %853 = vmatpush1.xpose.msra.mxu0 %v848
    %854 = vmatprep.subr.mxu0 0.0
    %855 = vmatpush1.xpose.msra.mxu0 %v850
    %856 = vmatprep.subr.mxu0 0.0
    %857 = vmatpush1.xpose.msra.mxu0 0.0
    %858 = vmatprep.subr.mxu0 0.0
    %859 = vmatpush1.xpose.msra.mxu0 0.0
    %860 = vmatprep.subr.mxu0 0.0
    %861 = vmatpush1.xpose.msra.mxu0 0.0
    %862 = vmatprep.subr.mxu0 0.0
    %863 = vmatpush1.xpose.msra.mxu0 0.0
    %864 = vmatprep.subr.mxu0 0.0
    %865 = vmatpush1.xpose.msra.mxu0 0.0
    %866 = vmatprep.subr.mxu0 0.0
    %867 = vmatpush1.xpose.msra.mxu0 0.0
    %868 = vmatprep.subr.mxu0 0.0
    %869 = vmatpush1.xpose.msra.mxu0 0.0
    %870 = vmatprep.subr.mxu0 0.0
    %871 = vmatpush1.xpose.msra.mxu0 0.0
    %872 = vmatprep.subr.mxu0 0.0
    %873 = vmatpush1.xpose.msra.mxu0 0.0
    %874 = vmatprep.subr.mxu0 0.0
    %875 = vmatpush1.xpose.msra.mxu0 0.0
    %876 = vmatprep.subr.mxu0 0.0
    %877 = vmatpush1.xpose.msra.mxu0 0.0
    %878 = vmatprep.subr.mxu0 0.0
    %879 = vmatpush1.xpose.msra.mxu0 0.0
    %880 = vmatprep.subr.mxu0 0.0
    %881 = vmatpush1.xpose.msra.mxu0 0.0
    %882 = vmatprep.subr.mxu0 0.0
    %883 = vmatpush1.xpose.msra.mxu0 0.0
    %884 = vmatprep.subr.mxu0 0.0
    %885 = vmatpush1.xpose.msra.mxu0 0.0
    %886 = vmatprep.subr.mxu0 0.0
    %887 = vmatpush1.xpose.msra.mxu0 0.0
    %888 = vmatprep.subr.mxu0 0.0
    %889 = vmatpush1.xpose.msra.mxu0 0.0
    %890 = vmatprep.subr.mxu0 0.0
    %891 = vmatpush1.xpose.msra.mxu0 0.0
    %892 = vmatprep.subr.mxu0 0.0
    %893 = vmatpush1.xpose.msra.mxu0 0.0
    %894 = vmatprep.subr.mxu0 0.0
    %895 = vmatpush1.xpose.msra.mxu0 0.0
    %896 = vmatprep.subr.mxu0 0.0
    %897 = vmatpush1.xpose.msra.mxu0 0.0
    %898 = vmatprep.subr.mxu0 0.0
    %899 = vmatpush1.xpose.msra.mxu0 0.0
    %900 = vmatprep.subr.mxu0 0.0
    %901 = vmatpush1.xpose.msra.mxu0 0.0
    %902 = vmatprep.subr.mxu0 0.0
    %903 = vmatpush1.xpose.msra.mxu0 0.0
    %904 = vmatprep.subr.mxu0 0.0
    %905 = vmatpush1.xpose.msra.mxu0 0.0
    %906 = vmatprep.subr.mxu0 0.0
    %907 = vmatpush1.xpose.msra.mxu0 0.0
    %908 = vmatprep.subr.mxu0 0.0
    %909 = vmatpush1.xpose.msra.mxu0 0.0
    %910 = vmatprep.subr.mxu0 0.0
    %911 = vmatpush1.xpose.msra.mxu0 0.0
    %912 = vmatprep.subr.mxu0 0.0
    %913 = vmatpush1.xpose.msra.mxu0 0.0
    %914 = vmatprep.subr.mxu0 0.0
    %915 = vmatpush1.xpose.msra.mxu0 0.0
    %916 = vmatprep.mubr.f32.mxu0 0.0
    %917 = vmatmul.mubr.f32.gmra.mrb[0].mxu0 %v844
    %v918 = vpop.f32.mrb[0].mxu0
    %v919 = vadd.f32 0.0, %v918
    %v920 = vpop.f32.mrb[0].mxu0
    %921 = vmatprep.mubr.f32.mxu0 0.0
    %922 = vmatmul.mubr.f32.gmra.mrb[0].mxu0 %v846
    %v923 = vpop.f32.mrb[0].mxu0
    %v924 = vadd.f32 0.0, %v923
    %v925 = vpop.f32.mrb[0].mxu0
    %926 = vdwg.mxu0
    %927 = vrot.lane.b32.xlu0 %v318, 96
    %v928 = vpop.permute.xlu0 %927
    %929 = vrot.lane.b32.xlu0 %v324, 96
    %v930 = vpop.permute.xlu0 %929
    %931 = vrot.lane.b32.xlu0 %v320, 96
    %v932 = vpop.permute.xlu0 %931
    %933 = vrot.lane.b32.xlu0 %v326, 96
    %v934 = vpop.permute.xlu0 %933
    %v935 = vsel %vm436, %v928, 0
    %v937 = vsel %vm436, %v930, 0
    %v939 = vsel %vm436, %v932, 0
    %v941 = vsel %vm436, %v934, 0
    %943 = vmatprep.subr.mxu0 0.0
    %944 = vmatpush1.xpose.msra.mxu0 %v939
    %945 = vmatprep.subr.mxu0 0.0
    %946 = vmatpush1.xpose.msra.mxu0 %v941
    %947 = vmatprep.subr.mxu0 0.0
    %948 = vmatpush1.xpose.msra.mxu0 0.0
    %949 = vmatprep.subr.mxu0 0.0
    %950 = vmatpush1.xpose.msra.mxu0 0.0
    %951 = vmatprep.subr.mxu0 0.0
    %952 = vmatpush1.xpose.msra.mxu0 0.0
    %953 = vmatprep.subr.mxu0 0.0
    %954 = vmatpush1.xpose.msra.mxu0 0.0
    %955 = vmatprep.subr.mxu0 0.0
    %956 = vmatpush1.xpose.msra.mxu0 0.0
    %957 = vmatprep.subr.mxu0 0.0
    %958 = vmatpush1.xpose.msra.mxu0 0.0
    %959 = vmatprep.subr.mxu0 0.0
    %960 = vmatpush1.xpose.msra.mxu0 0.0
    %961 = vmatprep.subr.mxu0 0.0
    %962 = vmatpush1.xpose.msra.mxu0 0.0
    %963 = vmatprep.subr.mxu0 0.0
    %964 = vmatpush1.xpose.msra.mxu0 0.0
    %965 = vmatprep.subr.mxu0 0.0
    %966 = vmatpush1.xpose.msra.mxu0 0.0
    %967 = vmatprep.subr.mxu0 0.0
    %968 = vmatpush1.xpose.msra.mxu0 0.0
    %969 = vmatprep.subr.mxu0 0.0
    %970 = vmatpush1.xpose.msra.mxu0 0.0
    %971 = vmatprep.subr.mxu0 0.0
    %972 = vmatpush1.xpose.msra.mxu0 0.0
    %973 = vmatprep.subr.mxu0 0.0
    %974 = vmatpush1.xpose.msra.mxu0 0.0
    %975 = vmatprep.subr.mxu0 0.0
    %976 = vmatpush1.xpose.msra.mxu0 0.0
    %977 = vmatprep.subr.mxu0 0.0
    %978 = vmatpush1.xpose.msra.mxu0 0.0
    %979 = vmatprep.subr.mxu0 0.0
    %980 = vmatpush1.xpose.msra.mxu0 0.0
    %981 = vmatprep.subr.mxu0 0.0
    %982 = vmatpush1.xpose.msra.mxu0 0.0
    %983 = vmatprep.subr.mxu0 0.0
    %984 = vmatpush1.xpose.msra.mxu0 0.0
    %985 = vmatprep.subr.mxu0 0.0
    %986 = vmatpush1.xpose.msra.mxu0 0.0
    %987 = vmatprep.subr.mxu0 0.0
    %988 = vmatpush1.xpose.msra.mxu0 0.0
    %989 = vmatprep.subr.mxu0 0.0
    %990 = vmatpush1.xpose.msra.mxu0 0.0
    %991 = vmatprep.subr.mxu0 0.0
    %992 = vmatpush1.xpose.msra.mxu0 0.0
    %993 = vmatprep.subr.mxu0 0.0
    %994 = vmatpush1.xpose.msra.mxu0 0.0
    %995 = vmatprep.subr.mxu0 0.0
    %996 = vmatpush1.xpose.msra.mxu0 0.0
    %997 = vmatprep.subr.mxu0 0.0
    %998 = vmatpush1.xpose.msra.mxu0 0.0
    %999 = vmatprep.subr.mxu0 0.0
    %1000 = vmatpush1.xpose.msra.mxu0 0.0
    %1001 = vmatprep.subr.mxu0 0.0
    %1002 = vmatpush1.xpose.msra.mxu0 0.0
    %1003 = vmatprep.subr.mxu0 0.0
    %1004 = vmatpush1.xpose.msra.mxu0 0.0
    %1005 = vmatprep.subr.mxu0 0.0
    %1006 = vmatpush1.xpose.msra.mxu0 0.0
    %1007 = vmatprep.mubr.f32.mxu0 0.0
    %1008 = vmatmul.mubr.f32.gmra.mrb[0].mxu0 %v935
    %v1009 = vpop.f32.mrb[0].mxu0
    %v1010 = vadd.f32 0.0, %v1009
    %v1011 = vpop.f32.mrb[0].mxu0
    %1012 = vmatprep.mubr.f32.mxu0 0.0
    %1013 = vmatmul.mubr.f32.gmra.mrb[0].mxu0 %v937
    %v1014 = vpop.f32.mrb[0].mxu0
    %v1015 = vadd.f32 0.0, %v1014
    %v1016 = vpop.f32.mrb[0].mxu0
    %1017 = vdwg.mxu0
    %v1018 = vmul.f32 %v919, 0.17677669
    %v1019 = vmul.f32 %v924, 0.17677669
    %v1020 = vmul.f32 %v1010, 0.17677669
    %v1021 = vmul.f32 %v1015, 0.17677669
    %v1022 = vadd.f32 %v1018, %v618
    %v1023 = vadd.f32 %v1019, %v618
    %v1024 = vadd.f32 %v1020, %v622
    %v1025 = vadd.f32 %v1021, %v622
    %v1026 = vsel %vm629, %v1022, -inf
    %1027 = vmax.xlane.f32.xlu0 %v1026
    %v1028 = vpop.xlane.xlu0 %1027
    %v1029 = vsel %vm629, %v1023, -inf
    %1030 = vmax.xlane.f32.xlu0 %v1029
    %v1031 = vpop.xlane.xlu0 %1030
    %v1032 = vsel %vm629, %v1024, -inf
    %1033 = vmax.xlane.f32.xlu0 %v1032
    %v1034 = vpop.xlane.xlu0 %1033
    %v1035 = vsel %vm629, %v1025, -inf
    %1036 = vmax.xlane.f32.xlu0 %v1035
    %v1037 = vpop.xlane.xlu0 %1036
    %v1038 = vsub.f32 %v1022, %v1028
    %v1039 = vsub.f32 %v1023, %v1031
    %v1040 = vsub.f32 %v1024, %v1034
    %v1041 = vsub.f32 %v1025, %v1037
    %v1042 = vmul.f32 %v1038, 1.442695
    %v1043 = vpow.pop %v1042
    %v1044 = vmul.f32 %v1039, 1.442695
    %v1045 = vpow.pop %v1044
    %v1046 = vmul.f32 %v1040, 1.442695
    %v1047 = vpow.pop %v1046
    %v1048 = vmul.f32 %v1041, 1.442695
    %v1049 = vpow.pop %v1048
    %v1050 = vsel %vm629, %v1043, 0.0
    %1051 = vadd.xlane.f32.xlu0 %v1050
    %v1052 = vpop.xlane.xlu0 %1051
    %v1053 = vsel %vm629, %v1045, 0.0
    %1054 = vadd.xlane.f32.xlu0 %v1053
    %v1055 = vpop.xlane.xlu0 %1054
    %v1056 = vsel %vm629, %v1047, 0.0
    %1057 = vadd.xlane.f32.xlu0 %v1056
    %v1058 = vpop.xlane.xlu0 %1057
    %v1059 = vsel %vm629, %v1049, 0.0
    %1060 = vadd.xlane.f32.xlu0 %v1059
    %v1061 = vpop.xlane.xlu0 %1060
    %v1062 = vrcp.pop %v1052
    %v1063 = vrcp.pop %v1055
    %v1064 = vrcp.pop %v1058
    %v1065 = vrcp.pop %v1061
    %v1066 = vmul.f32 %v1043, %v1062
    %v1067 = vmul.f32 %v1045, %v1063
    %v1068 = vmul.f32 %v1047, %v1064
    %v1069 = vmul.f32 %v1049, %v1065
    %1072 = vrot.lane.b32.xlu0 %v395, 96
    %v1073 = vpop.permute.xlu0 %1072
    %1074 = vrot.lane.b32.xlu0 %v400, 96
    %v1075 = vpop.permute.xlu0 %1074
    %v1079 = vsel %vm629, %v1066, 0
    %v1082 = vsel %vm629, %v1067, 0
    %1084 = vmatprep.subr.mxu0 0.0
    %1085 = vmatpush1.msra.mxu0 %v1073
    %1086 = vmatprep.subr.mxu0 0.0
    %1087 = vmatpush1.msra.mxu0 %v1075
    %1088 = vmatprep.subr.mxu0 0.0
    %1089 = vmatpush1.msra.mxu0 0.0
    %1090 = vmatprep.subr.mxu0 0.0
    %1091 = vmatpush1.msra.mxu0 0.0
    %1092 = vmatprep.subr.mxu0 0.0
    %1093 = vmatpush1.msra.mxu0 0.0
    %1094 = vmatprep.subr.mxu0 0.0
    %1095 = vmatpush1.msra.mxu0 0.0
    %1096 = vmatprep.subr.mxu0 0.0
    %1097 = vmatpush1.msra.mxu0 0.0
    %1098 = vmatprep.subr.mxu0 0.0
    %1099 = vmatpush1.msra.mxu0 0.0
    %1100 = vmatprep.subr.mxu0 0.0
    %1101 = vmatpush1.msra.mxu0 0.0
    %1102 = vmatprep.subr.mxu0 0.0
    %1103 = vmatpush1.msra.mxu0 0.0
    %1104 = vmatprep.subr.mxu0 0.0
    %1105 = vmatpush1.msra.mxu0 0.0
    %1106 = vmatprep.subr.mxu0 0.0
    %1107 = vmatpush1.msra.mxu0 0.0
    %1108 = vmatprep.subr.mxu0 0.0
    %1109 = vmatpush1.msra.mxu0 0.0
    %1110 = vmatprep.subr.mxu0 0.0
    %1111 = vmatpush1.msra.mxu0 0.0
    %1112 = vmatprep.subr.mxu0 0.0
    %1113 = vmatpush1.msra.mxu0 0.0
    %1114 = vmatprep.subr.mxu0 0.0
    %1115 = vmatpush1.msra.mxu0 0.0
    %1116 = vmatprep.subr.mxu0 0.0
    %1117 = vmatpush1.msra.mxu0 0.0
    %1118 = vmatprep.subr.mxu0 0.0
    %1119 = vmatpush1.msra.mxu0 0.0
    %1120 = vmatprep.subr.mxu0 0.0
    %1121 = vmatpush1.msra.mxu0 0.0
    %1122 = vmatprep.subr.mxu0 0.0
    %1123 = vmatpush1.msra.mxu0 0.0
    %1124 = vmatprep.subr.mxu0 0.0
    %1125 = vmatpush1.msra.mxu0 0.0
    %1126 = vmatprep.subr.mxu0 0.0
    %1127 = vmatpush1.msra.mxu0 0.0
    %1128 = vmatprep.subr.mxu0 0.0
    %1129 = vmatpush1.msra.mxu0 0.0
    %1130 = vmatprep.subr.mxu0 0.0
    %1131 = vmatpush1.msra.mxu0 0.0
    %1132 = vmatprep.subr.mxu0 0.0
    %1133 = vmatpush1.msra.mxu0 0.0
    %1134 = vmatprep.subr.mxu0 0.0
    %1135 = vmatpush1.msra.mxu0 0.0
    %1136 = vmatprep.subr.mxu0 0.0
    %1137 = vmatpush1.msra.mxu0 0.0
    %1138 = vmatprep.subr.mxu0 0.0
    %1139 = vmatpush1.msra.mxu0 0.0
    %1140 = vmatprep.subr.mxu0 0.0
    %1141 = vmatpush1.msra.mxu0 0.0
    %1142 = vmatprep.subr.mxu0 0.0
    %1143 = vmatpush1.msra.mxu0 0.0
    %1144 = vmatprep.subr.mxu0 0.0
    %1145 = vmatpush1.msra.mxu0 0.0
    %1146 = vmatprep.subr.mxu0 0.0
    %1147 = vmatpush1.msra.mxu0 0.0
    %1148 = vmatprep.mubr.f32.mxu0 0.0
    %1149 = vmatmul.mubr.f32.gmra.mrb[0].mxu0 %v1079
    %v1150 = vpop.f32.mrb[0].mxu0
    %v1151 = vadd.f32 0.0, %v1150
    %v1152 = vpop.f32.mrb[0].mxu0
    %1153 = vmatprep.mubr.f32.mxu0 0.0
    %1154 = vmatmul.mubr.f32.gmra.mrb[0].mxu0 %v1082
    %v1155 = vpop.f32.mrb[0].mxu0
    %v1156 = vadd.f32 0.0, %v1155
    %v1157 = vpop.f32.mrb[0].mxu0
    %1158 = vdwg.mxu0
    %1161 = vrot.lane.b32.xlu0 %v405, 96
    %v1162 = vpop.permute.xlu0 %1161
    %1163 = vrot.lane.b32.xlu0 %v410, 96
    %v1164 = vpop.permute.xlu0 %1163
    %v1168 = vsel %vm629, %v1068, 0
    %v1171 = vsel %vm629, %v1069, 0
    %1173 = vmatprep.subr.mxu0 0.0
    %1174 = vmatpush1.msra.mxu0 %v1162
    %1175 = vmatprep.subr.mxu0 0.0
    %1176 = vmatpush1.msra.mxu0 %v1164
    %1177 = vmatprep.subr.mxu0 0.0
    %1178 = vmatpush1.msra.mxu0 0.0
    %1179 = vmatprep.subr.mxu0 0.0
    %1180 = vmatpush1.msra.mxu0 0.0
    %1181 = vmatprep.subr.mxu0 0.0
    %1182 = vmatpush1.msra.mxu0 0.0
    %1183 = vmatprep.subr.mxu0 0.0
    %1184 = vmatpush1.msra.mxu0 0.0
    %1185 = vmatprep.subr.mxu0 0.0
    %1186 = vmatpush1.msra.mxu0 0.0
    %1187 = vmatprep.subr.mxu0 0.0
    %1188 = vmatpush1.msra.mxu0 0.0
    %1189 = vmatprep.subr.mxu0 0.0
    %1190 = vmatpush1.msra.mxu0 0.0
    %1191 = vmatprep.subr.mxu0 0.0
    %1192 = vmatpush1.msra.mxu0 0.0
    %1193 = vmatprep.subr.mxu0 0.0
    %1194 = vmatpush1.msra.mxu0 0.0
    %1195 = vmatprep.subr.mxu0 0.0
    %1196 = vmatpush1.msra.mxu0 0.0
    %1197 = vmatprep.subr.mxu0 0.0
    %1198 = vmatpush1.msra.mxu0 0.0
    %1199 = vmatprep.subr.mxu0 0.0
    %1200 = vmatpush1.msra.mxu0 0.0
    %1201 = vmatprep.subr.mxu0 0.0
    %1202 = vmatpush1.msra.mxu0 0.0
    %1203 = vmatprep.subr.mxu0 0.0
    %1204 = vmatpush1.msra.mxu0 0.0
    %1205 = vmatprep.subr.mxu0 0.0
    %1206 = vmatpush1.msra.mxu0 0.0
    %1207 = vmatprep.subr.mxu0 0.0
    %1208 = vmatpush1.msra.mxu0 0.0
    %1209 = vmatprep.subr.mxu0 0.0
    %1210 = vmatpush1.msra.mxu0 0.0
    %1211 = vmatprep.subr.mxu0 0.0
    %1212 = vmatpush1.msra.mxu0 0.0
    %1213 = vmatprep.subr.mxu0 0.0
    %1214 = vmatpush1.msra.mxu0 0.0
    %1215 = vmatprep.subr.mxu0 0.0
    %1216 = vmatpush1.msra.mxu0 0.0
    %1217 = vmatprep.subr.mxu0 0.0
    %1218 = vmatpush1.msra.mxu0 0.0
    %1219 = vmatprep.subr.mxu0 0.0
    %1220 = vmatpush1.msra.mxu0 0.0
    %1221 = vmatprep.subr.mxu0 0.0
    %1222 = vmatpush1.msra.mxu0 0.0
    %1223 = vmatprep.subr.mxu0 0.0
    %1224 = vmatpush1.msra.mxu0 0.0
    %1225 = vmatprep.subr.mxu0 0.0
    %1226 = vmatpush1.msra.mxu0 0.0
    %1227 = vmatprep.subr.mxu0 0.0
    %1228 = vmatpush1.msra.mxu0 0.0
    %1229 = vmatprep.subr.mxu0 0.0
    %1230 = vmatpush1.msra.mxu0 0.0
    %1231 = vmatprep.subr.mxu0 0.0
    %1232 = vmatpush1.msra.mxu0 0.0
    %1233 = vmatprep.subr.mxu0 0.0
    %1234 = vmatpush1.msra.mxu0 0.0
    %1235 = vmatprep.subr.mxu0 0.0
    %1236 = vmatpush1.msra.mxu0 0.0
    %1237 = vmatprep.mubr.f32.mxu0 0.0
    %1238 = vmatmul.mubr.f32.gmra.mrb[0].mxu0 %v1168
    %v1239 = vpop.f32.mrb[0].mxu0
    %v1240 = vadd.f32 0.0, %v1239
    %v1241 = vpop.f32.mrb[0].mxu0
    %1242 = vmatprep.mubr.f32.mxu0 0.0
    %1243 = vmatmul.mubr.f32.gmra.mrb[0].mxu0 %v1171
    %v1244 = vpop.f32.mrb[0].mxu0
    %v1245 = vadd.f32 0.0, %v1244
    %v1246 = vpop.f32.mrb[0].mxu0
    %1247 = vdwg.mxu0
    %v1249 = vsel %vm436, %v1151, 0
    %v1252 = vsel %vm436, %v1156, 0
    %v1255 = vsel %vm436, %v1240, 0
    %v1258 = vsel %vm436, %v1245, 0
    %1260 = vmatprep.subr.mxu0 0.0
    %1261 = vmatpush1.msra.mxu0 %v145
    %1262 = vmatprep.subr.mxu0 0.0
    %1263 = vmatpush1.msra.mxu0 %v146
    %1264 = vmatprep.subr.mxu0 0.0
    %1265 = vmatpush1.msra.mxu0 %v147
    %1266 = vmatprep.subr.mxu0 0.0
    %1267 = vmatpush1.msra.mxu0 %v148
    %1268 = vmatprep.subr.mxu0 0.0
    %1269 = vmatpush1.msra.mxu0 0.0
    %1270 = vmatprep.subr.mxu0 0.0
    %1271 = vmatpush1.msra.mxu0 0.0
    %1272 = vmatprep.subr.mxu0 0.0
    %1273 = vmatpush1.msra.mxu0 0.0
    %1274 = vmatprep.subr.mxu0 0.0
    %1275 = vmatpush1.msra.mxu0 0.0
    %1276 = vmatprep.subr.mxu0 0.0
    %1277 = vmatpush1.msra.mxu0 0.0
    %1278 = vmatprep.subr.mxu0 0.0
    %1279 = vmatpush1.msra.mxu0 0.0
    %1280 = vmatprep.subr.mxu0 0.0
    %1281 = vmatpush1.msra.mxu0 0.0
    %1282 = vmatprep.subr.mxu0 0.0
    %1283 = vmatpush1.msra.mxu0 0.0
    %1284 = vmatprep.subr.mxu0 0.0
    %1285 = vmatpush1.msra.mxu0 0.0
    %1286 = vmatprep.subr.mxu0 0.0
    %1287 = vmatpush1.msra.mxu0 0.0
    %1288 = vmatprep.subr.mxu0 0.0
    %1289 = vmatpush1.msra.mxu0 0.0
    %1290 = vmatprep.subr.mxu0 0.0
    %1291 = vmatpush1.msra.mxu0 0.0
    %1292 = vmatprep.subr.mxu0 0.0
    %1293 = vmatpush1.msra.mxu0 0.0
    %1294 = vmatprep.subr.mxu0 0.0
    %1295 = vmatpush1.msra.mxu0 0.0
    %1296 = vmatprep.subr.mxu0 0.0
    %1297 = vmatpush1.msra.mxu0 0.0
    %1298 = vmatprep.subr.mxu0 0.0
    %1299 = vmatpush1.msra.mxu0 0.0
    %1300 = vmatprep.subr.mxu0 0.0
    %1301 = vmatpush1.msra.mxu0 0.0
    %1302 = vmatprep.subr.mxu0 0.0
    %1303 = vmatpush1.msra.mxu0 0.0
    %1304 = vmatprep.subr.mxu0 0.0
    %1305 = vmatpush1.msra.mxu0 0.0
    %1306 = vmatprep.subr.mxu0 0.0
    %1307 = vmatpush1.msra.mxu0 0.0
    %1308 = vmatprep.subr.mxu0 0.0
    %1309 = vmatpush1.msra.mxu0 0.0
    %1310 = vmatprep.subr.mxu0 0.0
    %1311 = vmatpush1.msra.mxu0 0.0
    %1312 = vmatprep.subr.mxu0 0.0
    %1313 = vmatpush1.msra.mxu0 0.0
    %1314 = vmatprep.subr.mxu0 0.0
    %1315 = vmatpush1.msra.mxu0 0.0
    %1316 = vmatprep.subr.mxu0 0.0
    %1317 = vmatpush1.msra.mxu0 0.0
    %1318 = vmatprep.subr.mxu0 0.0
    %1319 = vmatpush1.msra.mxu0 0.0
    %1320 = vmatprep.subr.mxu0 0.0
    %1321 = vmatpush1.msra.mxu0 0.0
    %1322 = vmatprep.subr.mxu0 0.0
    %1323 = vmatpush1.msra.mxu0 0.0
    %1324 = vmatprep.mubr.f32.mxu0 0.0
    %1325 = vmatmul.mubr.f32.gmra.mrb[0].mxu0 %v1249
    %v1326 = vpop.f32.mrb[0].mxu0
    %v1327 = vadd.f32 0.0, %v1326
    %v1328 = vpop.f32.mrb[0].mxu0
    %1329 = vmatprep.mubr.f32.mxu0 0.0
    %1330 = vmatmul.mubr.f32.gmra.mrb[0].mxu0 %v1252
    %v1331 = vpop.f32.mrb[0].mxu0
    %v1332 = vadd.f32 0.0, %v1331
    %v1333 = vpop.f32.mrb[0].mxu0
    %1334 = vmatprep.mubr.f32.mxu0 0.0
    %1335 = vmatmul.mubr.f32.gmra.mrb[0].mxu0 %v1255
    %v1336 = vpop.f32.mrb[0].mxu0
    %v1337 = vadd.f32 0.0, %v1336
    %v1338 = vpop.f32.mrb[0].mxu0
    %1339 = vmatprep.mubr.f32.mxu0 0.0
    %1340 = vmatmul.mubr.f32.gmra.mrb[0].mxu0 %v1258
    %v1341 = vpop.f32.mrb[0].mxu0
    %v1342 = vadd.f32 0.0, %v1341
    %v1343 = vpop.f32.mrb[0].mxu0
    %1344 = vdwg.mxu0
    %v1346 = vsel %vm436, %v747, 0
    %v1349 = vsel %vm436, %v752, 0
    %v1352 = vsel %vm436, %v828, 0
    %v1355 = vsel %vm436, %v833, 0
    %1357 = vmatprep.subr.mxu0 0.0
    %1358 = vmatpush1.msra.mxu0 %v141
    %1359 = vmatprep.subr.mxu0 0.0
    %1360 = vmatpush1.msra.mxu0 %v142
    %1361 = vmatprep.subr.mxu0 0.0
    %1362 = vmatpush1.msra.mxu0 %v143
    %1363 = vmatprep.subr.mxu0 0.0
    %1364 = vmatpush1.msra.mxu0 %v144
    %1365 = vmatprep.subr.mxu0 0.0
    %1366 = vmatpush1.msra.mxu0 0.0
    %1367 = vmatprep.subr.mxu0 0.0
    %1368 = vmatpush1.msra.mxu0 0.0
    %1369 = vmatprep.subr.mxu0 0.0
    %1370 = vmatpush1.msra.mxu0 0.0
    %1371 = vmatprep.subr.mxu0 0.0
    %1372 = vmatpush1.msra.mxu0 0.0
    %1373 = vmatprep.subr.mxu0 0.0
    %1374 = vmatpush1.msra.mxu0 0.0
    %1375 = vmatprep.subr.mxu0 0.0
    %1376 = vmatpush1.msra.mxu0 0.0
    %1377 = vmatprep.subr.mxu0 0.0
    %1378 = vmatpush1.msra.mxu0 0.0
    %1379 = vmatprep.subr.mxu0 0.0
    %1380 = vmatpush1.msra.mxu0 0.0
    %1381 = vmatprep.subr.mxu0 0.0
    %1382 = vmatpush1.msra.mxu0 0.0
    %1383 = vmatprep.subr.mxu0 0.0
    %1384 = vmatpush1.msra.mxu0 0.0
    %1385 = vmatprep.subr.mxu0 0.0
    %1386 = vmatpush1.msra.mxu0 0.0
    %1387 = vmatprep.subr.mxu0 0.0
    %1388 = vmatpush1.msra.mxu0 0.0
    %1389 = vmatprep.subr.mxu0 0.0
    %1390 = vmatpush1.msra.mxu0 0.0
    %1391 = vmatprep.subr.mxu0 0.0
    %1392 = vmatpush1.msra.mxu0 0.0
    %1393 = vmatprep.subr.mxu0 0.0
    %1394 = vmatpush1.msra.mxu0 0.0
    %1395 = vmatprep.subr.mxu0 0.0
    %1396 = vmatpush1.msra.mxu0 0.0
    %1397 = vmatprep.subr.mxu0 0.0
    %1398 = vmatpush1.msra.mxu0 0.0
    %1399 = vmatprep.subr.mxu0 0.0
    %1400 = vmatpush1.msra.mxu0 0.0
    %1401 = vmatprep.subr.mxu0 0.0
    %1402 = vmatpush1.msra.mxu0 0.0
    %1403 = vmatprep.subr.mxu0 0.0
    %1404 = vmatpush1.msra.mxu0 0.0
    %1405 = vmatprep.subr.mxu0 0.0
    %1406 = vmatpush1.msra.mxu0 0.0
    %1407 = vmatprep.subr.mxu0 0.0
    %1408 = vmatpush1.msra.mxu0 0.0
    %1409 = vmatprep.subr.mxu0 0.0
    %1410 = vmatpush1.msra.mxu0 0.0
    %1411 = vmatprep.subr.mxu0 0.0
    %1412 = vmatpush1.msra.mxu0 0.0
    %1413 = vmatprep.subr.mxu0 0.0
    %1414 = vmatpush1.msra.mxu0 0.0
    %1415 = vmatprep.subr.mxu0 0.0
    %1416 = vmatpush1.msra.mxu0 0.0
    %1417 = vmatprep.subr.mxu0 0.0
    %1418 = vmatpush1.msra.mxu0 0.0
    %1419 = vmatprep.subr.mxu0 0.0
    %1420 = vmatpush1.msra.mxu0 0.0
    %1421 = vmatprep.mubr.f32.mxu0 0.0
    %1422 = vmatmul.mubr.f32.gmra.mrb[0].mxu0 %v1346
    %v1423 = vpop.f32.mrb[0].mxu0
    %v1424 = vadd.f32 %v1327, %v1423
    %v1425 = vpop.f32.mrb[0].mxu0
    %1426 = vmatprep.mubr.f32.mxu0 0.0
    %1427 = vmatmul.mubr.f32.gmra.mrb[0].mxu0 %v1349
    %v1428 = vpop.f32.mrb[0].mxu0
    %v1429 = vadd.f32 %v1332, %v1428
    %v1430 = vpop.f32.mrb[0].mxu0
    %1431 = vmatprep.mubr.f32.mxu0 0.0
    %1432 = vmatmul.mubr.f32.gmra.mrb[0].mxu0 %v1352
    %v1433 = vpop.f32.mrb[0].mxu0
    %v1434 = vadd.f32 %v1337, %v1433
    %v1435 = vpop.f32.mrb[0].mxu0
    %1436 = vmatprep.mubr.f32.mxu0 0.0
    %1437 = vmatmul.mubr.f32.gmra.mrb[0].mxu0 %v1355
    %v1438 = vpop.f32.mrb[0].mxu0
    %v1439 = vadd.f32 %v1342, %v1438
    %v1440 = vpop.f32.mrb[0].mxu0
    %1441 = vdwg.mxu0
    %1442 = vrot.lane.b32.xlu0 %v306, 64
    %v1443 = vpop.permute.xlu0 %1442
    %1444 = vrot.lane.b32.xlu0 %v312, 64
    %v1445 = vpop.permute.xlu0 %1444
    %1446 = vrot.lane.b32.xlu0 %v308, 64
    %v1447 = vpop.permute.xlu0 %1446
    %1448 = vrot.lane.b32.xlu0 %v314, 64
    %v1449 = vpop.permute.xlu0 %1448
    %v1450 = vsel %vm436, %v1443, 0
    %v1452 = vsel %vm436, %v1445, 0
    %v1454 = vsel %vm436, %v1447, 0
    %v1456 = vsel %vm436, %v1449, 0
    %1458 = vmatprep.subr.mxu0 0.0
    %1459 = vmatpush1.xpose.msra.mxu0 %v1454
    %1460 = vmatprep.subr.mxu0 0.0
    %1461 = vmatpush1.xpose.msra.mxu0 %v1456
    %1462 = vmatprep.subr.mxu0 0.0
    %1463 = vmatpush1.xpose.msra.mxu0 0.0
    %1464 = vmatprep.subr.mxu0 0.0
    %1465 = vmatpush1.xpose.msra.mxu0 0.0
    %1466 = vmatprep.subr.mxu0 0.0
    %1467 = vmatpush1.xpose.msra.mxu0 0.0
    %1468 = vmatprep.subr.mxu0 0.0
    %1469 = vmatpush1.xpose.msra.mxu0 0.0
    %1470 = vmatprep.subr.mxu0 0.0
    %1471 = vmatpush1.xpose.msra.mxu0 0.0
    %1472 = vmatprep.subr.mxu0 0.0
    %1473 = vmatpush1.xpose.msra.mxu0 0.0
    %1474 = vmatprep.subr.mxu0 0.0
    %1475 = vmatpush1.xpose.msra.mxu0 0.0
    %1476 = vmatprep.subr.mxu0 0.0
    %1477 = vmatpush1.xpose.msra.mxu0 0.0
    %1478 = vmatprep.subr.mxu0 0.0
    %1479 = vmatpush1.xpose.msra.mxu0 0.0
    %1480 = vmatprep.subr.mxu0 0.0
    %1481 = vmatpush1.xpose.msra.mxu0 0.0
    %1482 = vmatprep.subr.mxu0 0.0
    %1483 = vmatpush1.xpose.msra.mxu0 0.0
    %1484 = vmatprep.subr.mxu0 0.0
    %1485 = vmatpush1.xpose.msra.mxu0 0.0
    %1486 = vmatprep.subr.mxu0 0.0
    %1487 = vmatpush1.xpose.msra.mxu0 0.0
    %1488 = vmatprep.subr.mxu0 0.0
    %1489 = vmatpush1.xpose.msra.mxu0 0.0
    %1490 = vmatprep.subr.mxu0 0.0
    %1491 = vmatpush1.xpose.msra.mxu0 0.0
    %1492 = vmatprep.subr.mxu0 0.0
    %1493 = vmatpush1.xpose.msra.mxu0 0.0
    %1494 = vmatprep.subr.mxu0 0.0
    %1495 = vmatpush1.xpose.msra.mxu0 0.0
    %1496 = vmatprep.subr.mxu0 0.0
    %1497 = vmatpush1.xpose.msra.mxu0 0.0
    %1498 = vmatprep.subr.mxu0 0.0
    %1499 = vmatpush1.xpose.msra.mxu0 0.0
    %1500 = vmatprep.subr.mxu0 0.0
    %1501 = vmatpush1.xpose.msra.mxu0 0.0
    %1502 = vmatprep.subr.mxu0 0.0
    %1503 = vmatpush1.xpose.msra.mxu0 0.0
    %1504 = vmatprep.subr.mxu0 0.0
    %1505 = vmatpush1.xpose.msra.mxu0 0.0
    %1506 = vmatprep.subr.mxu0 0.0
    %1507 = vmatpush1.xpose.msra.mxu0 0.0
    %1508 = vmatprep.subr.mxu0 0.0
    %1509 = vmatpush1.xpose.msra.mxu0 0.0
    %1510 = vmatprep.subr.mxu0 0.0
    %1511 = vmatpush1.xpose.msra.mxu0 0.0
    %1512 = vmatprep.subr.mxu0 0.0
    %1513 = vmatpush1.xpose.msra.mxu0 0.0
    %1514 = vmatprep.subr.mxu0 0.0
    %1515 = vmatpush1.xpose.msra.mxu0 0.0
    %1516 = vmatprep.subr.mxu0 0.0
    %1517 = vmatpush1.xpose.msra.mxu0 0.0
    %1518 = vmatprep.subr.mxu0 0.0
    %1519 = vmatpush1.xpose.msra.mxu0 0.0
    %1520 = vmatprep.subr.mxu0 0.0
    %1521 = vmatpush1.xpose.msra.mxu0 0.0
    %1522 = vmatprep.mubr.f32.mxu0 0.0
    %1523 = vmatmul.mubr.f32.gmra.mrb[0].mxu0 %v1450
    %v1524 = vpop.f32.mrb[0].mxu0
    %v1525 = vadd.f32 0.0, %v1524
    %v1526 = vpop.f32.mrb[0].mxu0
    %1527 = vmatprep.mubr.f32.mxu0 0.0
    %1528 = vmatmul.mubr.f32.gmra.mrb[0].mxu0 %v1452
    %v1529 = vpop.f32.mrb[0].mxu0
    %v1530 = vadd.f32 0.0, %v1529
    %v1531 = vpop.f32.mrb[0].mxu0
    %1532 = vdwg.mxu0
    %1533 = vrot.lane.b32.xlu0 %v318, 64
    %v1534 = vpop.permute.xlu0 %1533
    %1535 = vrot.lane.b32.xlu0 %v324, 64
    %v1536 = vpop.permute.xlu0 %1535
    %1537 = vrot.lane.b32.xlu0 %v320, 64
    %v1538 = vpop.permute.xlu0 %1537
    %1539 = vrot.lane.b32.xlu0 %v326, 64
    %v1540 = vpop.permute.xlu0 %1539
    %v1541 = vsel %vm436, %v1534, 0
    %v1543 = vsel %vm436, %v1536, 0
    %v1545 = vsel %vm436, %v1538, 0
    %v1547 = vsel %vm436, %v1540, 0
    %1549 = vmatprep.subr.mxu0 0.0
    %1550 = vmatpush1.xpose.msra.mxu0 %v1545
    %1551 = vmatprep.subr.mxu0 0.0
    %1552 = vmatpush1.xpose.msra.mxu0 %v1547
    %1553 = vmatprep.subr.mxu0 0.0
    %1554 = vmatpush1.xpose.msra.mxu0 0.0
    %1555 = vmatprep.subr.mxu0 0.0
    %1556 = vmatpush1.xpose.msra.mxu0 0.0
    %1557 = vmatprep.subr.mxu0 0.0
    %1558 = vmatpush1.xpose.msra.mxu0 0.0
    %1559 = vmatprep.subr.mxu0 0.0
    %1560 = vmatpush1.xpose.msra.mxu0 0.0
    %1561 = vmatprep.subr.mxu0 0.0
    %1562 = vmatpush1.xpose.msra.mxu0 0.0
    %1563 = vmatprep.subr.mxu0 0.0
    %1564 = vmatpush1.xpose.msra.mxu0 0.0
    %1565 = vmatprep.subr.mxu0 0.0
    %1566 = vmatpush1.xpose.msra.mxu0 0.0
    %1567 = vmatprep.subr.mxu0 0.0
    %1568 = vmatpush1.xpose.msra.mxu0 0.0
    %1569 = vmatprep.subr.mxu0 0.0
    %1570 = vmatpush1.xpose.msra.mxu0 0.0
    %1571 = vmatprep.subr.mxu0 0.0
    %1572 = vmatpush1.xpose.msra.mxu0 0.0
    %1573 = vmatprep.subr.mxu0 0.0
    %1574 = vmatpush1.xpose.msra.mxu0 0.0
    %1575 = vmatprep.subr.mxu0 0.0
    %1576 = vmatpush1.xpose.msra.mxu0 0.0
    %1577 = vmatprep.subr.mxu0 0.0
    %1578 = vmatpush1.xpose.msra.mxu0 0.0
    %1579 = vmatprep.subr.mxu0 0.0
    %1580 = vmatpush1.xpose.msra.mxu0 0.0
    %1581 = vmatprep.subr.mxu0 0.0
    %1582 = vmatpush1.xpose.msra.mxu0 0.0
    %1583 = vmatprep.subr.mxu0 0.0
    %1584 = vmatpush1.xpose.msra.mxu0 0.0
    %1585 = vmatprep.subr.mxu0 0.0
    %1586 = vmatpush1.xpose.msra.mxu0 0.0
    %1587 = vmatprep.subr.mxu0 0.0
    %1588 = vmatpush1.xpose.msra.mxu0 0.0
    %1589 = vmatprep.subr.mxu0 0.0
    %1590 = vmatpush1.xpose.msra.mxu0 0.0
    %1591 = vmatprep.subr.mxu0 0.0
    %1592 = vmatpush1.xpose.msra.mxu0 0.0
    %1593 = vmatprep.subr.mxu0 0.0
    %1594 = vmatpush1.xpose.msra.mxu0 0.0
    %1595 = vmatprep.subr.mxu0 0.0
    %1596 = vmatpush1.xpose.msra.mxu0 0.0
    %1597 = vmatprep.subr.mxu0 0.0
    %1598 = vmatpush1.xpose.msra.mxu0 0.0
    %1599 = vmatprep.subr.mxu0 0.0
    %1600 = vmatpush1.xpose.msra.mxu0 0.0
    %1601 = vmatprep.subr.mxu0 0.0
    %1602 = vmatpush1.xpose.msra.mxu0 0.0
    %1603 = vmatprep.subr.mxu0 0.0
    %1604 = vmatpush1.xpose.msra.mxu0 0.0
    %1605 = vmatprep.subr.mxu0 0.0
    %1606 = vmatpush1.xpose.msra.mxu0 0.0
    %1607 = vmatprep.subr.mxu0 0.0
    %1608 = vmatpush1.xpose.msra.mxu0 0.0
    %1609 = vmatprep.subr.mxu0 0.0
    %1610 = vmatpush1.xpose.msra.mxu0 0.0
    %1611 = vmatprep.subr.mxu0 0.0
    %1612 = vmatpush1.xpose.msra.mxu0 0.0
    %1613 = vmatprep.mubr.f32.mxu0 0.0
    %1614 = vmatmul.mubr.f32.gmra.mrb[0].mxu0 %v1541
    %v1615 = vpop.f32.mrb[0].mxu0
    %v1616 = vadd.f32 0.0, %v1615
    %v1617 = vpop.f32.mrb[0].mxu0
    %1618 = vmatprep.mubr.f32.mxu0 0.0
    %1619 = vmatmul.mubr.f32.gmra.mrb[0].mxu0 %v1543
    %v1620 = vpop.f32.mrb[0].mxu0
    %v1621 = vadd.f32 0.0, %v1620
    %v1622 = vpop.f32.mrb[0].mxu0
    %1623 = vdwg.mxu0
    %v1624 = vmul.f32 %v1525, 0.17677669
    %v1625 = vmul.f32 %v1530, 0.17677669
    %v1626 = vmul.f32 %v1616, 0.17677669
    %v1627 = vmul.f32 %v1621, 0.17677669
    %v1628 = vadd.f32 %v1624, %v618
    %v1629 = vadd.f32 %v1625, %v618
    %v1630 = vadd.f32 %v1626, %v622
    %v1631 = vadd.f32 %v1627, %v622
    %v1632 = vsel %vm629, %v1628, -inf
    %1633 = vmax.xlane.f32.xlu0 %v1632
    %v1634 = vpop.xlane.xlu0 %1633
    %v1635 = vsel %vm629, %v1629, -inf
    %1636 = vmax.xlane.f32.xlu0 %v1635
    %v1637 = vpop.xlane.xlu0 %1636
    %v1638 = vsel %vm629, %v1630, -inf
    %1639 = vmax.xlane.f32.xlu0 %v1638
    %v1640 = vpop.xlane.xlu0 %1639
    %v1641 = vsel %vm629, %v1631, -inf
    %1642 = vmax.xlane.f32.xlu0 %v1641
    %v1643 = vpop.xlane.xlu0 %1642
    %v1644 = vsub.f32 %v1628, %v1634
    %v1645 = vsub.f32 %v1629, %v1637
    %v1646 = vsub.f32 %v1630, %v1640
    %v1647 = vsub.f32 %v1631, %v1643
    %v1648 = vmul.f32 %v1644, 1.442695
    %v1649 = vpow.pop %v1648
    %v1650 = vmul.f32 %v1645, 1.442695
    %v1651 = vpow.pop %v1650
    %v1652 = vmul.f32 %v1646, 1.442695
    %v1653 = vpow.pop %v1652
    %v1654 = vmul.f32 %v1647, 1.442695
    %v1655 = vpow.pop %v1654
    %v1656 = vsel %vm629, %v1649, 0.0
    %1657 = vadd.xlane.f32.xlu0 %v1656
    %v1658 = vpop.xlane.xlu0 %1657
    %v1659 = vsel %vm629, %v1651, 0.0
    %1660 = vadd.xlane.f32.xlu0 %v1659
    %v1661 = vpop.xlane.xlu0 %1660
    %v1662 = vsel %vm629, %v1653, 0.0
    %1663 = vadd.xlane.f32.xlu0 %v1662
    %v1664 = vpop.xlane.xlu0 %1663
    %v1665 = vsel %vm629, %v1655, 0.0
    %1666 = vadd.xlane.f32.xlu0 %v1665
    %v1667 = vpop.xlane.xlu0 %1666
    %v1668 = vrcp.pop %v1658
    %v1669 = vrcp.pop %v1661
    %v1670 = vrcp.pop %v1664
    %v1671 = vrcp.pop %v1667
    %v1672 = vmul.f32 %v1649, %v1668
    %v1673 = vmul.f32 %v1651, %v1669
    %v1674 = vmul.f32 %v1653, %v1670
    %v1675 = vmul.f32 %v1655, %v1671
    %1676 = vrot.lane.b32.xlu0 %v395, 64
    %v1677 = vpop.permute.xlu0 %1676
    %1678 = vrot.lane.b32.xlu0 %v400, 64
    %v1679 = vpop.permute.xlu0 %1678
    %v1683 = vsel %vm629, %v1672, 0
    %v1686 = vsel %vm629, %v1673, 0
    %1688 = vmatprep.subr.mxu0 0.0
    %1689 = vmatpush1.msra.mxu0 %v1677
    %1690 = vmatprep.subr.mxu0 0.0
    %1691 = vmatpush1.msra.mxu0 %v1679
    %1692 = vmatprep.subr.mxu0 0.0
    %1693 = vmatpush1.msra.mxu0 0.0
    %1694 = vmatprep.subr.mxu0 0.0
    %1695 = vmatpush1.msra.mxu0 0.0
    %1696 = vmatprep.subr.mxu0 0.0
    %1697 = vmatpush1.msra.mxu0 0.0
    %1698 = vmatprep.subr.mxu0 0.0
    %1699 = vmatpush1.msra.mxu0 0.0
    %1700 = vmatprep.subr.mxu0 0.0
    %1701 = vmatpush1.msra.mxu0 0.0
    %1702 = vmatprep.subr.mxu0 0.0
    %1703 = vmatpush1.msra.mxu0 0.0
    %1704 = vmatprep.subr.mxu0 0.0
    %1705 = vmatpush1.msra.mxu0 0.0
    %1706 = vmatprep.subr.mxu0 0.0
    %1707 = vmatpush1.msra.mxu0 0.0
    %1708 = vmatprep.subr.mxu0 0.0
    %1709 = vmatpush1.msra.mxu0 0.0
    %1710 = vmatprep.subr.mxu0 0.0
    %1711 = vmatpush1.msra.mxu0 0.0
    %1712 = vmatprep.subr.mxu0 0.0
    %1713 = vmatpush1.msra.mxu0 0.0
    %1714 = vmatprep.subr.mxu0 0.0
    %1715 = vmatpush1.msra.mxu0 0.0
    %1716 = vmatprep.subr.mxu0 0.0
    %1717 = vmatpush1.msra.mxu0 0.0
    %1718 = vmatprep.subr.mxu0 0.0
    %1719 = vmatpush1.msra.mxu0 0.0
    %1720 = vmatprep.subr.mxu0 0.0
    %1721 = vmatpush1.msra.mxu0 0.0
    %1722 = vmatprep.subr.mxu0 0.0
    %1723 = vmatpush1.msra.mxu0 0.0
    %1724 = vmatprep.subr.mxu0 0.0
    %1725 = vmatpush1.msra.mxu0 0.0
    %1726 = vmatprep.subr.mxu0 0.0
    %1727 = vmatpush1.msra.mxu0 0.0
    %1728 = vmatprep.subr.mxu0 0.0
    %1729 = vmatpush1.msra.mxu0 0.0
    %1730 = vmatprep.subr.mxu0 0.0
    %1731 = vmatpush1.msra.mxu0 0.0
    %1732 = vmatprep.subr.mxu0 0.0
    %1733 = vmatpush1.msra.mxu0 0.0
    %1734 = vmatprep.subr.mxu0 0.0
    %1735 = vmatpush1.msra.mxu0 0.0
    %1736 = vmatprep.subr.mxu0 0.0
    %1737 = vmatpush1.msra.mxu0 0.0
    %1738 = vmatprep.subr.mxu0 0.0
    %1739 = vmatpush1.msra.mxu0 0.0
    %1740 = vmatprep.subr.mxu0 0.0
    %1741 = vmatpush1.msra.mxu0 0.0
    %1742 = vmatprep.subr.mxu0 0.0
    %1743 = vmatpush1.msra.mxu0 0.0
    %1744 = vmatprep.subr.mxu0 0.0
    %1745 = vmatpush1.msra.mxu0 0.0
    %1746 = vmatprep.subr.mxu0 0.0
    %1747 = vmatpush1.msra.mxu0 0.0
    %1748 = vmatprep.subr.mxu0 0.0
    %1749 = vmatpush1.msra.mxu0 0.0
    %1750 = vmatprep.subr.mxu0 0.0
    %1751 = vmatpush1.msra.mxu0 0.0
    %1752 = vmatprep.mubr.f32.mxu0 0.0
    %1753 = vmatmul.mubr.f32.gmra.mrb[0].mxu0 %v1683
    %v1754 = vpop.f32.mrb[0].mxu0
    %v1755 = vadd.f32 0.0, %v1754
    %v1756 = vpop.f32.mrb[0].mxu0
    %1757 = vmatprep.mubr.f32.mxu0 0.0
    %1758 = vmatmul.mubr.f32.gmra.mrb[0].mxu0 %v1686
    %v1759 = vpop.f32.mrb[0].mxu0
    %v1760 = vadd.f32 0.0, %v1759
    %v1761 = vpop.f32.mrb[0].mxu0
    %1762 = vdwg.mxu0
    %1763 = vrot.lane.b32.xlu0 %v405, 64
    %v1764 = vpop.permute.xlu0 %1763
    %1765 = vrot.lane.b32.xlu0 %v410, 64
    %v1766 = vpop.permute.xlu0 %1765
    %v1770 = vsel %vm629, %v1674, 0
    %v1773 = vsel %vm629, %v1675, 0
    %1775 = vmatprep.subr.mxu0 0.0
    %1776 = vmatpush1.msra.mxu0 %v1764
    %1777 = vmatprep.subr.mxu0 0.0
    %1778 = vmatpush1.msra.mxu0 %v1766
    %1779 = vmatprep.subr.mxu0 0.0
    %1780 = vmatpush1.msra.mxu0 0.0
    %1781 = vmatprep.subr.mxu0 0.0
    %1782 = vmatpush1.msra.mxu0 0.0
    %1783 = vmatprep.subr.mxu0 0.0
    %1784 = vmatpush1.msra.mxu0 0.0
    %1785 = vmatprep.subr.mxu0 0.0
    %1786 = vmatpush1.msra.mxu0 0.0
    %1787 = vmatprep.subr.mxu0 0.0
    %1788 = vmatpush1.msra.mxu0 0.0
    %1789 = vmatprep.subr.mxu0 0.0
    %1790 = vmatpush1.msra.mxu0 0.0
    %1791 = vmatprep.subr.mxu0 0.0
    %1792 = vmatpush1.msra.mxu0 0.0
    %1793 = vmatprep.subr.mxu0 0.0
    %1794 = vmatpush1.msra.mxu0 0.0
    %1795 = vmatprep.subr.mxu0 0.0
    %1796 = vmatpush1.msra.mxu0 0.0
    %1797 = vmatprep.subr.mxu0 0.0
    %1798 = vmatpush1.msra.mxu0 0.0
    %1799 = vmatprep.subr.mxu0 0.0
    %1800 = vmatpush1.msra.mxu0 0.0
    %1801 = vmatprep.subr.mxu0 0.0
    %1802 = vmatpush1.msra.mxu0 0.0
    %1803 = vmatprep.subr.mxu0 0.0
    %1804 = vmatpush1.msra.mxu0 0.0
    %1805 = vmatprep.subr.mxu0 0.0
    %1806 = vmatpush1.msra.mxu0 0.0
    %1807 = vmatprep.subr.mxu0 0.0
    %1808 = vmatpush1.msra.mxu0 0.0
    %1809 = vmatprep.subr.mxu0 0.0
    %1810 = vmatpush1.msra.mxu0 0.0
    %1811 = vmatprep.subr.mxu0 0.0
    %1812 = vmatpush1.msra.mxu0 0.0
    %1813 = vmatprep.subr.mxu0 0.0
    %1814 = vmatpush1.msra.mxu0 0.0
    %1815 = vmatprep.subr.mxu0 0.0
    %1816 = vmatpush1.msra.mxu0 0.0
    %1817 = vmatprep.subr.mxu0 0.0
    %1818 = vmatpush1.msra.mxu0 0.0
    %1819 = vmatprep.subr.mxu0 0.0
    %1820 = vmatpush1.msra.mxu0 0.0
    %1821 = vmatprep.subr.mxu0 0.0
    %1822 = vmatpush1.msra.mxu0 0.0
    %1823 = vmatprep.subr.mxu0 0.0
    %1824 = vmatpush1.msra.mxu0 0.0
    %1825 = vmatprep.subr.mxu0 0.0
    %1826 = vmatpush1.msra.mxu0 0.0
    %1827 = vmatprep.subr.mxu0 0.0
    %1828 = vmatpush1.msra.mxu0 0.0
    %1829 = vmatprep.subr.mxu0 0.0
    %1830 = vmatpush1.msra.mxu0 0.0
    %1831 = vmatprep.subr.mxu0 0.0
    %1832 = vmatpush1.msra.mxu0 0.0
    %1833 = vmatprep.subr.mxu0 0.0
    %1834 = vmatpush1.msra.mxu0 0.0
    %1835 = vmatprep.subr.mxu0 0.0
    %1836 = vmatpush1.msra.mxu0 0.0
    %1837 = vmatprep.subr.mxu0 0.0
    %1838 = vmatpush1.msra.mxu0 0.0
    %1839 = vmatprep.mubr.f32.mxu0 0.0
    %1840 = vmatmul.mubr.f32.gmra.mrb[0].mxu0 %v1770
    %v1841 = vpop.f32.mrb[0].mxu0
    %v1842 = vadd.f32 0.0, %v1841
    %v1843 = vpop.f32.mrb[0].mxu0
    %1844 = vmatprep.mubr.f32.mxu0 0.0
    %1845 = vmatmul.mubr.f32.gmra.mrb[0].mxu0 %v1773
    %v1846 = vpop.f32.mrb[0].mxu0
    %v1847 = vadd.f32 0.0, %v1846
    %v1848 = vpop.f32.mrb[0].mxu0
    %1849 = vdwg.mxu0
    %v1851 = vsel %vm436, %v1755, 0
    %v1854 = vsel %vm436, %v1760, 0
    %v1857 = vsel %vm436, %v1842, 0
    %v1860 = vsel %vm436, %v1847, 0
    %1862 = vmatprep.subr.mxu0 0.0
    %1863 = vmatpush1.msra.mxu0 %v149
    %1864 = vmatprep.subr.mxu0 0.0
    %1865 = vmatpush1.msra.mxu0 %v150
    %1866 = vmatprep.subr.mxu0 0.0
    %1867 = vmatpush1.msra.mxu0 %v151
    %1868 = vmatprep.subr.mxu0 0.0
    %1869 = vmatpush1.msra.mxu0 %v152
    %1870 = vmatprep.subr.mxu0 0.0
    %1871 = vmatpush1.msra.mxu0 0.0
    %1872 = vmatprep.subr.mxu0 0.0
    %1873 = vmatpush1.msra.mxu0 0.0
    %1874 = vmatprep.subr.mxu0 0.0
    %1875 = vmatpush1.msra.mxu0 0.0
    %1876 = vmatprep.subr.mxu0 0.0
    %1877 = vmatpush1.msra.mxu0 0.0
    %1878 = vmatprep.subr.mxu0 0.0
    %1879 = vmatpush1.msra.mxu0 0.0
    %1880 = vmatprep.subr.mxu0 0.0
    %1881 = vmatpush1.msra.mxu0 0.0
    %1882 = vmatprep.subr.mxu0 0.0
    %1883 = vmatpush1.msra.mxu0 0.0
    %1884 = vmatprep.subr.mxu0 0.0
    %1885 = vmatpush1.msra.mxu0 0.0
    %1886 = vmatprep.subr.mxu0 0.0
    %1887 = vmatpush1.msra.mxu0 0.0
    %1888 = vmatprep.subr.mxu0 0.0
    %1889 = vmatpush1.msra.mxu0 0.0
    %1890 = vmatprep.subr.mxu0 0.0
    %1891 = vmatpush1.msra.mxu0 0.0
    %1892 = vmatprep.subr.mxu0 0.0
    %1893 = vmatpush1.msra.mxu0 0.0
    %1894 = vmatprep.subr.mxu0 0.0
    %1895 = vmatpush1.msra.mxu0 0.0
    %1896 = vmatprep.subr.mxu0 0.0
    %1897 = vmatpush1.msra.mxu0 0.0
    %1898 = vmatprep.subr.mxu0 0.0
    %1899 = vmatpush1.msra.mxu0 0.0
    %1900 = vmatprep.subr.mxu0 0.0
    %1901 = vmatpush1.msra.mxu0 0.0
    %1902 = vmatprep.subr.mxu0 0.0
    %1903 = vmatpush1.msra.mxu0 0.0
    %1904 = vmatprep.subr.mxu0 0.0
    %1905 = vmatpush1.msra.mxu0 0.0
    %1906 = vmatprep.subr.mxu0 0.0
    %1907 = vmatpush1.msra.mxu0 0.0
    %1908 = vmatprep.subr.mxu0 0.0
    %1909 = vmatpush1.msra.mxu0 0.0
    %1910 = vmatprep.subr.mxu0 0.0
    %1911 = vmatpush1.msra.mxu0 0.0
    %1912 = vmatprep.subr.mxu0 0.0
    %1913 = vmatpush1.msra.mxu0 0.0
    %1914 = vmatprep.subr.mxu0 0.0
    %1915 = vmatpush1.msra.mxu0 0.0
    %1916 = vmatprep.subr.mxu0 0.0
    %1917 = vmatpush1.msra.mxu0 0.0
    %1918 = vmatprep.subr.mxu0 0.0
    %1919 = vmatpush1.msra.mxu0 0.0
    %1920 = vmatprep.subr.mxu0 0.0
    %1921 = vmatpush1.msra.mxu0 0.0
    %1922 = vmatprep.subr.mxu0 0.0
    %1923 = vmatpush1.msra.mxu0 0.0
    %1924 = vmatprep.subr.mxu0 0.0
    %1925 = vmatpush1.msra.mxu0 0.0
    %1926 = vmatprep.mubr.f32.mxu0 0.0
    %1927 = vmatmul.mubr.f32.gmra.mrb[0].mxu0 %v1851
    %v1928 = vpop.f32.mrb[0].mxu0
    %v1929 = vadd.f32 0.0, %v1928
    %v1930 = vpop.f32.mrb[0].mxu0
    %1931 = vmatprep.mubr.f32.mxu0 0.0
    %1932 = vmatmul.mubr.f32.gmra.mrb[0].mxu0 %v1854
    %v1933 = vpop.f32.mrb[0].mxu0
    %v1934 = vadd.f32 0.0, %v1933
    %v1935 = vpop.f32.mrb[0].mxu0
    %1936 = vmatprep.mubr.f32.mxu0 0.0
    %1937 = vmatmul.mubr.f32.gmra.mrb[0].mxu0 %v1857
    %v1938 = vpop.f32.mrb[0].mxu0
    %v1939 = vadd.f32 0.0, %v1938
    %v1940 = vpop.f32.mrb[0].mxu0
    %1941 = vmatprep.mubr.f32.mxu0 0.0
    %1942 = vmatmul.mubr.f32.gmra.mrb[0].mxu0 %v1860
    %v1943 = vpop.f32.mrb[0].mxu0
    %v1944 = vadd.f32 0.0, %v1943
    %v1945 = vpop.f32.mrb[0].mxu0
    %1946 = vdwg.mxu0
    %v1947 = vadd.f32 %v1424, %v1929
    %v1948 = vadd.f32 %v1429, %v1934
    %v1949 = vadd.f32 %v1434, %v1939
    %v1950 = vadd.f32 %v1439, %v1944
    %1951 = vrot.lane.b32.xlu0 %v306, 32
    %v1952 = vpop.permute.xlu0 %1951
    %1953 = vrot.lane.b32.xlu0 %v312, 32
    %v1954 = vpop.permute.xlu0 %1953
    %1955 = vrot.lane.b32.xlu0 %v308, 32
    %v1956 = vpop.permute.xlu0 %1955
    %1957 = vrot.lane.b32.xlu0 %v314, 32
    %v1958 = vpop.permute.xlu0 %1957
    %v1959 = vsel %vm436, %v1952, 0
    %v1961 = vsel %vm436, %v1954, 0
    %v1963 = vsel %vm436, %v1956, 0
    %v1965 = vsel %vm436, %v1958, 0
    %1967 = vmatprep.subr.mxu0 0.0
    %1968 = vmatpush1.xpose.msra.mxu0 %v1963
    %1969 = vmatprep.subr.mxu0 0.0
    %1970 = vmatpush1.xpose.msra.mxu0 %v1965
    %1971 = vmatprep.subr.mxu0 0.0
    %1972 = vmatpush1.xpose.msra.mxu0 0.0
    %1973 = vmatprep.subr.mxu0 0.0
    %1974 = vmatpush1.xpose.msra.mxu0 0.0
    %1975 = vmatprep.subr.mxu0 0.0
    %1976 = vmatpush1.xpose.msra.mxu0 0.0
    %1977 = vmatprep.subr.mxu0 0.0
    %1978 = vmatpush1.xpose.msra.mxu0 0.0
    %1979 = vmatprep.subr.mxu0 0.0
    %1980 = vmatpush1.xpose.msra.mxu0 0.0
    %1981 = vmatprep.subr.mxu0 0.0
    %1982 = vmatpush1.xpose.msra.mxu0 0.0
    %1983 = vmatprep.subr.mxu0 0.0
    %1984 = vmatpush1.xpose.msra.mxu0 0.0
    %1985 = vmatprep.subr.mxu0 0.0
    %1986 = vmatpush1.xpose.msra.mxu0 0.0
    %1987 = vmatprep.subr.mxu0 0.0
    %1988 = vmatpush1.xpose.msra.mxu0 0.0
    %1989 = vmatprep.subr.mxu0 0.0
    %1990 = vmatpush1.xpose.msra.mxu0 0.0
    %1991 = vmatprep.subr.mxu0 0.0
    %1992 = vmatpush1.xpose.msra.mxu0 0.0
    %1993 = vmatprep.subr.mxu0 0.0
    %1994 = vmatpush1.xpose.msra.mxu0 0.0
    %1995 = vmatprep.subr.mxu0 0.0
    %1996 = vmatpush1.xpose.msra.mxu0 0.0
    %1997 = vmatprep.subr.mxu0 0.0
    %1998 = vmatpush1.xpose.msra.mxu0 0.0
    %1999 = vmatprep.subr.mxu0 0.0
    %2000 = vmatpush1.xpose.msra.mxu0 0.0
    %2001 = vmatprep.subr.mxu0 0.0
    %2002 = vmatpush1.xpose.msra.mxu0 0.0
    %2003 = vmatprep.subr.mxu0 0.0
    %2004 = vmatpush1.xpose.msra.mxu0 0.0
    %2005 = vmatprep.subr.mxu0 0.0
    %2006 = vmatpush1.xpose.msra.mxu0 0.0
    %2007 = vmatprep.subr.mxu0 0.0
    %2008 = vmatpush1.xpose.msra.mxu0 0.0
    %2009 = vmatprep.subr.mxu0 0.0
    %2010 = vmatpush1.xpose.msra.mxu0 0.0
    %2011 = vmatprep.subr.mxu0 0.0
    %2012 = vmatpush1.xpose.msra.mxu0 0.0
    %2013 = vmatprep.subr.mxu0 0.0
    %2014 = vmatpush1.xpose.msra.mxu0 0.0
    %2015 = vmatprep.subr.mxu0 0.0
    %2016 = vmatpush1.xpose.msra.mxu0 0.0
    %2017 = vmatprep.subr.mxu0 0.0
    %2018 = vmatpush1.xpose.msra.mxu0 0.0
    %2019 = vmatprep.subr.mxu0 0.0
    %2020 = vmatpush1.xpose.msra.mxu0 0.0
    %2021 = vmatprep.subr.mxu0 0.0
    %2022 = vmatpush1.xpose.msra.mxu0 0.0
    %2023 = vmatprep.subr.mxu0 0.0
    %2024 = vmatpush1.xpose.msra.mxu0 0.0
    %2025 = vmatprep.subr.mxu0 0.0
    %2026 = vmatpush1.xpose.msra.mxu0 0.0
    %2027 = vmatprep.subr.mxu0 0.0
    %2028 = vmatpush1.xpose.msra.mxu0 0.0
    %2029 = vmatprep.subr.mxu0 0.0
    %2030 = vmatpush1.xpose.msra.mxu0 0.0
    %2031 = vmatprep.mubr.f32.mxu0 0.0
    %2032 = vmatmul.mubr.f32.gmra.mrb[0].mxu0 %v1959
    %v2033 = vpop.f32.mrb[0].mxu0
    %v2034 = vadd.f32 0.0, %v2033
    %v2035 = vpop.f32.mrb[0].mxu0
    %2036 = vmatprep.mubr.f32.mxu0 0.0
    %2037 = vmatmul.mubr.f32.gmra.mrb[0].mxu0 %v1961
    %v2038 = vpop.f32.mrb[0].mxu0
    %v2039 = vadd.f32 0.0, %v2038
    %v2040 = vpop.f32.mrb[0].mxu0
    %2041 = vdwg.mxu0
    %2042 = vrot.lane.b32.xlu0 %v318, 32
    %v2043 = vpop.permute.xlu0 %2042
    %2044 = vrot.lane.b32.xlu0 %v324, 32
    %v2045 = vpop.permute.xlu0 %2044
    %2046 = vrot.lane.b32.xlu0 %v320, 32
    %v2047 = vpop.permute.xlu0 %2046
    %2048 = vrot.lane.b32.xlu0 %v326, 32
    %v2049 = vpop.permute.xlu0 %2048
    %v2050 = vsel %vm436, %v2043, 0
    %v2052 = vsel %vm436, %v2045, 0
    %v2054 = vsel %vm436, %v2047, 0
    %v2056 = vsel %vm436, %v2049, 0
    %2058 = vmatprep.subr.mxu0 0.0
    %2059 = vmatpush1.xpose.msra.mxu0 %v2054
    %2060 = vmatprep.subr.mxu0 0.0
    %2061 = vmatpush1.xpose.msra.mxu0 %v2056
    %2062 = vmatprep.subr.mxu0 0.0
    %2063 = vmatpush1.xpose.msra.mxu0 0.0
    %2064 = vmatprep.subr.mxu0 0.0
    %2065 = vmatpush1.xpose.msra.mxu0 0.0
    %2066 = vmatprep.subr.mxu0 0.0
    %2067 = vmatpush1.xpose.msra.mxu0 0.0
    %2068 = vmatprep.subr.mxu0 0.0
    %2069 = vmatpush1.xpose.msra.mxu0 0.0
    %2070 = vmatprep.subr.mxu0 0.0
    %2071 = vmatpush1.xpose.msra.mxu0 0.0
    %2072 = vmatprep.subr.mxu0 0.0
    %2073 = vmatpush1.xpose.msra.mxu0 0.0
    %2074 = vmatprep.subr.mxu0 0.0
    %2075 = vmatpush1.xpose.msra.mxu0 0.0
    %2076 = vmatprep.subr.mxu0 0.0
    %2077 = vmatpush1.xpose.msra.mxu0 0.0
    %2078 = vmatprep.subr.mxu0 0.0
    %2079 = vmatpush1.xpose.msra.mxu0 0.0
    %2080 = vmatprep.subr.mxu0 0.0
    %2081 = vmatpush1.xpose.msra.mxu0 0.0
    %2082 = vmatprep.subr.mxu0 0.0
    %2083 = vmatpush1.xpose.msra.mxu0 0.0
    %2084 = vmatprep.subr.mxu0 0.0
    %2085 = vmatpush1.xpose.msra.mxu0 0.0
    %2086 = vmatprep.subr.mxu0 0.0
    %2087 = vmatpush1.xpose.msra.mxu0 0.0
    %2088 = vmatprep.subr.mxu0 0.0
    %2089 = vmatpush1.xpose.msra.mxu0 0.0
    %2090 = vmatprep.subr.mxu0 0.0
    %2091 = vmatpush1.xpose.msra.mxu0 0.0
    %2092 = vmatprep.subr.mxu0 0.0
    %2093 = vmatpush1.xpose.msra.mxu0 0.0
    %2094 = vmatprep.subr.mxu0 0.0
    %2095 = vmatpush1.xpose.msra.mxu0 0.0
    %2096 = vmatprep.subr.mxu0 0.0
    %2097 = vmatpush1.xpose.msra.mxu0 0.0
    %2098 = vmatprep.subr.mxu0 0.0
    %2099 = vmatpush1.xpose.msra.mxu0 0.0
    %2100 = vmatprep.subr.mxu0 0.0
    %2101 = vmatpush1.xpose.msra.mxu0 0.0
    %2102 = vmatprep.subr.mxu0 0.0
    %2103 = vmatpush1.xpose.msra.mxu0 0.0
    %2104 = vmatprep.subr.mxu0 0.0
    %2105 = vmatpush1.xpose.msra.mxu0 0.0
    %2106 = vmatprep.subr.mxu0 0.0
    %2107 = vmatpush1.xpose.msra.mxu0 0.0
    %2108 = vmatprep.subr.mxu0 0.0
    %2109 = vmatpush1.xpose.msra.mxu0 0.0
    %2110 = vmatprep.subr.mxu0 0.0
    %2111 = vmatpush1.xpose.msra.mxu0 0.0
    %2112 = vmatprep.subr.mxu0 0.0
    %2113 = vmatpush1.xpose.msra.mxu0 0.0
    %2114 = vmatprep.subr.mxu0 0.0
    %2115 = vmatpush1.xpose.msra.mxu0 0.0
    %2116 = vmatprep.subr.mxu0 0.0
    %2117 = vmatpush1.xpose.msra.mxu0 0.0
    %2118 = vmatprep.subr.mxu0 0.0
    %2119 = vmatpush1.xpose.msra.mxu0 0.0
    %2120 = vmatprep.subr.mxu0 0.0
    %2121 = vmatpush1.xpose.msra.mxu0 0.0
    %2122 = vmatprep.mubr.f32.mxu0 0.0
    %2123 = vmatmul.mubr.f32.gmra.mrb[0].mxu0 %v2050
    %v2124 = vpop.f32.mrb[0].mxu0
    %v2125 = vadd.f32 0.0, %v2124
    %v2126 = vpop.f32.mrb[0].mxu0
    %2127 = vmatprep.mubr.f32.mxu0 0.0
    %2128 = vmatmul.mubr.f32.gmra.mrb[0].mxu0 %v2052
    %v2129 = vpop.f32.mrb[0].mxu0
    %v2130 = vadd.f32 0.0, %v2129
    %v2131 = vpop.f32.mrb[0].mxu0
    %2132 = vdwg.mxu0
    %v2133 = vmul.f32 %v2034, 0.17677669
    %v2134 = vmul.f32 %v2039, 0.17677669
    %v2135 = vmul.f32 %v2125, 0.17677669
    %v2136 = vmul.f32 %v2130, 0.17677669
    %v2137 = vadd.f32 %v2133, %v618
    %v2138 = vadd.f32 %v2134, %v618
    %v2139 = vadd.f32 %v2135, %v622
    %v2140 = vadd.f32 %v2136, %v622
    %v2141 = vsel %vm629, %v2137, -inf
    %2142 = vmax.xlane.f32.xlu0 %v2141
    %v2143 = vpop.xlane.xlu0 %2142
    %v2144 = vsel %vm629, %v2138, -inf
    %2145 = vmax.xlane.f32.xlu0 %v2144
    %v2146 = vpop.xlane.xlu0 %2145
    %v2147 = vsel %vm629, %v2139, -inf
    %2148 = vmax.xlane.f32.xlu0 %v2147
    %v2149 = vpop.xlane.xlu0 %2148
    %v2150 = vsel %vm629, %v2140, -inf
    %2151 = vmax.xlane.f32.xlu0 %v2150
    %v2152 = vpop.xlane.xlu0 %2151
    %v2153 = vsub.f32 %v2137, %v2143
    %v2154 = vsub.f32 %v2138, %v2146
    %v2155 = vsub.f32 %v2139, %v2149
    %v2156 = vsub.f32 %v2140, %v2152
    %v2157 = vmul.f32 %v2153, 1.442695
    %v2158 = vpow.pop %v2157
    %v2159 = vmul.f32 %v2154, 1.442695
    %v2160 = vpow.pop %v2159
    %v2161 = vmul.f32 %v2155, 1.442695
    %v2162 = vpow.pop %v2161
    %v2163 = vmul.f32 %v2156, 1.442695
    %v2164 = vpow.pop %v2163
    %v2165 = vsel %vm629, %v2158, 0.0
    %2166 = vadd.xlane.f32.xlu0 %v2165
    %v2167 = vpop.xlane.xlu0 %2166
    %v2168 = vsel %vm629, %v2160, 0.0
    %2169 = vadd.xlane.f32.xlu0 %v2168
    %v2170 = vpop.xlane.xlu0 %2169
    %v2171 = vsel %vm629, %v2162, 0.0
    %2172 = vadd.xlane.f32.xlu0 %v2171
    %v2173 = vpop.xlane.xlu0 %2172
    %v2174 = vsel %vm629, %v2164, 0.0
    %2175 = vadd.xlane.f32.xlu0 %v2174
    %v2176 = vpop.xlane.xlu0 %2175
    %v2177 = vrcp.pop %v2167
    %v2178 = vrcp.pop %v2170
    %v2179 = vrcp.pop %v2173
    %v2180 = vrcp.pop %v2176
    %v2181 = vmul.f32 %v2158, %v2177
    %v2182 = vmul.f32 %v2160, %v2178
    %v2183 = vmul.f32 %v2162, %v2179
    %v2184 = vmul.f32 %v2164, %v2180
    %2185 = vrot.lane.b32.xlu0 %v395, 32
    %v2186 = vpop.permute.xlu0 %2185
    %2187 = vrot.lane.b32.xlu0 %v400, 32
    %v2188 = vpop.permute.xlu0 %2187
    %v2192 = vsel %vm629, %v2181, 0
    %v2195 = vsel %vm629, %v2182, 0
    %2197 = vmatprep.subr.mxu0 0.0
    %2198 = vmatpush1.msra.mxu0 %v2186
    %2199 = vmatprep.subr.mxu0 0.0
    %2200 = vmatpush1.msra.mxu0 %v2188
    %2201 = vmatprep.subr.mxu0 0.0
    %2202 = vmatpush1.msra.mxu0 0.0
    %2203 = vmatprep.subr.mxu0 0.0
    %2204 = vmatpush1.msra.mxu0 0.0
    %2205 = vmatprep.subr.mxu0 0.0
    %2206 = vmatpush1.msra.mxu0 0.0
    %2207 = vmatprep.subr.mxu0 0.0
    %2208 = vmatpush1.msra.mxu0 0.0
    %2209 = vmatprep.subr.mxu0 0.0
    %2210 = vmatpush1.msra.mxu0 0.0
    %2211 = vmatprep.subr.mxu0 0.0
    %2212 = vmatpush1.msra.mxu0 0.0
    %2213 = vmatprep.subr.mxu0 0.0
    %2214 = vmatpush1.msra.mxu0 0.0
    %2215 = vmatprep.subr.mxu0 0.0
    %2216 = vmatpush1.msra.mxu0 0.0
    %2217 = vmatprep.subr.mxu0 0.0
    %2218 = vmatpush1.msra.mxu0 0.0
    %2219 = vmatprep.subr.mxu0 0.0
    %2220 = vmatpush1.msra.mxu0 0.0
    %2221 = vmatprep.subr.mxu0 0.0
    %2222 = vmatpush1.msra.mxu0 0.0
    %2223 = vmatprep.subr.mxu0 0.0
    %2224 = vmatpush1.msra.mxu0 0.0
    %2225 = vmatprep.subr.mxu0 0.0
    %2226 = vmatpush1.msra.mxu0 0.0
    %2227 = vmatprep.subr.mxu0 0.0
    %2228 = vmatpush1.msra.mxu0 0.0
    %2229 = vmatprep.subr.mxu0 0.0
    %2230 = vmatpush1.msra.mxu0 0.0
    %2231 = vmatprep.subr.mxu0 0.0
    %2232 = vmatpush1.msra.mxu0 0.0
    %2233 = vmatprep.subr.mxu0 0.0
    %2234 = vmatpush1.msra.mxu0 0.0
    %2235 = vmatprep.subr.mxu0 0.0
    %2236 = vmatpush1.msra.mxu0 0.0
    %2237 = vmatprep.subr.mxu0 0.0
    %2238 = vmatpush1.msra.mxu0 0.0
    %2239 = vmatprep.subr.mxu0 0.0
    %2240 = vmatpush1.msra.mxu0 0.0
    %2241 = vmatprep.subr.mxu0 0.0
    %2242 = vmatpush1.msra.mxu0 0.0
    %2243 = vmatprep.subr.mxu0 0.0
    %2244 = vmatpush1.msra.mxu0 0.0
    %2245 = vmatprep.subr.mxu0 0.0
    %2246 = vmatpush1.msra.mxu0 0.0
    %2247 = vmatprep.subr.mxu0 0.0
    %2248 = vmatpush1.msra.mxu0 0.0
    %2249 = vmatprep.subr.mxu0 0.0
    %2250 = vmatpush1.msra.mxu0 0.0
    %2251 = vmatprep.subr.mxu0 0.0
    %2252 = vmatpush1.msra.mxu0 0.0
    %2253 = vmatprep.subr.mxu0 0.0
    %2254 = vmatpush1.msra.mxu0 0.0
    %2255 = vmatprep.subr.mxu0 0.0
    %2256 = vmatpush1.msra.mxu0 0.0
    %2257 = vmatprep.subr.mxu0 0.0
    %2258 = vmatpush1.msra.mxu0 0.0
    %2259 = vmatprep.subr.mxu0 0.0
    %2260 = vmatpush1.msra.mxu0 0.0
    %2261 = vmatprep.mubr.f32.mxu0 0.0
    %2262 = vmatmul.mubr.f32.gmra.mrb[0].mxu0 %v2192
    %v2263 = vpop.f32.mrb[0].mxu0
    %v2264 = vadd.f32 0.0, %v2263
    %v2265 = vpop.f32.mrb[0].mxu0
    %2266 = vmatprep.mubr.f32.mxu0 0.0
    %2267 = vmatmul.mubr.f32.gmra.mrb[0].mxu0 %v2195
    %v2268 = vpop.f32.mrb[0].mxu0
    %v2269 = vadd.f32 0.0, %v2268
    %v2270 = vpop.f32.mrb[0].mxu0
    %2271 = vdwg.mxu0
    %2272 = vrot.lane.b32.xlu0 %v405, 32
    %v2273 = vpop.permute.xlu0 %2272
    %2274 = vrot.lane.b32.xlu0 %v410, 32
    %v2275 = vpop.permute.xlu0 %2274
    %v2279 = vsel %vm629, %v2183, 0
    %v2282 = vsel %vm629, %v2184, 0
    %2284 = vmatprep.subr.mxu0 0.0
    %2285 = vmatpush1.msra.mxu0 %v2273
    %2286 = vmatprep.subr.mxu0 0.0
    %2287 = vmatpush1.msra.mxu0 %v2275
    %2288 = vmatprep.subr.mxu0 0.0
    %2289 = vmatpush1.msra.mxu0 0.0
    %2290 = vmatprep.subr.mxu0 0.0
    %2291 = vmatpush1.msra.mxu0 0.0
    %2292 = vmatprep.subr.mxu0 0.0
    %2293 = vmatpush1.msra.mxu0 0.0
    %2294 = vmatprep.subr.mxu0 0.0
    %2295 = vmatpush1.msra.mxu0 0.0
    %2296 = vmatprep.subr.mxu0 0.0
    %2297 = vmatpush1.msra.mxu0 0.0
    %2298 = vmatprep.subr.mxu0 0.0
    %2299 = vmatpush1.msra.mxu0 0.0
    %2300 = vmatprep.subr.mxu0 0.0
    %2301 = vmatpush1.msra.mxu0 0.0
    %2302 = vmatprep.subr.mxu0 0.0
    %2303 = vmatpush1.msra.mxu0 0.0
    %2304 = vmatprep.subr.mxu0 0.0
    %2305 = vmatpush1.msra.mxu0 0.0
    %2306 = vmatprep.subr.mxu0 0.0
    %2307 = vmatpush1.msra.mxu0 0.0
    %2308 = vmatprep.subr.mxu0 0.0
    %2309 = vmatpush1.msra.mxu0 0.0
    %2310 = vmatprep.subr.mxu0 0.0
    %2311 = vmatpush1.msra.mxu0 0.0
    %2312 = vmatprep.subr.mxu0 0.0
    %2313 = vmatpush1.msra.mxu0 0.0
    %2314 = vmatprep.subr.mxu0 0.0
    %2315 = vmatpush1.msra.mxu0 0.0
    %2316 = vmatprep.subr.mxu0 0.0
    %2317 = vmatpush1.msra.mxu0 0.0
    %2318 = vmatprep.subr.mxu0 0.0
    %2319 = vmatpush1.msra.mxu0 0.0
    %2320 = vmatprep.subr.mxu0 0.0
    %2321 = vmatpush1.msra.mxu0 0.0
    %2322 = vmatprep.subr.mxu0 0.0
    %2323 = vmatpush1.msra.mxu0 0.0
    %2324 = vmatprep.subr.mxu0 0.0
    %2325 = vmatpush1.msra.mxu0 0.0
    %2326 = vmatprep.subr.mxu0 0.0
    %2327 = vmatpush1.msra.mxu0 0.0
    %2328 = vmatprep.subr.mxu0 0.0
    %2329 = vmatpush1.msra.mxu0 0.0
    %2330 = vmatprep.subr.mxu0 0.0
    %2331 = vmatpush1.msra.mxu0 0.0
    %2332 = vmatprep.subr.mxu0 0.0
    %2333 = vmatpush1.msra.mxu0 0.0
    %2334 = vmatprep.subr.mxu0 0.0
    %2335 = vmatpush1.msra.mxu0 0.0
    %2336 = vmatprep.subr.mxu0 0.0
    %2337 = vmatpush1.msra.mxu0 0.0
    %2338 = vmatprep.subr.mxu0 0.0
    %2339 = vmatpush1.msra.mxu0 0.0
    %2340 = vmatprep.subr.mxu0 0.0
    %2341 = vmatpush1.msra.mxu0 0.0
    %2342 = vmatprep.subr.mxu0 0.0
    %2343 = vmatpush1.msra.mxu0 0.0
    %2344 = vmatprep.subr.mxu0 0.0
    %2345 = vmatpush1.msra.mxu0 0.0
    %2346 = vmatprep.subr.mxu0 0.0
    %2347 = vmatpush1.msra.mxu0 0.0
    %2348 = vmatprep.mubr.f32.mxu0 0.0
    %2349 = vmatmul.mubr.f32.gmra.mrb[0].mxu0 %v2279
    %v2350 = vpop.f32.mrb[0].mxu0
    %v2351 = vadd.f32 0.0, %v2350
    %v2352 = vpop.f32.mrb[0].mxu0
    %2353 = vmatprep.mubr.f32.mxu0 0.0
    %2354 = vmatmul.mubr.f32.gmra.mrb[0].mxu0 %v2282
    %v2355 = vpop.f32.mrb[0].mxu0
    %v2356 = vadd.f32 0.0, %v2355
    %v2357 = vpop.f32.mrb[0].mxu0
    %2358 = vdwg.mxu0
    %v2360 = vsel %vm436, %v2264, 0
    %v2363 = vsel %vm436, %v2269, 0
    %v2366 = vsel %vm436, %v2351, 0
    %v2369 = vsel %vm436, %v2356, 0
    %2371 = vmatprep.subr.mxu0 0.0
    %2372 = vmatpush1.msra.mxu0 %v153
    %2373 = vmatprep.subr.mxu0 0.0
    %2374 = vmatpush1.msra.mxu0 %v154
    %2375 = vmatprep.subr.mxu0 0.0
    %2376 = vmatpush1.msra.mxu0 %v155
    %2377 = vmatprep.subr.mxu0 0.0
    %2378 = vmatpush1.msra.mxu0 %v156
    %2379 = vmatprep.subr.mxu0 0.0
    %2380 = vmatpush1.msra.mxu0 0.0
    %2381 = vmatprep.subr.mxu0 0.0
    %2382 = vmatpush1.msra.mxu0 0.0
    %2383 = vmatprep.subr.mxu0 0.0
    %2384 = vmatpush1.msra.mxu0 0.0
    %2385 = vmatprep.subr.mxu0 0.0
    %2386 = vmatpush1.msra.mxu0 0.0
    %2387 = vmatprep.subr.mxu0 0.0
    %2388 = vmatpush1.msra.mxu0 0.0
    %2389 = vmatprep.subr.mxu0 0.0
    %2390 = vmatpush1.msra.mxu0 0.0
    %2391 = vmatprep.subr.mxu0 0.0
    %2392 = vmatpush1.msra.mxu0 0.0
    %2393 = vmatprep.subr.mxu0 0.0
    %2394 = vmatpush1.msra.mxu0 0.0
    %2395 = vmatprep.subr.mxu0 0.0
    %2396 = vmatpush1.msra.mxu0 0.0
    %2397 = vmatprep.subr.mxu0 0.0
    %2398 = vmatpush1.msra.mxu0 0.0
    %2399 = vmatprep.subr.mxu0 0.0
    %2400 = vmatpush1.msra.mxu0 0.0
    %2401 = vmatprep.subr.mxu0 0.0
    %2402 = vmatpush1.msra.mxu0 0.0
    %2403 = vmatprep.subr.mxu0 0.0
    %2404 = vmatpush1.msra.mxu0 0.0
    %2405 = vmatprep.subr.mxu0 0.0
    %2406 = vmatpush1.msra.mxu0 0.0
    %2407 = vmatprep.subr.mxu0 0.0
    %2408 = vmatpush1.msra.mxu0 0.0
    %2409 = vmatprep.subr.mxu0 0.0
    %2410 = vmatpush1.msra.mxu0 0.0
    %2411 = vmatprep.subr.mxu0 0.0
    %2412 = vmatpush1.msra.mxu0 0.0
    %2413 = vmatprep.subr.mxu0 0.0
    %2414 = vmatpush1.msra.mxu0 0.0
    %2415 = vmatprep.subr.mxu0 0.0
    %2416 = vmatpush1.msra.mxu0 0.0
    %2417 = vmatprep.subr.mxu0 0.0
    %2418 = vmatpush1.msra.mxu0 0.0
    %2419 = vmatprep.subr.mxu0 0.0
    %2420 = vmatpush1.msra.mxu0 0.0
    %2421 = vmatprep.subr.mxu0 0.0
    %2422 = vmatpush1.msra.mxu0 0.0
    %2423 = vmatprep.subr.mxu0 0.0
    %2424 = vmatpush1.msra.mxu0 0.0
    %2425 = vmatprep.subr.mxu0 0.0
    %2426 = vmatpush1.msra.mxu0 0.0
    %2427 = vmatprep.subr.mxu0 0.0
    %2428 = vmatpush1.msra.mxu0 0.0
    %2429 = vmatprep.subr.mxu0 0.0
    %2430 = vmatpush1.msra.mxu0 0.0
    %2431 = vmatprep.subr.mxu0 0.0
    %2432 = vmatpush1.msra.mxu0 0.0
    %2433 = vmatprep.subr.mxu0 0.0
    %2434 = vmatpush1.msra.mxu0 0.0
    %2435 = vmatprep.mubr.f32.mxu0 0.0
    %2436 = vmatmul.mubr.f32.gmra.mrb[0].mxu0 %v2360
    %v2437 = vpop.f32.mrb[0].mxu0
    %v2438 = vadd.f32 0.0, %v2437
    %v2439 = vpop.f32.mrb[0].mxu0
    %2440 = vmatprep.mubr.f32.mxu0 0.0
    %2441 = vmatmul.mubr.f32.gmra.mrb[0].mxu0 %v2363
    %v2442 = vpop.f32.mrb[0].mxu0
    %v2443 = vadd.f32 0.0, %v2442
    %v2444 = vpop.f32.mrb[0].mxu0
    %2445 = vmatprep.mubr.f32.mxu0 0.0
    %2446 = vmatmul.mubr.f32.gmra.mrb[0].mxu0 %v2366
    %v2447 = vpop.f32.mrb[0].mxu0
    %v2448 = vadd.f32 0.0, %v2447
    %v2449 = vpop.f32.mrb[0].mxu0
    %2450 = vmatprep.mubr.f32.mxu0 0.0
    %2451 = vmatmul.mubr.f32.gmra.mrb[0].mxu0 %v2369
    %v2452 = vpop.f32.mrb[0].mxu0
    %v2453 = vadd.f32 0.0, %v2452
    %v2454 = vpop.f32.mrb[0].mxu0
    %2455 = vdwg.mxu0
    %v2456 = vadd.f32 %v1947, %v2438
    %v2457 = vadd.f32 %v1948, %v2443
    %v2458 = vadd.f32 %v1949, %v2448
    %v2459 = vadd.f32 %v1950, %v2453
    %v2460 = vlaneseq
    %v2461 = vshrl.u32 %v2460, 7
    %v2462 = vsub.s32 0, %v2461
    %v2463 = vrot.slane %v222, %v2462
    %v2464 = vadd.f32 %v2456, %v2463
    %v2465 = vadd.f32 %v2457, %v2463
    %v2466 = vadd.f32 %v2458, %v2463
    %v2467 = vadd.f32 %v2459, %v2463
    %v2468 = vadd.f32 %v87, %v2464
    %v2469 = vadd.f32 %v88, %v2465
    %v2470 = vadd.f32 %v89, %v2466
    %v2471 = vadd.f32 %v90, %v2467
    %2472 = vadd.xlane.f32.xlu0 %v2468
    %v2473 = vpop.xlane.xlu0 %2472
    %2474 = vadd.xlane.f32.xlu0 %v2469
    %v2475 = vpop.xlane.xlu0 %2474
    %2476 = vadd.xlane.f32.xlu0 %v2470
    %v2477 = vpop.xlane.xlu0 %2476
    %2478 = vadd.xlane.f32.xlu0 %v2471
    %v2479 = vpop.xlane.xlu0 %2478
    %v2480 = vrcp.pop 128.0
    %v2481 = vmul.f32 %v2473, %v2480
    %v2482 = vmul.f32 %v2475, %v2480
    %v2483 = vmul.f32 %v2477, %v2480
    %v2484 = vmul.f32 %v2479, %v2480
    %v2485 = vsub.f32 %v2468, %v2481
    %v2486 = vsub.f32 %v2469, %v2482
    %v2487 = vsub.f32 %v2470, %v2483
    %v2488 = vsub.f32 %v2471, %v2484
    %v2489 = vmul.f32 %v2485, %v2485
    %v2490 = vmul.f32 %v2486, %v2486
    %v2491 = vmul.f32 %v2487, %v2487
    %v2492 = vmul.f32 %v2488, %v2488
    %2493 = vadd.xlane.f32.xlu0 %v2489
    %v2494 = vpop.xlane.xlu0 %2493
    %2495 = vadd.xlane.f32.xlu0 %v2490
    %v2496 = vpop.xlane.xlu0 %2495
    %2497 = vadd.xlane.f32.xlu0 %v2491
    %v2498 = vpop.xlane.xlu0 %2497
    %2499 = vadd.xlane.f32.xlu0 %v2492
    %v2500 = vpop.xlane.xlu0 %2499
    %v2501 = vmul.f32 %v2494, %v2480
    %v2502 = vmul.f32 %v2496, %v2480
    %v2503 = vmul.f32 %v2498, %v2480
    %v2504 = vmul.f32 %v2500, %v2480
    %v2505 = vadd.f32 %v2501, 1e-05
    %v2506 = vadd.f32 %v2502, 1e-05
    %v2507 = vadd.f32 %v2503, 1e-05
    %v2508 = vadd.f32 %v2504, 1e-05
    %v2509 = vrsqrt.pop %v2505
    %v2510 = vrsqrt.pop %v2506
    %v2511 = vrsqrt.pop %v2507
    %v2512 = vrsqrt.pop %v2508
    %v2513 = vmul.f32 %v2485, %v2509
    %v2514 = vmul.f32 %v2486, %v2510
    %v2515 = vmul.f32 %v2487, %v2511
    %v2516 = vmul.f32 %v2488, %v2512
    %v2517 = vlaneseq
    %v2518 = vshrl.u32 %v2517, 7
    %v2519 = vsub.s32 1, %v2518
    %v2520 = vrot.slane %v222, %v2519
    %v2521 = vmul.f32 %v2513, %v2520
    %v2522 = vmul.f32 %v2514, %v2520
    %v2523 = vmul.f32 %v2515, %v2520
    %v2524 = vmul.f32 %v2516, %v2520
    %v2525 = vlaneseq
    %v2526 = vshrl.u32 %v2525, 7
    %v2527 = vsub.s32 2, %v2526
    %v2528 = vrot.slane %v222, %v2527
    %v2529 = vadd.f32 %v2521, %v2528
    %v2530 = vadd.f32 %v2522, %v2528
    %v2531 = vadd.f32 %v2523, %v2528
    %v2532 = vadd.f32 %v2524, %v2528
    %v2534 = vlaneseq
    %v2535 = vshrl.u32 %v2534, 7
    %v2536 = vsub.s32 0, %v2535
    %v2537 = vrot.slane %v189, %v2536
    %v2538 = vlaneseq
    %v2539 = vshrl.u32 %v2538, 7
    %v2540 = vsub.s32 1, %v2539
    %v2541 = vrot.slane %v189, %v2540
    %2544 = vmatprep.subr.mxu0 %v158
    %2545 = vmatpush1.msra.mxu0 %v157
    %2546 = vmatprep.subr.mxu0 %v160
    %2547 = vmatpush1.msra.mxu0 %v159
    %2548 = vmatprep.subr.mxu0 %v162
    %2549 = vmatpush1.msra.mxu0 %v161
    %2550 = vmatprep.subr.mxu0 %v164
    %2551 = vmatpush1.msra.mxu0 %v163
    %2552 = vmatprep.subr.mxu0 %v166
    %2553 = vmatpush1.msra.mxu0 %v165
    %2554 = vmatprep.subr.mxu0 %v168
    %2555 = vmatpush1.msra.mxu0 %v167
    %2556 = vmatprep.subr.mxu0 %v170
    %2557 = vmatpush1.msra.mxu0 %v169
    %2558 = vmatprep.subr.mxu0 %v172
    %2559 = vmatpush1.msra.mxu0 %v171
    %2560 = vmatprep.subr.mxu0 %v174
    %2561 = vmatpush1.msra.mxu0 %v173
    %2562 = vmatprep.subr.mxu0 %v176
    %2563 = vmatpush1.msra.mxu0 %v175
    %2564 = vmatprep.subr.mxu0 %v178
    %2565 = vmatpush1.msra.mxu0 %v177
    %2566 = vmatprep.subr.mxu0 %v180
    %2567 = vmatpush1.msra.mxu0 %v179
    %2568 = vmatprep.subr.mxu0 %v182
    %2569 = vmatpush1.msra.mxu0 %v181
    %2570 = vmatprep.subr.mxu0 %v184
    %2571 = vmatpush1.msra.mxu0 %v183
    %2572 = vmatprep.subr.mxu0 %v186
    %2573 = vmatpush1.msra.mxu0 %v185
    %2574 = vmatprep.subr.mxu0 %v188
    %2575 = vmatpush1.msra.mxu0 %v187
    %2576 = vmatprep.subr.mxu0 0.0
    %2577 = vmatpush1.msra.mxu0 0.0
    %2578 = vmatprep.subr.mxu0 0.0
    %2579 = vmatpush1.msra.mxu0 0.0
    %2580 = vmatprep.subr.mxu0 0.0
    %2581 = vmatpush1.msra.mxu0 0.0
    %2582 = vmatprep.subr.mxu0 0.0
    %2583 = vmatpush1.msra.mxu0 0.0
    %2584 = vmatprep.subr.mxu0 0.0
    %2585 = vmatpush1.msra.mxu0 0.0
    %2586 = vmatprep.subr.mxu0 0.0
    %2587 = vmatpush1.msra.mxu0 0.0
    %2588 = vmatprep.subr.mxu0 0.0
    %2589 = vmatpush1.msra.mxu0 0.0
    %2590 = vmatprep.subr.mxu0 0.0
    %2591 = vmatpush1.msra.mxu0 0.0
    %2592 = vmatprep.subr.mxu0 0.0
    %2593 = vmatpush1.msra.mxu0 0.0
    %2594 = vmatprep.subr.mxu0 0.0
    %2595 = vmatpush1.msra.mxu0 0.0
    %2596 = vmatprep.subr.mxu0 0.0
    %2597 = vmatpush1.msra.mxu0 0.0
    %2598 = vmatprep.subr.mxu0 0.0
    %2599 = vmatpush1.msra.mxu0 0.0
    %2600 = vmatprep.subr.mxu0 0.0
    %2601 = vmatpush1.msra.mxu0 0.0
    %2602 = vmatprep.subr.mxu0 0.0
    %2603 = vmatpush1.msra.mxu0 0.0
    %2604 = vmatprep.subr.mxu0 0.0
    %2605 = vmatpush1.msra.mxu0 0.0
    %2606 = vmatprep.subr.mxu0 0.0
    %2607 = vmatpush1.msra.mxu0 0.0
    %2608 = vmatprep.mubr.f32.mxu0 0.0
    %2609 = vmatmul.mubr.f32.gmra.mrb[0].mxu0 %v2529
    %v2610 = vpop.f32.mrb[0].mxu0
    %v2611 = vadd.f32 %v2537, %v2610
    %v2612 = vpop.f32.mrb[0].mxu0
    %v2613 = vadd.f32 %v2541, %v2612
    %2614 = vmatprep.mubr.f32.mxu0 0.0
    %2615 = vmatmul.mubr.f32.gmra.mrb[0].mxu0 %v2530
    %v2616 = vpop.f32.mrb[0].mxu0
    %v2617 = vadd.f32 %v2537, %v2616
    %v2618 = vpop.f32.mrb[0].mxu0
    %v2619 = vadd.f32 %v2541, %v2618
    %2620 = vmatprep.mubr.f32.mxu0 0.0
    %2621 = vmatmul.mubr.f32.gmra.mrb[0].mxu0 %v2531
    %v2622 = vpop.f32.mrb[0].mxu0
    %v2623 = vadd.f32 %v2537, %v2622
    %v2624 = vpop.f32.mrb[0].mxu0
    %v2625 = vadd.f32 %v2541, %v2624
    %2626 = vmatprep.mubr.f32.mxu0 0.0
    %2627 = vmatmul.mubr.f32.gmra.mrb[0].mxu0 %v2532
    %v2628 = vpop.f32.mrb[0].mxu0
    %v2629 = vadd.f32 %v2537, %v2628
    %v2630 = vpop.f32.mrb[0].mxu0
    %v2631 = vadd.f32 %v2541, %v2630
    %2632 = vdwg.mxu0
    %v2633 = vmax.f32 %v2611, 0.0
    %v2634 = vmax.f32 %v2613, 0.0
    %v2635 = vmax.f32 %v2617, 0.0
    %v2636 = vmax.f32 %v2619, 0.0
    %v2637 = vmax.f32 %v2623, 0.0
    %v2638 = vmax.f32 %v2625, 0.0
    %v2639 = vmax.f32 %v2629, 0.0
    %v2640 = vmax.f32 %v2631, 0.0
    %v2641 = vlaneseq
    %v2642 = vshrl.u32 %v2641, 7
    %v2643 = vsub.s32 3, %v2642
    %v2644 = vrot.slane %v222, %v2643
    %2645 = vmatprep.subr.mxu0 0.0
    %2646 = vmatpush1.msra.mxu0 %v190
    %2647 = vmatprep.subr.mxu0 0.0
    %2648 = vmatpush1.msra.mxu0 %v191
    %2649 = vmatprep.subr.mxu0 0.0
    %2650 = vmatpush1.msra.mxu0 %v192
    %2651 = vmatprep.subr.mxu0 0.0
    %2652 = vmatpush1.msra.mxu0 %v193
    %2653 = vmatprep.subr.mxu0 0.0
    %2654 = vmatpush1.msra.mxu0 %v194
    %2655 = vmatprep.subr.mxu0 0.0
    %2656 = vmatpush1.msra.mxu0 %v195
    %2657 = vmatprep.subr.mxu0 0.0
    %2658 = vmatpush1.msra.mxu0 %v196
    %2659 = vmatprep.subr.mxu0 0.0
    %2660 = vmatpush1.msra.mxu0 %v197
    %2661 = vmatprep.subr.mxu0 0.0
    %2662 = vmatpush1.msra.mxu0 %v198
    %2663 = vmatprep.subr.mxu0 0.0
    %2664 = vmatpush1.msra.mxu0 %v199
    %2665 = vmatprep.subr.mxu0 0.0
    %2666 = vmatpush1.msra.mxu0 %v200
    %2667 = vmatprep.subr.mxu0 0.0
    %2668 = vmatpush1.msra.mxu0 %v201
    %2669 = vmatprep.subr.mxu0 0.0
    %2670 = vmatpush1.msra.mxu0 %v202
    %2671 = vmatprep.subr.mxu0 0.0
    %2672 = vmatpush1.msra.mxu0 %v203
    %2673 = vmatprep.subr.mxu0 0.0
    %2674 = vmatpush1.msra.mxu0 %v204
    %2675 = vmatprep.subr.mxu0 0.0
    %2676 = vmatpush1.msra.mxu0 %v205
    %2677 = vmatprep.subr.mxu0 0.0
    %2678 = vmatpush1.msra.mxu0 %v206
    %2679 = vmatprep.subr.mxu0 0.0
    %2680 = vmatpush1.msra.mxu0 %v207
    %2681 = vmatprep.subr.mxu0 0.0
    %2682 = vmatpush1.msra.mxu0 %v208
    %2683 = vmatprep.subr.mxu0 0.0
    %2684 = vmatpush1.msra.mxu0 %v209
    %2685 = vmatprep.subr.mxu0 0.0
    %2686 = vmatpush1.msra.mxu0 %v210
    %2687 = vmatprep.subr.mxu0 0.0
    %2688 = vmatpush1.msra.mxu0 %v211
    %2689 = vmatprep.subr.mxu0 0.0
    %2690 = vmatpush1.msra.mxu0 %v212
    %2691 = vmatprep.subr.mxu0 0.0
    %2692 = vmatpush1.msra.mxu0 %v213
    %2693 = vmatprep.subr.mxu0 0.0
    %2694 = vmatpush1.msra.mxu0 %v214
    %2695 = vmatprep.subr.mxu0 0.0
    %2696 = vmatpush1.msra.mxu0 %v215
    %2697 = vmatprep.subr.mxu0 0.0
    %2698 = vmatpush1.msra.mxu0 %v216
    %2699 = vmatprep.subr.mxu0 0.0
    %2700 = vmatpush1.msra.mxu0 %v217
    %2701 = vmatprep.subr.mxu0 0.0
    %2702 = vmatpush1.msra.mxu0 %v218
    %2703 = vmatprep.subr.mxu0 0.0
    %2704 = vmatpush1.msra.mxu0 %v219
    %2705 = vmatprep.subr.mxu0 0.0
    %2706 = vmatpush1.msra.mxu0 %v220
    %2707 = vmatprep.subr.mxu0 0.0
    %2708 = vmatpush1.msra.mxu0 %v221
    %2709 = vmatprep.mubr.f32.mxu0 %v2634
    %2710 = vmatmul.mubr.f32.gmra.mrb[0].mxu0 %v2633
    %v2711 = vpop.f32.mrb[0].mxu0
    %v2712 = vadd.f32 %v2644, %v2711
    %v2713 = vpop.f32.mrb[0].mxu0
    %2714 = vmatprep.mubr.f32.mxu0 %v2636
    %2715 = vmatmul.mubr.f32.gmra.mrb[0].mxu0 %v2635
    %v2716 = vpop.f32.mrb[0].mxu0
    %v2717 = vadd.f32 %v2644, %v2716
    %v2718 = vpop.f32.mrb[0].mxu0
    %2719 = vmatprep.mubr.f32.mxu0 %v2638
    %2720 = vmatmul.mubr.f32.gmra.mrb[0].mxu0 %v2637
    %v2721 = vpop.f32.mrb[0].mxu0
    %v2722 = vadd.f32 %v2644, %v2721
    %v2723 = vpop.f32.mrb[0].mxu0
    %2724 = vmatprep.mubr.f32.mxu0 %v2640
    %2725 = vmatmul.mubr.f32.gmra.mrb[0].mxu0 %v2639
    %v2726 = vpop.f32.mrb[0].mxu0
    %v2727 = vadd.f32 %v2644, %v2726
    %v2728 = vpop.f32.mrb[0].mxu0
    %2729 = vdwg.mxu0
    %v2730 = vadd.f32 %v2529, %v2712
    %v2731 = vadd.f32 %v2530, %v2717
    %v2732 = vadd.f32 %v2531, %v2722
    %v2733 = vadd.f32 %v2532, %v2727
    %2734 = vadd.xlane.f32.xlu0 %v2730
    %v2735 = vpop.xlane.xlu0 %2734
    %2736 = vadd.xlane.f32.xlu0 %v2731
    %v2737 = vpop.xlane.xlu0 %2736
    %2738 = vadd.xlane.f32.xlu0 %v2732
    %v2739 = vpop.xlane.xlu0 %2738
    %2740 = vadd.xlane.f32.xlu0 %v2733
    %v2741 = vpop.xlane.xlu0 %2740
    %v2742 = vmul.f32 %v2735, %v2480
    %v2743 = vmul.f32 %v2737, %v2480
    %v2744 = vmul.f32 %v2739, %v2480
    %v2745 = vmul.f32 %v2741, %v2480
    %v2746 = vsub.f32 %v2730, %v2742
    %v2747 = vsub.f32 %v2731, %v2743
    %v2748 = vsub.f32 %v2732, %v2744
    %v2749 = vsub.f32 %v2733, %v2745
    %v2750 = vmul.f32 %v2746, %v2746
    %v2751 = vmul.f32 %v2747, %v2747
    %v2752 = vmul.f32 %v2748, %v2748
    %v2753 = vmul.f32 %v2749, %v2749
    %2754 = vadd.xlane.f32.xlu0 %v2750
    %v2755 = vpop.xlane.xlu0 %2754
    %2756 = vadd.xlane.f32.xlu0 %v2751
    %v2757 = vpop.xlane.xlu0 %2756
    %2758 = vadd.xlane.f32.xlu0 %v2752
    %v2759 = vpop.xlane.xlu0 %2758
    %2760 = vadd.xlane.f32.xlu0 %v2753
    %v2761 = vpop.xlane.xlu0 %2760
    %v2762 = vmul.f32 %v2755, %v2480
    %v2763 = vmul.f32 %v2757, %v2480
    %v2764 = vmul.f32 %v2759, %v2480
    %v2765 = vmul.f32 %v2761, %v2480
    %v2766 = vadd.f32 %v2762, 1e-05
    %v2767 = vadd.f32 %v2763, 1e-05
    %v2768 = vadd.f32 %v2764, 1e-05
    %v2769 = vadd.f32 %v2765, 1e-05
    %v2770 = vrsqrt.pop %v2766
    %v2771 = vrsqrt.pop %v2767
    %v2772 = vrsqrt.pop %v2768
    %v2773 = vrsqrt.pop %v2769
    %v2774 = vmul.f32 %v2746, %v2770
    %v2775 = vmul.f32 %v2747, %v2771
    %v2776 = vmul.f32 %v2748, %v2772
    %v2777 = vmul.f32 %v2749, %v2773
    %v2778 = vlaneseq
    %v2779 = vshrl.u32 %v2778, 7
    %v2780 = vsub.s32 4, %v2779
    %v2781 = vrot.slane %v222, %v2780
    %v2782 = vmul.f32 %v2774, %v2781
    %v2783 = vmul.f32 %v2775, %v2781
    %v2784 = vmul.f32 %v2776, %v2781
    %v2785 = vmul.f32 %v2777, %v2781
    %v2786 = vlaneseq
    %v2787 = vshrl.u32 %v2786, 7
    %v2788 = vsub.s32 5, %v2787
    %v2789 = vrot.slane %v222, %v2788
    %v2790 = vadd.f32 %v2782, %v2789
    %v2791 = vadd.f32 %v2783, %v2789
    %v2792 = vadd.f32 %v2784, %v2789
    %v2793 = vadd.f32 %v2785, %v2789
    %s2794 = scalar_lea.vmem [#allocation3], 384
    %v2795 = vld [vmem:[%s2794] sm:$0xff]
    %v2796 = vld [vmem:[%s2794 + $0x8] sm:$0xff]
    %v2797 = vld [vmem:[%s2794 + $0x10] sm:$0xff]
    %v2798 = vld [vmem:[%s2794 + $0x18] sm:$0xff]
    %v2799 = vld [vmem:[%s2794 + $0x20] sm:$0xff]
    %v2800 = vld [vmem:[%s2794 + $0x28] sm:$0xff]
    %v2801 = vld [vmem:[%s2794 + $0x30] sm:$0xff]
    %v2802 = vld [vmem:[%s2794 + $0x38] sm:$0xff]
    %v2803 = vld [vmem:[%s2794 + $0x40] sm:$0xff]
    %v2804 = vld [vmem:[%s2794 + $0x48] sm:$0xff]
    %v2805 = vld [vmem:[%s2794 + $0x50] sm:$0xff]
    %v2806 = vld [vmem:[%s2794 + $0x58] sm:$0xff]
    %v2807 = vld [vmem:[%s2794 + $0x60] sm:$0xff]
    %v2808 = vld [vmem:[%s2794 + $0x68] sm:$0xff]
    %v2809 = vld [vmem:[%s2794 + $0x70] sm:$0xff]
    %v2810 = vld [vmem:[%s2794 + $0x78] sm:$0xff]
    %v2811 = vld [vmem:[%s2794 + $0x80] sm:$0xff]
    %v2812 = vld [vmem:[%s2794 + $0x88] sm:$0xff]
    %v2813 = vld [vmem:[%s2794 + $0x90] sm:$0xff]
    %v2814 = vld [vmem:[%s2794 + $0x98] sm:$0xff]
    %v2815 = vld [vmem:[%s2794 + $0xa0] sm:$0xff]
    %v2816 = vld [vmem:[%s2794 + $0xa8] sm:$0xff]
    %v2817 = vld [vmem:[%s2794 + $0xb0] sm:$0xff]
    %v2818 = vld [vmem:[%s2794 + $0xb8] sm:$0xff]
    %v2819 = vld [vmem:[%s2794 + $0xc0] sm:$0xff]
    %v2820 = vld [vmem:[%s2794 + $0xc8] sm:$0xff]
    %v2821 = vld [vmem:[%s2794 + $0xd0] sm:$0xff]
    %v2822 = vld [vmem:[%s2794 + $0xd8] sm:$0xff]
    %v2823 = vld [vmem:[%s2794 + $0xe0] sm:$0xff]
    %v2824 = vld [vmem:[%s2794 + $0xe8] sm:$0xff]
    %v2825 = vld [vmem:[%s2794 + $0xf0] sm:$0xff]
    %v2826 = vld [vmem:[%s2794 + $0xf8] sm:$0xff]
    %v2827 = vld [vmem:[%s2794 + $0x100] sm:$0xff]
    %v2828 = vld [vmem:[%s2794 + $0x108] sm:$0xff]
    %v2829 = vld [vmem:[%s2794 + $0x110] sm:$0xff]
    %v2830 = vld [vmem:[%s2794 + $0x118] sm:$0xff]
    %v2831 = vld [vmem:[%s2794 + $0x120] sm:$0xff]
    %v2832 = vld [vmem:[%s2794 + $0x128] sm:$0xff]
    %v2833 = vld [vmem:[%s2794 + $0x130] sm:$0xff]
    %v2834 = vld [vmem:[%s2794 + $0x138] sm:$0xff]
    %v2835 = vld [vmem:[%s2794 + $0x140] sm:$0xff]
    %v2836 = vld [vmem:[%s2794 + $0x148] sm:$0xff]
    %v2837 = vld [vmem:[%s2794 + $0x150] sm:$0xff]
    %v2838 = vld [vmem:[%s2794 + $0x158] sm:$0xff]
    %v2839 = vld [vmem:[%s2794 + $0x160] sm:$0xff]
    %v2840 = vld [vmem:[%s2794 + $0x168] sm:$0xff]
    %v2841 = vld [vmem:[%s2794 + $0x170] sm:$0xff]
    %v2842 = vld [vmem:[%s2794 + $0x178] sm:$0xff]
    %s2843 = scalar_lea.vmem %s5, 3
    %v2844 = vld [vmem:[%s2843] sm:$0x7]
    %s2845 = scalar_lea.vmem %s6, 128
    %v2846 = vld [vmem:[%s2845] sm:$0xff]
    %v2847 = vld [vmem:[%s2845 + $0x8] sm:$0xff]
    %v2848 = vld [vmem:[%s2845 + $0x10] sm:$0xff]
    %v2849 = vld [vmem:[%s2845 + $0x18] sm:$0xff]
    %v2850 = vld [vmem:[%s2845 + $0x20] sm:$0xff]
    %v2851 = vld [vmem:[%s2845 + $0x28] sm:$0xff]
    %v2852 = vld [vmem:[%s2845 + $0x30] sm:$0xff]
    %v2853 = vld [vmem:[%s2845 + $0x38] sm:$0xff]
    %v2854 = vld [vmem:[%s2845 + $0x40] sm:$0xff]
    %v2855 = vld [vmem:[%s2845 + $0x48] sm:$0xff]
    %v2856 = vld [vmem:[%s2845 + $0x50] sm:$0xff]
    %v2857 = vld [vmem:[%s2845 + $0x58] sm:$0xff]
    %v2858 = vld [vmem:[%s2845 + $0x60] sm:$0xff]
    %v2859 = vld [vmem:[%s2845 + $0x68] sm:$0xff]
    %v2860 = vld [vmem:[%s2845 + $0x70] sm:$0xff]
    %v2861 = vld [vmem:[%s2845 + $0x78] sm:$0xff]
    %s2862 = scalar_lea.vmem [#allocation5], 256
    %v2863 = vld [vmem:[%s2862] sm:$0xff]
    %v2864 = vld [vmem:[%s2862 + $0x8] sm:$0xff]
    %v2865 = vld [vmem:[%s2862 + $0x10] sm:$0xff]
    %v2866 = vld [vmem:[%s2862 + $0x18] sm:$0xff]
    %v2867 = vld [vmem:[%s2862 + $0x20] sm:$0xff]
    %v2868 = vld [vmem:[%s2862 + $0x28] sm:$0xff]
    %v2869 = vld [vmem:[%s2862 + $0x30] sm:$0xff]
    %v2870 = vld [vmem:[%s2862 + $0x38] sm:$0xff]
    %v2871 = vld [vmem:[%s2862 + $0x40] sm:$0xff]
    %v2872 = vld [vmem:[%s2862 + $0x48] sm:$0xff]
    %v2873 = vld [vmem:[%s2862 + $0x50] sm:$0xff]
    %v2874 = vld [vmem:[%s2862 + $0x58] sm:$0xff]
    %v2875 = vld [vmem:[%s2862 + $0x60] sm:$0xff]
    %v2876 = vld [vmem:[%s2862 + $0x68] sm:$0xff]
    %v2877 = vld [vmem:[%s2862 + $0x70] sm:$0xff]
    %v2878 = vld [vmem:[%s2862 + $0x78] sm:$0xff]
    %v2879 = vld [vmem:[%s2862 + $0x80] sm:$0xff]
    %v2880 = vld [vmem:[%s2862 + $0x88] sm:$0xff]
    %v2881 = vld [vmem:[%s2862 + $0x90] sm:$0xff]
    %v2882 = vld [vmem:[%s2862 + $0x98] sm:$0xff]
    %v2883 = vld [vmem:[%s2862 + $0xa0] sm:$0xff]
    %v2884 = vld [vmem:[%s2862 + $0xa8] sm:$0xff]
    %v2885 = vld [vmem:[%s2862 + $0xb0] sm:$0xff]
    %v2886 = vld [vmem:[%s2862 + $0xb8] sm:$0xff]
    %v2887 = vld [vmem:[%s2862 + $0xc0] sm:$0xff]
    %v2888 = vld [vmem:[%s2862 + $0xc8] sm:$0xff]
    %v2889 = vld [vmem:[%s2862 + $0xd0] sm:$0xff]
    %v2890 = vld [vmem:[%s2862 + $0xd8] sm:$0xff]
    %v2891 = vld [vmem:[%s2862 + $0xe0] sm:$0xff]
    %v2892 = vld [vmem:[%s2862 + $0xe8] sm:$0xff]
    %v2893 = vld [vmem:[%s2862 + $0xf0] sm:$0xff]
    %v2894 = vld [vmem:[%s2862 + $0xf8] sm:$0xff]
    %s2895 = scalar_lea.vmem %s8, 2
    %v2896 = vld [vmem:[%s2895] sm:$0x3]
    %s2897 = scalar_lea.vmem [#allocation7], 256
    %v2898 = vld [vmem:[%s2897] sm:$0xff]
    %v2899 = vld [vmem:[%s2897 + $0x8] sm:$0xff]
    %v2900 = vld [vmem:[%s2897 + $0x10] sm:$0xff]
    %v2901 = vld [vmem:[%s2897 + $0x18] sm:$0xff]
    %v2902 = vld [vmem:[%s2897 + $0x20] sm:$0xff]
    %v2903 = vld [vmem:[%s2897 + $0x28] sm:$0xff]
    %v2904 = vld [vmem:[%s2897 + $0x30] sm:$0xff]
    %v2905 = vld [vmem:[%s2897 + $0x38] sm:$0xff]
    %v2906 = vld [vmem:[%s2897 + $0x40] sm:$0xff]
    %v2907 = vld [vmem:[%s2897 + $0x48] sm:$0xff]
    %v2908 = vld [vmem:[%s2897 + $0x50] sm:$0xff]
    %v2909 = vld [vmem:[%s2897 + $0x58] sm:$0xff]
    %v2910 = vld [vmem:[%s2897 + $0x60] sm:$0xff]
    %v2911 = vld [vmem:[%s2897 + $0x68] sm:$0xff]
    %v2912 = vld [vmem:[%s2897 + $0x70] sm:$0xff]
    %v2913 = vld [vmem:[%s2897 + $0x78] sm:$0xff]
    %v2914 = vld [vmem:[%s2897 + $0x80] sm:$0xff]
    %v2915 = vld [vmem:[%s2897 + $0x88] sm:$0xff]
    %v2916 = vld [vmem:[%s2897 + $0x90] sm:$0xff]
    %v2917 = vld [vmem:[%s2897 + $0x98] sm:$0xff]
    %v2918 = vld [vmem:[%s2897 + $0xa0] sm:$0xff]
    %v2919 = vld [vmem:[%s2897 + $0xa8] sm:$0xff]
    %v2920 = vld [vmem:[%s2897 + $0xb0] sm:$0xff]
    %v2921 = vld [vmem:[%s2897 + $0xb8] sm:$0xff]
    %v2922 = vld [vmem:[%s2897 + $0xc0] sm:$0xff]
    %v2923 = vld [vmem:[%s2897 + $0xc8] sm:$0xff]
    %v2924 = vld [vmem:[%s2897 + $0xd0] sm:$0xff]
    %v2925 = vld [vmem:[%s2897 + $0xd8] sm:$0xff]
    %v2926 = vld [vmem:[%s2897 + $0xe0] sm:$0xff]
    %v2927 = vld [vmem:[%s2897 + $0xe8] sm:$0xff]
    %v2928 = vld [vmem:[%s2897 + $0xf0] sm:$0xff]
    %v2929 = vld [vmem:[%s2897 + $0xf8] sm:$0xff]
    %s2930 = scalar_lea.vmem %s10, 8
    %v2931 = vld [vmem:[%s2930] sm:$0x3f]
    %v2933 = vlaneseq
    %v2934 = vshrl.u32 %v2933, 7
    %v2935 = vsub.s32 0, %v2934
    %v2936 = vrot.slane %v2844, %v2935
    %v2937 = vlaneseq
    %v2938 = vshrl.u32 %v2937, 7
    %v2939 = vsub.s32 1, %v2938
    %v2940 = vrot.slane %v2844, %v2939
    %v2941 = vlaneseq
    %v2942 = vshrl.u32 %v2941, 7
    %v2943 = vsub.s32 2, %v2942
    %v2944 = vrot.slane %v2844, %v2943
    %2948 = vmatprep.subr.mxu0 %v2796
    %2949 = vmatpush1.msra.mxu0 %v2795
    %2950 = vmatprep.subr.mxu0 %v2799
    %2951 = vmatpush1.msra.mxu0 %v2798
    %2952 = vmatprep.subr.mxu0 %v2802
    %2953 = vmatpush1.msra.mxu0 %v2801
    %2954 = vmatprep.subr.mxu0 %v2805
    %2955 = vmatpush1.msra.mxu0 %v2804
    %2956 = vmatprep.subr.mxu0 %v2808
    %2957 = vmatpush1.msra.mxu0 %v2807
    %2958 = vmatprep.subr.mxu0 %v2811
    %2959 = vmatpush1.msra.mxu0 %v2810
    %2960 = vmatprep.subr.mxu0 %v2814
    %2961 = vmatpush1.msra.mxu0 %v2813
    %2962 = vmatprep.subr.mxu0 %v2817
    %2963 = vmatpush1.msra.mxu0 %v2816
    %2964 = vmatprep.subr.mxu0 %v2820
    %2965 = vmatpush1.msra.mxu0 %v2819
    %2966 = vmatprep.subr.mxu0 %v2823
    %2967 = vmatpush1.msra.mxu0 %v2822
    %2968 = vmatprep.subr.mxu0 %v2826
    %2969 = vmatpush1.msra.mxu0 %v2825
    %2970 = vmatprep.subr.mxu0 %v2829
    %2971 = vmatpush1.msra.mxu0 %v2828
    %2972 = vmatprep.subr.mxu0 %v2832
    %2973 = vmatpush1.msra.mxu0 %v2831
    %2974 = vmatprep.subr.mxu0 %v2835
    %2975 = vmatpush1.msra.mxu0 %v2834
    %2976 = vmatprep.subr.mxu0 %v2838
    %2977 = vmatpush1.msra.mxu0 %v2837
    %2978 = vmatprep.subr.mxu0 %v2841
    %2979 = vmatpush1.msra.mxu0 %v2840
    %2980 = vmatprep.subr.mxu0 0.0
    %2981 = vmatpush1.msra.mxu0 0.0
    %2982 = vmatprep.subr.mxu0 0.0
    %2983 = vmatpush1.msra.mxu0 0.0
    %2984 = vmatprep.subr.mxu0 0.0
    %2985 = vmatpush1.msra.mxu0 0.0
    %2986 = vmatprep.subr.mxu0 0.0
    %2987 = vmatpush1.msra.mxu0 0.0
    %2988 = vmatprep.subr.mxu0 0.0
    %2989 = vmatpush1.msra.mxu0 0.0
    %2990 = vmatprep.subr.mxu0 0.0
    %2991 = vmatpush1.msra.mxu0 0.0
    %2992 = vmatprep.subr.mxu0 0.0
    %2993 = vmatpush1.msra.mxu0 0.0
    %2994 = vmatprep.subr.mxu0 0.0
    %2995 = vmatpush1.msra.mxu0 0.0
    %2996 = vmatprep.subr.mxu0 0.0
    %2997 = vmatpush1.msra.mxu0 0.0
    %2998 = vmatprep.subr.mxu0 0.0
    %2999 = vmatpush1.msra.mxu0 0.0
    %3000 = vmatprep.subr.mxu0 0.0
    %3001 = vmatpush1.msra.mxu0 0.0
    %3002 = vmatprep.subr.mxu0 0.0
    %3003 = vmatpush1.msra.mxu0 0.0
    %3004 = vmatprep.subr.mxu0 0.0
    %3005 = vmatpush1.msra.mxu0 0.0
    %3006 = vmatprep.subr.mxu0 0.0
    %3007 = vmatpush1.msra.mxu0 0.0
    %3008 = vmatprep.subr.mxu0 0.0
    %3009 = vmatpush1.msra.mxu0 0.0
    %3010 = vmatprep.subr.mxu0 0.0
    %3011 = vmatpush1.msra.mxu0 0.0
    %3012 = vmatprep.mubr.f32.mxu0 0.0
    %3013 = vmatmul.mubr.f32.gmra.mrb[0].mxu0 %v2790
    %v3014 = vpop.f32.mrb[0].mxu0
    %v3015 = vadd.f32 %v2936, %v3014
    %v3016 = vpop.f32.mrb[0].mxu0
    %v3017 = vadd.f32 %v2940, %v3016
    %3018 = vmatprep.mubr.f32.mxu0 0.0
    %3019 = vmatmul.mubr.f32.gmra.mrb[0].mxu0 %v2791
    %v3020 = vpop.f32.mrb[0].mxu0
    %v3021 = vadd.f32 %v2936, %v3020
    %v3022 = vpop.f32.mrb[0].mxu0
    %v3023 = vadd.f32 %v2940, %v3022
    %3024 = vmatprep.mubr.f32.mxu0 0.0
    %3025 = vmatmul.mubr.f32.gmra.mrb[0].mxu0 %v2792
    %v3026 = vpop.f32.mrb[0].mxu0
    %v3027 = vadd.f32 %v2936, %v3026
    %v3028 = vpop.f32.mrb[0].mxu0
    %v3029 = vadd.f32 %v2940, %v3028
    %3030 = vmatprep.mubr.f32.mxu0 0.0
    %3031 = vmatmul.mubr.f32.gmra.mrb[0].mxu0 %v2793
    %v3032 = vpop.f32.mrb[0].mxu0
    %v3033 = vadd.f32 %v2936, %v3032
    %v3034 = vpop.f32.mrb[0].mxu0
    %v3035 = vadd.f32 %v2940, %v3034
    %3036 = vdwg.mxu0
    %3037 = vmatprep.subr.mxu0 0.0
    %3038 = vmatpush1.msra.mxu0 %v2797
    %3039 = vmatprep.subr.mxu0 0.0
    %3040 = vmatpush1.msra.mxu0 %v2800
    %3041 = vmatprep.subr.mxu0 0.0
    %3042 = vmatpush1.msra.mxu0 %v2803
    %3043 = vmatprep.subr.mxu0 0.0
    %3044 = vmatpush1.msra.mxu0 %v2806
    %3045 = vmatprep.subr.mxu0 0.0
    %3046 = vmatpush1.msra.mxu0 %v2809
    %3047 = vmatprep.subr.mxu0 0.0
    %3048 = vmatpush1.msra.mxu0 %v2812
    %3049 = vmatprep.subr.mxu0 0.0
    %3050 = vmatpush1.msra.mxu0 %v2815
    %3051 = vmatprep.subr.mxu0 0.0
    %3052 = vmatpush1.msra.mxu0 %v2818
    %3053 = vmatprep.subr.mxu0 0.0
    %3054 = vmatpush1.msra.mxu0 %v2821
    %3055 = vmatprep.subr.mxu0 0.0
    %3056 = vmatpush1.msra.mxu0 %v2824
    %3057 = vmatprep.subr.mxu0 0.0
    %3058 = vmatpush1.msra.mxu0 %v2827
    %3059 = vmatprep.subr.mxu0 0.0
    %3060 = vmatpush1.msra.mxu0 %v2830
    %3061 = vmatprep.subr.mxu0 0.0
    %3062 = vmatpush1.msra.mxu0 %v2833
    %3063 = vmatprep.subr.mxu0 0.0
    %3064 = vmatpush1.msra.mxu0 %v2836
    %3065 = vmatprep.subr.mxu0 0.0
    %3066 = vmatpush1.msra.mxu0 %v2839
    %3067 = vmatprep.subr.mxu0 0.0
    %3068 = vmatpush1.msra.mxu0 %v2842
    %3069 = vmatprep.subr.mxu0 0.0
    %3070 = vmatpush1.msra.mxu0 0.0
    %3071 = vmatprep.subr.mxu0 0.0
    %3072 = vmatpush1.msra.mxu0 0.0
    %3073 = vmatprep.subr.mxu0 0.0
    %3074 = vmatpush1.msra.mxu0 0.0
    %3075 = vmatprep.subr.mxu0 0.0
    %3076 = vmatpush1.msra.mxu0 0.0
    %3077 = vmatprep.subr.mxu0 0.0
    %3078 = vmatpush1.msra.mxu0 0.0
    %3079 = vmatprep.subr.mxu0 0.0
    %3080 = vmatpush1.msra.mxu0 0.0
    %3081 = vmatprep.subr.mxu0 0.0
    %3082 = vmatpush1.msra.mxu0 0.0
    %3083 = vmatprep.subr.mxu0 0.0
    %3084 = vmatpush1.msra.mxu0 0.0
    %3085 = vmatprep.subr.mxu0 0.0
    %3086 = vmatpush1.msra.mxu0 0.0
    %3087 = vmatprep.subr.mxu0 0.0
    %3088 = vmatpush1.msra.mxu0 0.0
    %3089 = vmatprep.subr.mxu0 0.0
    %3090 = vmatpush1.msra.mxu0 0.0
    %3091 = vmatprep.subr.mxu0 0.0
    %3092 = vmatpush1.msra.mxu0 0.0
    %3093 = vmatprep.subr.mxu0 0.0
    %3094 = vmatpush1.msra.mxu0 0.0
    %3095 = vmatprep.subr.mxu0 0.0
    %3096 = vmatpush1.msra.mxu0 0.0
    %3097 = vmatprep.subr.mxu0 0.0
    %3098 = vmatpush1.msra.mxu0 0.0
    %3099 = vmatprep.subr.mxu0 0.0
    %3100 = vmatpush1.msra.mxu0 0.0
    %3101 = vmatprep.mubr.f32.mxu0 0.0
    %3102 = vmatmul.mubr.f32.gmra.mrb[0].mxu0 %v2790
    %v3103 = vpop.f32.mrb[0].mxu0
    %v3104 = vadd.f32 %v2944, %v3103
    %v3105 = vpop.f32.mrb[0].mxu0
    %3106 = vmatprep.mubr.f32.mxu0 0.0
    %3107 = vmatmul.mubr.f32.gmra.mrb[0].mxu0 %v2791
    %v3108 = vpop.f32.mrb[0].mxu0
    %v3109 = vadd.f32 %v2944, %v3108
    %v3110 = vpop.f32.mrb[0].mxu0
    %3111 = vmatprep.mubr.f32.mxu0 0.0
    %3112 = vmatmul.mubr.f32.gmra.mrb[0].mxu0 %v2792
    %v3113 = vpop.f32.mrb[0].mxu0
    %v3114 = vadd.f32 %v2944, %v3113
    %v3115 = vpop.f32.mrb[0].mxu0
    %3116 = vmatprep.mubr.f32.mxu0 0.0
    %3117 = vmatmul.mubr.f32.gmra.mrb[0].mxu0 %v2793
    %v3118 = vpop.f32.mrb[0].mxu0
    %v3119 = vadd.f32 %v2944, %v3118
    %v3120 = vpop.f32.mrb[0].mxu0
    %3121 = vdwg.mxu0
    %v3123 = vsel %vm436, %v3015, 0
    %v3126 = vsel %vm436, %v3021, 0
    %v3129 = vsel %vm436, %v3017, 0
    %v3132 = vsel %vm436, %v3023, 0
    %3134 = vmatprep.subr.mxu0 0.0
    %3135 = vmatpush1.xpose.msra.mxu0 %v3129
    %3136 = vmatprep.subr.mxu0 0.0
    %3137 = vmatpush1.xpose.msra.mxu0 %v3132
    %3138 = vmatprep.subr.mxu0 0.0
    %3139 = vmatpush1.xpose.msra.mxu0 0.0
    %3140 = vmatprep.subr.mxu0 0.0
    %3141 = vmatpush1.xpose.msra.mxu0 0.0
    %3142 = vmatprep.subr.mxu0 0.0
    %3143 = vmatpush1.xpose.msra.mxu0 0.0
    %3144 = vmatprep.subr.mxu0 0.0
    %3145 = vmatpush1.xpose.msra.mxu0 0.0
    %3146 = vmatprep.subr.mxu0 0.0
    %3147 = vmatpush1.xpose.msra.mxu0 0.0
    %3148 = vmatprep.subr.mxu0 0.0
    %3149 = vmatpush1.xpose.msra.mxu0 0.0
    %3150 = vmatprep.subr.mxu0 0.0
    %3151 = vmatpush1.xpose.msra.mxu0 0.0
    %3152 = vmatprep.subr.mxu0 0.0
    %3153 = vmatpush1.xpose.msra.mxu0 0.0
    %3154 = vmatprep.subr.mxu0 0.0
    %3155 = vmatpush1.xpose.msra.mxu0 0.0
    %3156 = vmatprep.subr.mxu0 0.0
    %3157 = vmatpush1.xpose.msra.mxu0 0.0
    %3158 = vmatprep.subr.mxu0 0.0
    %3159 = vmatpush1.xpose.msra.mxu0 0.0
    %3160 = vmatprep.subr.mxu0 0.0
    %3161 = vmatpush1.xpose.msra.mxu0 0.0
    %3162 = vmatprep.subr.mxu0 0.0
    %3163 = vmatpush1.xpose.msra.mxu0 0.0
    %3164 = vmatprep.subr.mxu0 0.0
    %3165 = vmatpush1.xpose.msra.mxu0 0.0
    %3166 = vmatprep.subr.mxu0 0.0
    %3167 = vmatpush1.xpose.msra.mxu0 0.0
    %3168 = vmatprep.subr.mxu0 0.0
    %3169 = vmatpush1.xpose.msra.mxu0 0.0
    %3170 = vmatprep.subr.mxu0 0.0
    %3171 = vmatpush1.xpose.msra.mxu0 0.0
    %3172 = vmatprep.subr.mxu0 0.0
    %3173 = vmatpush1.xpose.msra.mxu0 0.0
    %3174 = vmatprep.subr.mxu0 0.0
    %3175 = vmatpush1.xpose.msra.mxu0 0.0
    %3176 = vmatprep.subr.mxu0 0.0
    %3177 = vmatpush1.xpose.msra.mxu0 0.0
    %3178 = vmatprep.subr.mxu0 0.0
    %3179 = vmatpush1.xpose.msra.mxu0 0.0
    %3180 = vmatprep.subr.mxu0 0.0
    %3181 = vmatpush1.xpose.msra.mxu0 0.0
    %3182 = vmatprep.subr.mxu0 0.0
    %3183 = vmatpush1.xpose.msra.mxu0 0.0
    %3184 = vmatprep.subr.mxu0 0.0
    %3185 = vmatpush1.xpose.msra.mxu0 0.0
    %3186 = vmatprep.subr.mxu0 0.0
    %3187 = vmatpush1.xpose.msra.mxu0 0.0
    %3188 = vmatprep.subr.mxu0 0.0
    %3189 = vmatpush1.xpose.msra.mxu0 0.0
    %3190 = vmatprep.subr.mxu0 0.0
    %3191 = vmatpush1.xpose.msra.mxu0 0.0
    %3192 = vmatprep.subr.mxu0 0.0
    %3193 = vmatpush1.xpose.msra.mxu0 0.0
    %3194 = vmatprep.subr.mxu0 0.0
    %3195 = vmatpush1.xpose.msra.mxu0 0.0
    %3196 = vmatprep.subr.mxu0 0.0
    %3197 = vmatpush1.xpose.msra.mxu0 0.0
    %3198 = vmatprep.mubr.f32.mxu0 0.0
    %3199 = vmatmul.mubr.f32.gmra.mrb[0].mxu0 %v3123
    %v3200 = vpop.f32.mrb[0].mxu0
    %v3201 = vadd.f32 0.0, %v3200
    %v3202 = vpop.f32.mrb[0].mxu0
    %3203 = vmatprep.mubr.f32.mxu0 0.0
    %3204 = vmatmul.mubr.f32.gmra.mrb[0].mxu0 %v3126
    %v3205 = vpop.f32.mrb[0].mxu0
    %v3206 = vadd.f32 0.0, %v3205
    %v3207 = vpop.f32.mrb[0].mxu0
    %3208 = vdwg.mxu0
    %v3210 = vsel %vm436, %v3027, 0
    %v3213 = vsel %vm436, %v3033, 0
    %v3216 = vsel %vm436, %v3029, 0
    %v3219 = vsel %vm436, %v3035, 0
    %3221 = vmatprep.subr.mxu0 0.0
    %3222 = vmatpush1.xpose.msra.mxu0 %v3216
    %3223 = vmatprep.subr.mxu0 0.0
    %3224 = vmatpush1.xpose.msra.mxu0 %v3219
    %3225 = vmatprep.subr.mxu0 0.0
    %3226 = vmatpush1.xpose.msra.mxu0 0.0
    %3227 = vmatprep.subr.mxu0 0.0
    %3228 = vmatpush1.xpose.msra.mxu0 0.0
    %3229 = vmatprep.subr.mxu0 0.0
    %3230 = vmatpush1.xpose.msra.mxu0 0.0
    %3231 = vmatprep.subr.mxu0 0.0
    %3232 = vmatpush1.xpose.msra.mxu0 0.0
    %3233 = vmatprep.subr.mxu0 0.0
    %3234 = vmatpush1.xpose.msra.mxu0 0.0
    %3235 = vmatprep.subr.mxu0 0.0
    %3236 = vmatpush1.xpose.msra.mxu0 0.0
    %3237 = vmatprep.subr.mxu0 0.0
    %3238 = vmatpush1.xpose.msra.mxu0 0.0
    %3239 = vmatprep.subr.mxu0 0.0
    %3240 = vmatpush1.xpose.msra.mxu0 0.0
    %3241 = vmatprep.subr.mxu0 0.0
    %3242 = vmatpush1.xpose.msra.mxu0 0.0
    %3243 = vmatprep.subr.mxu0 0.0
    %3244 = vmatpush1.xpose.msra.mxu0 0.0
    %3245 = vmatprep.subr.mxu0 0.0
    %3246 = vmatpush1.xpose.msra.mxu0 0.0
    %3247 = vmatprep.subr.mxu0 0.0
    %3248 = vmatpush1.xpose.msra.mxu0 0.0
    %3249 = vmatprep.subr.mxu0 0.0
    %3250 = vmatpush1.xpose.msra.mxu0 0.0
    %3251 = vmatprep.subr.mxu0 0.0
    %3252 = vmatpush1.xpose.msra.mxu0 0.0
    %3253 = vmatprep.subr.mxu0 0.0
    %3254 = vmatpush1.xpose.msra.mxu0 0.0
    %3255 = vmatprep.subr.mxu0 0.0
    %3256 = vmatpush1.xpose.msra.mxu0 0.0
    %3257 = vmatprep.subr.mxu0 0.0
    %3258 = vmatpush1.xpose.msra.mxu0 0.0
    %3259 = vmatprep.subr.mxu0 0.0
    %3260 = vmatpush1.xpose.msra.mxu0 0.0
    %3261 = vmatprep.subr.mxu0 0.0
    %3262 = vmatpush1.xpose.msra.mxu0 0.0
    %3263 = vmatprep.subr.mxu0 0.0
    %3264 = vmatpush1.xpose.msra.mxu0 0.0
    %3265 = vmatprep.subr.mxu0 0.0
    %3266 = vmatpush1.xpose.msra.mxu0 0.0
    %3267 = vmatprep.subr.mxu0 0.0
    %3268 = vmatpush1.xpose.msra.mxu0 0.0
    %3269 = vmatprep.subr.mxu0 0.0
    %3270 = vmatpush1.xpose.msra.mxu0 0.0
    %3271 = vmatprep.subr.mxu0 0.0
    %3272 = vmatpush1.xpose.msra.mxu0 0.0
    %3273 = vmatprep.subr.mxu0 0.0
    %3274 = vmatpush1.xpose.msra.mxu0 0.0
    %3275 = vmatprep.subr.mxu0 0.0
    %3276 = vmatpush1.xpose.msra.mxu0 0.0
    %3277 = vmatprep.subr.mxu0 0.0
    %3278 = vmatpush1.xpose.msra.mxu0 0.0
    %3279 = vmatprep.subr.mxu0 0.0
    %3280 = vmatpush1.xpose.msra.mxu0 0.0
    %3281 = vmatprep.subr.mxu0 0.0
    %3282 = vmatpush1.xpose.msra.mxu0 0.0
    %3283 = vmatprep.subr.mxu0 0.0
    %3284 = vmatpush1.xpose.msra.mxu0 0.0
    %3285 = vmatprep.mubr.f32.mxu0 0.0
    %3286 = vmatmul.mubr.f32.gmra.mrb[0].mxu0 %v3210
    %v3287 = vpop.f32.mrb[0].mxu0
    %v3288 = vadd.f32 0.0, %v3287
    %v3289 = vpop.f32.mrb[0].mxu0
    %3290 = vmatprep.mubr.f32.mxu0 0.0
    %3291 = vmatmul.mubr.f32.gmra.mrb[0].mxu0 %v3213
    %v3292 = vpop.f32.mrb[0].mxu0
    %v3293 = vadd.f32 0.0, %v3292
    %v3294 = vpop.f32.mrb[0].mxu0
    %3295 = vdwg.mxu0
    %v3296 = vmul.f32 %v3201, 0.17677669
    %v3297 = vmul.f32 %v3206, 0.17677669
    %v3298 = vmul.f32 %v3288, 0.17677669
    %v3299 = vmul.f32 %v3293, 0.17677669
    %v3300 = vadd.f32 %v3296, %v618
    %v3301 = vadd.f32 %v3297, %v618
    %v3302 = vadd.f32 %v3298, %v622
    %v3303 = vadd.f32 %v3299, %v622
    %v3304 = vsel %vm629, %v3300, -inf
    %3305 = vmax.xlane.f32.xlu0 %v3304
    %v3306 = vpop.xlane.xlu0 %3305
    %v3307 = vsel %vm629, %v3301, -inf
    %3308 = vmax.xlane.f32.xlu0 %v3307
    %v3309 = vpop.xlane.xlu0 %3308
    %v3310 = vsel %vm629, %v3302, -inf
    %3311 = vmax.xlane.f32.xlu0 %v3310
    %v3312 = vpop.xlane.xlu0 %3311
    %v3313 = vsel %vm629, %v3303, -inf
    %3314 = vmax.xlane.f32.xlu0 %v3313
    %v3315 = vpop.xlane.xlu0 %3314
    %v3316 = vsub.f32 %v3300, %v3306
    %v3317 = vsub.f32 %v3301, %v3309
    %v3318 = vsub.f32 %v3302, %v3312
    %v3319 = vsub.f32 %v3303, %v3315
    %v3320 = vmul.f32 %v3316, 1.442695
    %v3321 = vpow.pop %v3320
    %v3322 = vmul.f32 %v3317, 1.442695
    %v3323 = vpow.pop %v3322
    %v3324 = vmul.f32 %v3318, 1.442695
    %v3325 = vpow.pop %v3324
    %v3326 = vmul.f32 %v3319, 1.442695
    %v3327 = vpow.pop %v3326
    %v3328 = vsel %vm629, %v3321, 0.0
    %3329 = vadd.xlane.f32.xlu0 %v3328
    %v3330 = vpop.xlane.xlu0 %3329
    %v3331 = vsel %vm629, %v3323, 0.0
    %3332 = vadd.xlane.f32.xlu0 %v3331
    %v3333 = vpop.xlane.xlu0 %3332
    %v3334 = vsel %vm629, %v3325, 0.0
    %3335 = vadd.xlane.f32.xlu0 %v3334
    %v3336 = vpop.xlane.xlu0 %3335
    %v3337 = vsel %vm629, %v3327, 0.0
    %3338 = vadd.xlane.f32.xlu0 %v3337
    %v3339 = vpop.xlane.xlu0 %3338
    %v3340 = vrcp.pop %v3330
    %v3341 = vrcp.pop %v3333
    %v3342 = vrcp.pop %v3336
    %v3343 = vrcp.pop %v3339
    %v3344 = vmul.f32 %v3321, %v3340
    %v3345 = vmul.f32 %v3323, %v3341
    %v3346 = vmul.f32 %v3325, %v3342
    %v3347 = vmul.f32 %v3327, %v3343
    %v3349 = vsel %vm629, %v3344, 0
    %v3352 = vsel %vm629, %v3345, 0
    %3354 = vmatprep.subr.mxu0 0.0
    %3355 = vmatpush1.msra.mxu0 %v3104
    %3356 = vmatprep.subr.mxu0 0.0
    %3357 = vmatpush1.msra.mxu0 %v3109
    %3358 = vmatprep.subr.mxu0 0.0
    %3359 = vmatpush1.msra.mxu0 0.0
    %3360 = vmatprep.subr.mxu0 0.0
    %3361 = vmatpush1.msra.mxu0 0.0
    %3362 = vmatprep.subr.mxu0 0.0
    %3363 = vmatpush1.msra.mxu0 0.0
    %3364 = vmatprep.subr.mxu0 0.0
    %3365 = vmatpush1.msra.mxu0 0.0
    %3366 = vmatprep.subr.mxu0 0.0
    %3367 = vmatpush1.msra.mxu0 0.0
    %3368 = vmatprep.subr.mxu0 0.0
    %3369 = vmatpush1.msra.mxu0 0.0
    %3370 = vmatprep.subr.mxu0 0.0
    %3371 = vmatpush1.msra.mxu0 0.0
    %3372 = vmatprep.subr.mxu0 0.0
    %3373 = vmatpush1.msra.mxu0 0.0
    %3374 = vmatprep.subr.mxu0 0.0
    %3375 = vmatpush1.msra.mxu0 0.0
    %3376 = vmatprep.subr.mxu0 0.0
    %3377 = vmatpush1.msra.mxu0 0.0
    %3378 = vmatprep.subr.mxu0 0.0
    %3379 = vmatpush1.msra.mxu0 0.0
    %3380 = vmatprep.subr.mxu0 0.0
    %3381 = vmatpush1.msra.mxu0 0.0
    %3382 = vmatprep.subr.mxu0 0.0
    %3383 = vmatpush1.msra.mxu0 0.0
    %3384 = vmatprep.subr.mxu0 0.0
    %3385 = vmatpush1.msra.mxu0 0.0
    %3386 = vmatprep.subr.mxu0 0.0
    %3387 = vmatpush1.msra.mxu0 0.0
    %3388 = vmatprep.subr.mxu0 0.0
    %3389 = vmatpush1.msra.mxu0 0.0
    %3390 = vmatprep.subr.mxu0 0.0
    %3391 = vmatpush1.msra.mxu0 0.0
    %3392 = vmatprep.subr.mxu0 0.0
    %3393 = vmatpush1.msra.mxu0 0.0
    %3394 = vmatprep.subr.mxu0 0.0
    %3395 = vmatpush1.msra.mxu0 0.0
    %3396 = vmatprep.subr.mxu0 0.0
    %3397 = vmatpush1.msra.mxu0 0.0
    %3398 = vmatprep.subr.mxu0 0.0
    %3399 = vmatpush1.msra.mxu0 0.0
    %3400 = vmatprep.subr.mxu0 0.0
    %3401 = vmatpush1.msra.mxu0 0.0
    %3402 = vmatprep.subr.mxu0 0.0
    %3403 = vmatpush1.msra.mxu0 0.0
    %3404 = vmatprep.subr.mxu0 0.0
    %3405 = vmatpush1.msra.mxu0 0.0
    %3406 = vmatprep.subr.mxu0 0.0
    %3407 = vmatpush1.msra.mxu0 0.0
    %3408 = vmatprep.subr.mxu0 0.0
    %3409 = vmatpush1.msra.mxu0 0.0
    %3410 = vmatprep.subr.mxu0 0.0
    %3411 = vmatpush1.msra.mxu0 0.0
    %3412 = vmatprep.subr.mxu0 0.0
    %3413 = vmatpush1.msra.mxu0 0.0
    %3414 = vmatprep.subr.mxu0 0.0
    %3415 = vmatpush1.msra.mxu0 0.0
    %3416 = vmatprep.subr.mxu0 0.0
    %3417 = vmatpush1.msra.mxu0 0.0
    %3418 = vmatprep.mubr.f32.mxu0 0.0
    %3419 = vmatmul.mubr.f32.gmra.mrb[0].mxu0 %v3349
    %v3420 = vpop.f32.mrb[0].mxu0
    %v3421 = vadd.f32 0.0, %v3420
    %v3422 = vpop.f32.mrb[0].mxu0
    %3423 = vmatprep.mubr.f32.mxu0 0.0
    %3424 = vmatmul.mubr.f32.gmra.mrb[0].mxu0 %v3352
    %v3425 = vpop.f32.mrb[0].mxu0
    %v3426 = vadd.f32 0.0, %v3425
    %v3427 = vpop.f32.mrb[0].mxu0
    %3428 = vdwg.mxu0
    %v3430 = vsel %vm629, %v3346, 0
    %v3433 = vsel %vm629, %v3347, 0
    %3435 = vmatprep.subr.mxu0 0.0
    %3436 = vmatpush1.msra.mxu0 %v3114
    %3437 = vmatprep.subr.mxu0 0.0
    %3438 = vmatpush1.msra.mxu0 %v3119
    %3439 = vmatprep.subr.mxu0 0.0
    %3440 = vmatpush1.msra.mxu0 0.0
    %3441 = vmatprep.subr.mxu0 0.0
    %3442 = vmatpush1.msra.mxu0 0.0
    %3443 = vmatprep.subr.mxu0 0.0
    %3444 = vmatpush1.msra.mxu0 0.0
    %3445 = vmatprep.subr.mxu0 0.0
    %3446 = vmatpush1.msra.mxu0 0.0
    %3447 = vmatprep.subr.mxu0 0.0
    %3448 = vmatpush1.msra.mxu0 0.0
    %3449 = vmatprep.subr.mxu0 0.0
    %3450 = vmatpush1.msra.mxu0 0.0
    %3451 = vmatprep.subr.mxu0 0.0
    %3452 = vmatpush1.msra.mxu0 0.0
    %3453 = vmatprep.subr.mxu0 0.0
    %3454 = vmatpush1.msra.mxu0 0.0
    %3455 = vmatprep.subr.mxu0 0.0
    %3456 = vmatpush1.msra.mxu0 0.0
    %3457 = vmatprep.subr.mxu0 0.0
    %3458 = vmatpush1.msra.mxu0 0.0
    %3459 = vmatprep.subr.mxu0 0.0
    %3460 = vmatpush1.msra.mxu0 0.0
    %3461 = vmatprep.subr.mxu0 0.0
    %3462 = vmatpush1.msra.mxu0 0.0
    %3463 = vmatprep.subr.mxu0 0.0
    %3464 = vmatpush1.msra.mxu0 0.0
    %3465 = vmatprep.subr.mxu0 0.0
    %3466 = vmatpush1.msra.mxu0 0.0
    %3467 = vmatprep.subr.mxu0 0.0
    %3468 = vmatpush1.msra.mxu0 0.0
    %3469 = vmatprep.subr.mxu0 0.0
    %3470 = vmatpush1.msra.mxu0 0.0
    %3471 = vmatprep.subr.mxu0 0.0
    %3472 = vmatpush1.msra.mxu0 0.0
    %3473 = vmatprep.subr.mxu0 0.0
    %3474 = vmatpush1.msra.mxu0 0.0
    %3475 = vmatprep.subr.mxu0 0.0
    %3476 = vmatpush1.msra.mxu0 0.0
    %3477 = vmatprep.subr.mxu0 0.0
    %3478 = vmatpush1.msra.mxu0 0.0
    %3479 = vmatprep.subr.mxu0 0.0
    %3480 = vmatpush1.msra.mxu0 0.0
    %3481 = vmatprep.subr.mxu0 0.0
    %3482 = vmatpush1.msra.mxu0 0.0
    %3483 = vmatprep.subr.mxu0 0.0
    %3484 = vmatpush1.msra.mxu0 0.0
    %3485 = vmatprep.subr.mxu0 0.0
    %3486 = vmatpush1.msra.mxu0 0.0
    %3487 = vmatprep.subr.mxu0 0.0
    %3488 = vmatpush1.msra.mxu0 0.0
    %3489 = vmatprep.subr.mxu0 0.0
    %3490 = vmatpush1.msra.mxu0 0.0
    %3491 = vmatprep.subr.mxu0 0.0
    %3492 = vmatpush1.msra.mxu0 0.0
    %3493 = vmatprep.subr.mxu0 0.0
    %3494 = vmatpush1.msra.mxu0 0.0
    %3495 = vmatprep.subr.mxu0 0.0
    %3496 = vmatpush1.msra.mxu0 0.0
    %3497 = vmatprep.subr.mxu0 0.0
    %3498 = vmatpush1.msra.mxu0 0.0
    %3499 = vmatprep.mubr.f32.mxu0 0.0
    %3500 = vmatmul.mubr.f32.gmra.mrb[0].mxu0 %v3430
    %v3501 = vpop.f32.mrb[0].mxu0
    %v3502 = vadd.f32 0.0, %v3501
    %v3503 = vpop.f32.mrb[0].mxu0
    %3504 = vmatprep.mubr.f32.mxu0 0.0
    %3505 = vmatmul.mubr.f32.gmra.mrb[0].mxu0 %v3433
    %v3506 = vpop.f32.mrb[0].mxu0
    %v3507 = vadd.f32 0.0, %v3506
    %v3508 = vpop.f32.mrb[0].mxu0
    %3509 = vdwg.mxu0
    %3510 = vrot.lane.b32.xlu0 %v3015, 96
    %v3511 = vpop.permute.xlu0 %3510
    %3512 = vrot.lane.b32.xlu0 %v3021, 96
    %v3513 = vpop.permute.xlu0 %3512
    %3514 = vrot.lane.b32.xlu0 %v3017, 96
    %v3515 = vpop.permute.xlu0 %3514
    %3516 = vrot.lane.b32.xlu0 %v3023, 96
    %v3517 = vpop.permute.xlu0 %3516
    %v3518 = vsel %vm436, %v3511, 0
    %v3520 = vsel %vm436, %v3513, 0
    %v3522 = vsel %vm436, %v3515, 0
    %v3524 = vsel %vm436, %v3517, 0
    %3526 = vmatprep.subr.mxu0 0.0
    %3527 = vmatpush1.xpose.msra.mxu0 %v3522
    %3528 = vmatprep.subr.mxu0 0.0
    %3529 = vmatpush1.xpose.msra.mxu0 %v3524
    %3530 = vmatprep.subr.mxu0 0.0
    %3531 = vmatpush1.xpose.msra.mxu0 0.0
    %3532 = vmatprep.subr.mxu0 0.0
    %3533 = vmatpush1.xpose.msra.mxu0 0.0
    %3534 = vmatprep.subr.mxu0 0.0
    %3535 = vmatpush1.xpose.msra.mxu0 0.0
    %3536 = vmatprep.subr.mxu0 0.0
    %3537 = vmatpush1.xpose.msra.mxu0 0.0
    %3538 = vmatprep.subr.mxu0 0.0
    %3539 = vmatpush1.xpose.msra.mxu0 0.0
    %3540 = vmatprep.subr.mxu0 0.0
    %3541 = vmatpush1.xpose.msra.mxu0 0.0
    %3542 = vmatprep.subr.mxu0 0.0
    %3543 = vmatpush1.xpose.msra.mxu0 0.0
    %3544 = vmatprep.subr.mxu0 0.0
    %3545 = vmatpush1.xpose.msra.mxu0 0.0
    %3546 = vmatprep.subr.mxu0 0.0
    %3547 = vmatpush1.xpose.msra.mxu0 0.0
    %3548 = vmatprep.subr.mxu0 0.0
    %3549 = vmatpush1.xpose.msra.mxu0 0.0
    %3550 = vmatprep.subr.mxu0 0.0
    %3551 = vmatpush1.xpose.msra.mxu0 0.0
    %3552 = vmatprep.subr.mxu0 0.0
    %3553 = vmatpush1.xpose.msra.mxu0 0.0
    %3554 = vmatprep.subr.mxu0 0.0
    %3555 = vmatpush1.xpose.msra.mxu0 0.0
    %3556 = vmatprep.subr.mxu0 0.0
    %3557 = vmatpush1.xpose.msra.mxu0 0.0
    %3558 = vmatprep.subr.mxu0 0.0
    %3559 = vmatpush1.xpose.msra.mxu0 0.0
    %3560 = vmatprep.subr.mxu0 0.0
    %3561 = vmatpush1.xpose.msra.mxu0 0.0
    %3562 = vmatprep.subr.mxu0 0.0
    %3563 = vmatpush1.xpose.msra.mxu0 0.0
    %3564 = vmatprep.subr.mxu0 0.0
    %3565 = vmatpush1.xpose.msra.mxu0 0.0
    %3566 = vmatprep.subr.mxu0 0.0
    %3567 = vmatpush1.xpose.msra.mxu0 0.0
    %3568 = vmatprep.subr.mxu0 0.0
    %3569 = vmatpush1.xpose.msra.mxu0 0.0
    %3570 = vmatprep.subr.mxu0 0.0
    %3571 = vmatpush1.xpose.msra.mxu0 0.0
    %3572 = vmatprep.subr.mxu0 0.0
    %3573 = vmatpush1.xpose.msra.mxu0 0.0
    %3574 = vmatprep.subr.mxu0 0.0
    %3575 = vmatpush1.xpose.msra.mxu0 0.0
    %3576 = vmatprep.subr.mxu0 0.0
    %3577 = vmatpush1.xpose.msra.mxu0 0.0
    %3578 = vmatprep.subr.mxu0 0.0
    %3579 = vmatpush1.xpose.msra.mxu0 0.0
    %3580 = vmatprep.subr.mxu0 0.0
    %3581 = vmatpush1.xpose.msra.mxu0 0.0
    %3582 = vmatprep.subr.mxu0 0.0
    %3583 = vmatpush1.xpose.msra.mxu0 0.0
    %3584 = vmatprep.subr.mxu0 0.0
    %3585 = vmatpush1.xpose.msra.mxu0 0.0
    %3586 = vmatprep.subr.mxu0 0.0
    %3587 = vmatpush1.xpose.msra.mxu0 0.0
    %3588 = vmatprep.subr.mxu0 0.0
    %3589 = vmatpush1.xpose.msra.mxu0 0.0
    %3590 = vmatprep.mubr.f32.mxu0 0.0
    %3591 = vmatmul.mubr.f32.gmra.mrb[0].mxu0 %v3518
    %v3592 = vpop.f32.mrb[0].mxu0
    %v3593 = vadd.f32 0.0, %v3592
    %v3594 = vpop.f32.mrb[0].mxu0
    %3595 = vmatprep.mubr.f32.mxu0 0.0
    %3596 = vmatmul.mubr.f32.gmra.mrb[0].mxu0 %v3520
    %v3597 = vpop.f32.mrb[0].mxu0
    %v3598 = vadd.f32 0.0, %v3597
    %v3599 = vpop.f32.mrb[0].mxu0
    %3600 = vdwg.mxu0
    %3601 = vrot.lane.b32.xlu0 %v3027, 96
    %v3602 = vpop.permute.xlu0 %3601
    %3603 = vrot.lane.b32.xlu0 %v3033, 96
    %v3604 = vpop.permute.xlu0 %3603
    %3605 = vrot.lane.b32.xlu0 %v3029, 96
    %v3606 = vpop.permute.xlu0 %3605
    %3607 = vrot.lane.b32.xlu0 %v3035, 96
    %v3608 = vpop.permute.xlu0 %3607
    %v3609 = vsel %vm436, %v3602, 0
    %v3611 = vsel %vm436, %v3604, 0
    %v3613 = vsel %vm436, %v3606, 0
    %v3615 = vsel %vm436, %v3608, 0
    %3617 = vmatprep.subr.mxu0 0.0
    %3618 = vmatpush1.xpose.msra.mxu0 %v3613
    %3619 = vmatprep.subr.mxu0 0.0
    %3620 = vmatpush1.xpose.msra.mxu0 %v3615
    %3621 = vmatprep.subr.mxu0 0.0
    %3622 = vmatpush1.xpose.msra.mxu0 0.0
    %3623 = vmatprep.subr.mxu0 0.0
    %3624 = vmatpush1.xpose.msra.mxu0 0.0
    %3625 = vmatprep.subr.mxu0 0.0
    %3626 = vmatpush1.xpose.msra.mxu0 0.0
    %3627 = vmatprep.subr.mxu0 0.0
    %3628 = vmatpush1.xpose.msra.mxu0 0.0
    %3629 = vmatprep.subr.mxu0 0.0
    %3630 = vmatpush1.xpose.msra.mxu0 0.0
    %3631 = vmatprep.subr.mxu0 0.0
    %3632 = vmatpush1.xpose.msra.mxu0 0.0
    %3633 = vmatprep.subr.mxu0 0.0
    %3634 = vmatpush1.xpose.msra.mxu0 0.0
    %3635 = vmatprep.subr.mxu0 0.0
    %3636 = vmatpush1.xpose.msra.mxu0 0.0
    %3637 = vmatprep.subr.mxu0 0.0
    %3638 = vmatpush1.xpose.msra.mxu0 0.0
    %3639 = vmatprep.subr.mxu0 0.0
    %3640 = vmatpush1.xpose.msra.mxu0 0.0
    %3641 = vmatprep.subr.mxu0 0.0
    %3642 = vmatpush1.xpose.msra.mxu0 0.0
    %3643 = vmatprep.subr.mxu0 0.0
    %3644 = vmatpush1.xpose.msra.mxu0 0.0
    %3645 = vmatprep.subr.mxu0 0.0
    %3646 = vmatpush1.xpose.msra.mxu0 0.0
    %3647 = vmatprep.subr.mxu0 0.0
    %3648 = vmatpush1.xpose.msra.mxu0 0.0
    %3649 = vmatprep.subr.mxu0 0.0
    %3650 = vmatpush1.xpose.msra.mxu0 0.0
    %3651 = vmatprep.subr.mxu0 0.0
    %3652 = vmatpush1.xpose.msra.mxu0 0.0
    %3653 = vmatprep.subr.mxu0 0.0
    %3654 = vmatpush1.xpose.msra.mxu0 0.0
    %3655 = vmatprep.subr.mxu0 0.0
    %3656 = vmatpush1.xpose.msra.mxu0 0.0
    %3657 = vmatprep.subr.mxu0 0.0
    %3658 = vmatpush1.xpose.msra.mxu0 0.0
    %3659 = vmatprep.subr.mxu0 0.0
    %3660 = vmatpush1.xpose.msra.mxu0 0.0
    %3661 = vmatprep.subr.mxu0 0.0
    %3662 = vmatpush1.xpose.msra.mxu0 0.0
    %3663 = vmatprep.subr.mxu0 0.0
    %3664 = vmatpush1.xpose.msra.mxu0 0.0
    %3665 = vmatprep.subr.mxu0 0.0
    %3666 = vmatpush1.xpose.msra.mxu0 0.0
    %3667 = vmatprep.subr.mxu0 0.0
    %3668 = vmatpush1.xpose.msra.mxu0 0.0
    %3669 = vmatprep.subr.mxu0 0.0
    %3670 = vmatpush1.xpose.msra.mxu0 0.0
    %3671 = vmatprep.subr.mxu0 0.0
    %3672 = vmatpush1.xpose.msra.mxu0 0.0
    %3673 = vmatprep.subr.mxu0 0.0
    %3674 = vmatpush1.xpose.msra.mxu0 0.0
    %3675 = vmatprep.subr.mxu0 0.0
    %3676 = vmatpush1.xpose.msra.mxu0 0.0
    %3677 = vmatprep.subr.mxu0 0.0
    %3678 = vmatpush1.xpose.msra.mxu0 0.0
    %3679 = vmatprep.subr.mxu0 0.0
    %3680 = vmatpush1.xpose.msra.mxu0 0.0
    %3681 = vmatprep.mubr.f32.mxu0 0.0
    %3682 = vmatmul.mubr.f32.gmra.mrb[0].mxu0 %v3609
    %v3683 = vpop.f32.mrb[0].mxu0
    %v3684 = vadd.f32 0.0, %v3683
    %v3685 = vpop.f32.mrb[0].mxu0
    %3686 = vmatprep.mubr.f32.mxu0 0.0
    %3687 = vmatmul.mubr.f32.gmra.mrb[0].mxu0 %v3611
    %v3688 = vpop.f32.mrb[0].mxu0
    %v3689 = vadd.f32 0.0, %v3688
    %v3690 = vpop.f32.mrb[0].mxu0
    %3691 = vdwg.mxu0
    %v3692 = vmul.f32 %v3593, 0.17677669
    %v3693 = vmul.f32 %v3598, 0.17677669
    %v3694 = vmul.f32 %v3684, 0.17677669
    %v3695 = vmul.f32 %v3689, 0.17677669
    %v3696 = vadd.f32 %v3692, %v618
    %v3697 = vadd.f32 %v3693, %v618
    %v3698 = vadd.f32 %v3694, %v622
    %v3699 = vadd.f32 %v3695, %v622
    %v3700 = vsel %vm629, %v3696, -inf
    %3701 = vmax.xlane.f32.xlu0 %v3700
    %v3702 = vpop.xlane.xlu0 %3701
    %v3703 = vsel %vm629, %v3697, -inf
    %3704 = vmax.xlane.f32.xlu0 %v3703
    %v3705 = vpop.xlane.xlu0 %3704
    %v3706 = vsel %vm629, %v3698, -inf
    %3707 = vmax.xlane.f32.xlu0 %v3706
    %v3708 = vpop.xlane.xlu0 %3707
    %v3709 = vsel %vm629, %v3699, -inf
    %3710 = vmax.xlane.f32.xlu0 %v3709
    %v3711 = vpop.xlane.xlu0 %3710
    %v3712 = vsub.f32 %v3696, %v3702
    %v3713 = vsub.f32 %v3697, %v3705
    %v3714 = vsub.f32 %v3698, %v3708
    %v3715 = vsub.f32 %v3699, %v3711
    %v3716 = vmul.f32 %v3712, 1.442695
    %v3717 = vpow.pop %v3716
    %v3718 = vmul.f32 %v3713, 1.442695
    %v3719 = vpow.pop %v3718
    %v3720 = vmul.f32 %v3714, 1.442695
    %v3721 = vpow.pop %v3720
    %v3722 = vmul.f32 %v3715, 1.442695
    %v3723 = vpow.pop %v3722
    %v3724 = vsel %vm629, %v3717, 0.0
    %3725 = vadd.xlane.f32.xlu0 %v3724
    %v3726 = vpop.xlane.xlu0 %3725
    %v3727 = vsel %vm629, %v3719, 0.0
    %3728 = vadd.xlane.f32.xlu0 %v3727
    %v3729 = vpop.xlane.xlu0 %3728
    %v3730 = vsel %vm629, %v3721, 0.0
    %3731 = vadd.xlane.f32.xlu0 %v3730
    %v3732 = vpop.xlane.xlu0 %3731
    %v3733 = vsel %vm629, %v3723, 0.0
    %3734 = vadd.xlane.f32.xlu0 %v3733
    %v3735 = vpop.xlane.xlu0 %3734
    %v3736 = vrcp.pop %v3726
    %v3737 = vrcp.pop %v3729
    %v3738 = vrcp.pop %v3732
    %v3739 = vrcp.pop %v3735
    %v3740 = vmul.f32 %v3717, %v3736
    %v3741 = vmul.f32 %v3719, %v3737
    %v3742 = vmul.f32 %v3721, %v3738
    %v3743 = vmul.f32 %v3723, %v3739
    %3746 = vrot.lane.b32.xlu0 %v3104, 96
    %v3747 = vpop.permute.xlu0 %3746
    %3748 = vrot.lane.b32.xlu0 %v3109, 96
    %v3749 = vpop.permute.xlu0 %3748
    %v3753 = vsel %vm629, %v3740, 0
    %v3756 = vsel %vm629, %v3741, 0
    %3758 = vmatprep.subr.mxu0 0.0
    %3759 = vmatpush1.msra.mxu0 %v3747
    %3760 = vmatprep.subr.mxu0 0.0
    %3761 = vmatpush1.msra.mxu0 %v3749
    %3762 = vmatprep.subr.mxu0 0.0
    %3763 = vmatpush1.msra.mxu0 0.0
    %3764 = vmatprep.subr.mxu0 0.0
    %3765 = vmatpush1.msra.mxu0 0.0
    %3766 = vmatprep.subr.mxu0 0.0
    %3767 = vmatpush1.msra.mxu0 0.0
    %3768 = vmatprep.subr.mxu0 0.0
    %3769 = vmatpush1.msra.mxu0 0.0
    %3770 = vmatprep.subr.mxu0 0.0
    %3771 = vmatpush1.msra.mxu0 0.0
    %3772 = vmatprep.subr.mxu0 0.0
    %3773 = vmatpush1.msra.mxu0 0.0
    %3774 = vmatprep.subr.mxu0 0.0
    %3775 = vmatpush1.msra.mxu0 0.0
    %3776 = vmatprep.subr.mxu0 0.0
    %3777 = vmatpush1.msra.mxu0 0.0
    %3778 = vmatprep.subr.mxu0 0.0
    %3779 = vmatpush1.msra.mxu0 0.0
    %3780 = vmatprep.subr.mxu0 0.0
    %3781 = vmatpush1.msra.mxu0 0.0
    %3782 = vmatprep.subr.mxu0 0.0
    %3783 = vmatpush1.msra.mxu0 0.0
    %3784 = vmatprep.subr.mxu0 0.0
    %3785 = vmatpush1.msra.mxu0 0.0
    %3786 = vmatprep.subr.mxu0 0.0
    %3787 = vmatpush1.msra.mxu0 0.0
    %3788 = vmatprep.subr.mxu0 0.0
    %3789 = vmatpush1.msra.mxu0 0.0
    %3790 = vmatprep.subr.mxu0 0.0
    %3791 = vmatpush1.msra.mxu0 0.0
    %3792 = vmatprep.subr.mxu0 0.0
    %3793 = vmatpush1.msra.mxu0 0.0
    %3794 = vmatprep.subr.mxu0 0.0
    %3795 = vmatpush1.msra.mxu0 0.0
    %3796 = vmatprep.subr.mxu0 0.0
    %3797 = vmatpush1.msra.mxu0 0.0
    %3798 = vmatprep.subr.mxu0 0.0
    %3799 = vmatpush1.msra.mxu0 0.0
    %3800 = vmatprep.subr.mxu0 0.0
    %3801 = vmatpush1.msra.mxu0 0.0
    %3802 = vmatprep.subr.mxu0 0.0
    %3803 = vmatpush1.msra.mxu0 0.0
    %3804 = vmatprep.subr.mxu0 0.0
    %3805 = vmatpush1.msra.mxu0 0.0
    %3806 = vmatprep.subr.mxu0 0.0
    %3807 = vmatpush1.msra.mxu0 0.0
    %3808 = vmatprep.subr.mxu0 0.0
    %3809 = vmatpush1.msra.mxu0 0.0
    %3810 = vmatprep.subr.mxu0 0.0
    %3811 = vmatpush1.msra.mxu0 0.0
    %3812 = vmatprep.subr.mxu0 0.0
    %3813 = vmatpush1.msra.mxu0 0.0
    %3814 = vmatprep.subr.mxu0 0.0
    %3815 = vmatpush1.msra.mxu0 0.0
    %3816 = vmatprep.subr.mxu0 0.0
    %3817 = vmatpush1.msra.mxu0 0.0
    %3818 = vmatprep.subr.mxu0 0.0
    %3819 = vmatpush1.msra.mxu0 0.0
    %3820 = vmatprep.subr.mxu0 0.0
    %3821 = vmatpush1.msra.mxu0 0.0
    %3822 = vmatprep.mubr.f32.mxu0 0.0
    %3823 = vmatmul.mubr.f32.gmra.mrb[0].mxu0 %v3753
    %v3824 = vpop.f32.mrb[0].mxu0
    %v3825 = vadd.f32 0.0, %v3824
    %v3826 = vpop.f32.mrb[0].mxu0
    %3827 = vmatprep.mubr.f32.mxu0 0.0
    %3828 = vmatmul.mubr.f32.gmra.mrb[0].mxu0 %v3756
    %v3829 = vpop.f32.mrb[0].mxu0
    %v3830 = vadd.f32 0.0, %v3829
    %v3831 = vpop.f32.mrb[0].mxu0
    %3832 = vdwg.mxu0
    %3835 = vrot.lane.b32.xlu0 %v3114, 96
    %v3836 = vpop.permute.xlu0 %3835
    %3837 = vrot.lane.b32.xlu0 %v3119, 96
    %v3838 = vpop.permute.xlu0 %3837
    %v3842 = vsel %vm629, %v3742, 0
    %v3845 = vsel %vm629, %v3743, 0
    %3847 = vmatprep.subr.mxu0 0.0
    %3848 = vmatpush1.msra.mxu0 %v3836
    %3849 = vmatprep.subr.mxu0 0.0
    %3850 = vmatpush1.msra.mxu0 %v3838
    %3851 = vmatprep.subr.mxu0 0.0
    %3852 = vmatpush1.msra.mxu0 0.0
    %3853 = vmatprep.subr.mxu0 0.0
    %3854 = vmatpush1.msra.mxu0 0.0
    %3855 = vmatprep.subr.mxu0 0.0
    %3856 = vmatpush1.msra.mxu0 0.0
    %3857 = vmatprep.subr.mxu0 0.0
    %3858 = vmatpush1.msra.mxu0 0.0
    %3859 = vmatprep.subr.mxu0 0.0
    %3860 = vmatpush1.msra.mxu0 0.0
    %3861 = vmatprep.subr.mxu0 0.0
    %3862 = vmatpush1.msra.mxu0 0.0
    %3863 = vmatprep.subr.mxu0 0.0
    %3864 = vmatpush1.msra.mxu0 0.0
    %3865 = vmatprep.subr.mxu0 0.0
    %3866 = vmatpush1.msra.mxu0 0.0
    %3867 = vmatprep.subr.mxu0 0.0
    %3868 = vmatpush1.msra.mxu0 0.0
    %3869 = vmatprep.subr.mxu0 0.0
    %3870 = vmatpush1.msra.mxu0 0.0
    %3871 = vmatprep.subr.mxu0 0.0
    %3872 = vmatpush1.msra.mxu0 0.0
    %3873 = vmatprep.subr.mxu0 0.0
    %3874 = vmatpush1.msra.mxu0 0.0
    %3875 = vmatprep.subr.mxu0 0.0
    %3876 = vmatpush1.msra.mxu0 0.0
    %3877 = vmatprep.subr.mxu0 0.0
    %3878 = vmatpush1.msra.mxu0 0.0
    %3879 = vmatprep.subr.mxu0 0.0
    %3880 = vmatpush1.msra.mxu0 0.0
    %3881 = vmatprep.subr.mxu0 0.0
    %3882 = vmatpush1.msra.mxu0 0.0
    %3883 = vmatprep.subr.mxu0 0.0
    %3884 = vmatpush1.msra.mxu0 0.0
    %3885 = vmatprep.subr.mxu0 0.0
    %3886 = vmatpush1.msra.mxu0 0.0
    %3887 = vmatprep.subr.mxu0 0.0
    %3888 = vmatpush1.msra.mxu0 0.0
    %3889 = vmatprep.subr.mxu0 0.0
    %3890 = vmatpush1.msra.mxu0 0.0
    %3891 = vmatprep.subr.mxu0 0.0
    %3892 = vmatpush1.msra.mxu0 0.0
    %3893 = vmatprep.subr.mxu0 0.0
    %3894 = vmatpush1.msra.mxu0 0.0
    %3895 = vmatprep.subr.mxu0 0.0
    %3896 = vmatpush1.msra.mxu0 0.0
    %3897 = vmatprep.subr.mxu0 0.0
    %3898 = vmatpush1.msra.mxu0 0.0
    %3899 = vmatprep.subr.mxu0 0.0
    %3900 = vmatpush1.msra.mxu0 0.0
    %3901 = vmatprep.subr.mxu0 0.0
    %3902 = vmatpush1.msra.mxu0 0.0
    %3903 = vmatprep.subr.mxu0 0.0
    %3904 = vmatpush1.msra.mxu0 0.0
    %3905 = vmatprep.subr.mxu0 0.0
    %3906 = vmatpush1.msra.mxu0 0.0
    %3907 = vmatprep.subr.mxu0 0.0
    %3908 = vmatpush1.msra.mxu0 0.0
    %3909 = vmatprep.subr.mxu0 0.0
    %3910 = vmatpush1.msra.mxu0 0.0
    %3911 = vmatprep.mubr.f32.mxu0 0.0
    %3912 = vmatmul.mubr.f32.gmra.mrb[0].mxu0 %v3842
    %v3913 = vpop.f32.mrb[0].mxu0
    %v3914 = vadd.f32 0.0, %v3913
    %v3915 = vpop.f32.mrb[0].mxu0
    %3916 = vmatprep.mubr.f32.mxu0 0.0
    %3917 = vmatmul.mubr.f32.gmra.mrb[0].mxu0 %v3845
    %v3918 = vpop.f32.mrb[0].mxu0
    %v3919 = vadd.f32 0.0, %v3918
    %v3920 = vpop.f32.mrb[0].mxu0
    %3921 = vdwg.mxu0
    %v3923 = vsel %vm436, %v3825, 0
    %v3926 = vsel %vm436, %v3830, 0
    %v3929 = vsel %vm436, %v3914, 0
    %v3932 = vsel %vm436, %v3919, 0
    %3934 = vmatprep.subr.mxu0 0.0
    %3935 = vmatpush1.msra.mxu0 %v2850
    %3936 = vmatprep.subr.mxu0 0.0
    %3937 = vmatpush1.msra.mxu0 %v2851
    %3938 = vmatprep.subr.mxu0 0.0
    %3939 = vmatpush1.msra.mxu0 %v2852
    %3940 = vmatprep.subr.mxu0 0.0
    %3941 = vmatpush1.msra.mxu0 %v2853
    %3942 = vmatprep.subr.mxu0 0.0
    %3943 = vmatpush1.msra.mxu0 0.0
    %3944 = vmatprep.subr.mxu0 0.0
    %3945 = vmatpush1.msra.mxu0 0.0
    %3946 = vmatprep.subr.mxu0 0.0
    %3947 = vmatpush1.msra.mxu0 0.0
    %3948 = vmatprep.subr.mxu0 0.0
    %3949 = vmatpush1.msra.mxu0 0.0
    %3950 = vmatprep.subr.mxu0 0.0
    %3951 = vmatpush1.msra.mxu0 0.0
    %3952 = vmatprep.subr.mxu0 0.0
    %3953 = vmatpush1.msra.mxu0 0.0
    %3954 = vmatprep.subr.mxu0 0.0
    %3955 = vmatpush1.msra.mxu0 0.0
    %3956 = vmatprep.subr.mxu0 0.0
    %3957 = vmatpush1.msra.mxu0 0.0
    %3958 = vmatprep.subr.mxu0 0.0
    %3959 = vmatpush1.msra.mxu0 0.0
    %3960 = vmatprep.subr.mxu0 0.0
    %3961 = vmatpush1.msra.mxu0 0.0
    %3962 = vmatprep.subr.mxu0 0.0
    %3963 = vmatpush1.msra.mxu0 0.0
    %3964 = vmatprep.subr.mxu0 0.0
    %3965 = vmatpush1.msra.mxu0 0.0
    %3966 = vmatprep.subr.mxu0 0.0
    %3967 = vmatpush1.msra.mxu0 0.0
    %3968 = vmatprep.subr.mxu0 0.0
    %3969 = vmatpush1.msra.mxu0 0.0
    %3970 = vmatprep.subr.mxu0 0.0
    %3971 = vmatpush1.msra.mxu0 0.0
    %3972 = vmatprep.subr.mxu0 0.0
    %3973 = vmatpush1.msra.mxu0 0.0
    %3974 = vmatprep.subr.mxu0 0.0
    %3975 = vmatpush1.msra.mxu0 0.0
    %3976 = vmatprep.subr.mxu0 0.0
    %3977 = vmatpush1.msra.mxu0 0.0
    %3978 = vmatprep.subr.mxu0 0.0
    %3979 = vmatpush1.msra.mxu0 0.0
    %3980 = vmatprep.subr.mxu0 0.0
    %3981 = vmatpush1.msra.mxu0 0.0
    %3982 = vmatprep.subr.mxu0 0.0
    %3983 = vmatpush1.msra.mxu0 0.0
    %3984 = vmatprep.subr.mxu0 0.0
    %3985 = vmatpush1.msra.mxu0 0.0
    %3986 = vmatprep.subr.mxu0 0.0
    %3987 = vmatpush1.msra.mxu0 0.0
    %3988 = vmatprep.subr.mxu0 0.0
    %3989 = vmatpush1.msra.mxu0 0.0
    %3990 = vmatprep.subr.mxu0 0.0
    %3991 = vmatpush1.msra.mxu0 0.0
    %3992 = vmatprep.subr.mxu0 0.0
    %3993 = vmatpush1.msra.mxu0 0.0
    %3994 = vmatprep.subr.mxu0 0.0
    %3995 = vmatpush1.msra.mxu0 0.0
    %3996 = vmatprep.subr.mxu0 0.0
    %3997 = vmatpush1.msra.mxu0 0.0
    %3998 = vmatprep.mubr.f32.mxu0 0.0
    %3999 = vmatmul.mubr.f32.gmra.mrb[0].mxu0 %v3923
    %v4000 = vpop.f32.mrb[0].mxu0
    %v4001 = vadd.f32 0.0, %v4000
    %v4002 = vpop.f32.mrb[0].mxu0
    %4003 = vmatprep.mubr.f32.mxu0 0.0
    %4004 = vmatmul.mubr.f32.gmra.mrb[0].mxu0 %v3926
    %v4005 = vpop.f32.mrb[0].mxu0
    %v4006 = vadd.f32 0.0, %v4005
    %v4007 = vpop.f32.mrb[0].mxu0
    %4008 = vmatprep.mubr.f32.mxu0 0.0
    %4009 = vmatmul.mubr.f32.gmra.mrb[0].mxu0 %v3929
    %v4010 = vpop.f32.mrb[0].mxu0
    %v4011 = vadd.f32 0.0, %v4010
    %v4012 = vpop.f32.mrb[0].mxu0
    %4013 = vmatprep.mubr.f32.mxu0 0.0
    %4014 = vmatmul.mubr.f32.gmra.mrb[0].mxu0 %v3932
    %v4015 = vpop.f32.mrb[0].mxu0
    %v4016 = vadd.f32 0.0, %v4015
    %v4017 = vpop.f32.mrb[0].mxu0
    %4018 = vdwg.mxu0
    %v4020 = vsel %vm436, %v3421, 0
    %v4023 = vsel %vm436, %v3426, 0
    %v4026 = vsel %vm436, %v3502, 0
    %v4029 = vsel %vm436, %v3507, 0
    %4031 = vmatprep.subr.mxu0 0.0
    %4032 = vmatpush1.msra.mxu0 %v2846
    %4033 = vmatprep.subr.mxu0 0.0
    %4034 = vmatpush1.msra.mxu0 %v2847
    %4035 = vmatprep.subr.mxu0 0.0
    %4036 = vmatpush1.msra.mxu0 %v2848
    %4037 = vmatprep.subr.mxu0 0.0
    %4038 = vmatpush1.msra.mxu0 %v2849
    %4039 = vmatprep.subr.mxu0 0.0
    %4040 = vmatpush1.msra.mxu0 0.0
    %4041 = vmatprep.subr.mxu0 0.0
    %4042 = vmatpush1.msra.mxu0 0.0
    %4043 = vmatprep.subr.mxu0 0.0
    %4044 = vmatpush1.msra.mxu0 0.0
    %4045 = vmatprep.subr.mxu0 0.0
    %4046 = vmatpush1.msra.mxu0 0.0
    %4047 = vmatprep.subr.mxu0 0.0
    %4048 = vmatpush1.msra.mxu0 0.0
    %4049 = vmatprep.subr.mxu0 0.0
    %4050 = vmatpush1.msra.mxu0 0.0
    %4051 = vmatprep.subr.mxu0 0.0
    %4052 = vmatpush1.msra.mxu0 0.0
    %4053 = vmatprep.subr.mxu0 0.0
    %4054 = vmatpush1.msra.mxu0 0.0
    %4055 = vmatprep.subr.mxu0 0.0
    %4056 = vmatpush1.msra.mxu0 0.0
    %4057 = vmatprep.subr.mxu0 0.0
    %4058 = vmatpush1.msra.mxu0 0.0
    %4059 = vmatprep.subr.mxu0 0.0
    %4060 = vmatpush1.msra.mxu0 0.0
    %4061 = vmatprep.subr.mxu0 0.0
    %4062 = vmatpush1.msra.mxu0 0.0
    %4063 = vmatprep.subr.mxu0 0.0
    %4064 = vmatpush1.msra.mxu0 0.0
    %4065 = vmatprep.subr.mxu0 0.0
    %4066 = vmatpush1.msra.mxu0 0.0
    %4067 = vmatprep.subr.mxu0 0.0
    %4068 = vmatpush1.msra.mxu0 0.0
    %4069 = vmatprep.subr.mxu0 0.0
    %4070 = vmatpush1.msra.mxu0 0.0
    %4071 = vmatprep.subr.mxu0 0.0
    %4072 = vmatpush1.msra.mxu0 0.0
    %4073 = vmatprep.subr.mxu0 0.0
    %4074 = vmatpush1.msra.mxu0 0.0
    %4075 = vmatprep.subr.mxu0 0.0
    %4076 = vmatpush1.msra.mxu0 0.0
    %4077 = vmatprep.subr.mxu0 0.0
    %4078 = vmatpush1.msra.mxu0 0.0
    %4079 = vmatprep.subr.mxu0 0.0
    %4080 = vmatpush1.msra.mxu0 0.0
    %4081 = vmatprep.subr.mxu0 0.0
    %4082 = vmatpush1.msra.mxu0 0.0
    %4083 = vmatprep.subr.mxu0 0.0
    %4084 = vmatpush1.msra.mxu0 0.0
    %4085 = vmatprep.subr.mxu0 0.0
    %4086 = vmatpush1.msra.mxu0 0.0
    %4087 = vmatprep.subr.mxu0 0.0
    %4088 = vmatpush1.msra.mxu0 0.0
    %4089 = vmatprep.subr.mxu0 0.0
    %4090 = vmatpush1.msra.mxu0 0.0
    %4091 = vmatprep.subr.mxu0 0.0
    %4092 = vmatpush1.msra.mxu0 0.0
    %4093 = vmatprep.subr.mxu0 0.0
    %4094 = vmatpush1.msra.mxu0 0.0
    %4095 = vmatprep.mubr.f32.mxu0 0.0
    %4096 = vmatmul.mubr.f32.gmra.mrb[0].mxu0 %v4020
    %v4097 = vpop.f32.mrb[0].mxu0
    %v4098 = vadd.f32 %v4001, %v4097
    %v4099 = vpop.f32.mrb[0].mxu0
    %4100 = vmatprep.mubr.f32.mxu0 0.0
    %4101 = vmatmul.mubr.f32.gmra.mrb[0].mxu0 %v4023
    %v4102 = vpop.f32.mrb[0].mxu0
    %v4103 = vadd.f32 %v4006, %v4102
    %v4104 = vpop.f32.mrb[0].mxu0
    %4105 = vmatprep.mubr.f32.mxu0 0.0
    %4106 = vmatmul.mubr.f32.gmra.mrb[0].mxu0 %v4026
    %v4107 = vpop.f32.mrb[0].mxu0
    %v4108 = vadd.f32 %v4011, %v4107
    %v4109 = vpop.f32.mrb[0].mxu0
    %4110 = vmatprep.mubr.f32.mxu0 0.0
    %4111 = vmatmul.mubr.f32.gmra.mrb[0].mxu0 %v4029
    %v4112 = vpop.f32.mrb[0].mxu0
    %v4113 = vadd.f32 %v4016, %v4112
    %v4114 = vpop.f32.mrb[0].mxu0
    %4115 = vdwg.mxu0
    %4116 = vrot.lane.b32.xlu0 %v3015, 64
    %v4117 = vpop.permute.xlu0 %4116
    %4118 = vrot.lane.b32.xlu0 %v3021, 64
    %v4119 = vpop.permute.xlu0 %4118
    %4120 = vrot.lane.b32.xlu0 %v3017, 64
    %v4121 = vpop.permute.xlu0 %4120
    %4122 = vrot.lane.b32.xlu0 %v3023, 64
    %v4123 = vpop.permute.xlu0 %4122
    %v4124 = vsel %vm436, %v4117, 0
    %v4126 = vsel %vm436, %v4119, 0
    %v4128 = vsel %vm436, %v4121, 0
    %v4130 = vsel %vm436, %v4123, 0
    %4132 = vmatprep.subr.mxu0 0.0
    %4133 = vmatpush1.xpose.msra.mxu0 %v4128
    %4134 = vmatprep.subr.mxu0 0.0
    %4135 = vmatpush1.xpose.msra.mxu0 %v4130
    %4136 = vmatprep.subr.mxu0 0.0
    %4137 = vmatpush1.xpose.msra.mxu0 0.0
    %4138 = vmatprep.subr.mxu0 0.0
    %4139 = vmatpush1.xpose.msra.mxu0 0.0
    %4140 = vmatprep.subr.mxu0 0.0
    %4141 = vmatpush1.xpose.msra.mxu0 0.0
    %4142 = vmatprep.subr.mxu0 0.0
    %4143 = vmatpush1.xpose.msra.mxu0 0.0
    %4144 = vmatprep.subr.mxu0 0.0
    %4145 = vmatpush1.xpose.msra.mxu0 0.0
    %4146 = vmatprep.subr.mxu0 0.0
    %4147 = vmatpush1.xpose.msra.mxu0 0.0
    %4148 = vmatprep.subr.mxu0 0.0
    %4149 = vmatpush1.xpose.msra.mxu0 0.0
    %4150 = vmatprep.subr.mxu0 0.0
    %4151 = vmatpush1.xpose.msra.mxu0 0.0
    %4152 = vmatprep.subr.mxu0 0.0
    %4153 = vmatpush1.xpose.msra.mxu0 0.0
    %4154 = vmatprep.subr.mxu0 0.0
    %4155 = vmatpush1.xpose.msra.mxu0 0.0
    %4156 = vmatprep.subr.mxu0 0.0
    %4157 = vmatpush1.xpose.msra.mxu0 0.0
    %4158 = vmatprep.subr.mxu0 0.0
    %4159 = vmatpush1.xpose.msra.mxu0 0.0
    %4160 = vmatprep.subr.mxu0 0.0
    %4161 = vmatpush1.xpose.msra.mxu0 0.0
    %4162 = vmatprep.subr.mxu0 0.0
    %4163 = vmatpush1.xpose.msra.mxu0 0.0
    %4164 = vmatprep.subr.mxu0 0.0
    %4165 = vmatpush1.xpose.msra.mxu0 0.0
    %4166 = vmatprep.subr.mxu0 0.0
    %4167 = vmatpush1.xpose.msra.mxu0 0.0
    %4168 = vmatprep.subr.mxu0 0.0
    %4169 = vmatpush1.xpose.msra.mxu0 0.0
    %4170 = vmatprep.subr.mxu0 0.0
    %4171 = vmatpush1.xpose.msra.mxu0 0.0
    %4172 = vmatprep.subr.mxu0 0.0
    %4173 = vmatpush1.xpose.msra.mxu0 0.0
    %4174 = vmatprep.subr.mxu0 0.0
    %4175 = vmatpush1.xpose.msra.mxu0 0.0
    %4176 = vmatprep.subr.mxu0 0.0
    %4177 = vmatpush1.xpose.msra.mxu0 0.0
    %4178 = vmatprep.subr.mxu0 0.0
    %4179 = vmatpush1.xpose.msra.mxu0 0.0
    %4180 = vmatprep.subr.mxu0 0.0
    %4181 = vmatpush1.xpose.msra.mxu0 0.0
    %4182 = vmatprep.subr.mxu0 0.0
    %4183 = vmatpush1.xpose.msra.mxu0 0.0
    %4184 = vmatprep.subr.mxu0 0.0
    %4185 = vmatpush1.xpose.msra.mxu0 0.0
    %4186 = vmatprep.subr.mxu0 0.0
    %4187 = vmatpush1.xpose.msra.mxu0 0.0
    %4188 = vmatprep.subr.mxu0 0.0
    %4189 = vmatpush1.xpose.msra.mxu0 0.0
    %4190 = vmatprep.subr.mxu0 0.0
    %4191 = vmatpush1.xpose.msra.mxu0 0.0
    %4192 = vmatprep.subr.mxu0 0.0
    %4193 = vmatpush1.xpose.msra.mxu0 0.0
    %4194 = vmatprep.subr.mxu0 0.0
    %4195 = vmatpush1.xpose.msra.mxu0 0.0
    %4196 = vmatprep.mubr.f32.mxu0 0.0
    %4197 = vmatmul.mubr.f32.gmra.mrb[0].mxu0 %v4124
    %v4198 = vpop.f32.mrb[0].mxu0
    %v4199 = vadd.f32 0.0, %v4198
    %v4200 = vpop.f32.mrb[0].mxu0
    %4201 = vmatprep.mubr.f32.mxu0 0.0
    %4202 = vmatmul.mubr.f32.gmra.mrb[0].mxu0 %v4126
    %v4203 = vpop.f32.mrb[0].mxu0
    %v4204 = vadd.f32 0.0, %v4203
    %v4205 = vpop.f32.mrb[0].mxu0
    %4206 = vdwg.mxu0
    %4207 = vrot.lane.b32.xlu0 %v3027, 64
    %v4208 = vpop.permute.xlu0 %4207
    %4209 = vrot.lane.b32.xlu0 %v3033, 64
    %v4210 = vpop.permute.xlu0 %4209
    %4211 = vrot.lane.b32.xlu0 %v3029, 64
    %v4212 = vpop.permute.xlu0 %4211
    %4213 = vrot.lane.b32.xlu0 %v3035, 64
    %v4214 = vpop.permute.xlu0 %4213
    %v4215 = vsel %vm436, %v4208, 0
    %v4217 = vsel %vm436, %v4210, 0
    %v4219 = vsel %vm436, %v4212, 0
    %v4221 = vsel %vm436, %v4214, 0
    %4223 = vmatprep.subr.mxu0 0.0
    %4224 = vmatpush1.xpose.msra.mxu0 %v4219
    %4225 = vmatprep.subr.mxu0 0.0
    %4226 = vmatpush1.xpose.msra.mxu0 %v4221
    %4227 = vmatprep.subr.mxu0 0.0
    %4228 = vmatpush1.xpose.msra.mxu0 0.0
    %4229 = vmatprep.subr.mxu0 0.0
    %4230 = vmatpush1.xpose.msra.mxu0 0.0
    %4231 = vmatprep.subr.mxu0 0.0
    %4232 = vmatpush1.xpose.msra.mxu0 0.0
    %4233 = vmatprep.subr.mxu0 0.0
    %4234 = vmatpush1.xpose.msra.mxu0 0.0
    %4235 = vmatprep.subr.mxu0 0.0
    %4236 = vmatpush1.xpose.msra.mxu0 0.0
    %4237 = vmatprep.subr.mxu0 0.0
    %4238 = vmatpush1.xpose.msra.mxu0 0.0
    %4239 = vmatprep.subr.mxu0 0.0
    %4240 = vmatpush1.xpose.msra.mxu0 0.0
    %4241 = vmatprep.subr.mxu0 0.0
    %4242 = vmatpush1.xpose.msra.mxu0 0.0
    %4243 = vmatprep.subr.mxu0 0.0
    %4244 = vmatpush1.xpose.msra.mxu0 0.0
    %4245 = vmatprep.subr.mxu0 0.0
    %4246 = vmatpush1.xpose.msra.mxu0 0.0
    %4247 = vmatprep.subr.mxu0 0.0
    %4248 = vmatpush1.xpose.msra.mxu0 0.0
    %4249 = vmatprep.subr.mxu0 0.0
    %4250 = vmatpush1.xpose.msra.mxu0 0.0
    %4251 = vmatprep.subr.mxu0 0.0
    %4252 = vmatpush1.xpose.msra.mxu0 0.0
    %4253 = vmatprep.subr.mxu0 0.0
    %4254 = vmatpush1.xpose.msra.mxu0 0.0
    %4255 = vmatprep.subr.mxu0 0.0
    %4256 = vmatpush1.xpose.msra.mxu0 0.0
    %4257 = vmatprep.subr.mxu0 0.0
    %4258 = vmatpush1.xpose.msra.mxu0 0.0
    %4259 = vmatprep.subr.mxu0 0.0
    %4260 = vmatpush1.xpose.msra.mxu0 0.0
    %4261 = vmatprep.subr.mxu0 0.0
    %4262 = vmatpush1.xpose.msra.mxu0 0.0
    %4263 = vmatprep.subr.mxu0 0.0
    %4264 = vmatpush1.xpose.msra.mxu0 0.0
    %4265 = vmatprep.subr.mxu0 0.0
    %4266 = vmatpush1.xpose.msra.mxu0 0.0
    %4267 = vmatprep.subr.mxu0 0.0
    %4268 = vmatpush1.xpose.msra.mxu0 0.0
    %4269 = vmatprep.subr.mxu0 0.0
    %4270 = vmatpush1.xpose.msra.mxu0 0.0
    %4271 = vmatprep.subr.mxu0 0.0
    %4272 = vmatpush1.xpose.msra.mxu0 0.0
    %4273 = vmatprep.subr.mxu0 0.0
    %4274 = vmatpush1.xpose.msra.mxu0 0.0
    %4275 = vmatprep.subr.mxu0 0.0
    %4276 = vmatpush1.xpose.msra.mxu0 0.0
    %4277 = vmatprep.subr.mxu0 0.0
    %4278 = vmatpush1.xpose.msra.mxu0 0.0
    %4279 = vmatprep.subr.mxu0 0.0
    %4280 = vmatpush1.xpose.msra.mxu0 0.0
    %4281 = vmatprep.subr.mxu0 0.0
    %4282 = vmatpush1.xpose.msra.mxu0 0.0
    %4283 = vmatprep.subr.mxu0 0.0
    %4284 = vmatpush1.xpose.msra.mxu0 0.0
    %4285 = vmatprep.subr.mxu0 0.0
    %4286 = vmatpush1.xpose.msra.mxu0 0.0
    %4287 = vmatprep.mubr.f32.mxu0 0.0
    %4288 = vmatmul.mubr.f32.gmra.mrb[0].mxu0 %v4215
    %v4289 = vpop.f32.mrb[0].mxu0
    %v4290 = vadd.f32 0.0, %v4289
    %v4291 = vpop.f32.mrb[0].mxu0
    %4292 = vmatprep.mubr.f32.mxu0 0.0
    %4293 = vmatmul.mubr.f32.gmra.mrb[0].mxu0 %v4217
    %v4294 = vpop.f32.mrb[0].mxu0
    %v4295 = vadd.f32 0.0, %v4294
    %v4296 = vpop.f32.mrb[0].mxu0
    %4297 = vdwg.mxu0
    %v4298 = vmul.f32 %v4199, 0.17677669
    %v4299 = vmul.f32 %v4204, 0.17677669
    %v4300 = vmul.f32 %v4290, 0.17677669
    %v4301 = vmul.f32 %v4295, 0.17677669
    %v4302 = vadd.f32 %v4298, %v618
    %v4303 = vadd.f32 %v4299, %v618
    %v4304 = vadd.f32 %v4300, %v622
    %v4305 = vadd.f32 %v4301, %v622
    %v4306 = vsel %vm629, %v4302, -inf
    %4307 = vmax.xlane.f32.xlu0 %v4306
    %v4308 = vpop.xlane.xlu0 %4307
    %v4309 = vsel %vm629, %v4303, -inf
    %4310 = vmax.xlane.f32.xlu0 %v4309
    %v4311 = vpop.xlane.xlu0 %4310
    %v4312 = vsel %vm629, %v4304, -inf
    %4313 = vmax.xlane.f32.xlu0 %v4312
    %v4314 = vpop.xlane.xlu0 %4313
    %v4315 = vsel %vm629, %v4305, -inf
    %4316 = vmax.xlane.f32.xlu0 %v4315
    %v4317 = vpop.xlane.xlu0 %4316
    %v4318 = vsub.f32 %v4302, %v4308
    %v4319 = vsub.f32 %v4303, %v4311
    %v4320 = vsub.f32 %v4304, %v4314
    %v4321 = vsub.f32 %v4305, %v4317
    %v4322 = vmul.f32 %v4318, 1.442695
    %v4323 = vpow.pop %v4322
    %v4324 = vmul.f32 %v4319, 1.442695
    %v4325 = vpow.pop %v4324
    %v4326 = vmul.f32 %v4320, 1.442695
    %v4327 = vpow.pop %v4326
    %v4328 = vmul.f32 %v4321, 1.442695
    %v4329 = vpow.pop %v4328
    %v4330 = vsel %vm629, %v4323, 0.0
    %4331 = vadd.xlane.f32.xlu0 %v4330
    %v4332 = vpop.xlane.xlu0 %4331
    %v4333 = vsel %vm629, %v4325, 0.0
    %4334 = vadd.xlane.f32.xlu0 %v4333
    %v4335 = vpop.xlane.xlu0 %4334
    %v4336 = vsel %vm629, %v4327, 0.0
    %4337 = vadd.xlane.f32.xlu0 %v4336
    %v4338 = vpop.xlane.xlu0 %4337
    %v4339 = vsel %vm629, %v4329, 0.0
    %4340 = vadd.xlane.f32.xlu0 %v4339
    %v4341 = vpop.xlane.xlu0 %4340
    %v4342 = vrcp.pop %v4332
    %v4343 = vrcp.pop %v4335
    %v4344 = vrcp.pop %v4338
    %v4345 = vrcp.pop %v4341
    %v4346 = vmul.f32 %v4323, %v4342
    %v4347 = vmul.f32 %v4325, %v4343
    %v4348 = vmul.f32 %v4327, %v4344
    %v4349 = vmul.f32 %v4329, %v4345
    %4350 = vrot.lane.b32.xlu0 %v3104, 64
    %v4351 = vpop.permute.xlu0 %4350
    %4352 = vrot.lane.b32.xlu0 %v3109, 64
    %v4353 = vpop.permute.xlu0 %4352
    %v4357 = vsel %vm629, %v4346, 0
    %v4360 = vsel %vm629, %v4347, 0
    %4362 = vmatprep.subr.mxu0 0.0
    %4363 = vmatpush1.msra.mxu0 %v4351
    %4364 = vmatprep.subr.mxu0 0.0
    %4365 = vmatpush1.msra.mxu0 %v4353
    %4366 = vmatprep.subr.mxu0 0.0
    %4367 = vmatpush1.msra.mxu0 0.0
    %4368 = vmatprep.subr.mxu0 0.0
    %4369 = vmatpush1.msra.mxu0 0.0
    %4370 = vmatprep.subr.mxu0 0.0
    %4371 = vmatpush1.msra.mxu0 0.0
    %4372 = vmatprep.subr.mxu0 0.0
    %4373 = vmatpush1.msra.mxu0 0.0
    %4374 = vmatprep.subr.mxu0 0.0
    %4375 = vmatpush1.msra.mxu0 0.0
    %4376 = vmatprep.subr.mxu0 0.0
    %4377 = vmatpush1.msra.mxu0 0.0
    %4378 = vmatprep.subr.mxu0 0.0
    %4379 = vmatpush1.msra.mxu0 0.0
    %4380 = vmatprep.subr.mxu0 0.0
    %4381 = vmatpush1.msra.mxu0 0.0
    %4382 = vmatprep.subr.mxu0 0.0
    %4383 = vmatpush1.msra.mxu0 0.0
    %4384 = vmatprep.subr.mxu0 0.0
    %4385 = vmatpush1.msra.mxu0 0.0
    %4386 = vmatprep.subr.mxu0 0.0
    %4387 = vmatpush1.msra.mxu0 0.0
    %4388 = vmatprep.subr.mxu0 0.0
    %4389 = vmatpush1.msra.mxu0 0.0
    %4390 = vmatprep.subr.mxu0 0.0
    %4391 = vmatpush1.msra.mxu0 0.0
    %4392 = vmatprep.subr.mxu0 0.0
    %4393 = vmatpush1.msra.mxu0 0.0
    %4394 = vmatprep.subr.mxu0 0.0
    %4395 = vmatpush1.msra.mxu0 0.0
    %4396 = vmatprep.subr.mxu0 0.0
    %4397 = vmatpush1.msra.mxu0 0.0
    %4398 = vmatprep.subr.mxu0 0.0
    %4399 = vmatpush1.msra.mxu0 0.0
    %4400 = vmatprep.subr.mxu0 0.0
    %4401 = vmatpush1.msra.mxu0 0.0
    %4402 = vmatprep.subr.mxu0 0.0
    %4403 = vmatpush1.msra.mxu0 0.0
    %4404 = vmatprep.subr.mxu0 0.0
    %4405 = vmatpush1.msra.mxu0 0.0
    %4406 = vmatprep.subr.mxu0 0.0
    %4407 = vmatpush1.msra.mxu0 0.0
    %4408 = vmatprep.subr.mxu0 0.0
    %4409 = vmatpush1.msra.mxu0 0.0
    %4410 = vmatprep.subr.mxu0 0.0
    %4411 = vmatpush1.msra.mxu0 0.0
    %4412 = vmatprep.subr.mxu0 0.0
    %4413 = vmatpush1.msra.mxu0 0.0
    %4414 = vmatprep.subr.mxu0 0.0
    %4415 = vmatpush1.msra.mxu0 0.0
    %4416 = vmatprep.subr.mxu0 0.0
    %4417 = vmatpush1.msra.mxu0 0.0
    %4418 = vmatprep.subr.mxu0 0.0
    %4419 = vmatpush1.msra.mxu0 0.0
    %4420 = vmatprep.subr.mxu0 0.0
    %4421 = vmatpush1.msra.mxu0 0.0
    %4422 = vmatprep.subr.mxu0 0.0
    %4423 = vmatpush1.msra.mxu0 0.0
    %4424 = vmatprep.subr.mxu0 0.0
    %4425 = vmatpush1.msra.mxu0 0.0
    %4426 = vmatprep.mubr.f32.mxu0 0.0
    %4427 = vmatmul.mubr.f32.gmra.mrb[0].mxu0 %v4357
    %v4428 = vpop.f32.mrb[0].mxu0
    %v4429 = vadd.f32 0.0, %v4428
    %v4430 = vpop.f32.mrb[0].mxu0
    %4431 = vmatprep.mubr.f32.mxu0 0.0
    %4432 = vmatmul.mubr.f32.gmra.mrb[0].mxu0 %v4360
    %v4433 = vpop.f32.mrb[0].mxu0
    %v4434 = vadd.f32 0.0, %v4433
    %v4435 = vpop.f32.mrb[0].mxu0
    %4436 = vdwg.mxu0
    %4437 = vrot.lane.b32.xlu0 %v3114, 64
    %v4438 = vpop.permute.xlu0 %4437
    %4439 = vrot.lane.b32.xlu0 %v3119, 64
    %v4440 = vpop.permute.xlu0 %4439
    %v4444 = vsel %vm629, %v4348, 0
    %v4447 = vsel %vm629, %v4349, 0
    %4449 = vmatprep.subr.mxu0 0.0
    %4450 = vmatpush1.msra.mxu0 %v4438
    %4451 = vmatprep.subr.mxu0 0.0
    %4452 = vmatpush1.msra.mxu0 %v4440
    %4453 = vmatprep.subr.mxu0 0.0
    %4454 = vmatpush1.msra.mxu0 0.0
    %4455 = vmatprep.subr.mxu0 0.0
    %4456 = vmatpush1.msra.mxu0 0.0
    %4457 = vmatprep.subr.mxu0 0.0
    %4458 = vmatpush1.msra.mxu0 0.0
    %4459 = vmatprep.subr.mxu0 0.0
    %4460 = vmatpush1.msra.mxu0 0.0
    %4461 = vmatprep.subr.mxu0 0.0
    %4462 = vmatpush1.msra.mxu0 0.0
    %4463 = vmatprep.subr.mxu0 0.0
    %4464 = vmatpush1.msra.mxu0 0.0
    %4465 = vmatprep.subr.mxu0 0.0
    %4466 = vmatpush1.msra.mxu0 0.0
    %4467 = vmatprep.subr.mxu0 0.0
    %4468 = vmatpush1.msra.mxu0 0.0
    %4469 = vmatprep.subr.mxu0 0.0
    %4470 = vmatpush1.msra.mxu0 0.0
    %4471 = vmatprep.subr.mxu0 0.0
    %4472 = vmatpush1.msra.mxu0 0.0
    %4473 = vmatprep.subr.mxu0 0.0
    %4474 = vmatpush1.msra.mxu0 0.0
    %4475 = vmatprep.subr.mxu0 0.0
    %4476 = vmatpush1.msra.mxu0 0.0
    %4477 = vmatprep.subr.mxu0 0.0
    %4478 = vmatpush1.msra.mxu0 0.0
    %4479 = vmatprep.subr.mxu0 0.0
    %4480 = vmatpush1.msra.mxu0 0.0
    %4481 = vmatprep.subr.mxu0 0.0
    %4482 = vmatpush1.msra.mxu0 0.0
    %4483 = vmatprep.subr.mxu0 0.0
    %4484 = vmatpush1.msra.mxu0 0.0
    %4485 = vmatprep.subr.mxu0 0.0
    %4486 = vmatpush1.msra.mxu0 0.0
    %4487 = vmatprep.subr.mxu0 0.0
    %4488 = vmatpush1.msra.mxu0 0.0
    %4489 = vmatprep.subr.mxu0 0.0
    %4490 = vmatpush1.msra.mxu0 0.0
    %4491 = vmatprep.subr.mxu0 0.0
    %4492 = vmatpush1.msra.mxu0 0.0
    %4493 = vmatprep.subr.mxu0 0.0
    %4494 = vmatpush1.msra.mxu0 0.0
    %4495 = vmatprep.subr.mxu0 0.0
    %4496 = vmatpush1.msra.mxu0 0.0
    %4497 = vmatprep.subr.mxu0 0.0
    %4498 = vmatpush1.msra.mxu0 0.0
    %4499 = vmatprep.subr.mxu0 0.0
    %4500 = vmatpush1.msra.mxu0 0.0
    %4501 = vmatprep.subr.mxu0 0.0
    %4502 = vmatpush1.msra.mxu0 0.0
    %4503 = vmatprep.subr.mxu0 0.0
    %4504 = vmatpush1.msra.mxu0 0.0
    %4505 = vmatprep.subr.mxu0 0.0
    %4506 = vmatpush1.msra.mxu0 0.0
    %4507 = vmatprep.subr.mxu0 0.0
    %4508 = vmatpush1.msra.mxu0 0.0
    %4509 = vmatprep.subr.mxu0 0.0
    %4510 = vmatpush1.msra.mxu0 0.0
    %4511 = vmatprep.subr.mxu0 0.0
    %4512 = vmatpush1.msra.mxu0 0.0
    %4513 = vmatprep.mubr.f32.mxu0 0.0
    %4514 = vmatmul.mubr.f32.gmra.mrb[0].mxu0 %v4444
    %v4515 = vpop.f32.mrb[0].mxu0
    %v4516 = vadd.f32 0.0, %v4515
    %v4517 = vpop.f32.mrb[0].mxu0
    %4518 = vmatprep.mubr.f32.mxu0 0.0
    %4519 = vmatmul.mubr.f32.gmra.mrb[0].mxu0 %v4447
    %v4520 = vpop.f32.mrb[0].mxu0
    %v4521 = vadd.f32 0.0, %v4520
    %v4522 = vpop.f32.mrb[0].mxu0
    %4523 = vdwg.mxu0
    %v4525 = vsel %vm436, %v4429, 0
    %v4528 = vsel %vm436, %v4434, 0
    %v4531 = vsel %vm436, %v4516, 0
    %v4534 = vsel %vm436, %v4521, 0
    %4536 = vmatprep.subr.mxu0 0.0
    %4537 = vmatpush1.msra.mxu0 %v2854
    %4538 = vmatprep.subr.mxu0 0.0
    %4539 = vmatpush1.msra.mxu0 %v2855
    %4540 = vmatprep.subr.mxu0 0.0
    %4541 = vmatpush1.msra.mxu0 %v2856
    %4542 = vmatprep.subr.mxu0 0.0
    %4543 = vmatpush1.msra.mxu0 %v2857
    %4544 = vmatprep.subr.mxu0 0.0
    %4545 = vmatpush1.msra.mxu0 0.0
    %4546 = vmatprep.subr.mxu0 0.0
    %4547 = vmatpush1.msra.mxu0 0.0
    %4548 = vmatprep.subr.mxu0 0.0
    %4549 = vmatpush1.msra.mxu0 0.0
    %4550 = vmatprep.subr.mxu0 0.0
    %4551 = vmatpush1.msra.mxu0 0.0
    %4552 = vmatprep.subr.mxu0 0.0
    %4553 = vmatpush1.msra.mxu0 0.0
    %4554 = vmatprep.subr.mxu0 0.0
    %4555 = vmatpush1.msra.mxu0 0.0
    %4556 = vmatprep.subr.mxu0 0.0
    %4557 = vmatpush1.msra.mxu0 0.0
    %4558 = vmatprep.subr.mxu0 0.0
    %4559 = vmatpush1.msra.mxu0 0.0
    %4560 = vmatprep.subr.mxu0 0.0
    %4561 = vmatpush1.msra.mxu0 0.0
    %4562 = vmatprep.subr.mxu0 0.0
    %4563 = vmatpush1.msra.mxu0 0.0
    %4564 = vmatprep.subr.mxu0 0.0
    %4565 = vmatpush1.msra.mxu0 0.0
    %4566 = vmatprep.subr.mxu0 0.0
    %4567 = vmatpush1.msra.mxu0 0.0
    %4568 = vmatprep.subr.mxu0 0.0
    %4569 = vmatpush1.msra.mxu0 0.0
    %4570 = vmatprep.subr.mxu0 0.0
    %4571 = vmatpush1.msra.mxu0 0.0
    %4572 = vmatprep.subr.mxu0 0.0
    %4573 = vmatpush1.msra.mxu0 0.0
    %4574 = vmatprep.subr.mxu0 0.0
    %4575 = vmatpush1.msra.mxu0 0.0
    %4576 = vmatprep.subr.mxu0 0.0
    %4577 = vmatpush1.msra.mxu0 0.0
    %4578 = vmatprep.subr.mxu0 0.0
    %4579 = vmatpush1.msra.mxu0 0.0
    %4580 = vmatprep.subr.mxu0 0.0
    %4581 = vmatpush1.msra.mxu0 0.0
    %4582 = vmatprep.subr.mxu0 0.0
    %4583 = vmatpush1.msra.mxu0 0.0
    %4584 = vmatprep.subr.mxu0 0.0
    %4585 = vmatpush1.msra.mxu0 0.0
    %4586 = vmatprep.subr.mxu0 0.0
    %4587 = vmatpush1.msra.mxu0 0.0
    %4588 = vmatprep.subr.mxu0 0.0
    %4589 = vmatpush1.msra.mxu0 0.0
    %4590 = vmatprep.subr.mxu0 0.0
    %4591 = vmatpush1.msra.mxu0 0.0
    %4592 = vmatprep.subr.mxu0 0.0
    %4593 = vmatpush1.msra.mxu0 0.0
    %4594 = vmatprep.subr.mxu0 0.0
    %4595 = vmatpush1.msra.mxu0 0.0
    %4596 = vmatprep.subr.mxu0 0.0
    %4597 = vmatpush1.msra.mxu0 0.0
    %4598 = vmatprep.subr.mxu0 0.0
    %4599 = vmatpush1.msra.mxu0 0.0
    %4600 = vmatprep.mubr.f32.mxu0 0.0
    %4601 = vmatmul.mubr.f32.gmra.mrb[0].mxu0 %v4525
    %v4602 = vpop.f32.mrb[0].mxu0
    %v4603 = vadd.f32 0.0, %v4602
    %v4604 = vpop.f32.mrb[0].mxu0
    %4605 = vmatprep.mubr.f32.mxu0 0.0
    %4606 = vmatmul.mubr.f32.gmra.mrb[0].mxu0 %v4528
    %v4607 = vpop.f32.mrb[0].mxu0
    %v4608 = vadd.f32 0.0, %v4607
    %v4609 = vpop.f32.mrb[0].mxu0
    %4610 = vmatprep.mubr.f32.mxu0 0.0
    %4611 = vmatmul.mubr.f32.gmra.mrb[0].mxu0 %v4531
    %v4612 = vpop.f32.mrb[0].mxu0
    %v4613 = vadd.f32 0.0, %v4612
    %v4614 = vpop.f32.mrb[0].mxu0
    %4615 = vmatprep.mubr.f32.mxu0 0.0
    %4616 = vmatmul.mubr.f32.gmra.mrb[0].mxu0 %v4534
    %v4617 = vpop.f32.mrb[0].mxu0
    %v4618 = vadd.f32 0.0, %v4617
    %v4619 = vpop.f32.mrb[0].mxu0
    %4620 = vdwg.mxu0
    %v4621 = vadd.f32 %v4098, %v4603
    %v4622 = vadd.f32 %v4103, %v4608
    %v4623 = vadd.f32 %v4108, %v4613
    %v4624 = vadd.f32 %v4113, %v4618
    %4625 = vrot.lane.b32.xlu0 %v3015, 32
    %v4626 = vpop.permute.xlu0 %4625
    %4627 = vrot.lane.b32.xlu0 %v3021, 32
    %v4628 = vpop.permute.xlu0 %4627
    %4629 = vrot.lane.b32.xlu0 %v3017, 32
    %v4630 = vpop.permute.xlu0 %4629
    %4631 = vrot.lane.b32.xlu0 %v3023, 32
    %v4632 = vpop.permute.xlu0 %4631
    %v4633 = vsel %vm436, %v4626, 0
    %v4635 = vsel %vm436, %v4628, 0
    %v4637 = vsel %vm436, %v4630, 0
    %v4639 = vsel %vm436, %v4632, 0
    %4641 = vmatprep.subr.mxu0 0.0
    %4642 = vmatpush1.xpose.msra.mxu0 %v4637
    %4643 = vmatprep.subr.mxu0 0.0
    %4644 = vmatpush1.xpose.msra.mxu0 %v4639
    %4645 = vmatprep.subr.mxu0 0.0
    %4646 = vmatpush1.xpose.msra.mxu0 0.0
    %4647 = vmatprep.subr.mxu0 0.0
    %4648 = vmatpush1.xpose.msra.mxu0 0.0
    %4649 = vmatprep.subr.mxu0 0.0
    %4650 = vmatpush1.xpose.msra.mxu0 0.0
    %4651 = vmatprep.subr.mxu0 0.0
    %4652 = vmatpush1.xpose.msra.mxu0 0.0
    %4653 = vmatprep.subr.mxu0 0.0
    %4654 = vmatpush1.xpose.msra.mxu0 0.0
    %4655 = vmatprep.subr.mxu0 0.0
    %4656 = vmatpush1.xpose.msra.mxu0 0.0
    %4657 = vmatprep.subr.mxu0 0.0
    %4658 = vmatpush1.xpose.msra.mxu0 0.0
    %4659 = vmatprep.subr.mxu0 0.0
    %4660 = vmatpush1.xpose.msra.mxu0 0.0
    %4661 = vmatprep.subr.mxu0 0.0
    %4662 = vmatpush1.xpose.msra.mxu0 0.0
    %4663 = vmatprep.subr.mxu0 0.0
    %4664 = vmatpush1.xpose.msra.mxu0 0.0
    %4665 = vmatprep.subr.mxu0 0.0
    %4666 = vmatpush1.xpose.msra.mxu0 0.0
    %4667 = vmatprep.subr.mxu0 0.0
    %4668 = vmatpush1.xpose.msra.mxu0 0.0
    %4669 = vmatprep.subr.mxu0 0.0
    %4670 = vmatpush1.xpose.msra.mxu0 0.0
    %4671 = vmatprep.subr.mxu0 0.0
    %4672 = vmatpush1.xpose.msra.mxu0 0.0
    %4673 = vmatprep.subr.mxu0 0.0
    %4674 = vmatpush1.xpose.msra.mxu0 0.0
    %4675 = vmatprep.subr.mxu0 0.0
    %4676 = vmatpush1.xpose.msra.mxu0 0.0
    %4677 = vmatprep.subr.mxu0 0.0
    %4678 = vmatpush1.xpose.msra.mxu0 0.0
    %4679 = vmatprep.subr.mxu0 0.0
    %4680 = vmatpush1.xpose.msra.mxu0 0.0
    %4681 = vmatprep.subr.mxu0 0.0
    %4682 = vmatpush1.xpose.msra.mxu0 0.0
    %4683 = vmatprep.subr.mxu0 0.0
    %4684 = vmatpush1.xpose.msra.mxu0 0.0
    %4685 = vmatprep.subr.mxu0 0.0
    %4686 = vmatpush1.xpose.msra.mxu0 0.0
    %4687 = vmatprep.subr.mxu0 0.0
    %4688 = vmatpush1.xpose.msra.mxu0 0.0
    %4689 = vmatprep.subr.mxu0 0.0
    %4690 = vmatpush1.xpose.msra.mxu0 0.0
    %4691 = vmatprep.subr.mxu0 0.0
    %4692 = vmatpush1.xpose.msra.mxu0 0.0
    %4693 = vmatprep.subr.mxu0 0.0
    %4694 = vmatpush1.xpose.msra.mxu0 0.0
    %4695 = vmatprep.subr.mxu0 0.0
    %4696 = vmatpush1.xpose.msra.mxu0 0.0
    %4697 = vmatprep.subr.mxu0 0.0
    %4698 = vmatpush1.xpose.msra.mxu0 0.0
    %4699 = vmatprep.subr.mxu0 0.0
    %4700 = vmatpush1.xpose.msra.mxu0 0.0
    %4701 = vmatprep.subr.mxu0 0.0
    %4702 = vmatpush1.xpose.msra.mxu0 0.0
    %4703 = vmatprep.subr.mxu0 0.0
    %4704 = vmatpush1.xpose.msra.mxu0 0.0
    %4705 = vmatprep.mubr.f32.mxu0 0.0
    %4706 = vmatmul.mubr.f32.gmra.mrb[0].mxu0 %v4633
    %v4707 = vpop.f32.mrb[0].mxu0
    %v4708 = vadd.f32 0.0, %v4707
    %v4709 = vpop.f32.mrb[0].mxu0
    %4710 = vmatprep.mubr.f32.mxu0 0.0
    %4711 = vmatmul.mubr.f32.gmra.mrb[0].mxu0 %v4635
    %v4712 = vpop.f32.mrb[0].mxu0
    %v4713 = vadd.f32 0.0, %v4712
    %v4714 = vpop.f32.mrb[0].mxu0
    %4715 = vdwg.mxu0
    %4716 = vrot.lane.b32.xlu0 %v3027, 32
    %v4717 = vpop.permute.xlu0 %4716
    %4718 = vrot.lane.b32.xlu0 %v3033, 32
    %v4719 = vpop.permute.xlu0 %4718
    %4720 = vrot.lane.b32.xlu0 %v3029, 32
    %v4721 = vpop.permute.xlu0 %4720
    %4722 = vrot.lane.b32.xlu0 %v3035, 32
    %v4723 = vpop.permute.xlu0 %4722
    %v4724 = vsel %vm436, %v4717, 0
    %v4726 = vsel %vm436, %v4719, 0
    %v4728 = vsel %vm436, %v4721, 0
    %v4730 = vsel %vm436, %v4723, 0
    %4732 = vmatprep.subr.mxu0 0.0
    %4733 = vmatpush1.xpose.msra.mxu0 %v4728
    %4734 = vmatprep.subr.mxu0 0.0
    %4735 = vmatpush1.xpose.msra.mxu0 %v4730
    %4736 = vmatprep.subr.mxu0 0.0
    %4737 = vmatpush1.xpose.msra.mxu0 0.0
    %4738 = vmatprep.subr.mxu0 0.0
    %4739 = vmatpush1.xpose.msra.mxu0 0.0
    %4740 = vmatprep.subr.mxu0 0.0
    %4741 = vmatpush1.xpose.msra.mxu0 0.0
    %4742 = vmatprep.subr.mxu0 0.0
    %4743 = vmatpush1.xpose.msra.mxu0 0.0
    %4744 = vmatprep.subr.mxu0 0.0
    %4745 = vmatpush1.xpose.msra.mxu0 0.0
    %4746 = vmatprep.subr.mxu0 0.0
    %4747 = vmatpush1.xpose.msra.mxu0 0.0
    %4748 = vmatprep.subr.mxu0 0.0
    %4749 = vmatpush1.xpose.msra.mxu0 0.0
    %4750 = vmatprep.subr.mxu0 0.0
    %4751 = vmatpush1.xpose.msra.mxu0 0.0
    %4752 = vmatprep.subr.mxu0 0.0
    %4753 = vmatpush1.xpose.msra.mxu0 0.0
    %4754 = vmatprep.subr.mxu0 0.0
    %4755 = vmatpush1.xpose.msra.mxu0 0.0
    %4756 = vmatprep.subr.mxu0 0.0
    %4757 = vmatpush1.xpose.msra.mxu0 0.0
    %4758 = vmatprep.subr.mxu0 0.0
    %4759 = vmatpush1.xpose.msra.mxu0 0.0
    %4760 = vmatprep.subr.mxu0 0.0
    %4761 = vmatpush1.xpose.msra.mxu0 0.0
    %4762 = vmatprep.subr.mxu0 0.0
    %4763 = vmatpush1.xpose.msra.mxu0 0.0
    %4764 = vmatprep.subr.mxu0 0.0
    %4765 = vmatpush1.xpose.msra.mxu0 0.0
    %4766 = vmatprep.subr.mxu0 0.0
    %4767 = vmatpush1.xpose.msra.mxu0 0.0
    %4768 = vmatprep.subr.mxu0 0.0
    %4769 = vmatpush1.xpose.msra.mxu0 0.0
    %4770 = vmatprep.subr.mxu0 0.0
    %4771 = vmatpush1.xpose.msra.mxu0 0.0
    %4772 = vmatprep.subr.mxu0 0.0
    %4773 = vmatpush1.xpose.msra.mxu0 0.0
    %4774 = vmatprep.subr.mxu0 0.0
    %4775 = vmatpush1.xpose.msra.mxu0 0.0
    %4776 = vmatprep.subr.mxu0 0.0
    %4777 = vmatpush1.xpose.msra.mxu0 0.0
    %4778 = vmatprep.subr.mxu0 0.0
    %4779 = vmatpush1.xpose.msra.mxu0 0.0
    %4780 = vmatprep.subr.mxu0 0.0
    %4781 = vmatpush1.xpose.msra.mxu0 0.0
    %4782 = vmatprep.subr.mxu0 0.0
    %4783 = vmatpush1.xpose.msra.mxu0 0.0
    %4784 = vmatprep.subr.mxu0 0.0
    %4785 = vmatpush1.xpose.msra.mxu0 0.0
    %4786 = vmatprep.subr.mxu0 0.0
    %4787 = vmatpush1.xpose.msra.mxu0 0.0
    %4788 = vmatprep.subr.mxu0 0.0
    %4789 = vmatpush1.xpose.msra.mxu0 0.0
    %4790 = vmatprep.subr.mxu0 0.0
    %4791 = vmatpush1.xpose.msra.mxu0 0.0
    %4792 = vmatprep.subr.mxu0 0.0
    %4793 = vmatpush1.xpose.msra.mxu0 0.0
    %4794 = vmatprep.subr.mxu0 0.0
    %4795 = vmatpush1.xpose.msra.mxu0 0.0
    %4796 = vmatprep.mubr.f32.mxu0 0.0
    %4797 = vmatmul.mubr.f32.gmra.mrb[0].mxu0 %v4724
    %v4798 = vpop.f32.mrb[0].mxu0
    %v4799 = vadd.f32 0.0, %v4798
    %v4800 = vpop.f32.mrb[0].mxu0
    %4801 = vmatprep.mubr.f32.mxu0 0.0
    %4802 = vmatmul.mubr.f32.gmra.mrb[0].mxu0 %v4726
    %v4803 = vpop.f32.mrb[0].mxu0
    %v4804 = vadd.f32 0.0, %v4803
    %v4805 = vpop.f32.mrb[0].mxu0
    %4806 = vdwg.mxu0
    %v4807 = vmul.f32 %v4708, 0.17677669
    %v4808 = vmul.f32 %v4713, 0.17677669
    %v4809 = vmul.f32 %v4799, 0.17677669
    %v4810 = vmul.f32 %v4804, 0.17677669
    %v4811 = vadd.f32 %v4807, %v618
    %v4812 = vadd.f32 %v4808, %v618
    %v4813 = vadd.f32 %v4809, %v622
    %v4814 = vadd.f32 %v4810, %v622
    %v4815 = vsel %vm629, %v4811, -inf
    %4816 = vmax.xlane.f32.xlu0 %v4815
    %v4817 = vpop.xlane.xlu0 %4816
    %v4818 = vsel %vm629, %v4812, -inf
    %4819 = vmax.xlane.f32.xlu0 %v4818
    %v4820 = vpop.xlane.xlu0 %4819
    %v4821 = vsel %vm629, %v4813, -inf
    %4822 = vmax.xlane.f32.xlu0 %v4821
    %v4823 = vpop.xlane.xlu0 %4822
    %v4824 = vsel %vm629, %v4814, -inf
    %4825 = vmax.xlane.f32.xlu0 %v4824
    %v4826 = vpop.xlane.xlu0 %4825
    %v4827 = vsub.f32 %v4811, %v4817
    %v4828 = vsub.f32 %v4812, %v4820
    %v4829 = vsub.f32 %v4813, %v4823
    %v4830 = vsub.f32 %v4814, %v4826
    %v4831 = vmul.f32 %v4827, 1.442695
    %v4832 = vpow.pop %v4831
    %v4833 = vmul.f32 %v4828, 1.442695
    %v4834 = vpow.pop %v4833
    %v4835 = vmul.f32 %v4829, 1.442695
    %v4836 = vpow.pop %v4835
    %v4837 = vmul.f32 %v4830, 1.442695
    %v4838 = vpow.pop %v4837
    %v4839 = vsel %vm629, %v4832, 0.0
    %4840 = vadd.xlane.f32.xlu0 %v4839
    %v4841 = vpop.xlane.xlu0 %4840
    %v4842 = vsel %vm629, %v4834, 0.0
    %4843 = vadd.xlane.f32.xlu0 %v4842
    %v4844 = vpop.xlane.xlu0 %4843
    %v4845 = vsel %vm629, %v4836, 0.0
    %4846 = vadd.xlane.f32.xlu0 %v4845
    %v4847 = vpop.xlane.xlu0 %4846
    %v4848 = vsel %vm629, %v4838, 0.0
    %4849 = vadd.xlane.f32.xlu0 %v4848
    %v4850 = vpop.xlane.xlu0 %4849
    %v4851 = vrcp.pop %v4841
    %v4852 = vrcp.pop %v4844
    %v4853 = vrcp.pop %v4847
    %v4854 = vrcp.pop %v4850
    %v4855 = vmul.f32 %v4832, %v4851
    %v4856 = vmul.f32 %v4834, %v4852
    %v4857 = vmul.f32 %v4836, %v4853
    %v4858 = vmul.f32 %v4838, %v4854
    %4859 = vrot.lane.b32.xlu0 %v3104, 32
    %v4860 = vpop.permute.xlu0 %4859
    %4861 = vrot.lane.b32.xlu0 %v3109, 32
    %v4862 = vpop.permute.xlu0 %4861
    %v4866 = vsel %vm629, %v4855, 0
    %v4869 = vsel %vm629, %v4856, 0
    %4871 = vmatprep.subr.mxu0 0.0
    %4872 = vmatpush1.msra.mxu0 %v4860
    %4873 = vmatprep.subr.mxu0 0.0
    %4874 = vmatpush1.msra.mxu0 %v4862
    %4875 = vmatprep.subr.mxu0 0.0
    %4876 = vmatpush1.msra.mxu0 0.0
    %4877 = vmatprep.subr.mxu0 0.0
    %4878 = vmatpush1.msra.mxu0 0.0
    %4879 = vmatprep.subr.mxu0 0.0
    %4880 = vmatpush1.msra.mxu0 0.0
    %4881 = vmatprep.subr.mxu0 0.0
    %4882 = vmatpush1.msra.mxu0 0.0
    %4883 = vmatprep.subr.mxu0 0.0
    %4884 = vmatpush1.msra.mxu0 0.0
    %4885 = vmatprep.subr.mxu0 0.0
    %4886 = vmatpush1.msra.mxu0 0.0
    %4887 = vmatprep.subr.mxu0 0.0
    %4888 = vmatpush1.msra.mxu0 0.0
    %4889 = vmatprep.subr.mxu0 0.0
    %4890 = vmatpush1.msra.mxu0 0.0
    %4891 = vmatprep.subr.mxu0 0.0
    %4892 = vmatpush1.msra.mxu0 0.0
    %4893 = vmatprep.subr.mxu0 0.0
    %4894 = vmatpush1.msra.mxu0 0.0
    %4895 = vmatprep.subr.mxu0 0.0
    %4896 = vmatpush1.msra.mxu0 0.0
    %4897 = vmatprep.subr.mxu0 0.0
    %4898 = vmatpush1.msra.mxu0 0.0
    %4899 = vmatprep.subr.mxu0 0.0
    %4900 = vmatpush1.msra.mxu0 0.0
    %4901 = vmatprep.subr.mxu0 0.0
    %4902 = vmatpush1.msra.mxu0 0.0
    %4903 = vmatprep.subr.mxu0 0.0
    %4904 = vmatpush1.msra.mxu0 0.0
    %4905 = vmatprep.subr.mxu0 0.0
    %4906 = vmatpush1.msra.mxu0 0.0
    %4907 = vmatprep.subr.mxu0 0.0
    %4908 = vmatpush1.msra.mxu0 0.0
    %4909 = vmatprep.subr.mxu0 0.0
    %4910 = vmatpush1.msra.mxu0 0.0
    %4911 = vmatprep.subr.mxu0 0.0
    %4912 = vmatpush1.msra.mxu0 0.0
    %4913 = vmatprep.subr.mxu0 0.0
    %4914 = vmatpush1.msra.mxu0 0.0
    %4915 = vmatprep.subr.mxu0 0.0
    %4916 = vmatpush1.msra.mxu0 0.0
    %4917 = vmatprep.subr.mxu0 0.0
    %4918 = vmatpush1.msra.mxu0 0.0
    %4919 = vmatprep.subr.mxu0 0.0
    %4920 = vmatpush1.msra.mxu0 0.0
    %4921 = vmatprep.subr.mxu0 0.0
    %4922 = vmatpush1.msra.mxu0 0.0
    %4923 = vmatprep.subr.mxu0 0.0
    %4924 = vmatpush1.msra.mxu0 0.0
    %4925 = vmatprep.subr.mxu0 0.0
    %4926 = vmatpush1.msra.mxu0 0.0
    %4927 = vmatprep.subr.mxu0 0.0
    %4928 = vmatpush1.msra.mxu0 0.0
    %4929 = vmatprep.subr.mxu0 0.0
    %4930 = vmatpush1.msra.mxu0 0.0
    %4931 = vmatprep.subr.mxu0 0.0
    %4932 = vmatpush1.msra.mxu0 0.0
    %4933 = vmatprep.subr.mxu0 0.0
    %4934 = vmatpush1.msra.mxu0 0.0
    %4935 = vmatprep.mubr.f32.mxu0 0.0
    %4936 = vmatmul.mubr.f32.gmra.mrb[0].mxu0 %v4866
    %v4937 = vpop.f32.mrb[0].mxu0
    %v4938 = vadd.f32 0.0, %v4937
    %v4939 = vpop.f32.mrb[0].mxu0
    %4940 = vmatprep.mubr.f32.mxu0 0.0
    %4941 = vmatmul.mubr.f32.gmra.mrb[0].mxu0 %v4869
    %v4942 = vpop.f32.mrb[0].mxu0
    %v4943 = vadd.f32 0.0, %v4942
    %v4944 = vpop.f32.mrb[0].mxu0
    %4945 = vdwg.mxu0
    %4946 = vrot.lane.b32.xlu0 %v3114, 32
    %v4947 = vpop.permute.xlu0 %4946
    %4948 = vrot.lane.b32.xlu0 %v3119, 32
    %v4949 = vpop.permute.xlu0 %4948
    %v4953 = vsel %vm629, %v4857, 0
    %v4956 = vsel %vm629, %v4858, 0
    %4958 = vmatprep.subr.mxu0 0.0
    %4959 = vmatpush1.msra.mxu0 %v4947
    %4960 = vmatprep.subr.mxu0 0.0
    %4961 = vmatpush1.msra.mxu0 %v4949
    %4962 = vmatprep.subr.mxu0 0.0
    %4963 = vmatpush1.msra.mxu0 0.0
    %4964 = vmatprep.subr.mxu0 0.0
    %4965 = vmatpush1.msra.mxu0 0.0
    %4966 = vmatprep.subr.mxu0 0.0
    %4967 = vmatpush1.msra.mxu0 0.0
    %4968 = vmatprep.subr.mxu0 0.0
    %4969 = vmatpush1.msra.mxu0 0.0
    %4970 = vmatprep.subr.mxu0 0.0
    %4971 = vmatpush1.msra.mxu0 0.0
    %4972 = vmatprep.subr.mxu0 0.0
    %4973 = vmatpush1.msra.mxu0 0.0
    %4974 = vmatprep.subr.mxu0 0.0
    %4975 = vmatpush1.msra.mxu0 0.0
    %4976 = vmatprep.subr.mxu0 0.0
    %4977 = vmatpush1.msra.mxu0 0.0
    %4978 = vmatprep.subr.mxu0 0.0
    %4979 = vmatpush1.msra.mxu0 0.0
    %4980 = vmatprep.subr.mxu0 0.0
    %4981 = vmatpush1.msra.mxu0 0.0
    %4982 = vmatprep.subr.mxu0 0.0
    %4983 = vmatpush1.msra.mxu0 0.0
    %4984 = vmatprep.subr.mxu0 0.0
    %4985 = vmatpush1.msra.mxu0 0.0
    %4986 = vmatprep.subr.mxu0 0.0
    %4987 = vmatpush1.msra.mxu0 0.0
    %4988 = vmatprep.subr.mxu0 0.0
    %4989 = vmatpush1.msra.mxu0 0.0
    %4990 = vmatprep.subr.mxu0 0.0
    %4991 = vmatpush1.msra.mxu0 0.0
    %4992 = vmatprep.subr.mxu0 0.0
    %4993 = vmatpush1.msra.mxu0 0.0
    %4994 = vmatprep.subr.mxu0 0.0
    %4995 = vmatpush1.msra.mxu0 0.0
    %4996 = vmatprep.subr.mxu0 0.0
    %4997 = vmatpush1.msra.mxu0 0.0
    %4998 = vmatprep.subr.mxu0 0.0
    %4999 = vmatpush1.msra.mxu0 0.0
    %5000 = vmatprep.subr.mxu0 0.0
    %5001 = vmatpush1.msra.mxu0 0.0
    %5002 = vmatprep.subr.mxu0 0.0
    %5003 = vmatpush1.msra.mxu0 0.0
    %5004 = vmatprep.subr.mxu0 0.0
    %5005 = vmatpush1.msra.mxu0 0.0
    %5006 = vmatprep.subr.mxu0 0.0
    %5007 = vmatpush1.msra.mxu0 0.0
    %5008 = vmatprep.subr.mxu0 0.0
    %5009 = vmatpush1.msra.mxu0 0.0
    %5010 = vmatprep.subr.mxu0 0.0
    %5011 = vmatpush1.msra.mxu0 0.0
    %5012 = vmatprep.subr.mxu0 0.0
    %5013 = vmatpush1.msra.mxu0 0.0
    %5014 = vmatprep.subr.mxu0 0.0
    %5015 = vmatpush1.msra.mxu0 0.0
    %5016 = vmatprep.subr.mxu0 0.0
    %5017 = vmatpush1.msra.mxu0 0.0
    %5018 = vmatprep.subr.mxu0 0.0
    %5019 = vmatpush1.msra.mxu0 0.0
    %5020 = vmatprep.subr.mxu0 0.0
    %5021 = vmatpush1.msra.mxu0 0.0
    %5022 = vmatprep.mubr.f32.mxu0 0.0
    %5023 = vmatmul.mubr.f32.gmra.mrb[0].mxu0 %v4953
    %v5024 = vpop.f32.mrb[0].mxu0
    %v5025 = vadd.f32 0.0, %v5024
    %v5026 = vpop.f32.mrb[0].mxu0
    %5027 = vmatprep.mubr.f32.mxu0 0.0
    %5028 = vmatmul.mubr.f32.gmra.mrb[0].mxu0 %v4956
    %v5029 = vpop.f32.mrb[0].mxu0
    %v5030 = vadd.f32 0.0, %v5029
    %v5031 = vpop.f32.mrb[0].mxu0
    %5032 = vdwg.mxu0
    %v5034 = vsel %vm436, %v4938, 0
    %v5037 = vsel %vm436, %v4943, 0
    %v5040 = vsel %vm436, %v5025, 0
    %v5043 = vsel %vm436, %v5030, 0
    %5045 = vmatprep.subr.mxu0 0.0
    %5046 = vmatpush1.msra.mxu0 %v2858
    %5047 = vmatprep.subr.mxu0 0.0
    %5048 = vmatpush1.msra.mxu0 %v2859
    %5049 = vmatprep.subr.mxu0 0.0
    %5050 = vmatpush1.msra.mxu0 %v2860
    %5051 = vmatprep.subr.mxu0 0.0
    %5052 = vmatpush1.msra.mxu0 %v2861
    %5053 = vmatprep.subr.mxu0 0.0
    %5054 = vmatpush1.msra.mxu0 0.0
    %5055 = vmatprep.subr.mxu0 0.0
    %5056 = vmatpush1.msra.mxu0 0.0
    %5057 = vmatprep.subr.mxu0 0.0
    %5058 = vmatpush1.msra.mxu0 0.0
    %5059 = vmatprep.subr.mxu0 0.0
    %5060 = vmatpush1.msra.mxu0 0.0
    %5061 = vmatprep.subr.mxu0 0.0
    %5062 = vmatpush1.msra.mxu0 0.0
    %5063 = vmatprep.subr.mxu0 0.0
    %5064 = vmatpush1.msra.mxu0 0.0
    %5065 = vmatprep.subr.mxu0 0.0
    %5066 = vmatpush1.msra.mxu0 0.0
    %5067 = vmatprep.subr.mxu0 0.0
    %5068 = vmatpush1.msra.mxu0 0.0
    %5069 = vmatprep.subr.mxu0 0.0
    %5070 = vmatpush1.msra.mxu0 0.0
    %5071 = vmatprep.subr.mxu0 0.0
    %5072 = vmatpush1.msra.mxu0 0.0
    %5073 = vmatprep.subr.mxu0 0.0
    %5074 = vmatpush1.msra.mxu0 0.0
    %5075 = vmatprep.subr.mxu0 0.0
    %5076 = vmatpush1.msra.mxu0 0.0
    %5077 = vmatprep.subr.mxu0 0.0
    %5078 = vmatpush1.msra.mxu0 0.0
    %5079 = vmatprep.subr.mxu0 0.0
    %5080 = vmatpush1.msra.mxu0 0.0
    %5081 = vmatprep.subr.mxu0 0.0
    %5082 = vmatpush1.msra.mxu0 0.0
    %5083 = vmatprep.subr.mxu0 0.0
    %5084 = vmatpush1.msra.mxu0 0.0
    %5085 = vmatprep.subr.mxu0 0.0
    %5086 = vmatpush1.msra.mxu0 0.0
    %5087 = vmatprep.subr.mxu0 0.0
    %5088 = vmatpush1.msra.mxu0 0.0
    %5089 = vmatprep.subr.mxu0 0.0
    %5090 = vmatpush1.msra.mxu0 0.0
    %5091 = vmatprep.subr.mxu0 0.0
    %5092 = vmatpush1.msra.mxu0 0.0
    %5093 = vmatprep.subr.mxu0 0.0
    %5094 = vmatpush1.msra.mxu0 0.0
    %5095 = vmatprep.subr.mxu0 0.0
    %5096 = vmatpush1.msra.mxu0 0.0
    %5097 = vmatprep.subr.mxu0 0.0
    %5098 = vmatpush1.msra.mxu0 0.0
    %5099 = vmatprep.subr.mxu0 0.0
    %5100 = vmatpush1.msra.mxu0 0.0
    %5101 = vmatprep.subr.mxu0 0.0
    %5102 = vmatpush1.msra.mxu0 0.0
    %5103 = vmatprep.subr.mxu0 0.0
    %5104 = vmatpush1.msra.mxu0 0.0
    %5105 = vmatprep.subr.mxu0 0.0
    %5106 = vmatpush1.msra.mxu0 0.0
    %5107 = vmatprep.subr.mxu0 0.0
    %5108 = vmatpush1.msra.mxu0 0.0
    %5109 = vmatprep.mubr.f32.mxu0 0.0
    %5110 = vmatmul.mubr.f32.gmra.mrb[0].mxu0 %v5034
    %v5111 = vpop.f32.mrb[0].mxu0
    %v5112 = vadd.f32 0.0, %v5111
    %v5113 = vpop.f32.mrb[0].mxu0
    %5114 = vmatprep.mubr.f32.mxu0 0.0
    %5115 = vmatmul.mubr.f32.gmra.mrb[0].mxu0 %v5037
    %v5116 = vpop.f32.mrb[0].mxu0
    %v5117 = vadd.f32 0.0, %v5116
    %v5118 = vpop.f32.mrb[0].mxu0
    %5119 = vmatprep.mubr.f32.mxu0 0.0
    %5120 = vmatmul.mubr.f32.gmra.mrb[0].mxu0 %v5040
    %v5121 = vpop.f32.mrb[0].mxu0
    %v5122 = vadd.f32 0.0, %v5121
    %v5123 = vpop.f32.mrb[0].mxu0
    %5124 = vmatprep.mubr.f32.mxu0 0.0
    %5125 = vmatmul.mubr.f32.gmra.mrb[0].mxu0 %v5043
    %v5126 = vpop.f32.mrb[0].mxu0
    %v5127 = vadd.f32 0.0, %v5126
    %v5128 = vpop.f32.mrb[0].mxu0
    %5129 = vdwg.mxu0
    %v5130 = vadd.f32 %v4621, %v5112
    %v5131 = vadd.f32 %v4622, %v5117
    %v5132 = vadd.f32 %v4623, %v5122
    %v5133 = vadd.f32 %v4624, %v5127
    %v5134 = vlaneseq
    %v5135 = vshrl.u32 %v5134, 7
    %v5136 = vsub.s32 0, %v5135
    %v5137 = vrot.slane %v2931, %v5136
    %v5138 = vadd.f32 %v5130, %v5137
    %v5139 = vadd.f32 %v5131, %v5137
    %v5140 = vadd.f32 %v5132, %v5137
    %v5141 = vadd.f32 %v5133, %v5137
    %v5142 = vadd.f32 %v2790, %v5138
    %v5143 = vadd.f32 %v2791, %v5139
    %v5144 = vadd.f32 %v2792, %v5140
    %v5145 = vadd.f32 %v2793, %v5141
    %5146 = vadd.xlane.f32.xlu0 %v5142
    %v5147 = vpop.xlane.xlu0 %5146
    %5148 = vadd.xlane.f32.xlu0 %v5143
    %v5149 = vpop.xlane.xlu0 %5148
    %5150 = vadd.xlane.f32.xlu0 %v5144
    %v5151 = vpop.xlane.xlu0 %5150
    %5152 = vadd.xlane.f32.xlu0 %v5145
    %v5153 = vpop.xlane.xlu0 %5152
    %v5154 = vmul.f32 %v5147, %v2480
    %v5155 = vmul.f32 %v5149, %v2480
    %v5156 = vmul.f32 %v5151, %v2480
    %v5157 = vmul.f32 %v5153, %v2480
    %v5158 = vsub.f32 %v5142, %v5154
    %v5159 = vsub.f32 %v5143, %v5155
    %v5160 = vsub.f32 %v5144, %v5156
    %v5161 = vsub.f32 %v5145, %v5157
    %v5162 = vmul.f32 %v5158, %v5158
    %v5163 = vmul.f32 %v5159, %v5159
    %v5164 = vmul.f32 %v5160, %v5160
    %v5165 = vmul.f32 %v5161, %v5161
    %5166 = vadd.xlane.f32.xlu0 %v5162
    %v5167 = vpop.xlane.xlu0 %5166
    %5168 = vadd.xlane.f32.xlu0 %v5163
    %v5169 = vpop.xlane.xlu0 %5168
    %5170 = vadd.xlane.f32.xlu0 %v5164
    %v5171 = vpop.xlane.xlu0 %5170
    %5172 = vadd.xlane.f32.xlu0 %v5165
    %v5173 = vpop.xlane.xlu0 %5172
    %v5174 = vmul.f32 %v5167, %v2480
    %v5175 = vmul.f32 %v5169, %v2480
    %v5176 = vmul.f32 %v5171, %v2480
    %v5177 = vmul.f32 %v5173, %v2480
    %v5178 = vadd.f32 %v5174, 1e-05
    %v5179 = vadd.f32 %v5175, 1e-05
    %v5180 = vadd.f32 %v5176, 1e-05
    %v5181 = vadd.f32 %v5177, 1e-05
    %v5182 = vrsqrt.pop %v5178
    %v5183 = vrsqrt.pop %v5179
    %v5184 = vrsqrt.pop %v5180
    %v5185 = vrsqrt.pop %v5181
    %v5186 = vmul.f32 %v5158, %v5182
    %v5187 = vmul.f32 %v5159, %v5183
    %v5188 = vmul.f32 %v5160, %v5184
    %v5189 = vmul.f32 %v5161, %v5185
    %v5190 = vlaneseq
    %v5191 = vshrl.u32 %v5190, 7
    %v5192 = vsub.s32 1, %v5191
    %v5193 = vrot.slane %v2931, %v5192
    %v5194 = vmul.f32 %v5186, %v5193
    %v5195 = vmul.f32 %v5187, %v5193
    %v5196 = vmul.f32 %v5188, %v5193
    %v5197 = vmul.f32 %v5189, %v5193
    %v5198 = vlaneseq
    %v5199 = vshrl.u32 %v5198, 7
    %v5200 = vsub.s32 2, %v5199
    %v5201 = vrot.slane %v2931, %v5200
    %v5202 = vadd.f32 %v5194, %v5201
    %v5203 = vadd.f32 %v5195, %v5201
    %v5204 = vadd.f32 %v5196, %v5201
    %v5205 = vadd.f32 %v5197, %v5201
    %v5207 = vlaneseq
    %v5208 = vshrl.u32 %v5207, 7
    %v5209 = vsub.s32 0, %v5208
    %v5210 = vrot.slane %v2896, %v5209
    %v5211 = vlaneseq
    %v5212 = vshrl.u32 %v5211, 7
    %v5213 = vsub.s32 1, %v5212
    %v5214 = vrot.slane %v2896, %v5213
    %5217 = vmatprep.subr.mxu0 %v2864
    %5218 = vmatpush1.msra.mxu0 %v2863
    %5219 = vmatprep.subr.mxu0 %v2866
    %5220 = vmatpush1.msra.mxu0 %v2865
    %5221 = vmatprep.subr.mxu0 %v2868
    %5222 = vmatpush1.msra.mxu0 %v2867
    %5223 = vmatprep.subr.mxu0 %v2870
    %5224 = vmatpush1.msra.mxu0 %v2869
    %5225 = vmatprep.subr.mxu0 %v2872
    %5226 = vmatpush1.msra.mxu0 %v2871
    %5227 = vmatprep.subr.mxu0 %v2874
    %5228 = vmatpush1.msra.mxu0 %v2873
    %5229 = vmatprep.subr.mxu0 %v2876
    %5230 = vmatpush1.msra.mxu0 %v2875
    %5231 = vmatprep.subr.mxu0 %v2878
    %5232 = vmatpush1.msra.mxu0 %v2877
    %5233 = vmatprep.subr.mxu0 %v2880
    %5234 = vmatpush1.msra.mxu0 %v2879
    %5235 = vmatprep.subr.mxu0 %v2882
    %5236 = vmatpush1.msra.mxu0 %v2881
    %5237 = vmatprep.subr.mxu0 %v2884
    %5238 = vmatpush1.msra.mxu0 %v2883
    %5239 = vmatprep.subr.mxu0 %v2886
    %5240 = vmatpush1.msra.mxu0 %v2885
    %5241 = vmatprep.subr.mxu0 %v2888
    %5242 = vmatpush1.msra.mxu0 %v2887
    %5243 = vmatprep.subr.mxu0 %v2890
    %5244 = vmatpush1.msra.mxu0 %v2889
    %5245 = vmatprep.subr.mxu0 %v2892
    %5246 = vmatpush1.msra.mxu0 %v2891
    %5247 = vmatprep.subr.mxu0 %v2894
    %5248 = vmatpush1.msra.mxu0 %v2893
    %5249 = vmatprep.subr.mxu0 0.0
    %5250 = vmatpush1.msra.mxu0 0.0
    %5251 = vmatprep.subr.mxu0 0.0
    %5252 = vmatpush1.msra.mxu0 0.0
    %5253 = vmatprep.subr.mxu0 0.0
    %5254 = vmatpush1.msra.mxu0 0.0
    %5255 = vmatprep.subr.mxu0 0.0
    %5256 = vmatpush1.msra.mxu0 0.0
    %5257 = vmatprep.subr.mxu0 0.0
    %5258 = vmatpush1.msra.mxu0 0.0
    %5259 = vmatprep.subr.mxu0 0.0
    %5260 = vmatpush1.msra.mxu0 0.0
    %5261 = vmatprep.subr.mxu0 0.0
    %5262 = vmatpush1.msra.mxu0 0.0
    %5263 = vmatprep.subr.mxu0 0.0
    %5264 = vmatpush1.msra.mxu0 0.0
    %5265 = vmatprep.subr.mxu0 0.0
    %5266 = vmatpush1.msra.mxu0 0.0
    %5267 = vmatprep.subr.mxu0 0.0
    %5268 = vmatpush1.msra.mxu0 0.0
    %5269 = vmatprep.subr.mxu0 0.0
    %5270 = vmatpush1.msra.mxu0 0.0
    %5271 = vmatprep.subr.mxu0 0.0
    %5272 = vmatpush1.msra.mxu0 0.0
    %5273 = vmatprep.subr.mxu0 0.0
    %5274 = vmatpush1.msra.mxu0 0.0
    %5275 = vmatprep.subr.mxu0 0.0
    %5276 = vmatpush1.msra.mxu0 0.0
    %5277 = vmatprep.subr.mxu0 0.0
    %5278 = vmatpush1.msra.mxu0 0.0
    %5279 = vmatprep.subr.mxu0 0.0
    %5280 = vmatpush1.msra.mxu0 0.0
    %5281 = vmatprep.mubr.f32.mxu0 0.0
    %5282 = vmatmul.mubr.f32.gmra.mrb[0].mxu0 %v5202
    %v5283 = vpop.f32.mrb[0].mxu0
    %v5284 = vadd.f32 %v5210, %v5283
    %v5285 = vpop.f32.mrb[0].mxu0
    %v5286 = vadd.f32 %v5214, %v5285
    %5287 = vmatprep.mubr.f32.mxu0 0.0
    %5288 = vmatmul.mubr.f32.gmra.mrb[0].mxu0 %v5203
    %v5289 = vpop.f32.mrb[0].mxu0
    %v5290 = vadd.f32 %v5210, %v5289
    %v5291 = vpop.f32.mrb[0].mxu0
    %v5292 = vadd.f32 %v5214, %v5291
    %5293 = vmatprep.mubr.f32.mxu0 0.0
    %5294 = vmatmul.mubr.f32.gmra.mrb[0].mxu0 %v5204
    %v5295 = vpop.f32.mrb[0].mxu0
    %v5296 = vadd.f32 %v5210, %v5295
    %v5297 = vpop.f32.mrb[0].mxu0
    %v5298 = vadd.f32 %v5214, %v5297
    %5299 = vmatprep.mubr.f32.mxu0 0.0
    %5300 = vmatmul.mubr.f32.gmra.mrb[0].mxu0 %v5205
    %v5301 = vpop.f32.mrb[0].mxu0
    %v5302 = vadd.f32 %v5210, %v5301
    %v5303 = vpop.f32.mrb[0].mxu0
    %v5304 = vadd.f32 %v5214, %v5303
    %5305 = vdwg.mxu0
    %v5306 = vmax.f32 %v5284, 0.0
    %v5307 = vmax.f32 %v5286, 0.0
    %v5308 = vmax.f32 %v5290, 0.0
    %v5309 = vmax.f32 %v5292, 0.0
    %v5310 = vmax.f32 %v5296, 0.0
    %v5311 = vmax.f32 %v5298, 0.0
    %v5312 = vmax.f32 %v5302, 0.0
    %v5313 = vmax.f32 %v5304, 0.0
    %v5314 = vlaneseq
    %v5315 = vshrl.u32 %v5314, 7
    %v5316 = vsub.s32 3, %v5315
    %v5317 = vrot.slane %v2931, %v5316
    %5318 = vmatprep.subr.mxu0 0.0
    %5319 = vmatpush1.msra.mxu0 %v2898
    %5320 = vmatprep.subr.mxu0 0.0
    %5321 = vmatpush1.msra.mxu0 %v2899
    %5322 = vmatprep.subr.mxu0 0.0
    %5323 = vmatpush1.msra.mxu0 %v2900
    %5324 = vmatprep.subr.mxu0 0.0
    %5325 = vmatpush1.msra.mxu0 %v2901
    %5326 = vmatprep.subr.mxu0 0.0
    %5327 = vmatpush1.msra.mxu0 %v2902
    %5328 = vmatprep.subr.mxu0 0.0
    %5329 = vmatpush1.msra.mxu0 %v2903
    %5330 = vmatprep.subr.mxu0 0.0
    %5331 = vmatpush1.msra.mxu0 %v2904
    %5332 = vmatprep.subr.mxu0 0.0
    %5333 = vmatpush1.msra.mxu0 %v2905
    %5334 = vmatprep.subr.mxu0 0.0
    %5335 = vmatpush1.msra.mxu0 %v2906
    %5336 = vmatprep.subr.mxu0 0.0
    %5337 = vmatpush1.msra.mxu0 %v2907
    %5338 = vmatprep.subr.mxu0 0.0
    %5339 = vmatpush1.msra.mxu0 %v2908
    %5340 = vmatprep.subr.mxu0 0.0
    %5341 = vmatpush1.msra.mxu0 %v2909
    %5342 = vmatprep.subr.mxu0 0.0
    %5343 = vmatpush1.msra.mxu0 %v2910
    %5344 = vmatprep.subr.mxu0 0.0
    %5345 = vmatpush1.msra.mxu0 %v2911
    %5346 = vmatprep.subr.mxu0 0.0
    %5347 = vmatpush1.msra.mxu0 %v2912
    %5348 = vmatprep.subr.mxu0 0.0
    %5349 = vmatpush1.msra.mxu0 %v2913
    %5350 = vmatprep.subr.mxu0 0.0
    %5351 = vmatpush1.msra.mxu0 %v2914
    %5352 = vmatprep.subr.mxu0 0.0
    %5353 = vmatpush1.msra.mxu0 %v2915
    %5354 = vmatprep.subr.mxu0 0.0
    %5355 = vmatpush1.msra.mxu0 %v2916
    %5356 = vmatprep.subr.mxu0 0.0
    %5357 = vmatpush1.msra.mxu0 %v2917
    %5358 = vmatprep.subr.mxu0 0.0
    %5359 = vmatpush1.msra.mxu0 %v2918
    %5360 = vmatprep.subr.mxu0 0.0
    %5361 = vmatpush1.msra.mxu0 %v2919
    %5362 = vmatprep.subr.mxu0 0.0
    %5363 = vmatpush1.msra.mxu0 %v2920
    %5364 = vmatprep.subr.mxu0 0.0
    %5365 = vmatpush1.msra.mxu0 %v2921
    %5366 = vmatprep.subr.mxu0 0.0
    %5367 = vmatpush1.msra.mxu0 %v2922
    %5368 = vmatprep.subr.mxu0 0.0
    %5369 = vmatpush1.msra.mxu0 %v2923
    %5370 = vmatprep.subr.mxu0 0.0
    %5371 = vmatpush1.msra.mxu0 %v2924
    %5372 = vmatprep.subr.mxu0 0.0
    %5373 = vmatpush1.msra.mxu0 %v2925
    %5374 = vmatprep.subr.mxu0 0.0
    %5375 = vmatpush1.msra.mxu0 %v2926
    %5376 = vmatprep.subr.mxu0 0.0
    %5377 = vmatpush1.msra.mxu0 %v2927
    %5378 = vmatprep.subr.mxu0 0.0
    %5379 = vmatpush1.msra.mxu0 %v2928
    %5380 = vmatprep.subr.mxu0 0.0
    %5381 = vmatpush1.msra.mxu0 %v2929
    %5382 = vmatprep.mubr.f32.mxu0 %v5307
    %5383 = vmatmul.mubr.f32.gmra.mrb[0].mxu0 %v5306
    %v5384 = vpop.f32.mrb[0].mxu0
    %v5385 = vadd.f32 %v5317, %v5384
    %v5386 = vpop.f32.mrb[0].mxu0
    %5387 = vmatprep.mubr.f32.mxu0 %v5309
    %5388 = vmatmul.mubr.f32.gmra.mrb[0].mxu0 %v5308
    %v5389 = vpop.f32.mrb[0].mxu0
    %v5390 = vadd.f32 %v5317, %v5389
    %v5391 = vpop.f32.mrb[0].mxu0
    %5392 = vmatprep.mubr.f32.mxu0 %v5311
    %5393 = vmatmul.mubr.f32.gmra.mrb[0].mxu0 %v5310
    %v5394 = vpop.f32.mrb[0].mxu0
    %v5395 = vadd.f32 %v5317, %v5394
    %v5396 = vpop.f32.mrb[0].mxu0
    %5397 = vmatprep.mubr.f32.mxu0 %v5313
    %5398 = vmatmul.mubr.f32.gmra.mrb[0].mxu0 %v5312
    %v5399 = vpop.f32.mrb[0].mxu0
    %v5400 = vadd.f32 %v5317, %v5399
    %v5401 = vpop.f32.mrb[0].mxu0
    %5402 = vdwg.mxu0
    %v5403 = vadd.f32 %v5202, %v5385
    %v5404 = vadd.f32 %v5203, %v5390
    %v5405 = vadd.f32 %v5204, %v5395
    %v5406 = vadd.f32 %v5205, %v5400
    %5407 = vadd.xlane.f32.xlu0 %v5403
    %v5408 = vpop.xlane.xlu0 %5407
    %5409 = vadd.xlane.f32.xlu0 %v5404
    %v5410 = vpop.xlane.xlu0 %5409
    %5411 = vadd.xlane.f32.xlu0 %v5405
    %v5412 = vpop.xlane.xlu0 %5411
    %5413 = vadd.xlane.f32.xlu0 %v5406
    %v5414 = vpop.xlane.xlu0 %5413
    %v5415 = vmul.f32 %v5408, %v2480
    %v5416 = vmul.f32 %v5410, %v2480
    %v5417 = vmul.f32 %v5412, %v2480
    %v5418 = vmul.f32 %v5414, %v2480
    %v5419 = vsub.f32 %v5403, %v5415
    %v5420 = vsub.f32 %v5404, %v5416
    %v5421 = vsub.f32 %v5405, %v5417
    %v5422 = vsub.f32 %v5406, %v5418
    %v5423 = vmul.f32 %v5419, %v5419
    %v5424 = vmul.f32 %v5420, %v5420
    %v5425 = vmul.f32 %v5421, %v5421
    %v5426 = vmul.f32 %v5422, %v5422
    %5427 = vadd.xlane.f32.xlu0 %v5423
    %v5428 = vpop.xlane.xlu0 %5427
    %5429 = vadd.xlane.f32.xlu0 %v5424
    %v5430 = vpop.xlane.xlu0 %5429
    %5431 = vadd.xlane.f32.xlu0 %v5425
    %v5432 = vpop.xlane.xlu0 %5431
    %5433 = vadd.xlane.f32.xlu0 %v5426
    %v5434 = vpop.xlane.xlu0 %5433
    %v5435 = vmul.f32 %v5428, %v2480
    %v5436 = vmul.f32 %v5430, %v2480
    %v5437 = vmul.f32 %v5432, %v2480
    %v5438 = vmul.f32 %v5434, %v2480
    %v5439 = vadd.f32 %v5435, 1e-05
    %v5440 = vadd.f32 %v5436, 1e-05
    %v5441 = vadd.f32 %v5437, 1e-05
    %v5442 = vadd.f32 %v5438, 1e-05
    %v5443 = vrsqrt.pop %v5439
    %v5444 = vrsqrt.pop %v5440
    %v5445 = vrsqrt.pop %v5441
    %v5446 = vrsqrt.pop %v5442
    %v5447 = vmul.f32 %v5419, %v5443
    %v5448 = vmul.f32 %v5420, %v5444
    %v5449 = vmul.f32 %v5421, %v5445
    %v5450 = vmul.f32 %v5422, %v5446
    %v5451 = vlaneseq
    %v5452 = vshrl.u32 %v5451, 7
    %v5453 = vsub.s32 4, %v5452
    %v5454 = vrot.slane %v2931, %v5453
    %v5455 = vmul.f32 %v5447, %v5454
    %v5456 = vmul.f32 %v5448, %v5454
    %v5457 = vmul.f32 %v5449, %v5454
    %v5458 = vmul.f32 %v5450, %v5454
    %v5459 = vlaneseq
    %v5460 = vshrl.u32 %v5459, 7
    %v5461 = vsub.s32 5, %v5460
    %v5462 = vrot.slane %v2931, %v5461
    %v5463 = vadd.f32 %v5455, %v5462
    %v5464 = vadd.f32 %v5456, %v5462
    %v5465 = vadd.f32 %v5457, %v5462
    %v5466 = vadd.f32 %v5458, %v5462
    %v5467 = vld [vmem:[%s2] sm:$0xff]
    %v5468 = vld [vmem:[%s2 + $0x8] sm:$0xff]
    %v5470 = vsel %vm629, %v5467, 0
    %5472 = vmatprep.subr.mxu0 0.0
    %5473 = vmatpush1.msra.mxu0 %v5463
    %5474 = vmatprep.subr.mxu0 0.0
    %5475 = vmatpush1.msra.mxu0 %v5464
    %5476 = vmatprep.subr.mxu0 0.0
    %5477 = vmatpush1.msra.mxu0 0.0
    %5478 = vmatprep.subr.mxu0 0.0
    %5479 = vmatpush1.msra.mxu0 0.0
    %5480 = vmatprep.subr.mxu0 0.0
    %5481 = vmatpush1.msra.mxu0 0.0
    %5482 = vmatprep.subr.mxu0 0.0
    %5483 = vmatpush1.msra.mxu0 0.0
    %5484 = vmatprep.subr.mxu0 0.0
    %5485 = vmatpush1.msra.mxu0 0.0
    %5486 = vmatprep.subr.mxu0 0.0
    %5487 = vmatpush1.msra.mxu0 0.0
    %5488 = vmatprep.subr.mxu0 0.0
    %5489 = vmatpush1.msra.mxu0 0.0
    %5490 = vmatprep.subr.mxu0 0.0
    %5491 = vmatpush1.msra.mxu0 0.0
    %5492 = vmatprep.subr.mxu0 0.0
    %5493 = vmatpush1.msra.mxu0 0.0
    %5494 = vmatprep.subr.mxu0 0.0
    %5495 = vmatpush1.msra.mxu0 0.0
    %5496 = vmatprep.subr.mxu0 0.0
    %5497 = vmatpush1.msra.mxu0 0.0
    %5498 = vmatprep.subr.mxu0 0.0
    %5499 = vmatpush1.msra.mxu0 0.0
    %5500 = vmatprep.subr.mxu0 0.0
    %5501 = vmatpush1.msra.mxu0 0.0
    %5502 = vmatprep.subr.mxu0 0.0
    %5503 = vmatpush1.msra.mxu0 0.0
    %5504 = vmatprep.subr.mxu0 0.0
    %5505 = vmatpush1.msra.mxu0 0.0
    %5506 = vmatprep.subr.mxu0 0.0
    %5507 = vmatpush1.msra.mxu0 0.0
    %5508 = vmatprep.subr.mxu0 0.0
    %5509 = vmatpush1.msra.mxu0 0.0
    %5510 = vmatprep.subr.mxu0 0.0
    %5511 = vmatpush1.msra.mxu0 0.0
    %5512 = vmatprep.subr.mxu0 0.0
    %5513 = vmatpush1.msra.mxu0 0.0
    %5514 = vmatprep.subr.mxu0 0.0
    %5515 = vmatpush1.msra.mxu0 0.0
    %5516 = vmatprep.subr.mxu0 0.0
    %5517 = vmatpush1.msra.mxu0 0.0
    %5518 = vmatprep.subr.mxu0 0.0
    %5519 = vmatpush1.msra.mxu0 0.0
    %5520 = vmatprep.subr.mxu0 0.0
    %5521 = vmatpush1.msra.mxu0 0.0
    %5522 = vmatprep.subr.mxu0 0.0
    %5523 = vmatpush1.msra.mxu0 0.0
    %5524 = vmatprep.subr.mxu0 0.0
    %5525 = vmatpush1.msra.mxu0 0.0
    %5526 = vmatprep.subr.mxu0 0.0
    %5527 = vmatpush1.msra.mxu0 0.0
    %5528 = vmatprep.subr.mxu0 0.0
    %5529 = vmatpush1.msra.mxu0 0.0
    %5530 = vmatprep.subr.mxu0 0.0
    %5531 = vmatpush1.msra.mxu0 0.0
    %5532 = vmatprep.subr.mxu0 0.0
    %5533 = vmatpush1.msra.mxu0 0.0
    %5534 = vmatprep.subr.mxu0 0.0
    %5535 = vmatpush1.msra.mxu0 0.0
    %5536 = vmatprep.mubr.f32.mxu0 0.0
    %5537 = vmatmul.mubr.f32.gmra.mrb[0].mxu0 %v5470
    %v5538 = vpop.f32.mrb[0].mxu0
    %v5539 = vadd.f32 0.0, %v5538
    %v5540 = vpop.f32.mrb[0].mxu0
    %5541 = vdwg.mxu0
    %v5543 = vsel %vm629, %v5468, 0
    %5545 = vmatprep.subr.mxu0 0.0
    %5546 = vmatpush1.msra.mxu0 %v5465
    %5547 = vmatprep.subr.mxu0 0.0
    %5548 = vmatpush1.msra.mxu0 %v5466
    %5549 = vmatprep.subr.mxu0 0.0
    %5550 = vmatpush1.msra.mxu0 0.0
    %5551 = vmatprep.subr.mxu0 0.0
    %5552 = vmatpush1.msra.mxu0 0.0
    %5553 = vmatprep.subr.mxu0 0.0
    %5554 = vmatpush1.msra.mxu0 0.0
    %5555 = vmatprep.subr.mxu0 0.0
    %5556 = vmatpush1.msra.mxu0 0.0
    %5557 = vmatprep.subr.mxu0 0.0
    %5558 = vmatpush1.msra.mxu0 0.0
    %5559 = vmatprep.subr.mxu0 0.0
    %5560 = vmatpush1.msra.mxu0 0.0
    %5561 = vmatprep.subr.mxu0 0.0
    %5562 = vmatpush1.msra.mxu0 0.0
    %5563 = vmatprep.subr.mxu0 0.0
    %5564 = vmatpush1.msra.mxu0 0.0
    %5565 = vmatprep.subr.mxu0 0.0
    %5566 = vmatpush1.msra.mxu0 0.0
    %5567 = vmatprep.subr.mxu0 0.0
    %5568 = vmatpush1.msra.mxu0 0.0
    %5569 = vmatprep.subr.mxu0 0.0
    %5570 = vmatpush1.msra.mxu0 0.0
    %5571 = vmatprep.subr.mxu0 0.0
    %5572 = vmatpush1.msra.mxu0 0.0
    %5573 = vmatprep.subr.mxu0 0.0
    %5574 = vmatpush1.msra.mxu0 0.0
    %5575 = vmatprep.subr.mxu0 0.0
    %5576 = vmatpush1.msra.mxu0 0.0
    %5577 = vmatprep.subr.mxu0 0.0
    %5578 = vmatpush1.msra.mxu0 0.0
    %5579 = vmatprep.subr.mxu0 0.0
    %5580 = vmatpush1.msra.mxu0 0.0
    %5581 = vmatprep.subr.mxu0 0.0
    %5582 = vmatpush1.msra.mxu0 0.0
    %5583 = vmatprep.subr.mxu0 0.0
    %5584 = vmatpush1.msra.mxu0 0.0
    %5585 = vmatprep.subr.mxu0 0.0
    %5586 = vmatpush1.msra.mxu0 0.0
    %5587 = vmatprep.subr.mxu0 0.0
    %5588 = vmatpush1.msra.mxu0 0.0
    %5589 = vmatprep.subr.mxu0 0.0
    %5590 = vmatpush1.msra.mxu0 0.0
    %5591 = vmatprep.subr.mxu0 0.0
    %5592 = vmatpush1.msra.mxu0 0.0
    %5593 = vmatprep.subr.mxu0 0.0
    %5594 = vmatpush1.msra.mxu0 0.0
    %5595 = vmatprep.subr.mxu0 0.0
    %5596 = vmatpush1.msra.mxu0 0.0
    %5597 = vmatprep.subr.mxu0 0.0
    %5598 = vmatpush1.msra.mxu0 0.0
    %5599 = vmatprep.subr.mxu0 0.0
    %5600 = vmatpush1.msra.mxu0 0.0
    %5601 = vmatprep.subr.mxu0 0.0
    %5602 = vmatpush1.msra.mxu0 0.0
    %5603 = vmatprep.subr.mxu0 0.0
    %5604 = vmatpush1.msra.mxu0 0.0
    %5605 = vmatprep.subr.mxu0 0.0
    %5606 = vmatpush1.msra.mxu0 0.0
    %5607 = vmatprep.subr.mxu0 0.0
    %5608 = vmatpush1.msra.mxu0 0.0
    %5609 = vmatprep.mubr.f32.mxu0 0.0
    %5610 = vmatmul.mubr.f32.gmra.mrb[0].mxu0 %v5543
    %v5611 = vpop.f32.mrb[0].mxu0
    %v5612 = vadd.f32 0.0, %v5611
    %v5613 = vpop.f32.mrb[0].mxu0
    %5614 = vdwg.mxu0
    %v5615 = vld [vmem:[%s3] sm:$0x3]
    %s5616 = scalar_lea.vmem [#allocation3], 768
    %v5617 = vld [vmem:[%s5616] sm:$0xff]
    %v5618 = vld [vmem:[%s5616 + $0x8] sm:$0xff]
    %v5619 = vld [vmem:[%s5616 + $0x10] sm:$0xff]
    %v5620 = vld [vmem:[%s5616 + $0x18] sm:$0xff]
    %v5621 = vld [vmem:[%s5616 + $0x20] sm:$0xff]
    %v5622 = vld [vmem:[%s5616 + $0x28] sm:$0xff]
    %v5623 = vld [vmem:[%s5616 + $0x30] sm:$0xff]
    %v5624 = vld [vmem:[%s5616 + $0x38] sm:$0xff]
    %v5625 = vld [vmem:[%s5616 + $0x40] sm:$0xff]
    %v5626 = vld [vmem:[%s5616 + $0x48] sm:$0xff]
    %v5627 = vld [vmem:[%s5616 + $0x50] sm:$0xff]
    %v5628 = vld [vmem:[%s5616 + $0x58] sm:$0xff]
    %v5629 = vld [vmem:[%s5616 + $0x60] sm:$0xff]
    %v5630 = vld [vmem:[%s5616 + $0x68] sm:$0xff]
    %v5631 = vld [vmem:[%s5616 + $0x70] sm:$0xff]
    %v5632 = vld [vmem:[%s5616 + $0x78] sm:$0xff]
    %v5633 = vld [vmem:[%s5616 + $0x80] sm:$0xff]
    %v5634 = vld [vmem:[%s5616 + $0x88] sm:$0xff]
    %v5635 = vld [vmem:[%s5616 + $0x90] sm:$0xff]
    %v5636 = vld [vmem:[%s5616 + $0x98] sm:$0xff]
    %v5637 = vld [vmem:[%s5616 + $0xa0] sm:$0xff]
    %v5638 = vld [vmem:[%s5616 + $0xa8] sm:$0xff]
    %v5639 = vld [vmem:[%s5616 + $0xb0] sm:$0xff]
    %v5640 = vld [vmem:[%s5616 + $0xb8] sm:$0xff]
    %v5641 = vld [vmem:[%s5616 + $0xc0] sm:$0xff]
    %v5642 = vld [vmem:[%s5616 + $0xc8] sm:$0xff]
    %v5643 = vld [vmem:[%s5616 + $0xd0] sm:$0xff]
    %v5644 = vld [vmem:[%s5616 + $0xd8] sm:$0xff]
    %v5645 = vld [vmem:[%s5616 + $0xe0] sm:$0xff]
    %v5646 = vld [vmem:[%s5616 + $0xe8] sm:$0xff]
    %v5647 = vld [vmem:[%s5616 + $0xf0] sm:$0xff]
    %v5648 = vld [vmem:[%s5616 + $0xf8] sm:$0xff]
    %v5649 = vld [vmem:[%s5616 + $0x100] sm:$0xff]
    %v5650 = vld [vmem:[%s5616 + $0x108] sm:$0xff]
    %v5651 = vld [vmem:[%s5616 + $0x110] sm:$0xff]
    %v5652 = vld [vmem:[%s5616 + $0x118] sm:$0xff]
    %v5653 = vld [vmem:[%s5616 + $0x120] sm:$0xff]
    %v5654 = vld [vmem:[%s5616 + $0x128] sm:$0xff]
    %v5655 = vld [vmem:[%s5616 + $0x130] sm:$0xff]
    %v5656 = vld [vmem:[%s5616 + $0x138] sm:$0xff]
    %v5657 = vld [vmem:[%s5616 + $0x140] sm:$0xff]
    %v5658 = vld [vmem:[%s5616 + $0x148] sm:$0xff]
    %v5659 = vld [vmem:[%s5616 + $0x150] sm:$0xff]
    %v5660 = vld [vmem:[%s5616 + $0x158] sm:$0xff]
    %v5661 = vld [vmem:[%s5616 + $0x160] sm:$0xff]
    %v5662 = vld [vmem:[%s5616 + $0x168] sm:$0xff]
    %v5663 = vld [vmem:[%s5616 + $0x170] sm:$0xff]
    %v5664 = vld [vmem:[%s5616 + $0x178] sm:$0xff]
    %s5665 = scalar_lea.vmem %s5, 6
    %v5666 = vld [vmem:[%s5665] sm:$0x7]
    %s5667 = scalar_lea.vmem %s6, 256
    %v5668 = vld [vmem:[%s5667] sm:$0xff]
    %v5669 = vld [vmem:[%s5667 + $0x8] sm:$0xff]
    %v5670 = vld [vmem:[%s5667 + $0x10] sm:$0xff]
    %v5671 = vld [vmem:[%s5667 + $0x18] sm:$0xff]
    %v5672 = vld [vmem:[%s5667 + $0x20] sm:$0xff]
    %v5673 = vld [vmem:[%s5667 + $0x28] sm:$0xff]
    %v5674 = vld [vmem:[%s5667 + $0x30] sm:$0xff]
    %v5675 = vld [vmem:[%s5667 + $0x38] sm:$0xff]
    %v5676 = vld [vmem:[%s5667 + $0x40] sm:$0xff]
    %v5677 = vld [vmem:[%s5667 + $0x48] sm:$0xff]
    %v5678 = vld [vmem:[%s5667 + $0x50] sm:$0xff]
    %v5679 = vld [vmem:[%s5667 + $0x58] sm:$0xff]
    %v5680 = vld [vmem:[%s5667 + $0x60] sm:$0xff]
    %v5681 = vld [vmem:[%s5667 + $0x68] sm:$0xff]
    %v5682 = vld [vmem:[%s5667 + $0x70] sm:$0xff]
    %v5683 = vld [vmem:[%s5667 + $0x78] sm:$0xff]
    %s5684 = scalar_lea.vmem [#allocation5], 512
    %v5685 = vld [vmem:[%s5684] sm:$0xff]
    %v5686 = vld [vmem:[%s5684 + $0x8] sm:$0xff]
    %v5687 = vld [vmem:[%s5684 + $0x10] sm:$0xff]
    %v5688 = vld [vmem:[%s5684 + $0x18] sm:$0xff]
    %v5689 = vld [vmem:[%s5684 + $0x20] sm:$0xff]
    %v5690 = vld [vmem:[%s5684 + $0x28] sm:$0xff]
    %v5691 = vld [vmem:[%s5684 + $0x30] sm:$0xff]
    %v5692 = vld [vmem:[%s5684 + $0x38] sm:$0xff]
    %v5693 = vld [vmem:[%s5684 + $0x40] sm:$0xff]
    %v5694 = vld [vmem:[%s5684 + $0x48] sm:$0xff]
    %v5695 = vld [vmem:[%s5684 + $0x50] sm:$0xff]
    %v5696 = vld [vmem:[%s5684 + $0x58] sm:$0xff]
    %v5697 = vld [vmem:[%s5684 + $0x60] sm:$0xff]
    %v5698 = vld [vmem:[%s5684 + $0x68] sm:$0xff]
    %v5699 = vld [vmem:[%s5684 + $0x70] sm:$0xff]
    %v5700 = vld [vmem:[%s5684 + $0x78] sm:$0xff]
    %v5701 = vld [vmem:[%s5684 + $0x80] sm:$0xff]
    %v5702 = vld [vmem:[%s5684 + $0x88] sm:$0xff]
    %v5703 = vld [vmem:[%s5684 + $0x90] sm:$0xff]
    %v5704 = vld [vmem:[%s5684 + $0x98] sm:$0xff]
    %v5705 = vld [vmem:[%s5684 + $0xa0] sm:$0xff]
    %v5706 = vld [vmem:[%s5684 + $0xa8] sm:$0xff]
    %v5707 = vld [vmem:[%s5684 + $0xb0] sm:$0xff]
    %v5708 = vld [vmem:[%s5684 + $0xb8] sm:$0xff]
    %v5709 = vld [vmem:[%s5684 + $0xc0] sm:$0xff]
    %v5710 = vld [vmem:[%s5684 + $0xc8] sm:$0xff]
    %v5711 = vld [vmem:[%s5684 + $0xd0] sm:$0xff]
    %v5712 = vld [vmem:[%s5684 + $0xd8] sm:$0xff]
    %v5713 = vld [vmem:[%s5684 + $0xe0] sm:$0xff]
    %v5714 = vld [vmem:[%s5684 + $0xe8] sm:$0xff]
    %v5715 = vld [vmem:[%s5684 + $0xf0] sm:$0xff]
    %v5716 = vld [vmem:[%s5684 + $0xf8] sm:$0xff]
    %s5717 = scalar_lea.vmem %s8, 4
    %v5718 = vld [vmem:[%s5717] sm:$0x3]
    %s5719 = scalar_lea.vmem [#allocation7], 512
    %v5720 = vld [vmem:[%s5719] sm:$0xff]
    %v5721 = vld [vmem:[%s5719 + $0x8] sm:$0xff]
    %v5722 = vld [vmem:[%s5719 + $0x10] sm:$0xff]
    %v5723 = vld [vmem:[%s5719 + $0x18] sm:$0xff]
    %v5724 = vld [vmem:[%s5719 + $0x20] sm:$0xff]
    %v5725 = vld [vmem:[%s5719 + $0x28] sm:$0xff]
    %v5726 = vld [vmem:[%s5719 + $0x30] sm:$0xff]
    %v5727 = vld [vmem:[%s5719 + $0x38] sm:$0xff]
    %v5728 = vld [vmem:[%s5719 + $0x40] sm:$0xff]
    %v5729 = vld [vmem:[%s5719 + $0x48] sm:$0xff]
    %v5730 = vld [vmem:[%s5719 + $0x50] sm:$0xff]
    %v5731 = vld [vmem:[%s5719 + $0x58] sm:$0xff]
    %v5732 = vld [vmem:[%s5719 + $0x60] sm:$0xff]
    %v5733 = vld [vmem:[%s5719 + $0x68] sm:$0xff]
    %v5734 = vld [vmem:[%s5719 + $0x70] sm:$0xff]
    %v5735 = vld [vmem:[%s5719 + $0x78] sm:$0xff]
    %v5736 = vld [vmem:[%s5719 + $0x80] sm:$0xff]
    %v5737 = vld [vmem:[%s5719 + $0x88] sm:$0xff]
    %v5738 = vld [vmem:[%s5719 + $0x90] sm:$0xff]
    %v5739 = vld [vmem:[%s5719 + $0x98] sm:$0xff]
    %v5740 = vld [vmem:[%s5719 + $0xa0] sm:$0xff]
    %v5741 = vld [vmem:[%s5719 + $0xa8] sm:$0xff]
    %v5742 = vld [vmem:[%s5719 + $0xb0] sm:$0xff]
    %v5743 = vld [vmem:[%s5719 + $0xb8] sm:$0xff]
    %v5744 = vld [vmem:[%s5719 + $0xc0] sm:$0xff]
    %v5745 = vld [vmem:[%s5719 + $0xc8] sm:$0xff]
    %v5746 = vld [vmem:[%s5719 + $0xd0] sm:$0xff]
    %v5747 = vld [vmem:[%s5719 + $0xd8] sm:$0xff]
    %v5748 = vld [vmem:[%s5719 + $0xe0] sm:$0xff]
    %v5749 = vld [vmem:[%s5719 + $0xe8] sm:$0xff]
    %v5750 = vld [vmem:[%s5719 + $0xf0] sm:$0xff]
    %v5751 = vld [vmem:[%s5719 + $0xf8] sm:$0xff]
    %s5752 = scalar_lea.vmem %s10, 16
    %v5753 = vld [vmem:[%s5752] sm:$0x3f]
    %v5755 = vlaneseq
    %v5756 = vshrl.u32 %v5755, 7
    %v5757 = vsub.s32 0, %v5756
    %v5758 = vrot.slane %v5666, %v5757
    %v5759 = vlaneseq
    %v5760 = vshrl.u32 %v5759, 7
    %v5761 = vsub.s32 1, %v5760
    %v5762 = vrot.slane %v5666, %v5761
    %v5763 = vlaneseq
    %v5764 = vshrl.u32 %v5763, 7
    %v5765 = vsub.s32 2, %v5764
    %v5766 = vrot.slane %v5666, %v5765
    %5770 = vmatprep.subr.mxu0 %v5618
    %5771 = vmatpush1.msra.mxu0 %v5617
    %5772 = vmatprep.subr.mxu0 %v5621
    %5773 = vmatpush1.msra.mxu0 %v5620
    %5774 = vmatprep.subr.mxu0 %v5624
    %5775 = vmatpush1.msra.mxu0 %v5623
    %5776 = vmatprep.subr.mxu0 %v5627
    %5777 = vmatpush1.msra.mxu0 %v5626
    %5778 = vmatprep.subr.mxu0 %v5630
    %5779 = vmatpush1.msra.mxu0 %v5629
    %5780 = vmatprep.subr.mxu0 %v5633
    %5781 = vmatpush1.msra.mxu0 %v5632
    %5782 = vmatprep.subr.mxu0 %v5636
    %5783 = vmatpush1.msra.mxu0 %v5635
    %5784 = vmatprep.subr.mxu0 %v5639
    %5785 = vmatpush1.msra.mxu0 %v5638
    %5786 = vmatprep.subr.mxu0 %v5642
    %5787 = vmatpush1.msra.mxu0 %v5641
    %5788 = vmatprep.subr.mxu0 %v5645
    %5789 = vmatpush1.msra.mxu0 %v5644
    %5790 = vmatprep.subr.mxu0 %v5648
    %5791 = vmatpush1.msra.mxu0 %v5647
    %5792 = vmatprep.subr.mxu0 %v5651
    %5793 = vmatpush1.msra.mxu0 %v5650
    %5794 = vmatprep.subr.mxu0 %v5654
    %5795 = vmatpush1.msra.mxu0 %v5653
    %5796 = vmatprep.subr.mxu0 %v5657
    %5797 = vmatpush1.msra.mxu0 %v5656
    %5798 = vmatprep.subr.mxu0 %v5660
    %5799 = vmatpush1.msra.mxu0 %v5659
    %5800 = vmatprep.subr.mxu0 %v5663
    %5801 = vmatpush1.msra.mxu0 %v5662
    %5802 = vmatprep.subr.mxu0 0.0
    %5803 = vmatpush1.msra.mxu0 0.0
    %5804 = vmatprep.subr.mxu0 0.0
    %5805 = vmatpush1.msra.mxu0 0.0
    %5806 = vmatprep.subr.mxu0 0.0
    %5807 = vmatpush1.msra.mxu0 0.0
    %5808 = vmatprep.subr.mxu0 0.0
    %5809 = vmatpush1.msra.mxu0 0.0
    %5810 = vmatprep.subr.mxu0 0.0
    %5811 = vmatpush1.msra.mxu0 0.0
    %5812 = vmatprep.subr.mxu0 0.0
    %5813 = vmatpush1.msra.mxu0 0.0
    %5814 = vmatprep.subr.mxu0 0.0
    %5815 = vmatpush1.msra.mxu0 0.0
    %5816 = vmatprep.subr.mxu0 0.0
    %5817 = vmatpush1.msra.mxu0 0.0
    %5818 = vmatprep.subr.mxu0 0.0
    %5819 = vmatpush1.msra.mxu0 0.0
    %5820 = vmatprep.subr.mxu0 0.0
    %5821 = vmatpush1.msra.mxu0 0.0
    %5822 = vmatprep.subr.mxu0 0.0
    %5823 = vmatpush1.msra.mxu0 0.0
    %5824 = vmatprep.subr.mxu0 0.0
    %5825 = vmatpush1.msra.mxu0 0.0
    %5826 = vmatprep.subr.mxu0 0.0
    %5827 = vmatpush1.msra.mxu0 0.0
    %5828 = vmatprep.subr.mxu0 0.0
    %5829 = vmatpush1.msra.mxu0 0.0
    %5830 = vmatprep.subr.mxu0 0.0
    %5831 = vmatpush1.msra.mxu0 0.0
    %5832 = vmatprep.subr.mxu0 0.0
    %5833 = vmatpush1.msra.mxu0 0.0
    %5834 = vmatprep.mubr.f32.mxu0 0.0
    %5835 = vmatmul.mubr.f32.gmra.mrb[0].mxu0 %v5539
    %v5836 = vpop.f32.mrb[0].mxu0
    %v5837 = vadd.f32 %v5758, %v5836
    %v5838 = vpop.f32.mrb[0].mxu0
    %v5839 = vadd.f32 %v5762, %v5838
    %5840 = vmatprep.mubr.f32.mxu0 0.0
    %5841 = vmatmul.mubr.f32.gmra.mrb[0].mxu0 %v5612
    %v5842 = vpop.f32.mrb[0].mxu0
    %v5843 = vadd.f32 %v5758, %v5842
    %v5844 = vpop.f32.mrb[0].mxu0
    %v5845 = vadd.f32 %v5762, %v5844
    %5846 = vdwg.mxu0
    %5847 = vmatprep.subr.mxu0 0.0
    %5848 = vmatpush1.msra.mxu0 %v5619
    %5849 = vmatprep.subr.mxu0 0.0
    %5850 = vmatpush1.msra.mxu0 %v5622
    %5851 = vmatprep.subr.mxu0 0.0
    %5852 = vmatpush1.msra.mxu0 %v5625
    %5853 = vmatprep.subr.mxu0 0.0
    %5854 = vmatpush1.msra.mxu0 %v5628
    %5855 = vmatprep.subr.mxu0 0.0
    %5856 = vmatpush1.msra.mxu0 %v5631
    %5857 = vmatprep.subr.mxu0 0.0
    %5858 = vmatpush1.msra.mxu0 %v5634
    %5859 = vmatprep.subr.mxu0 0.0
    %5860 = vmatpush1.msra.mxu0 %v5637
    %5861 = vmatprep.subr.mxu0 0.0
    %5862 = vmatpush1.msra.mxu0 %v5640
    %5863 = vmatprep.subr.mxu0 0.0
    %5864 = vmatpush1.msra.mxu0 %v5643
    %5865 = vmatprep.subr.mxu0 0.0
    %5866 = vmatpush1.msra.mxu0 %v5646
    %5867 = vmatprep.subr.mxu0 0.0
    %5868 = vmatpush1.msra.mxu0 %v5649
    %5869 = vmatprep.subr.mxu0 0.0
    %5870 = vmatpush1.msra.mxu0 %v5652
    %5871 = vmatprep.subr.mxu0 0.0
    %5872 = vmatpush1.msra.mxu0 %v5655
    %5873 = vmatprep.subr.mxu0 0.0
    %5874 = vmatpush1.msra.mxu0 %v5658
    %5875 = vmatprep.subr.mxu0 0.0
    %5876 = vmatpush1.msra.mxu0 %v5661
    %5877 = vmatprep.subr.mxu0 0.0
    %5878 = vmatpush1.msra.mxu0 %v5664
    %5879 = vmatprep.subr.mxu0 0.0
    %5880 = vmatpush1.msra.mxu0 0.0
    %5881 = vmatprep.subr.mxu0 0.0
    %5882 = vmatpush1.msra.mxu0 0.0
    %5883 = vmatprep.subr.mxu0 0.0
    %5884 = vmatpush1.msra.mxu0 0.0
    %5885 = vmatprep.subr.mxu0 0.0
    %5886 = vmatpush1.msra.mxu0 0.0
    %5887 = vmatprep.subr.mxu0 0.0
    %5888 = vmatpush1.msra.mxu0 0.0
    %5889 = vmatprep.subr.mxu0 0.0
    %5890 = vmatpush1.msra.mxu0 0.0
    %5891 = vmatprep.subr.mxu0 0.0
    %5892 = vmatpush1.msra.mxu0 0.0
    %5893 = vmatprep.subr.mxu0 0.0
    %5894 = vmatpush1.msra.mxu0 0.0
    %5895 = vmatprep.subr.mxu0 0.0
    %5896 = vmatpush1.msra.mxu0 0.0
    %5897 = vmatprep.subr.mxu0 0.0
    %5898 = vmatpush1.msra.mxu0 0.0
    %5899 = vmatprep.subr.mxu0 0.0
    %5900 = vmatpush1.msra.mxu0 0.0
    %5901 = vmatprep.subr.mxu0 0.0
    %5902 = vmatpush1.msra.mxu0 0.0
    %5903 = vmatprep.subr.mxu0 0.0
    %5904 = vmatpush1.msra.mxu0 0.0
    %5905 = vmatprep.subr.mxu0 0.0
    %5906 = vmatpush1.msra.mxu0 0.0
    %5907 = vmatprep.subr.mxu0 0.0
    %5908 = vmatpush1.msra.mxu0 0.0
    %5909 = vmatprep.subr.mxu0 0.0
    %5910 = vmatpush1.msra.mxu0 0.0
    %5911 = vmatprep.mubr.f32.mxu0 0.0
    %5912 = vmatmul.mubr.f32.gmra.mrb[0].mxu0 %v5539
    %v5913 = vpop.f32.mrb[0].mxu0
    %v5914 = vadd.f32 %v5766, %v5913
    %v5915 = vpop.f32.mrb[0].mxu0
    %5916 = vmatprep.mubr.f32.mxu0 0.0
    %5917 = vmatmul.mubr.f32.gmra.mrb[0].mxu0 %v5612
    %v5918 = vpop.f32.mrb[0].mxu0
    %v5919 = vadd.f32 %v5766, %v5918
    %v5920 = vpop.f32.mrb[0].mxu0
    %5921 = vdwg.mxu0
    %v5924 = vunpack.c.l.s4 1966171168
    %v5925 = vunpack.c.0.s8 %v5924
    %v5926 = vlaneseq
    %v5927 = vshrl.u32 %v5926, 7
    %v5928 = vsub.s32 %v5925, %v5927
    %v5929 = vrot.slane %v5615, %v5928
    %v5930 = vcombine.high %v5929, %v5929
    %v5932 = vunpack.c.l.s4 1966171168
    %v5933 = vunpack.c.0.s8 %v5932
    %v5934 = vlaneseq
    %v5935 = vshrl.u32 %v5934, 7
    %v5936 = vsub.s32 %v5933, %v5935
    %v5937 = vrot.slane %v5929, %v5936
    %v5939 = vunpack.c.l.s4 1966171168
    %v5940 = vunpack.c.0.s8 %v5939
    %v5941 = vlaneseq
    %v5942 = vshrl.u32 %v5941, 7
    %v5943 = vsub.s32 %v5940, %v5942
    %v5944 = vrot.slane %v5930, %v5943
    %v5946 = vsel %vm436, %v5837, 0
    %v5949 = vsel %vm436, %v5839, 0
    %5951 = vmatprep.subr.mxu0 0.0
    %5952 = vmatpush1.xpose.msra.mxu0 %v5949
    %5953 = vmatprep.subr.mxu0 0.0
    %5954 = vmatpush1.xpose.msra.mxu0 0.0
    %5955 = vmatprep.subr.mxu0 0.0
    %5956 = vmatpush1.xpose.msra.mxu0 0.0
    %5957 = vmatprep.subr.mxu0 0.0
    %5958 = vmatpush1.xpose.msra.mxu0 0.0
    %5959 = vmatprep.subr.mxu0 0.0
    %5960 = vmatpush1.xpose.msra.mxu0 0.0
    %5961 = vmatprep.subr.mxu0 0.0
    %5962 = vmatpush1.xpose.msra.mxu0 0.0
    %5963 = vmatprep.subr.mxu0 0.0
    %5964 = vmatpush1.xpose.msra.mxu0 0.0
    %5965 = vmatprep.subr.mxu0 0.0
    %5966 = vmatpush1.xpose.msra.mxu0 0.0
    %5967 = vmatprep.subr.mxu0 0.0
    %5968 = vmatpush1.xpose.msra.mxu0 0.0
    %5969 = vmatprep.subr.mxu0 0.0
    %5970 = vmatpush1.xpose.msra.mxu0 0.0
    %5971 = vmatprep.subr.mxu0 0.0
    %5972 = vmatpush1.xpose.msra.mxu0 0.0
    %5973 = vmatprep.subr.mxu0 0.0
    %5974 = vmatpush1.xpose.msra.mxu0 0.0
    %5975 = vmatprep.subr.mxu0 0.0
    %5976 = vmatpush1.xpose.msra.mxu0 0.0
    %5977 = vmatprep.subr.mxu0 0.0
    %5978 = vmatpush1.xpose.msra.mxu0 0.0
    %5979 = vmatprep.subr.mxu0 0.0
    %5980 = vmatpush1.xpose.msra.mxu0 0.0
    %5981 = vmatprep.subr.mxu0 0.0
    %5982 = vmatpush1.xpose.msra.mxu0 0.0
    %5983 = vmatprep.subr.mxu0 0.0
    %5984 = vmatpush1.xpose.msra.mxu0 0.0
    %5985 = vmatprep.subr.mxu0 0.0
    %5986 = vmatpush1.xpose.msra.mxu0 0.0
    %5987 = vmatprep.subr.mxu0 0.0
    %5988 = vmatpush1.xpose.msra.mxu0 0.0
    %5989 = vmatprep.subr.mxu0 0.0
    %5990 = vmatpush1.xpose.msra.mxu0 0.0
    %5991 = vmatprep.subr.mxu0 0.0
    %5992 = vmatpush1.xpose.msra.mxu0 0.0
    %5993 = vmatprep.subr.mxu0 0.0
    %5994 = vmatpush1.xpose.msra.mxu0 0.0
    %5995 = vmatprep.subr.mxu0 0.0
    %5996 = vmatpush1.xpose.msra.mxu0 0.0
    %5997 = vmatprep.subr.mxu0 0.0
    %5998 = vmatpush1.xpose.msra.mxu0 0.0
    %5999 = vmatprep.subr.mxu0 0.0
    %6000 = vmatpush1.xpose.msra.mxu0 0.0
    %6001 = vmatprep.subr.mxu0 0.0
    %6002 = vmatpush1.xpose.msra.mxu0 0.0
    %6003 = vmatprep.subr.mxu0 0.0
    %6004 = vmatpush1.xpose.msra.mxu0 0.0
    %6005 = vmatprep.subr.mxu0 0.0
    %6006 = vmatpush1.xpose.msra.mxu0 0.0
    %6007 = vmatprep.subr.mxu0 0.0
    %6008 = vmatpush1.xpose.msra.mxu0 0.0
    %6009 = vmatprep.subr.mxu0 0.0
    %6010 = vmatpush1.xpose.msra.mxu0 0.0
    %6011 = vmatprep.subr.mxu0 0.0
    %6012 = vmatpush1.xpose.msra.mxu0 0.0
    %6013 = vmatprep.subr.mxu0 0.0
    %6014 = vmatpush1.xpose.msra.mxu0 0.0
    %6015 = vmatprep.mubr.f32.mxu0 0.0
    %6016 = vmatmul.mubr.f32.gmra.mrb[0].mxu0 %v5946
    %v6017 = vpop.f32.mrb[0].mxu0
    %v6018 = vadd.f32 0.0, %v6017
    %v6019 = vpop.f32.mrb[0].mxu0
    %6020 = vdwg.mxu0
    %v6022 = vsel %vm436, %v5843, 0
    %v6025 = vsel %vm436, %v5845, 0
    %6027 = vmatprep.subr.mxu0 0.0
    %6028 = vmatpush1.xpose.msra.mxu0 %v6025
    %6029 = vmatprep.subr.mxu0 0.0
    %6030 = vmatpush1.xpose.msra.mxu0 0.0
    %6031 = vmatprep.subr.mxu0 0.0
    %6032 = vmatpush1.xpose.msra.mxu0 0.0
    %6033 = vmatprep.subr.mxu0 0.0
    %6034 = vmatpush1.xpose.msra.mxu0 0.0
    %6035 = vmatprep.subr.mxu0 0.0
    %6036 = vmatpush1.xpose.msra.mxu0 0.0
    %6037 = vmatprep.subr.mxu0 0.0
    %6038 = vmatpush1.xpose.msra.mxu0 0.0
    %6039 = vmatprep.subr.mxu0 0.0
    %6040 = vmatpush1.xpose.msra.mxu0 0.0
    %6041 = vmatprep.subr.mxu0 0.0
    %6042 = vmatpush1.xpose.msra.mxu0 0.0
    %6043 = vmatprep.subr.mxu0 0.0
    %6044 = vmatpush1.xpose.msra.mxu0 0.0
    %6045 = vmatprep.subr.mxu0 0.0
    %6046 = vmatpush1.xpose.msra.mxu0 0.0
    %6047 = vmatprep.subr.mxu0 0.0
    %6048 = vmatpush1.xpose.msra.mxu0 0.0
    %6049 = vmatprep.subr.mxu0 0.0
    %6050 = vmatpush1.xpose.msra.mxu0 0.0
    %6051 = vmatprep.subr.mxu0 0.0
    %6052 = vmatpush1.xpose.msra.mxu0 0.0
    %6053 = vmatprep.subr.mxu0 0.0
    %6054 = vmatpush1.xpose.msra.mxu0 0.0
    %6055 = vmatprep.subr.mxu0 0.0
    %6056 = vmatpush1.xpose.msra.mxu0 0.0
    %6057 = vmatprep.subr.mxu0 0.0
    %6058 = vmatpush1.xpose.msra.mxu0 0.0
    %6059 = vmatprep.subr.mxu0 0.0
    %6060 = vmatpush1.xpose.msra.mxu0 0.0
    %6061 = vmatprep.subr.mxu0 0.0
    %6062 = vmatpush1.xpose.msra.mxu0 0.0
    %6063 = vmatprep.subr.mxu0 0.0
    %6064 = vmatpush1.xpose.msra.mxu0 0.0
    %6065 = vmatprep.subr.mxu0 0.0
    %6066 = vmatpush1.xpose.msra.mxu0 0.0
    %6067 = vmatprep.subr.mxu0 0.0
    %6068 = vmatpush1.xpose.msra.mxu0 0.0
    %6069 = vmatprep.subr.mxu0 0.0
    %6070 = vmatpush1.xpose.msra.mxu0 0.0
    %6071 = vmatprep.subr.mxu0 0.0
    %6072 = vmatpush1.xpose.msra.mxu0 0.0
    %6073 = vmatprep.subr.mxu0 0.0
    %6074 = vmatpush1.xpose.msra.mxu0 0.0
    %6075 = vmatprep.subr.mxu0 0.0
    %6076 = vmatpush1.xpose.msra.mxu0 0.0
    %6077 = vmatprep.subr.mxu0 0.0
    %6078 = vmatpush1.xpose.msra.mxu0 0.0
    %6079 = vmatprep.subr.mxu0 0.0
    %6080 = vmatpush1.xpose.msra.mxu0 0.0
    %6081 = vmatprep.subr.mxu0 0.0
    %6082 = vmatpush1.xpose.msra.mxu0 0.0
    %6083 = vmatprep.subr.mxu0 0.0
    %6084 = vmatpush1.xpose.msra.mxu0 0.0
    %6085 = vmatprep.subr.mxu0 0.0
    %6086 = vmatpush1.xpose.msra.mxu0 0.0
    %6087 = vmatprep.subr.mxu0 0.0
    %6088 = vmatpush1.xpose.msra.mxu0 0.0
    %6089 = vmatprep.subr.mxu0 0.0
    %6090 = vmatpush1.xpose.msra.mxu0 0.0
    %6091 = vmatprep.mubr.f32.mxu0 0.0
    %6092 = vmatmul.mubr.f32.gmra.mrb[0].mxu0 %v6022
    %v6093 = vpop.f32.mrb[0].mxu0
    %v6094 = vadd.f32 0.0, %v6093
    %v6095 = vpop.f32.mrb[0].mxu0
    %6096 = vdwg.mxu0
    %v6097 = vmul.f32 %v6018, 0.17677669
    %v6098 = vmul.f32 %v6094, 0.17677669
    %v6099 = vlaneseq
    %v6100 = vshrl.u32 %v6099, 7
    %v6101 = vsub.s32 0, %v6100
    %v6102 = vrot.slane %v5937, %v6101
    %v6103 = vlaneseq
    %v6104 = vshrl.u32 %v6103, 7
    %v6105 = vsub.s32 0, %v6104
    %v6106 = vrot.slane %v5944, %v6105
    %v6109 = vadd.f32 %v6097, %v6102
    %v6110 = vadd.f32 %v6098, %v6106
    %vm6111 = vcmask 64512
    %v6112 = vsel %vm6111, %v6109, -inf
    %6113 = vmax.xlane.f32.xlu0 %v6112
    %v6114 = vpop.xlane.xlu0 %6113
    %v6115 = vsel %vm6111, %v6110, -inf
    %6116 = vmax.xlane.f32.xlu0 %v6115
    %v6117 = vpop.xlane.xlu0 %6116
    %v6118 = vsub.f32 %v6109, %v6114
    %v6119 = vsub.f32 %v6110, %v6117
    %v6120 = vmul.f32 %v6118, 1.442695
    %v6121 = vpow.pop %v6120
    %v6122 = vmul.f32 %v6119, 1.442695
    %v6123 = vpow.pop %v6122
    %v6124 = vsel %vm6111, %v6121, 0.0
    %6125 = vadd.xlane.f32.xlu0 %v6124
    %v6126 = vpop.xlane.xlu0 %6125
    %v6127 = vsel %vm6111, %v6123, 0.0
    %6128 = vadd.xlane.f32.xlu0 %v6127
    %v6129 = vpop.xlane.xlu0 %6128
    %v6130 = vrcp.pop %v6126
    %v6131 = vrcp.pop %v6129
    %v6132 = vmul.f32 %v6121, %v6130
    %v6133 = vmul.f32 %v6123, %v6131
    %v6135 = vsel %vm6111, %v6132, 0
    %6137 = vmatprep.subr.mxu0 0.0
    %6138 = vmatpush1.msra.mxu0 %v5914
    %6139 = vmatprep.subr.mxu0 0.0
    %6140 = vmatpush1.msra.mxu0 0.0
    %6141 = vmatprep.subr.mxu0 0.0
    %6142 = vmatpush1.msra.mxu0 0.0
    %6143 = vmatprep.subr.mxu0 0.0
    %6144 = vmatpush1.msra.mxu0 0.0
    %6145 = vmatprep.subr.mxu0 0.0
    %6146 = vmatpush1.msra.mxu0 0.0
    %6147 = vmatprep.subr.mxu0 0.0
    %6148 = vmatpush1.msra.mxu0 0.0
    %6149 = vmatprep.subr.mxu0 0.0
    %6150 = vmatpush1.msra.mxu0 0.0
    %6151 = vmatprep.subr.mxu0 0.0
    %6152 = vmatpush1.msra.mxu0 0.0
    %6153 = vmatprep.subr.mxu0 0.0
    %6154 = vmatpush1.msra.mxu0 0.0
    %6155 = vmatprep.subr.mxu0 0.0
    %6156 = vmatpush1.msra.mxu0 0.0
    %6157 = vmatprep.subr.mxu0 0.0
    %6158 = vmatpush1.msra.mxu0 0.0
    %6159 = vmatprep.subr.mxu0 0.0
    %6160 = vmatpush1.msra.mxu0 0.0
    %6161 = vmatprep.subr.mxu0 0.0
    %6162 = vmatpush1.msra.mxu0 0.0
    %6163 = vmatprep.subr.mxu0 0.0
    %6164 = vmatpush1.msra.mxu0 0.0
    %6165 = vmatprep.subr.mxu0 0.0
    %6166 = vmatpush1.msra.mxu0 0.0
    %6167 = vmatprep.subr.mxu0 0.0
    %6168 = vmatpush1.msra.mxu0 0.0
    %6169 = vmatprep.subr.mxu0 0.0
    %6170 = vmatpush1.msra.mxu0 0.0
    %6171 = vmatprep.subr.mxu0 0.0
    %6172 = vmatpush1.msra.mxu0 0.0
    %6173 = vmatprep.subr.mxu0 0.0
    %6174 = vmatpush1.msra.mxu0 0.0
    %6175 = vmatprep.subr.mxu0 0.0
    %6176 = vmatpush1.msra.mxu0 0.0
    %6177 = vmatprep.subr.mxu0 0.0
    %6178 = vmatpush1.msra.mxu0 0.0
    %6179 = vmatprep.subr.mxu0 0.0
    %6180 = vmatpush1.msra.mxu0 0.0
    %6181 = vmatprep.subr.mxu0 0.0
    %6182 = vmatpush1.msra.mxu0 0.0
    %6183 = vmatprep.subr.mxu0 0.0
    %6184 = vmatpush1.msra.mxu0 0.0
    %6185 = vmatprep.subr.mxu0 0.0
    %6186 = vmatpush1.msra.mxu0 0.0
    %6187 = vmatprep.subr.mxu0 0.0
    %6188 = vmatpush1.msra.mxu0 0.0
    %6189 = vmatprep.subr.mxu0 0.0
    %6190 = vmatpush1.msra.mxu0 0.0
    %6191 = vmatprep.subr.mxu0 0.0
    %6192 = vmatpush1.msra.mxu0 0.0
    %6193 = vmatprep.subr.mxu0 0.0
    %6194 = vmatpush1.msra.mxu0 0.0
    %6195 = vmatprep.subr.mxu0 0.0
    %6196 = vmatpush1.msra.mxu0 0.0
    %6197 = vmatprep.subr.mxu0 0.0
    %6198 = vmatpush1.msra.mxu0 0.0
    %6199 = vmatprep.subr.mxu0 0.0
    %6200 = vmatpush1.msra.mxu0 0.0
    %6201 = vmatprep.mubr.f32.mxu0 0.0
    %6202 = vmatmul.mubr.f32.gmra.mrb[0].mxu0 %v6135
    %v6203 = vpop.f32.mrb[0].mxu0
    %v6204 = vadd.f32 0.0, %v6203
    %v6205 = vpop.f32.mrb[0].mxu0
    %6206 = vdwg.mxu0
    %v6208 = vsel %vm6111, %v6133, 0
    %6210 = vmatprep.subr.mxu0 0.0
    %6211 = vmatpush1.msra.mxu0 %v5919
    %6212 = vmatprep.subr.mxu0 0.0
    %6213 = vmatpush1.msra.mxu0 0.0
    %6214 = vmatprep.subr.mxu0 0.0
    %6215 = vmatpush1.msra.mxu0 0.0
    %6216 = vmatprep.subr.mxu0 0.0
    %6217 = vmatpush1.msra.mxu0 0.0
    %6218 = vmatprep.subr.mxu0 0.0
    %6219 = vmatpush1.msra.mxu0 0.0
    %6220 = vmatprep.subr.mxu0 0.0
    %6221 = vmatpush1.msra.mxu0 0.0
    %6222 = vmatprep.subr.mxu0 0.0
    %6223 = vmatpush1.msra.mxu0 0.0
    %6224 = vmatprep.subr.mxu0 0.0
    %6225 = vmatpush1.msra.mxu0 0.0
    %6226 = vmatprep.subr.mxu0 0.0
    %6227 = vmatpush1.msra.mxu0 0.0
    %6228 = vmatprep.subr.mxu0 0.0
    %6229 = vmatpush1.msra.mxu0 0.0
    %6230 = vmatprep.subr.mxu0 0.0
    %6231 = vmatpush1.msra.mxu0 0.0
    %6232 = vmatprep.subr.mxu0 0.0
    %6233 = vmatpush1.msra.mxu0 0.0
    %6234 = vmatprep.subr.mxu0 0.0
    %6235 = vmatpush1.msra.mxu0 0.0
    %6236 = vmatprep.subr.mxu0 0.0
    %6237 = vmatpush1.msra.mxu0 0.0
    %6238 = vmatprep.subr.mxu0 0.0
    %6239 = vmatpush1.msra.mxu0 0.0
    %6240 = vmatprep.subr.mxu0 0.0
    %6241 = vmatpush1.msra.mxu0 0.0
    %6242 = vmatprep.subr.mxu0 0.0
    %6243 = vmatpush1.msra.mxu0 0.0
    %6244 = vmatprep.subr.mxu0 0.0
    %6245 = vmatpush1.msra.mxu0 0.0
    %6246 = vmatprep.subr.mxu0 0.0
    %6247 = vmatpush1.msra.mxu0 0.0
    %6248 = vmatprep.subr.mxu0 0.0
    %6249 = vmatpush1.msra.mxu0 0.0
    %6250 = vmatprep.subr.mxu0 0.0
    %6251 = vmatpush1.msra.mxu0 0.0
    %6252 = vmatprep.subr.mxu0 0.0
    %6253 = vmatpush1.msra.mxu0 0.0
    %6254 = vmatprep.subr.mxu0 0.0
    %6255 = vmatpush1.msra.mxu0 0.0
    %6256 = vmatprep.subr.mxu0 0.0
    %6257 = vmatpush1.msra.mxu0 0.0
    %6258 = vmatprep.subr.mxu0 0.0
    %6259 = vmatpush1.msra.mxu0 0.0
    %6260 = vmatprep.subr.mxu0 0.0
    %6261 = vmatpush1.msra.mxu0 0.0
    %6262 = vmatprep.subr.mxu0 0.0
    %6263 = vmatpush1.msra.mxu0 0.0
    %6264 = vmatprep.subr.mxu0 0.0
    %6265 = vmatpush1.msra.mxu0 0.0
    %6266 = vmatprep.subr.mxu0 0.0
    %6267 = vmatpush1.msra.mxu0 0.0
    %6268 = vmatprep.subr.mxu0 0.0
    %6269 = vmatpush1.msra.mxu0 0.0
    %6270 = vmatprep.subr.mxu0 0.0
    %6271 = vmatpush1.msra.mxu0 0.0
    %6272 = vmatprep.subr.mxu0 0.0
    %6273 = vmatpush1.msra.mxu0 0.0
    %6274 = vmatprep.mubr.f32.mxu0 0.0
    %6275 = vmatmul.mubr.f32.gmra.mrb[0].mxu0 %v6208
    %v6276 = vpop.f32.mrb[0].mxu0
    %v6277 = vadd.f32 0.0, %v6276
    %v6278 = vpop.f32.mrb[0].mxu0
    %6279 = vdwg.mxu0
    %6280 = vrot.lane.b32.xlu0 %v5837, 96
    %v6281 = vpop.permute.xlu0 %6280
    %6282 = vrot.lane.b32.xlu0 %v5839, 96
    %v6283 = vpop.permute.xlu0 %6282
    %v6284 = vsel %vm436, %v6281, 0
    %v6286 = vsel %vm436, %v6283, 0
    %6288 = vmatprep.subr.mxu0 0.0
    %6289 = vmatpush1.xpose.msra.mxu0 %v6286
    %6290 = vmatprep.subr.mxu0 0.0
    %6291 = vmatpush1.xpose.msra.mxu0 0.0
    %6292 = vmatprep.subr.mxu0 0.0
    %6293 = vmatpush1.xpose.msra.mxu0 0.0
    %6294 = vmatprep.subr.mxu0 0.0
    %6295 = vmatpush1.xpose.msra.mxu0 0.0
    %6296 = vmatprep.subr.mxu0 0.0
    %6297 = vmatpush1.xpose.msra.mxu0 0.0
    %6298 = vmatprep.subr.mxu0 0.0
    %6299 = vmatpush1.xpose.msra.mxu0 0.0
    %6300 = vmatprep.subr.mxu0 0.0
    %6301 = vmatpush1.xpose.msra.mxu0 0.0
    %6302 = vmatprep.subr.mxu0 0.0
    %6303 = vmatpush1.xpose.msra.mxu0 0.0
    %6304 = vmatprep.subr.mxu0 0.0
    %6305 = vmatpush1.xpose.msra.mxu0 0.0
    %6306 = vmatprep.subr.mxu0 0.0
    %6307 = vmatpush1.xpose.msra.mxu0 0.0
    %6308 = vmatprep.subr.mxu0 0.0
    %6309 = vmatpush1.xpose.msra.mxu0 0.0
    %6310 = vmatprep.subr.mxu0 0.0
    %6311 = vmatpush1.xpose.msra.mxu0 0.0
    %6312 = vmatprep.subr.mxu0 0.0
    %6313 = vmatpush1.xpose.msra.mxu0 0.0
    %6314 = vmatprep.subr.mxu0 0.0
    %6315 = vmatpush1.xpose.msra.mxu0 0.0
    %6316 = vmatprep.subr.mxu0 0.0
    %6317 = vmatpush1.xpose.msra.mxu0 0.0
    %6318 = vmatprep.subr.mxu0 0.0
    %6319 = vmatpush1.xpose.msra.mxu0 0.0
    %6320 = vmatprep.subr.mxu0 0.0
    %6321 = vmatpush1.xpose.msra.mxu0 0.0
    %6322 = vmatprep.subr.mxu0 0.0
    %6323 = vmatpush1.xpose.msra.mxu0 0.0
    %6324 = vmatprep.subr.mxu0 0.0
    %6325 = vmatpush1.xpose.msra.mxu0 0.0
    %6326 = vmatprep.subr.mxu0 0.0
    %6327 = vmatpush1.xpose.msra.mxu0 0.0
    %6328 = vmatprep.subr.mxu0 0.0
    %6329 = vmatpush1.xpose.msra.mxu0 0.0
    %6330 = vmatprep.subr.mxu0 0.0
    %6331 = vmatpush1.xpose.msra.mxu0 0.0
    %6332 = vmatprep.subr.mxu0 0.0
    %6333 = vmatpush1.xpose.msra.mxu0 0.0
    %6334 = vmatprep.subr.mxu0 0.0
    %6335 = vmatpush1.xpose.msra.mxu0 0.0
    %6336 = vmatprep.subr.mxu0 0.0
    %6337 = vmatpush1.xpose.msra.mxu0 0.0
    %6338 = vmatprep.subr.mxu0 0.0
    %6339 = vmatpush1.xpose.msra.mxu0 0.0
    %6340 = vmatprep.subr.mxu0 0.0
    %6341 = vmatpush1.xpose.msra.mxu0 0.0
    %6342 = vmatprep.subr.mxu0 0.0
    %6343 = vmatpush1.xpose.msra.mxu0 0.0
    %6344 = vmatprep.subr.mxu0 0.0
    %6345 = vmatpush1.xpose.msra.mxu0 0.0
    %6346 = vmatprep.subr.mxu0 0.0
    %6347 = vmatpush1.xpose.msra.mxu0 0.0
    %6348 = vmatprep.subr.mxu0 0.0
    %6349 = vmatpush1.xpose.msra.mxu0 0.0
    %6350 = vmatprep.subr.mxu0 0.0
    %6351 = vmatpush1.xpose.msra.mxu0 0.0
    %6352 = vmatprep.mubr.f32.mxu0 0.0
    %6353 = vmatmul.mubr.f32.gmra.mrb[0].mxu0 %v6284
    %v6354 = vpop.f32.mrb[0].mxu0
    %v6355 = vadd.f32 0.0, %v6354
    %v6356 = vpop.f32.mrb[0].mxu0
    %6357 = vdwg.mxu0
    %6358 = vrot.lane.b32.xlu0 %v5843, 96
    %v6359 = vpop.permute.xlu0 %6358
    %6360 = vrot.lane.b32.xlu0 %v5845, 96
    %v6361 = vpop.permute.xlu0 %6360
    %v6362 = vsel %vm436, %v6359, 0
    %v6364 = vsel %vm436, %v6361, 0
    %6366 = vmatprep.subr.mxu0 0.0
    %6367 = vmatpush1.xpose.msra.mxu0 %v6364
    %6368 = vmatprep.subr.mxu0 0.0
    %6369 = vmatpush1.xpose.msra.mxu0 0.0
    %6370 = vmatprep.subr.mxu0 0.0
    %6371 = vmatpush1.xpose.msra.mxu0 0.0
    %6372 = vmatprep.subr.mxu0 0.0
    %6373 = vmatpush1.xpose.msra.mxu0 0.0
    %6374 = vmatprep.subr.mxu0 0.0
    %6375 = vmatpush1.xpose.msra.mxu0 0.0
    %6376 = vmatprep.subr.mxu0 0.0
    %6377 = vmatpush1.xpose.msra.mxu0 0.0
    %6378 = vmatprep.subr.mxu0 0.0
    %6379 = vmatpush1.xpose.msra.mxu0 0.0
    %6380 = vmatprep.subr.mxu0 0.0
    %6381 = vmatpush1.xpose.msra.mxu0 0.0
    %6382 = vmatprep.subr.mxu0 0.0
    %6383 = vmatpush1.xpose.msra.mxu0 0.0
    %6384 = vmatprep.subr.mxu0 0.0
    %6385 = vmatpush1.xpose.msra.mxu0 0.0
    %6386 = vmatprep.subr.mxu0 0.0
    %6387 = vmatpush1.xpose.msra.mxu0 0.0
    %6388 = vmatprep.subr.mxu0 0.0
    %6389 = vmatpush1.xpose.msra.mxu0 0.0
    %6390 = vmatprep.subr.mxu0 0.0
    %6391 = vmatpush1.xpose.msra.mxu0 0.0
    %6392 = vmatprep.subr.mxu0 0.0
    %6393 = vmatpush1.xpose.msra.mxu0 0.0
    %6394 = vmatprep.subr.mxu0 0.0
    %6395 = vmatpush1.xpose.msra.mxu0 0.0
    %6396 = vmatprep.subr.mxu0 0.0
    %6397 = vmatpush1.xpose.msra.mxu0 0.0
    %6398 = vmatprep.subr.mxu0 0.0
    %6399 = vmatpush1.xpose.msra.mxu0 0.0
    %6400 = vmatprep.subr.mxu0 0.0
    %6401 = vmatpush1.xpose.msra.mxu0 0.0
    %6402 = vmatprep.subr.mxu0 0.0
    %6403 = vmatpush1.xpose.msra.mxu0 0.0
    %6404 = vmatprep.subr.mxu0 0.0
    %6405 = vmatpush1.xpose.msra.mxu0 0.0
    %6406 = vmatprep.subr.mxu0 0.0
    %6407 = vmatpush1.xpose.msra.mxu0 0.0
    %6408 = vmatprep.subr.mxu0 0.0
    %6409 = vmatpush1.xpose.msra.mxu0 0.0
    %6410 = vmatprep.subr.mxu0 0.0
    %6411 = vmatpush1.xpose.msra.mxu0 0.0
    %6412 = vmatprep.subr.mxu0 0.0
    %6413 = vmatpush1.xpose.msra.mxu0 0.0
    %6414 = vmatprep.subr.mxu0 0.0
    %6415 = vmatpush1.xpose.msra.mxu0 0.0
    %6416 = vmatprep.subr.mxu0 0.0
    %6417 = vmatpush1.xpose.msra.mxu0 0.0
    %6418 = vmatprep.subr.mxu0 0.0
    %6419 = vmatpush1.xpose.msra.mxu0 0.0
    %6420 = vmatprep.subr.mxu0 0.0
    %6421 = vmatpush1.xpose.msra.mxu0 0.0
    %6422 = vmatprep.subr.mxu0 0.0
    %6423 = vmatpush1.xpose.msra.mxu0 0.0
    %6424 = vmatprep.subr.mxu0 0.0
    %6425 = vmatpush1.xpose.msra.mxu0 0.0
    %6426 = vmatprep.subr.mxu0 0.0
    %6427 = vmatpush1.xpose.msra.mxu0 0.0
    %6428 = vmatprep.subr.mxu0 0.0
    %6429 = vmatpush1.xpose.msra.mxu0 0.0
    %6430 = vmatprep.mubr.f32.mxu0 0.0
    %6431 = vmatmul.mubr.f32.gmra.mrb[0].mxu0 %v6362
    %v6432 = vpop.f32.mrb[0].mxu0
    %v6433 = vadd.f32 0.0, %v6432
    %v6434 = vpop.f32.mrb[0].mxu0
    %6435 = vdwg.mxu0
    %v6436 = vmul.f32 %v6355, 0.17677669
    %v6437 = vmul.f32 %v6433, 0.17677669
    %v6438 = vadd.f32 %v6436, %v6102
    %v6439 = vadd.f32 %v6437, %v6106
    %v6440 = vsel %vm6111, %v6438, -inf
    %6441 = vmax.xlane.f32.xlu0 %v6440
    %v6442 = vpop.xlane.xlu0 %6441
    %v6443 = vsel %vm6111, %v6439, -inf
    %6444 = vmax.xlane.f32.xlu0 %v6443
    %v6445 = vpop.xlane.xlu0 %6444
    %v6446 = vsub.f32 %v6438, %v6442
    %v6447 = vsub.f32 %v6439, %v6445
    %v6448 = vmul.f32 %v6446, 1.442695
    %v6449 = vpow.pop %v6448
    %v6450 = vmul.f32 %v6447, 1.442695
    %v6451 = vpow.pop %v6450
    %v6452 = vsel %vm6111, %v6449, 0.0
    %6453 = vadd.xlane.f32.xlu0 %v6452
    %v6454 = vpop.xlane.xlu0 %6453
    %v6455 = vsel %vm6111, %v6451, 0.0
    %6456 = vadd.xlane.f32.xlu0 %v6455
    %v6457 = vpop.xlane.xlu0 %6456
    %v6458 = vrcp.pop %v6454
    %v6459 = vrcp.pop %v6457
    %v6460 = vmul.f32 %v6449, %v6458
    %v6461 = vmul.f32 %v6451, %v6459
    %6463 = vrot.lane.b32.xlu0 %v5914, 96
    %v6464 = vpop.permute.xlu0 %6463
    %v6467 = vsel %vm6111, %v6460, 0
    %6469 = vmatprep.subr.mxu0 0.0
    %6470 = vmatpush1.msra.mxu0 %v6464
    %6471 = vmatprep.subr.mxu0 0.0
    %6472 = vmatpush1.msra.mxu0 0.0
    %6473 = vmatprep.subr.mxu0 0.0
    %6474 = vmatpush1.msra.mxu0 0.0
    %6475 = vmatprep.subr.mxu0 0.0
    %6476 = vmatpush1.msra.mxu0 0.0
    %6477 = vmatprep.subr.mxu0 0.0
    %6478 = vmatpush1.msra.mxu0 0.0
    %6479 = vmatprep.subr.mxu0 0.0
    %6480 = vmatpush1.msra.mxu0 0.0
    %6481 = vmatprep.subr.mxu0 0.0
    %6482 = vmatpush1.msra.mxu0 0.0
    %6483 = vmatprep.subr.mxu0 0.0
    %6484 = vmatpush1.msra.mxu0 0.0
    %6485 = vmatprep.subr.mxu0 0.0
    %6486 = vmatpush1.msra.mxu0 0.0
    %6487 = vmatprep.subr.mxu0 0.0
    %6488 = vmatpush1.msra.mxu0 0.0
    %6489 = vmatprep.subr.mxu0 0.0
    %6490 = vmatpush1.msra.mxu0 0.0
    %6491 = vmatprep.subr.mxu0 0.0
    %6492 = vmatpush1.msra.mxu0 0.0
    %6493 = vmatprep.subr.mxu0 0.0
    %6494 = vmatpush1.msra.mxu0 0.0
    %6495 = vmatprep.subr.mxu0 0.0
    %6496 = vmatpush1.msra.mxu0 0.0
    %6497 = vmatprep.subr.mxu0 0.0
    %6498 = vmatpush1.msra.mxu0 0.0
    %6499 = vmatprep.subr.mxu0 0.0
    %6500 = vmatpush1.msra.mxu0 0.0
    %6501 = vmatprep.subr.mxu0 0.0
    %6502 = vmatpush1.msra.mxu0 0.0
    %6503 = vmatprep.subr.mxu0 0.0
    %6504 = vmatpush1.msra.mxu0 0.0
    %6505 = vmatprep.subr.mxu0 0.0
    %6506 = vmatpush1.msra.mxu0 0.0
    %6507 = vmatprep.subr.mxu0 0.0
    %6508 = vmatpush1.msra.mxu0 0.0
    %6509 = vmatprep.subr.mxu0 0.0
    %6510 = vmatpush1.msra.mxu0 0.0
    %6511 = vmatprep.subr.mxu0 0.0
    %6512 = vmatpush1.msra.mxu0 0.0
    %6513 = vmatprep.subr.mxu0 0.0
    %6514 = vmatpush1.msra.mxu0 0.0
    %6515 = vmatprep.subr.mxu0 0.0
    %6516 = vmatpush1.msra.mxu0 0.0
    %6517 = vmatprep.subr.mxu0 0.0
    %6518 = vmatpush1.msra.mxu0 0.0
    %6519 = vmatprep.subr.mxu0 0.0
    %6520 = vmatpush1.msra.mxu0 0.0
    %6521 = vmatprep.subr.mxu0 0.0
    %6522 = vmatpush1.msra.mxu0 0.0
    %6523 = vmatprep.subr.mxu0 0.0
    %6524 = vmatpush1.msra.mxu0 0.0
    %6525 = vmatprep.subr.mxu0 0.0
    %6526 = vmatpush1.msra.mxu0 0.0
    %6527 = vmatprep.subr.mxu0 0.0
    %6528 = vmatpush1.msra.mxu0 0.0
    %6529 = vmatprep.subr.mxu0 0.0
    %6530 = vmatpush1.msra.mxu0 0.0
    %6531 = vmatprep.subr.mxu0 0.0
    %6532 = vmatpush1.msra.mxu0 0.0
    %6533 = vmatprep.mubr.f32.mxu0 0.0
    %6534 = vmatmul.mubr.f32.gmra.mrb[0].mxu0 %v6467
    %v6535 = vpop.f32.mrb[0].mxu0
    %v6536 = vadd.f32 0.0, %v6535
    %v6537 = vpop.f32.mrb[0].mxu0
    %6538 = vdwg.mxu0
    %6540 = vrot.lane.b32.xlu0 %v5919, 96
    %v6541 = vpop.permute.xlu0 %6540
    %v6544 = vsel %vm6111, %v6461, 0
    %6546 = vmatprep.subr.mxu0 0.0
    %6547 = vmatpush1.msra.mxu0 %v6541
    %6548 = vmatprep.subr.mxu0 0.0
    %6549 = vmatpush1.msra.mxu0 0.0
    %6550 = vmatprep.subr.mxu0 0.0
    %6551 = vmatpush1.msra.mxu0 0.0
    %6552 = vmatprep.subr.mxu0 0.0
    %6553 = vmatpush1.msra.mxu0 0.0
    %6554 = vmatprep.subr.mxu0 0.0
    %6555 = vmatpush1.msra.mxu0 0.0
    %6556 = vmatprep.subr.mxu0 0.0
    %6557 = vmatpush1.msra.mxu0 0.0
    %6558 = vmatprep.subr.mxu0 0.0
    %6559 = vmatpush1.msra.mxu0 0.0
    %6560 = vmatprep.subr.mxu0 0.0
    %6561 = vmatpush1.msra.mxu0 0.0
    %6562 = vmatprep.subr.mxu0 0.0
    %6563 = vmatpush1.msra.mxu0 0.0
    %6564 = vmatprep.subr.mxu0 0.0
    %6565 = vmatpush1.msra.mxu0 0.0
    %6566 = vmatprep.subr.mxu0 0.0
    %6567 = vmatpush1.msra.mxu0 0.0
    %6568 = vmatprep.subr.mxu0 0.0
    %6569 = vmatpush1.msra.mxu0 0.0
    %6570 = vmatprep.subr.mxu0 0.0
    %6571 = vmatpush1.msra.mxu0 0.0
    %6572 = vmatprep.subr.mxu0 0.0
    %6573 = vmatpush1.msra.mxu0 0.0
    %6574 = vmatprep.subr.mxu0 0.0
    %6575 = vmatpush1.msra.mxu0 0.0
    %6576 = vmatprep.subr.mxu0 0.0
    %6577 = vmatpush1.msra.mxu0 0.0
    %6578 = vmatprep.subr.mxu0 0.0
    %6579 = vmatpush1.msra.mxu0 0.0
    %6580 = vmatprep.subr.mxu0 0.0
    %6581 = vmatpush1.msra.mxu0 0.0
    %6582 = vmatprep.subr.mxu0 0.0
    %6583 = vmatpush1.msra.mxu0 0.0
    %6584 = vmatprep.subr.mxu0 0.0
    %6585 = vmatpush1.msra.mxu0 0.0
    %6586 = vmatprep.subr.mxu0 0.0
    %6587 = vmatpush1.msra.mxu0 0.0
    %6588 = vmatprep.subr.mxu0 0.0
    %6589 = vmatpush1.msra.mxu0 0.0
    %6590 = vmatprep.subr.mxu0 0.0
    %6591 = vmatpush1.msra.mxu0 0.0
    %6592 = vmatprep.subr.mxu0 0.0
    %6593 = vmatpush1.msra.mxu0 0.0
    %6594 = vmatprep.subr.mxu0 0.0
    %6595 = vmatpush1.msra.mxu0 0.0
    %6596 = vmatprep.subr.mxu0 0.0
    %6597 = vmatpush1.msra.mxu0 0.0
    %6598 = vmatprep.subr.mxu0 0.0
    %6599 = vmatpush1.msra.mxu0 0.0
    %6600 = vmatprep.subr.mxu0 0.0
    %6601 = vmatpush1.msra.mxu0 0.0
    %6602 = vmatprep.subr.mxu0 0.0
    %6603 = vmatpush1.msra.mxu0 0.0
    %6604 = vmatprep.subr.mxu0 0.0
    %6605 = vmatpush1.msra.mxu0 0.0
    %6606 = vmatprep.subr.mxu0 0.0
    %6607 = vmatpush1.msra.mxu0 0.0
    %6608 = vmatprep.subr.mxu0 0.0
    %6609 = vmatpush1.msra.mxu0 0.0
    %6610 = vmatprep.mubr.f32.mxu0 0.0
    %6611 = vmatmul.mubr.f32.gmra.mrb[0].mxu0 %v6544
    %v6612 = vpop.f32.mrb[0].mxu0
    %v6613 = vadd.f32 0.0, %v6612
    %v6614 = vpop.f32.mrb[0].mxu0
    %6615 = vdwg.mxu0
    %v6617 = vsel %vm436, %v6536, 0
    %v6620 = vsel %vm436, %v6613, 0
    %6622 = vmatprep.subr.mxu0 0.0
    %6623 = vmatpush1.msra.mxu0 %v5672
    %6624 = vmatprep.subr.mxu0 0.0
    %6625 = vmatpush1.msra.mxu0 %v5673
    %6626 = vmatprep.subr.mxu0 0.0
    %6627 = vmatpush1.msra.mxu0 %v5674
    %6628 = vmatprep.subr.mxu0 0.0
    %6629 = vmatpush1.msra.mxu0 %v5675
    %6630 = vmatprep.subr.mxu0 0.0
    %6631 = vmatpush1.msra.mxu0 0.0
    %6632 = vmatprep.subr.mxu0 0.0
    %6633 = vmatpush1.msra.mxu0 0.0
    %6634 = vmatprep.subr.mxu0 0.0
    %6635 = vmatpush1.msra.mxu0 0.0
    %6636 = vmatprep.subr.mxu0 0.0
    %6637 = vmatpush1.msra.mxu0 0.0
    %6638 = vmatprep.subr.mxu0 0.0
    %6639 = vmatpush1.msra.mxu0 0.0
    %6640 = vmatprep.subr.mxu0 0.0
    %6641 = vmatpush1.msra.mxu0 0.0
    %6642 = vmatprep.subr.mxu0 0.0
    %6643 = vmatpush1.msra.mxu0 0.0
    %6644 = vmatprep.subr.mxu0 0.0
    %6645 = vmatpush1.msra.mxu0 0.0
    %6646 = vmatprep.subr.mxu0 0.0
    %6647 = vmatpush1.msra.mxu0 0.0
    %6648 = vmatprep.subr.mxu0 0.0
    %6649 = vmatpush1.msra.mxu0 0.0
    %6650 = vmatprep.subr.mxu0 0.0
    %6651 = vmatpush1.msra.mxu0 0.0
    %6652 = vmatprep.subr.mxu0 0.0
    %6653 = vmatpush1.msra.mxu0 0.0
    %6654 = vmatprep.subr.mxu0 0.0
    %6655 = vmatpush1.msra.mxu0 0.0
    %6656 = vmatprep.subr.mxu0 0.0
    %6657 = vmatpush1.msra.mxu0 0.0
    %6658 = vmatprep.subr.mxu0 0.0
    %6659 = vmatpush1.msra.mxu0 0.0
    %6660 = vmatprep.subr.mxu0 0.0
    %6661 = vmatpush1.msra.mxu0 0.0
    %6662 = vmatprep.subr.mxu0 0.0
    %6663 = vmatpush1.msra.mxu0 0.0
    %6664 = vmatprep.subr.mxu0 0.0
    %6665 = vmatpush1.msra.mxu0 0.0
    %6666 = vmatprep.subr.mxu0 0.0
    %6667 = vmatpush1.msra.mxu0 0.0
    %6668 = vmatprep.subr.mxu0 0.0
    %6669 = vmatpush1.msra.mxu0 0.0
    %6670 = vmatprep.subr.mxu0 0.0
    %6671 = vmatpush1.msra.mxu0 0.0
    %6672 = vmatprep.subr.mxu0 0.0
    %6673 = vmatpush1.msra.mxu0 0.0
    %6674 = vmatprep.subr.mxu0 0.0
    %6675 = vmatpush1.msra.mxu0 0.0
    %6676 = vmatprep.subr.mxu0 0.0
    %6677 = vmatpush1.msra.mxu0 0.0
    %6678 = vmatprep.subr.mxu0 0.0
    %6679 = vmatpush1.msra.mxu0 0.0
    %6680 = vmatprep.subr.mxu0 0.0
    %6681 = vmatpush1.msra.mxu0 0.0
    %6682 = vmatprep.subr.mxu0 0.0
    %6683 = vmatpush1.msra.mxu0 0.0
    %6684 = vmatprep.subr.mxu0 0.0
    %6685 = vmatpush1.msra.mxu0 0.0
    %6686 = vmatprep.mubr.f32.mxu0 0.0
    %6687 = vmatmul.mubr.f32.gmra.mrb[0].mxu0 %v6617
    %v6688 = vpop.f32.mrb[0].mxu0
    %v6689 = vadd.f32 0.0, %v6688
    %v6690 = vpop.f32.mrb[0].mxu0
    %6691 = vmatprep.mubr.f32.mxu0 0.0
    %6692 = vmatmul.mubr.f32.gmra.mrb[0].mxu0 %v6620
    %v6693 = vpop.f32.mrb[0].mxu0
    %v6694 = vadd.f32 0.0, %v6693
    %v6695 = vpop.f32.mrb[0].mxu0
    %6696 = vdwg.mxu0
    %v6698 = vsel %vm436, %v6204, 0
    %v6701 = vsel %vm436, %v6277, 0
    %6703 = vmatprep.subr.mxu0 0.0
    %6704 = vmatpush1.msra.mxu0 %v5668
    %6705 = vmatprep.subr.mxu0 0.0
    %6706 = vmatpush1.msra.mxu0 %v5669
    %6707 = vmatprep.subr.mxu0 0.0
    %6708 = vmatpush1.msra.mxu0 %v5670
    %6709 = vmatprep.subr.mxu0 0.0
    %6710 = vmatpush1.msra.mxu0 %v5671
    %6711 = vmatprep.subr.mxu0 0.0
    %6712 = vmatpush1.msra.mxu0 0.0
    %6713 = vmatprep.subr.mxu0 0.0
    %6714 = vmatpush1.msra.mxu0 0.0
    %6715 = vmatprep.subr.mxu0 0.0
    %6716 = vmatpush1.msra.mxu0 0.0
    %6717 = vmatprep.subr.mxu0 0.0
    %6718 = vmatpush1.msra.mxu0 0.0
    %6719 = vmatprep.subr.mxu0 0.0
    %6720 = vmatpush1.msra.mxu0 0.0
    %6721 = vmatprep.subr.mxu0 0.0
    %6722 = vmatpush1.msra.mxu0 0.0
    %6723 = vmatprep.subr.mxu0 0.0
    %6724 = vmatpush1.msra.mxu0 0.0
    %6725 = vmatprep.subr.mxu0 0.0
    %6726 = vmatpush1.msra.mxu0 0.0
    %6727 = vmatprep.subr.mxu0 0.0
    %6728 = vmatpush1.msra.mxu0 0.0
    %6729 = vmatprep.subr.mxu0 0.0
    %6730 = vmatpush1.msra.mxu0 0.0
    %6731 = vmatprep.subr.mxu0 0.0
    %6732 = vmatpush1.msra.mxu0 0.0
    %6733 = vmatprep.subr.mxu0 0.0
    %6734 = vmatpush1.msra.mxu0 0.0
    %6735 = vmatprep.subr.mxu0 0.0
    %6736 = vmatpush1.msra.mxu0 0.0
    %6737 = vmatprep.subr.mxu0 0.0
    %6738 = vmatpush1.msra.mxu0 0.0
    %6739 = vmatprep.subr.mxu0 0.0
    %6740 = vmatpush1.msra.mxu0 0.0
    %6741 = vmatprep.subr.mxu0 0.0
    %6742 = vmatpush1.msra.mxu0 0.0
    %6743 = vmatprep.subr.mxu0 0.0
    %6744 = vmatpush1.msra.mxu0 0.0
    %6745 = vmatprep.subr.mxu0 0.0
    %6746 = vmatpush1.msra.mxu0 0.0
    %6747 = vmatprep.subr.mxu0 0.0
    %6748 = vmatpush1.msra.mxu0 0.0
    %6749 = vmatprep.subr.mxu0 0.0
    %6750 = vmatpush1.msra.mxu0 0.0
    %6751 = vmatprep.subr.mxu0 0.0
    %6752 = vmatpush1.msra.mxu0 0.0
    %6753 = vmatprep.subr.mxu0 0.0
    %6754 = vmatpush1.msra.mxu0 0.0
    %6755 = vmatprep.subr.mxu0 0.0
    %6756 = vmatpush1.msra.mxu0 0.0
    %6757 = vmatprep.subr.mxu0 0.0
    %6758 = vmatpush1.msra.mxu0 0.0
    %6759 = vmatprep.subr.mxu0 0.0
    %6760 = vmatpush1.msra.mxu0 0.0
    %6761 = vmatprep.subr.mxu0 0.0
    %6762 = vmatpush1.msra.mxu0 0.0
    %6763 = vmatprep.subr.mxu0 0.0
    %6764 = vmatpush1.msra.mxu0 0.0
    %6765 = vmatprep.subr.mxu0 0.0
    %6766 = vmatpush1.msra.mxu0 0.0
    %6767 = vmatprep.mubr.f32.mxu0 0.0
    %6768 = vmatmul.mubr.f32.gmra.mrb[0].mxu0 %v6698
    %v6769 = vpop.f32.mrb[0].mxu0
    %v6770 = vadd.f32 %v6689, %v6769
    %v6771 = vpop.f32.mrb[0].mxu0
    %6772 = vmatprep.mubr.f32.mxu0 0.0
    %6773 = vmatmul.mubr.f32.gmra.mrb[0].mxu0 %v6701
    %v6774 = vpop.f32.mrb[0].mxu0
    %v6775 = vadd.f32 %v6694, %v6774
    %v6776 = vpop.f32.mrb[0].mxu0
    %6777 = vdwg.mxu0
    %6778 = vrot.lane.b32.xlu0 %v5837, 64
    %v6779 = vpop.permute.xlu0 %6778
    %6780 = vrot.lane.b32.xlu0 %v5839, 64
    %v6781 = vpop.permute.xlu0 %6780
    %v6782 = vsel %vm436, %v6779, 0
    %v6784 = vsel %vm436, %v6781, 0
    %6786 = vmatprep.subr.mxu0 0.0
    %6787 = vmatpush1.xpose.msra.mxu0 %v6784
    %6788 = vmatprep.subr.mxu0 0.0
    %6789 = vmatpush1.xpose.msra.mxu0 0.0
    %6790 = vmatprep.subr.mxu0 0.0
    %6791 = vmatpush1.xpose.msra.mxu0 0.0
    %6792 = vmatprep.subr.mxu0 0.0
    %6793 = vmatpush1.xpose.msra.mxu0 0.0
    %6794 = vmatprep.subr.mxu0 0.0
    %6795 = vmatpush1.xpose.msra.mxu0 0.0
    %6796 = vmatprep.subr.mxu0 0.0
    %6797 = vmatpush1.xpose.msra.mxu0 0.0
    %6798 = vmatprep.subr.mxu0 0.0
    %6799 = vmatpush1.xpose.msra.mxu0 0.0
    %6800 = vmatprep.subr.mxu0 0.0
    %6801 = vmatpush1.xpose.msra.mxu0 0.0
    %6802 = vmatprep.subr.mxu0 0.0
    %6803 = vmatpush1.xpose.msra.mxu0 0.0
    %6804 = vmatprep.subr.mxu0 0.0
    %6805 = vmatpush1.xpose.msra.mxu0 0.0
    %6806 = vmatprep.subr.mxu0 0.0
    %6807 = vmatpush1.xpose.msra.mxu0 0.0
    %6808 = vmatprep.subr.mxu0 0.0
    %6809 = vmatpush1.xpose.msra.mxu0 0.0
    %6810 = vmatprep.subr.mxu0 0.0
    %6811 = vmatpush1.xpose.msra.mxu0 0.0
    %6812 = vmatprep.subr.mxu0 0.0
    %6813 = vmatpush1.xpose.msra.mxu0 0.0
    %6814 = vmatprep.subr.mxu0 0.0
    %6815 = vmatpush1.xpose.msra.mxu0 0.0
    %6816 = vmatprep.subr.mxu0 0.0
    %6817 = vmatpush1.xpose.msra.mxu0 0.0
    %6818 = vmatprep.subr.mxu0 0.0
    %6819 = vmatpush1.xpose.msra.mxu0 0.0
    %6820 = vmatprep.subr.mxu0 0.0
    %6821 = vmatpush1.xpose.msra.mxu0 0.0
    %6822 = vmatprep.subr.mxu0 0.0
    %6823 = vmatpush1.xpose.msra.mxu0 0.0
    %6824 = vmatprep.subr.mxu0 0.0
    %6825 = vmatpush1.xpose.msra.mxu0 0.0
    %6826 = vmatprep.subr.mxu0 0.0
    %6827 = vmatpush1.xpose.msra.mxu0 0.0
    %6828 = vmatprep.subr.mxu0 0.0
    %6829 = vmatpush1.xpose.msra.mxu0 0.0
    %6830 = vmatprep.subr.mxu0 0.0
    %6831 = vmatpush1.xpose.msra.mxu0 0.0
    %6832 = vmatprep.subr.mxu0 0.0
    %6833 = vmatpush1.xpose.msra.mxu0 0.0
    %6834 = vmatprep.subr.mxu0 0.0
    %6835 = vmatpush1.xpose.msra.mxu0 0.0
    %6836 = vmatprep.subr.mxu0 0.0
    %6837 = vmatpush1.xpose.msra.mxu0 0.0
    %6838 = vmatprep.subr.mxu0 0.0
    %6839 = vmatpush1.xpose.msra.mxu0 0.0
    %6840 = vmatprep.subr.mxu0 0.0
    %6841 = vmatpush1.xpose.msra.mxu0 0.0
    %6842 = vmatprep.subr.mxu0 0.0
    %6843 = vmatpush1.xpose.msra.mxu0 0.0
    %6844 = vmatprep.subr.mxu0 0.0
    %6845 = vmatpush1.xpose.msra.mxu0 0.0
    %6846 = vmatprep.subr.mxu0 0.0
    %6847 = vmatpush1.xpose.msra.mxu0 0.0
    %6848 = vmatprep.subr.mxu0 0.0
    %6849 = vmatpush1.xpose.msra.mxu0 0.0
    %6850 = vmatprep.mubr.f32.mxu0 0.0
    %6851 = vmatmul.mubr.f32.gmra.mrb[0].mxu0 %v6782
    %v6852 = vpop.f32.mrb[0].mxu0
    %v6853 = vadd.f32 0.0, %v6852
    %v6854 = vpop.f32.mrb[0].mxu0
    %6855 = vdwg.mxu0
    %6856 = vrot.lane.b32.xlu0 %v5843, 64
    %v6857 = vpop.permute.xlu0 %6856
    %6858 = vrot.lane.b32.xlu0 %v5845, 64
    %v6859 = vpop.permute.xlu0 %6858
    %v6860 = vsel %vm436, %v6857, 0
    %v6862 = vsel %vm436, %v6859, 0
    %6864 = vmatprep.subr.mxu0 0.0
    %6865 = vmatpush1.xpose.msra.mxu0 %v6862
    %6866 = vmatprep.subr.mxu0 0.0
    %6867 = vmatpush1.xpose.msra.mxu0 0.0
    %6868 = vmatprep.subr.mxu0 0.0
    %6869 = vmatpush1.xpose.msra.mxu0 0.0
    %6870 = vmatprep.subr.mxu0 0.0
    %6871 = vmatpush1.xpose.msra.mxu0 0.0
    %6872 = vmatprep.subr.mxu0 0.0
    %6873 = vmatpush1.xpose.msra.mxu0 0.0
    %6874 = vmatprep.subr.mxu0 0.0
    %6875 = vmatpush1.xpose.msra.mxu0 0.0
    %6876 = vmatprep.subr.mxu0 0.0
    %6877 = vmatpush1.xpose.msra.mxu0 0.0
    %6878 = vmatprep.subr.mxu0 0.0
    %6879 = vmatpush1.xpose.msra.mxu0 0.0
    %6880 = vmatprep.subr.mxu0 0.0
    %6881 = vmatpush1.xpose.msra.mxu0 0.0
    %6882 = vmatprep.subr.mxu0 0.0
    %6883 = vmatpush1.xpose.msra.mxu0 0.0
    %6884 = vmatprep.subr.mxu0 0.0
    %6885 = vmatpush1.xpose.msra.mxu0 0.0
    %6886 = vmatprep.subr.mxu0 0.0
    %6887 = vmatpush1.xpose.msra.mxu0 0.0
    %6888 = vmatprep.subr.mxu0 0.0
    %6889 = vmatpush1.xpose.msra.mxu0 0.0
    %6890 = vmatprep.subr.mxu0 0.0
    %6891 = vmatpush1.xpose.msra.mxu0 0.0
    %6892 = vmatprep.subr.mxu0 0.0
    %6893 = vmatpush1.xpose.msra.mxu0 0.0
    %6894 = vmatprep.subr.mxu0 0.0
    %6895 = vmatpush1.xpose.msra.mxu0 0.0
    %6896 = vmatprep.subr.mxu0 0.0
    %6897 = vmatpush1.xpose.msra.mxu0 0.0
    %6898 = vmatprep.subr.mxu0 0.0
    %6899 = vmatpush1.xpose.msra.mxu0 0.0
    %6900 = vmatprep.subr.mxu0 0.0
    %6901 = vmatpush1.xpose.msra.mxu0 0.0
    %6902 = vmatprep.subr.mxu0 0.0
    %6903 = vmatpush1.xpose.msra.mxu0 0.0
    %6904 = vmatprep.subr.mxu0 0.0
    %6905 = vmatpush1.xpose.msra.mxu0 0.0
    %6906 = vmatprep.subr.mxu0 0.0
    %6907 = vmatpush1.xpose.msra.mxu0 0.0
    %6908 = vmatprep.subr.mxu0 0.0
    %6909 = vmatpush1.xpose.msra.mxu0 0.0
    %6910 = vmatprep.subr.mxu0 0.0
    %6911 = vmatpush1.xpose.msra.mxu0 0.0
    %6912 = vmatprep.subr.mxu0 0.0
    %6913 = vmatpush1.xpose.msra.mxu0 0.0
    %6914 = vmatprep.subr.mxu0 0.0
    %6915 = vmatpush1.xpose.msra.mxu0 0.0
    %6916 = vmatprep.subr.mxu0 0.0
    %6917 = vmatpush1.xpose.msra.mxu0 0.0
    %6918 = vmatprep.subr.mxu0 0.0
    %6919 = vmatpush1.xpose.msra.mxu0 0.0
    %6920 = vmatprep.subr.mxu0 0.0
    %6921 = vmatpush1.xpose.msra.mxu0 0.0
    %6922 = vmatprep.subr.mxu0 0.0
    %6923 = vmatpush1.xpose.msra.mxu0 0.0
    %6924 = vmatprep.subr.mxu0 0.0
    %6925 = vmatpush1.xpose.msra.mxu0 0.0
    %6926 = vmatprep.subr.mxu0 0.0
    %6927 = vmatpush1.xpose.msra.mxu0 0.0
    %6928 = vmatprep.mubr.f32.mxu0 0.0
    %6929 = vmatmul.mubr.f32.gmra.mrb[0].mxu0 %v6860
    %v6930 = vpop.f32.mrb[0].mxu0
    %v6931 = vadd.f32 0.0, %v6930
    %v6932 = vpop.f32.mrb[0].mxu0
    %6933 = vdwg.mxu0
    %v6934 = vmul.f32 %v6853, 0.17677669
    %v6935 = vmul.f32 %v6931, 0.17677669
    %v6936 = vadd.f32 %v6934, %v6102
    %v6937 = vadd.f32 %v6935, %v6106
    %v6938 = vsel %vm6111, %v6936, -inf
    %6939 = vmax.xlane.f32.xlu0 %v6938
    %v6940 = vpop.xlane.xlu0 %6939
    %v6941 = vsel %vm6111, %v6937, -inf
    %6942 = vmax.xlane.f32.xlu0 %v6941
    %v6943 = vpop.xlane.xlu0 %6942
    %v6944 = vsub.f32 %v6936, %v6940
    %v6945 = vsub.f32 %v6937, %v6943
    %v6946 = vmul.f32 %v6944, 1.442695
    %v6947 = vpow.pop %v6946
    %v6948 = vmul.f32 %v6945, 1.442695
    %v6949 = vpow.pop %v6948
    %v6950 = vsel %vm6111, %v6947, 0.0
    %6951 = vadd.xlane.f32.xlu0 %v6950
    %v6952 = vpop.xlane.xlu0 %6951
    %v6953 = vsel %vm6111, %v6949, 0.0
    %6954 = vadd.xlane.f32.xlu0 %v6953
    %v6955 = vpop.xlane.xlu0 %6954
    %v6956 = vrcp.pop %v6952
    %v6957 = vrcp.pop %v6955
    %v6958 = vmul.f32 %v6947, %v6956
    %v6959 = vmul.f32 %v6949, %v6957
    %6960 = vrot.lane.b32.xlu0 %v5914, 64
    %v6961 = vpop.permute.xlu0 %6960
    %v6964 = vsel %vm6111, %v6958, 0
    %6966 = vmatprep.subr.mxu0 0.0
    %6967 = vmatpush1.msra.mxu0 %v6961
    %6968 = vmatprep.subr.mxu0 0.0
    %6969 = vmatpush1.msra.mxu0 0.0
    %6970 = vmatprep.subr.mxu0 0.0
    %6971 = vmatpush1.msra.mxu0 0.0
    %6972 = vmatprep.subr.mxu0 0.0
    %6973 = vmatpush1.msra.mxu0 0.0
    %6974 = vmatprep.subr.mxu0 0.0
    %6975 = vmatpush1.msra.mxu0 0.0
    %6976 = vmatprep.subr.mxu0 0.0
    %6977 = vmatpush1.msra.mxu0 0.0
    %6978 = vmatprep.subr.mxu0 0.0
    %6979 = vmatpush1.msra.mxu0 0.0
    %6980 = vmatprep.subr.mxu0 0.0
    %6981 = vmatpush1.msra.mxu0 0.0
    %6982 = vmatprep.subr.mxu0 0.0
    %6983 = vmatpush1.msra.mxu0 0.0
    %6984 = vmatprep.subr.mxu0 0.0
    %6985 = vmatpush1.msra.mxu0 0.0
    %6986 = vmatprep.subr.mxu0 0.0
    %6987 = vmatpush1.msra.mxu0 0.0
    %6988 = vmatprep.subr.mxu0 0.0
    %6989 = vmatpush1.msra.mxu0 0.0
    %6990 = vmatprep.subr.mxu0 0.0
    %6991 = vmatpush1.msra.mxu0 0.0
    %6992 = vmatprep.subr.mxu0 0.0
    %6993 = vmatpush1.msra.mxu0 0.0
    %6994 = vmatprep.subr.mxu0 0.0
    %6995 = vmatpush1.msra.mxu0 0.0
    %6996 = vmatprep.subr.mxu0 0.0
    %6997 = vmatpush1.msra.mxu0 0.0
    %6998 = vmatprep.subr.mxu0 0.0
    %6999 = vmatpush1.msra.mxu0 0.0
    %7000 = vmatprep.subr.mxu0 0.0
    %7001 = vmatpush1.msra.mxu0 0.0
    %7002 = vmatprep.subr.mxu0 0.0
    %7003 = vmatpush1.msra.mxu0 0.0
    %7004 = vmatprep.subr.mxu0 0.0
    %7005 = vmatpush1.msra.mxu0 0.0
    %7006 = vmatprep.subr.mxu0 0.0
    %7007 = vmatpush1.msra.mxu0 0.0
    %7008 = vmatprep.subr.mxu0 0.0
    %7009 = vmatpush1.msra.mxu0 0.0
    %7010 = vmatprep.subr.mxu0 0.0
    %7011 = vmatpush1.msra.mxu0 0.0
    %7012 = vmatprep.subr.mxu0 0.0
    %7013 = vmatpush1.msra.mxu0 0.0
    %7014 = vmatprep.subr.mxu0 0.0
    %7015 = vmatpush1.msra.mxu0 0.0
    %7016 = vmatprep.subr.mxu0 0.0
    %7017 = vmatpush1.msra.mxu0 0.0
    %7018 = vmatprep.subr.mxu0 0.0
    %7019 = vmatpush1.msra.mxu0 0.0
    %7020 = vmatprep.subr.mxu0 0.0
    %7021 = vmatpush1.msra.mxu0 0.0
    %7022 = vmatprep.subr.mxu0 0.0
    %7023 = vmatpush1.msra.mxu0 0.0
    %7024 = vmatprep.subr.mxu0 0.0
    %7025 = vmatpush1.msra.mxu0 0.0
    %7026 = vmatprep.subr.mxu0 0.0
    %7027 = vmatpush1.msra.mxu0 0.0
    %7028 = vmatprep.subr.mxu0 0.0
    %7029 = vmatpush1.msra.mxu0 0.0
    %7030 = vmatprep.mubr.f32.mxu0 0.0
    %7031 = vmatmul.mubr.f32.gmra.mrb[0].mxu0 %v6964
    %v7032 = vpop.f32.mrb[0].mxu0
    %v7033 = vadd.f32 0.0, %v7032
    %v7034 = vpop.f32.mrb[0].mxu0
    %7035 = vdwg.mxu0
    %7036 = vrot.lane.b32.xlu0 %v5919, 64
    %v7037 = vpop.permute.xlu0 %7036
    %v7040 = vsel %vm6111, %v6959, 0
    %7042 = vmatprep.subr.mxu0 0.0
    %7043 = vmatpush1.msra.mxu0 %v7037
    %7044 = vmatprep.subr.mxu0 0.0
    %7045 = vmatpush1.msra.mxu0 0.0
    %7046 = vmatprep.subr.mxu0 0.0
    %7047 = vmatpush1.msra.mxu0 0.0
    %7048 = vmatprep.subr.mxu0 0.0
    %7049 = vmatpush1.msra.mxu0 0.0
    %7050 = vmatprep.subr.mxu0 0.0
    %7051 = vmatpush1.msra.mxu0 0.0
    %7052 = vmatprep.subr.mxu0 0.0
    %7053 = vmatpush1.msra.mxu0 0.0
    %7054 = vmatprep.subr.mxu0 0.0
    %7055 = vmatpush1.msra.mxu0 0.0
    %7056 = vmatprep.subr.mxu0 0.0
    %7057 = vmatpush1.msra.mxu0 0.0
    %7058 = vmatprep.subr.mxu0 0.0
    %7059 = vmatpush1.msra.mxu0 0.0
    %7060 = vmatprep.subr.mxu0 0.0
    %7061 = vmatpush1.msra.mxu0 0.0
    %7062 = vmatprep.subr.mxu0 0.0
    %7063 = vmatpush1.msra.mxu0 0.0
    %7064 = vmatprep.subr.mxu0 0.0
    %7065 = vmatpush1.msra.mxu0 0.0
    %7066 = vmatprep.subr.mxu0 0.0
    %7067 = vmatpush1.msra.mxu0 0.0
    %7068 = vmatprep.subr.mxu0 0.0
    %7069 = vmatpush1.msra.mxu0 0.0
    %7070 = vmatprep.subr.mxu0 0.0
    %7071 = vmatpush1.msra.mxu0 0.0
    %7072 = vmatprep.subr.mxu0 0.0
    %7073 = vmatpush1.msra.mxu0 0.0
    %7074 = vmatprep.subr.mxu0 0.0
    %7075 = vmatpush1.msra.mxu0 0.0
    %7076 = vmatprep.subr.mxu0 0.0
    %7077 = vmatpush1.msra.mxu0 0.0
    %7078 = vmatprep.subr.mxu0 0.0
    %7079 = vmatpush1.msra.mxu0 0.0
    %7080 = vmatprep.subr.mxu0 0.0
    %7081 = vmatpush1.msra.mxu0 0.0
    %7082 = vmatprep.subr.mxu0 0.0
    %7083 = vmatpush1.msra.mxu0 0.0
    %7084 = vmatprep.subr.mxu0 0.0
    %7085 = vmatpush1.msra.mxu0 0.0
    %7086 = vmatprep.subr.mxu0 0.0
    %7087 = vmatpush1.msra.mxu0 0.0
    %7088 = vmatprep.subr.mxu0 0.0
    %7089 = vmatpush1.msra.mxu0 0.0
    %7090 = vmatprep.subr.mxu0 0.0
    %7091 = vmatpush1.msra.mxu0 0.0
    %7092 = vmatprep.subr.mxu0 0.0
    %7093 = vmatpush1.msra.mxu0 0.0
    %7094 = vmatprep.subr.mxu0 0.0
    %7095 = vmatpush1.msra.mxu0 0.0
    %7096 = vmatprep.subr.mxu0 0.0
    %7097 = vmatpush1.msra.mxu0 0.0
    %7098 = vmatprep.subr.mxu0 0.0
    %7099 = vmatpush1.msra.mxu0 0.0
    %7100 = vmatprep.subr.mxu0 0.0
    %7101 = vmatpush1.msra.mxu0 0.0
    %7102 = vmatprep.subr.mxu0 0.0
    %7103 = vmatpush1.msra.mxu0 0.0
    %7104 = vmatprep.subr.mxu0 0.0
    %7105 = vmatpush1.msra.mxu0 0.0
    %7106 = vmatprep.mubr.f32.mxu0 0.0
    %7107 = vmatmul.mubr.f32.gmra.mrb[0].mxu0 %v7040
    %v7108 = vpop.f32.mrb[0].mxu0
    %v7109 = vadd.f32 0.0, %v7108
    %v7110 = vpop.f32.mrb[0].mxu0
    %7111 = vdwg.mxu0
    %v7113 = vsel %vm436, %v7033, 0
    %v7116 = vsel %vm436, %v7109, 0
    %7118 = vmatprep.subr.mxu0 0.0
    %7119 = vmatpush1.msra.mxu0 %v5676
    %7120 = vmatprep.subr.mxu0 0.0
    %7121 = vmatpush1.msra.mxu0 %v5677
    %7122 = vmatprep.subr.mxu0 0.0
    %7123 = vmatpush1.msra.mxu0 %v5678
    %7124 = vmatprep.subr.mxu0 0.0
    %7125 = vmatpush1.msra.mxu0 %v5679
    %7126 = vmatprep.subr.mxu0 0.0
    %7127 = vmatpush1.msra.mxu0 0.0
    %7128 = vmatprep.subr.mxu0 0.0
    %7129 = vmatpush1.msra.mxu0 0.0
    %7130 = vmatprep.subr.mxu0 0.0
    %7131 = vmatpush1.msra.mxu0 0.0
    %7132 = vmatprep.subr.mxu0 0.0
    %7133 = vmatpush1.msra.mxu0 0.0
    %7134 = vmatprep.subr.mxu0 0.0
    %7135 = vmatpush1.msra.mxu0 0.0
    %7136 = vmatprep.subr.mxu0 0.0
    %7137 = vmatpush1.msra.mxu0 0.0
    %7138 = vmatprep.subr.mxu0 0.0
    %7139 = vmatpush1.msra.mxu0 0.0
    %7140 = vmatprep.subr.mxu0 0.0
    %7141 = vmatpush1.msra.mxu0 0.0
    %7142 = vmatprep.subr.mxu0 0.0
    %7143 = vmatpush1.msra.mxu0 0.0
    %7144 = vmatprep.subr.mxu0 0.0
    %7145 = vmatpush1.msra.mxu0 0.0
    %7146 = vmatprep.subr.mxu0 0.0
    %7147 = vmatpush1.msra.mxu0 0.0
    %7148 = vmatprep.subr.mxu0 0.0
    %7149 = vmatpush1.msra.mxu0 0.0
    %7150 = vmatprep.subr.mxu0 0.0
    %7151 = vmatpush1.msra.mxu0 0.0
    %7152 = vmatprep.subr.mxu0 0.0
    %7153 = vmatpush1.msra.mxu0 0.0
    %7154 = vmatprep.subr.mxu0 0.0
    %7155 = vmatpush1.msra.mxu0 0.0
    %7156 = vmatprep.subr.mxu0 0.0
    %7157 = vmatpush1.msra.mxu0 0.0
    %7158 = vmatprep.subr.mxu0 0.0
    %7159 = vmatpush1.msra.mxu0 0.0
    %7160 = vmatprep.subr.mxu0 0.0
    %7161 = vmatpush1.msra.mxu0 0.0
    %7162 = vmatprep.subr.mxu0 0.0
    %7163 = vmatpush1.msra.mxu0 0.0
    %7164 = vmatprep.subr.mxu0 0.0
    %7165 = vmatpush1.msra.mxu0 0.0
    %7166 = vmatprep.subr.mxu0 0.0
    %7167 = vmatpush1.msra.mxu0 0.0
    %7168 = vmatprep.subr.mxu0 0.0
    %7169 = vmatpush1.msra.mxu0 0.0
    %7170 = vmatprep.subr.mxu0 0.0
    %7171 = vmatpush1.msra.mxu0 0.0
    %7172 = vmatprep.subr.mxu0 0.0
    %7173 = vmatpush1.msra.mxu0 0.0
    %7174 = vmatprep.subr.mxu0 0.0
    %7175 = vmatpush1.msra.mxu0 0.0
    %7176 = vmatprep.subr.mxu0 0.0
    %7177 = vmatpush1.msra.mxu0 0.0
    %7178 = vmatprep.subr.mxu0 0.0
    %7179 = vmatpush1.msra.mxu0 0.0
    %7180 = vmatprep.subr.mxu0 0.0
    %7181 = vmatpush1.msra.mxu0 0.0
    %7182 = vmatprep.mubr.f32.mxu0 0.0
    %7183 = vmatmul.mubr.f32.gmra.mrb[0].mxu0 %v7113
    %v7184 = vpop.f32.mrb[0].mxu0
    %v7185 = vadd.f32 0.0, %v7184
    %v7186 = vpop.f32.mrb[0].mxu0
    %7187 = vmatprep.mubr.f32.mxu0 0.0
    %7188 = vmatmul.mubr.f32.gmra.mrb[0].mxu0 %v7116
    %v7189 = vpop.f32.mrb[0].mxu0
    %v7190 = vadd.f32 0.0, %v7189
    %v7191 = vpop.f32.mrb[0].mxu0
    %7192 = vdwg.mxu0
    %v7193 = vadd.f32 %v6770, %v7185
    %v7194 = vadd.f32 %v6775, %v7190
    %7195 = vrot.lane.b32.xlu0 %v5837, 32
    %v7196 = vpop.permute.xlu0 %7195
    %7197 = vrot.lane.b32.xlu0 %v5839, 32
    %v7198 = vpop.permute.xlu0 %7197
    %v7199 = vsel %vm436, %v7196, 0
    %v7201 = vsel %vm436, %v7198, 0
    %7203 = vmatprep.subr.mxu0 0.0
    %7204 = vmatpush1.xpose.msra.mxu0 %v7201
    %7205 = vmatprep.subr.mxu0 0.0
    %7206 = vmatpush1.xpose.msra.mxu0 0.0
    %7207 = vmatprep.subr.mxu0 0.0
    %7208 = vmatpush1.xpose.msra.mxu0 0.0
    %7209 = vmatprep.subr.mxu0 0.0
    %7210 = vmatpush1.xpose.msra.mxu0 0.0
    %7211 = vmatprep.subr.mxu0 0.0
    %7212 = vmatpush1.xpose.msra.mxu0 0.0
    %7213 = vmatprep.subr.mxu0 0.0
    %7214 = vmatpush1.xpose.msra.mxu0 0.0
    %7215 = vmatprep.subr.mxu0 0.0
    %7216 = vmatpush1.xpose.msra.mxu0 0.0
    %7217 = vmatprep.subr.mxu0 0.0
    %7218 = vmatpush1.xpose.msra.mxu0 0.0
    %7219 = vmatprep.subr.mxu0 0.0
    %7220 = vmatpush1.xpose.msra.mxu0 0.0
    %7221 = vmatprep.subr.mxu0 0.0
    %7222 = vmatpush1.xpose.msra.mxu0 0.0
    %7223 = vmatprep.subr.mxu0 0.0
    %7224 = vmatpush1.xpose.msra.mxu0 0.0
    %7225 = vmatprep.subr.mxu0 0.0
    %7226 = vmatpush1.xpose.msra.mxu0 0.0
    %7227 = vmatprep.subr.mxu0 0.0
    %7228 = vmatpush1.xpose.msra.mxu0 0.0
    %7229 = vmatprep.subr.mxu0 0.0
    %7230 = vmatpush1.xpose.msra.mxu0 0.0
    %7231 = vmatprep.subr.mxu0 0.0
    %7232 = vmatpush1.xpose.msra.mxu0 0.0
    %7233 = vmatprep.subr.mxu0 0.0
    %7234 = vmatpush1.xpose.msra.mxu0 0.0
    %7235 = vmatprep.subr.mxu0 0.0
    %7236 = vmatpush1.xpose.msra.mxu0 0.0
    %7237 = vmatprep.subr.mxu0 0.0
    %7238 = vmatpush1.xpose.msra.mxu0 0.0
    %7239 = vmatprep.subr.mxu0 0.0
    %7240 = vmatpush1.xpose.msra.mxu0 0.0
    %7241 = vmatprep.subr.mxu0 0.0
    %7242 = vmatpush1.xpose.msra.mxu0 0.0
    %7243 = vmatprep.subr.mxu0 0.0
    %7244 = vmatpush1.xpose.msra.mxu0 0.0
    %7245 = vmatprep.subr.mxu0 0.0
    %7246 = vmatpush1.xpose.msra.mxu0 0.0
    %7247 = vmatprep.subr.mxu0 0.0
    %7248 = vmatpush1.xpose.msra.mxu0 0.0
    %7249 = vmatprep.subr.mxu0 0.0
    %7250 = vmatpush1.xpose.msra.mxu0 0.0
    %7251 = vmatprep.subr.mxu0 0.0
    %7252 = vmatpush1.xpose.msra.mxu0 0.0
    %7253 = vmatprep.subr.mxu0 0.0
    %7254 = vmatpush1.xpose.msra.mxu0 0.0
    %7255 = vmatprep.subr.mxu0 0.0
    %7256 = vmatpush1.xpose.msra.mxu0 0.0
    %7257 = vmatprep.subr.mxu0 0.0
    %7258 = vmatpush1.xpose.msra.mxu0 0.0
    %7259 = vmatprep.subr.mxu0 0.0
    %7260 = vmatpush1.xpose.msra.mxu0 0.0
    %7261 = vmatprep.subr.mxu0 0.0
    %7262 = vmatpush1.xpose.msra.mxu0 0.0
    %7263 = vmatprep.subr.mxu0 0.0
    %7264 = vmatpush1.xpose.msra.mxu0 0.0
    %7265 = vmatprep.subr.mxu0 0.0
    %7266 = vmatpush1.xpose.msra.mxu0 0.0
    %7267 = vmatprep.mubr.f32.mxu0 0.0
    %7268 = vmatmul.mubr.f32.gmra.mrb[0].mxu0 %v7199
    %v7269 = vpop.f32.mrb[0].mxu0
    %v7270 = vadd.f32 0.0, %v7269
    %v7271 = vpop.f32.mrb[0].mxu0
    %7272 = vdwg.mxu0
    %7273 = vrot.lane.b32.xlu0 %v5843, 32
    %v7274 = vpop.permute.xlu0 %7273
    %7275 = vrot.lane.b32.xlu0 %v5845, 32
    %v7276 = vpop.permute.xlu0 %7275
    %v7277 = vsel %vm436, %v7274, 0
    %v7279 = vsel %vm436, %v7276, 0
    %7281 = vmatprep.subr.mxu0 0.0
    %7282 = vmatpush1.xpose.msra.mxu0 %v7279
    %7283 = vmatprep.subr.mxu0 0.0
    %7284 = vmatpush1.xpose.msra.mxu0 0.0
    %7285 = vmatprep.subr.mxu0 0.0
    %7286 = vmatpush1.xpose.msra.mxu0 0.0
    %7287 = vmatprep.subr.mxu0 0.0
    %7288 = vmatpush1.xpose.msra.mxu0 0.0
    %7289 = vmatprep.subr.mxu0 0.0
    %7290 = vmatpush1.xpose.msra.mxu0 0.0
    %7291 = vmatprep.subr.mxu0 0.0
    %7292 = vmatpush1.xpose.msra.mxu0 0.0
    %7293 = vmatprep.subr.mxu0 0.0
    %7294 = vmatpush1.xpose.msra.mxu0 0.0
    %7295 = vmatprep.subr.mxu0 0.0
    %7296 = vmatpush1.xpose.msra.mxu0 0.0
    %7297 = vmatprep.subr.mxu0 0.0
    %7298 = vmatpush1.xpose.msra.mxu0 0.0
    %7299 = vmatprep.subr.mxu0 0.0
    %7300 = vmatpush1.xpose.msra.mxu0 0.0
    %7301 = vmatprep.subr.mxu0 0.0
    %7302 = vmatpush1.xpose.msra.mxu0 0.0
    %7303 = vmatprep.subr.mxu0 0.0
    %7304 = vmatpush1.xpose.msra.mxu0 0.0
    %7305 = vmatprep.subr.mxu0 0.0
    %7306 = vmatpush1.xpose.msra.mxu0 0.0
    %7307 = vmatprep.subr.mxu0 0.0
    %7308 = vmatpush1.xpose.msra.mxu0 0.0
    %7309 = vmatprep.subr.mxu0 0.0
    %7310 = vmatpush1.xpose.msra.mxu0 0.0
    %7311 = vmatprep.subr.mxu0 0.0
    %7312 = vmatpush1.xpose.msra.mxu0 0.0
    %7313 = vmatprep.subr.mxu0 0.0
    %7314 = vmatpush1.xpose.msra.mxu0 0.0
    %7315 = vmatprep.subr.mxu0 0.0
    %7316 = vmatpush1.xpose.msra.mxu0 0.0
    %7317 = vmatprep.subr.mxu0 0.0
    %7318 = vmatpush1.xpose.msra.mxu0 0.0
    %7319 = vmatprep.subr.mxu0 0.0
    %7320 = vmatpush1.xpose.msra.mxu0 0.0
    %7321 = vmatprep.subr.mxu0 0.0
    %7322 = vmatpush1.xpose.msra.mxu0 0.0
    %7323 = vmatprep.subr.mxu0 0.0
    %7324 = vmatpush1.xpose.msra.mxu0 0.0
    %7325 = vmatprep.subr.mxu0 0.0
    %7326 = vmatpush1.xpose.msra.mxu0 0.0
    %7327 = vmatprep.subr.mxu0 0.0
    %7328 = vmatpush1.xpose.msra.mxu0 0.0
    %7329 = vmatprep.subr.mxu0 0.0
    %7330 = vmatpush1.xpose.msra.mxu0 0.0
    %7331 = vmatprep.subr.mxu0 0.0
    %7332 = vmatpush1.xpose.msra.mxu0 0.0
    %7333 = vmatprep.subr.mxu0 0.0
    %7334 = vmatpush1.xpose.msra.mxu0 0.0
    %7335 = vmatprep.subr.mxu0 0.0
    %7336 = vmatpush1.xpose.msra.mxu0 0.0
    %7337 = vmatprep.subr.mxu0 0.0
    %7338 = vmatpush1.xpose.msra.mxu0 0.0
    %7339 = vmatprep.subr.mxu0 0.0
    %7340 = vmatpush1.xpose.msra.mxu0 0.0
    %7341 = vmatprep.subr.mxu0 0.0
    %7342 = vmatpush1.xpose.msra.mxu0 0.0
    %7343 = vmatprep.subr.mxu0 0.0
    %7344 = vmatpush1.xpose.msra.mxu0 0.0
    %7345 = vmatprep.mubr.f32.mxu0 0.0
    %7346 = vmatmul.mubr.f32.gmra.mrb[0].mxu0 %v7277
    %v7347 = vpop.f32.mrb[0].mxu0
    %v7348 = vadd.f32 0.0, %v7347
    %v7349 = vpop.f32.mrb[0].mxu0
    %7350 = vdwg.mxu0
    %v7351 = vmul.f32 %v7270, 0.17677669
    %v7352 = vmul.f32 %v7348, 0.17677669
    %v7353 = vadd.f32 %v7351, %v6102
    %v7354 = vadd.f32 %v7352, %v6106
    %v7355 = vsel %vm6111, %v7353, -inf
    %7356 = vmax.xlane.f32.xlu0 %v7355
    %v7357 = vpop.xlane.xlu0 %7356
    %v7358 = vsel %vm6111, %v7354, -inf
    %7359 = vmax.xlane.f32.xlu0 %v7358
    %v7360 = vpop.xlane.xlu0 %7359
    %v7361 = vsub.f32 %v7353, %v7357
    %v7362 = vsub.f32 %v7354, %v7360
    %v7363 = vmul.f32 %v7361, 1.442695
    %v7364 = vpow.pop %v7363
    %v7365 = vmul.f32 %v7362, 1.442695
    %v7366 = vpow.pop %v7365
    %v7367 = vsel %vm6111, %v7364, 0.0
    %7368 = vadd.xlane.f32.xlu0 %v7367
    %v7369 = vpop.xlane.xlu0 %7368
    %v7370 = vsel %vm6111, %v7366, 0.0
    %7371 = vadd.xlane.f32.xlu0 %v7370
    %v7372 = vpop.xlane.xlu0 %7371
    %v7373 = vrcp.pop %v7369
    %v7374 = vrcp.pop %v7372
    %v7375 = vmul.f32 %v7364, %v7373
    %v7376 = vmul.f32 %v7366, %v7374
    %7377 = vrot.lane.b32.xlu0 %v5914, 32
    %v7378 = vpop.permute.xlu0 %7377
    %v7381 = vsel %vm6111, %v7375, 0
    %7383 = vmatprep.subr.mxu0 0.0
    %7384 = vmatpush1.msra.mxu0 %v7378
    %7385 = vmatprep.subr.mxu0 0.0
    %7386 = vmatpush1.msra.mxu0 0.0
    %7387 = vmatprep.subr.mxu0 0.0
    %7388 = vmatpush1.msra.mxu0 0.0
    %7389 = vmatprep.subr.mxu0 0.0
    %7390 = vmatpush1.msra.mxu0 0.0
    %7391 = vmatprep.subr.mxu0 0.0
    %7392 = vmatpush1.msra.mxu0 0.0
    %7393 = vmatprep.subr.mxu0 0.0
    %7394 = vmatpush1.msra.mxu0 0.0
    %7395 = vmatprep.subr.mxu0 0.0
    %7396 = vmatpush1.msra.mxu0 0.0
    %7397 = vmatprep.subr.mxu0 0.0
    %7398 = vmatpush1.msra.mxu0 0.0
    %7399 = vmatprep.subr.mxu0 0.0
    %7400 = vmatpush1.msra.mxu0 0.0
    %7401 = vmatprep.subr.mxu0 0.0
    %7402 = vmatpush1.msra.mxu0 0.0
    %7403 = vmatprep.subr.mxu0 0.0
    %7404 = vmatpush1.msra.mxu0 0.0
    %7405 = vmatprep.subr.mxu0 0.0
    %7406 = vmatpush1.msra.mxu0 0.0
    %7407 = vmatprep.subr.mxu0 0.0
    %7408 = vmatpush1.msra.mxu0 0.0
    %7409 = vmatprep.subr.mxu0 0.0
    %7410 = vmatpush1.msra.mxu0 0.0
    %7411 = vmatprep.subr.mxu0 0.0
    %7412 = vmatpush1.msra.mxu0 0.0
    %7413 = vmatprep.subr.mxu0 0.0
    %7414 = vmatpush1.msra.mxu0 0.0
    %7415 = vmatprep.subr.mxu0 0.0
    %7416 = vmatpush1.msra.mxu0 0.0
    %7417 = vmatprep.subr.mxu0 0.0
    %7418 = vmatpush1.msra.mxu0 0.0
    %7419 = vmatprep.subr.mxu0 0.0
    %7420 = vmatpush1.msra.mxu0 0.0
    %7421 = vmatprep.subr.mxu0 0.0
    %7422 = vmatpush1.msra.mxu0 0.0
    %7423 = vmatprep.subr.mxu0 0.0
    %7424 = vmatpush1.msra.mxu0 0.0
    %7425 = vmatprep.subr.mxu0 0.0
    %7426 = vmatpush1.msra.mxu0 0.0
    %7427 = vmatprep.subr.mxu0 0.0
    %7428 = vmatpush1.msra.mxu0 0.0
    %7429 = vmatprep.subr.mxu0 0.0
    %7430 = vmatpush1.msra.mxu0 0.0
    %7431 = vmatprep.subr.mxu0 0.0
    %7432 = vmatpush1.msra.mxu0 0.0
    %7433 = vmatprep.subr.mxu0 0.0
    %7434 = vmatpush1.msra.mxu0 0.0
    %7435 = vmatprep.subr.mxu0 0.0
    %7436 = vmatpush1.msra.mxu0 0.0
    %7437 = vmatprep.subr.mxu0 0.0
    %7438 = vmatpush1.msra.mxu0 0.0
    %7439 = vmatprep.subr.mxu0 0.0
    %7440 = vmatpush1.msra.mxu0 0.0
    %7441 = vmatprep.subr.mxu0 0.0
    %7442 = vmatpush1.msra.mxu0 0.0
    %7443 = vmatprep.subr.mxu0 0.0
    %7444 = vmatpush1.msra.mxu0 0.0
    %7445 = vmatprep.subr.mxu0 0.0
    %7446 = vmatpush1.msra.mxu0 0.0
    %7447 = vmatprep.mubr.f32.mxu0 0.0
    %7448 = vmatmul.mubr.f32.gmra.mrb[0].mxu0 %v7381
    %v7449 = vpop.f32.mrb[0].mxu0
    %v7450 = vadd.f32 0.0, %v7449
    %v7451 = vpop.f32.mrb[0].mxu0
    %7452 = vdwg.mxu0
    %7453 = vrot.lane.b32.xlu0 %v5919, 32
    %v7454 = vpop.permute.xlu0 %7453
    %v7457 = vsel %vm6111, %v7376, 0
    %7459 = vmatprep.subr.mxu0 0.0
    %7460 = vmatpush1.msra.mxu0 %v7454
    %7461 = vmatprep.subr.mxu0 0.0
    %7462 = vmatpush1.msra.mxu0 0.0
    %7463 = vmatprep.subr.mxu0 0.0
    %7464 = vmatpush1.msra.mxu0 0.0
    %7465 = vmatprep.subr.mxu0 0.0
    %7466 = vmatpush1.msra.mxu0 0.0
    %7467 = vmatprep.subr.mxu0 0.0
    %7468 = vmatpush1.msra.mxu0 0.0
    %7469 = vmatprep.subr.mxu0 0.0
    %7470 = vmatpush1.msra.mxu0 0.0
    %7471 = vmatprep.subr.mxu0 0.0
    %7472 = vmatpush1.msra.mxu0 0.0
    %7473 = vmatprep.subr.mxu0 0.0
    %7474 = vmatpush1.msra.mxu0 0.0
    %7475 = vmatprep.subr.mxu0 0.0
    %7476 = vmatpush1.msra.mxu0 0.0
    %7477 = vmatprep.subr.mxu0 0.0
    %7478 = vmatpush1.msra.mxu0 0.0
    %7479 = vmatprep.subr.mxu0 0.0
    %7480 = vmatpush1.msra.mxu0 0.0
    %7481 = vmatprep.subr.mxu0 0.0
    %7482 = vmatpush1.msra.mxu0 0.0
    %7483 = vmatprep.subr.mxu0 0.0
    %7484 = vmatpush1.msra.mxu0 0.0
    %7485 = vmatprep.subr.mxu0 0.0
    %7486 = vmatpush1.msra.mxu0 0.0
    %7487 = vmatprep.subr.mxu0 0.0
    %7488 = vmatpush1.msra.mxu0 0.0
    %7489 = vmatprep.subr.mxu0 0.0
    %7490 = vmatpush1.msra.mxu0 0.0
    %7491 = vmatprep.subr.mxu0 0.0
    %7492 = vmatpush1.msra.mxu0 0.0
    %7493 = vmatprep.subr.mxu0 0.0
    %7494 = vmatpush1.msra.mxu0 0.0
    %7495 = vmatprep.subr.mxu0 0.0
    %7496 = vmatpush1.msra.mxu0 0.0
    %7497 = vmatprep.subr.mxu0 0.0
    %7498 = vmatpush1.msra.mxu0 0.0
    %7499 = vmatprep.subr.mxu0 0.0
    %7500 = vmatpush1.msra.mxu0 0.0
    %7501 = vmatprep.subr.mxu0 0.0
    %7502 = vmatpush1.msra.mxu0 0.0
    %7503 = vmatprep.subr.mxu0 0.0
    %7504 = vmatpush1.msra.mxu0 0.0
    %7505 = vmatprep.subr.mxu0 0.0
    %7506 = vmatpush1.msra.mxu0 0.0
    %7507 = vmatprep.subr.mxu0 0.0
    %7508 = vmatpush1.msra.mxu0 0.0
    %7509 = vmatprep.subr.mxu0 0.0
    %7510 = vmatpush1.msra.mxu0 0.0
    %7511 = vmatprep.subr.mxu0 0.0
    %7512 = vmatpush1.msra.mxu0 0.0
    %7513 = vmatprep.subr.mxu0 0.0
    %7514 = vmatpush1.msra.mxu0 0.0
    %7515 = vmatprep.subr.mxu0 0.0
    %7516 = vmatpush1.msra.mxu0 0.0
    %7517 = vmatprep.subr.mxu0 0.0
    %7518 = vmatpush1.msra.mxu0 0.0
    %7519 = vmatprep.subr.mxu0 0.0
    %7520 = vmatpush1.msra.mxu0 0.0
    %7521 = vmatprep.subr.mxu0 0.0
    %7522 = vmatpush1.msra.mxu0 0.0
    %7523 = vmatprep.mubr.f32.mxu0 0.0
    %7524 = vmatmul.mubr.f32.gmra.mrb[0].mxu0 %v7457
    %v7525 = vpop.f32.mrb[0].mxu0
    %v7526 = vadd.f32 0.0, %v7525
    %v7527 = vpop.f32.mrb[0].mxu0
    %7528 = vdwg.mxu0
    %v7530 = vsel %vm436, %v7450, 0
    %v7533 = vsel %vm436, %v7526, 0
    %7535 = vmatprep.subr.mxu0 0.0
    %7536 = vmatpush1.msra.mxu0 %v5680
    %7537 = vmatprep.subr.mxu0 0.0
    %7538 = vmatpush1.msra.mxu0 %v5681
    %7539 = vmatprep.subr.mxu0 0.0
    %7540 = vmatpush1.msra.mxu0 %v5682
    %7541 = vmatprep.subr.mxu0 0.0
    %7542 = vmatpush1.msra.mxu0 %v5683
    %7543 = vmatprep.subr.mxu0 0.0
    %7544 = vmatpush1.msra.mxu0 0.0
    %7545 = vmatprep.subr.mxu0 0.0
    %7546 = vmatpush1.msra.mxu0 0.0
    %7547 = vmatprep.subr.mxu0 0.0
    %7548 = vmatpush1.msra.mxu0 0.0
    %7549 = vmatprep.subr.mxu0 0.0
    %7550 = vmatpush1.msra.mxu0 0.0
    %7551 = vmatprep.subr.mxu0 0.0
    %7552 = vmatpush1.msra.mxu0 0.0
    %7553 = vmatprep.subr.mxu0 0.0
    %7554 = vmatpush1.msra.mxu0 0.0
    %7555 = vmatprep.subr.mxu0 0.0
    %7556 = vmatpush1.msra.mxu0 0.0
    %7557 = vmatprep.subr.mxu0 0.0
    %7558 = vmatpush1.msra.mxu0 0.0
    %7559 = vmatprep.subr.mxu0 0.0
    %7560 = vmatpush1.msra.mxu0 0.0
    %7561 = vmatprep.subr.mxu0 0.0
    %7562 = vmatpush1.msra.mxu0 0.0
    %7563 = vmatprep.subr.mxu0 0.0
    %7564 = vmatpush1.msra.mxu0 0.0
    %7565 = vmatprep.subr.mxu0 0.0
    %7566 = vmatpush1.msra.mxu0 0.0
    %7567 = vmatprep.subr.mxu0 0.0
    %7568 = vmatpush1.msra.mxu0 0.0
    %7569 = vmatprep.subr.mxu0 0.0
    %7570 = vmatpush1.msra.mxu0 0.0
    %7571 = vmatprep.subr.mxu0 0.0
    %7572 = vmatpush1.msra.mxu0 0.0
    %7573 = vmatprep.subr.mxu0 0.0
    %7574 = vmatpush1.msra.mxu0 0.0
    %7575 = vmatprep.subr.mxu0 0.0
    %7576 = vmatpush1.msra.mxu0 0.0
    %7577 = vmatprep.subr.mxu0 0.0
    %7578 = vmatpush1.msra.mxu0 0.0
    %7579 = vmatprep.subr.mxu0 0.0
    %7580 = vmatpush1.msra.mxu0 0.0
    %7581 = vmatprep.subr.mxu0 0.0
    %7582 = vmatpush1.msra.mxu0 0.0
    %7583 = vmatprep.subr.mxu0 0.0
    %7584 = vmatpush1.msra.mxu0 0.0
    %7585 = vmatprep.subr.mxu0 0.0
    %7586 = vmatpush1.msra.mxu0 0.0
    %7587 = vmatprep.subr.mxu0 0.0
    %7588 = vmatpush1.msra.mxu0 0.0
    %7589 = vmatprep.subr.mxu0 0.0
    %7590 = vmatpush1.msra.mxu0 0.0
    %7591 = vmatprep.subr.mxu0 0.0
    %7592 = vmatpush1.msra.mxu0 0.0
    %7593 = vmatprep.subr.mxu0 0.0
    %7594 = vmatpush1.msra.mxu0 0.0
    %7595 = vmatprep.subr.mxu0 0.0
    %7596 = vmatpush1.msra.mxu0 0.0
    %7597 = vmatprep.subr.mxu0 0.0
    %7598 = vmatpush1.msra.mxu0 0.0
    %7599 = vmatprep.mubr.f32.mxu0 0.0
    %7600 = vmatmul.mubr.f32.gmra.mrb[0].mxu0 %v7530
    %v7601 = vpop.f32.mrb[0].mxu0
    %v7602 = vadd.f32 0.0, %v7601
    %v7603 = vpop.f32.mrb[0].mxu0
    %7604 = vmatprep.mubr.f32.mxu0 0.0
    %7605 = vmatmul.mubr.f32.gmra.mrb[0].mxu0 %v7533
    %v7606 = vpop.f32.mrb[0].mxu0
    %v7607 = vadd.f32 0.0, %v7606
    %v7608 = vpop.f32.mrb[0].mxu0
    %7609 = vdwg.mxu0
    %v7610 = vadd.f32 %v7193, %v7602
    %v7611 = vadd.f32 %v7194, %v7607
    %v7612 = vlaneseq
    %v7613 = vshrl.u32 %v7612, 7
    %v7614 = vsub.s32 0, %v7613
    %v7615 = vrot.slane %v5753, %v7614
    %v7616 = vadd.f32 %v7610, %v7615
    %v7617 = vadd.f32 %v7611, %v7615
    %v7618 = vadd.f32 %v5539, %v7616
    %v7619 = vadd.f32 %v5612, %v7617
    %7620 = vadd.xlane.f32.xlu0 %v7618
    %v7621 = vpop.xlane.xlu0 %7620
    %7622 = vadd.xlane.f32.xlu0 %v7619
    %v7623 = vpop.xlane.xlu0 %7622
    %v7624 = vmul.f32 %v7621, %v2480
    %v7625 = vmul.f32 %v7623, %v2480
    %v7626 = vsub.f32 %v7618, %v7624
    %v7627 = vsub.f32 %v7619, %v7625
    %v7628 = vmul.f32 %v7626, %v7626
    %v7629 = vmul.f32 %v7627, %v7627
    %7630 = vadd.xlane.f32.xlu0 %v7628
    %v7631 = vpop.xlane.xlu0 %7630
    %7632 = vadd.xlane.f32.xlu0 %v7629
    %v7633 = vpop.xlane.xlu0 %7632
    %v7634 = vmul.f32 %v7631, %v2480
    %v7635 = vmul.f32 %v7633, %v2480
    %v7636 = vadd.f32 %v7634, 1e-05
    %v7637 = vadd.f32 %v7635, 1e-05
    %v7638 = vrsqrt.pop %v7636
    %v7639 = vrsqrt.pop %v7637
    %v7640 = vmul.f32 %v7626, %v7638
    %v7641 = vmul.f32 %v7627, %v7639
    %v7642 = vlaneseq
    %v7643 = vshrl.u32 %v7642, 7
    %v7644 = vsub.s32 1, %v7643
    %v7645 = vrot.slane %v5753, %v7644
    %v7646 = vmul.f32 %v7640, %v7645
    %v7647 = vmul.f32 %v7641, %v7645
    %v7648 = vlaneseq
    %v7649 = vshrl.u32 %v7648, 7
    %v7650 = vsub.s32 2, %v7649
    %v7651 = vrot.slane %v5753, %v7650
    %v7652 = vadd.f32 %v7646, %v7651
    %v7653 = vadd.f32 %v7647, %v7651
    %v7655 = vlaneseq
    %v7656 = vshrl.u32 %v7655, 7
    %v7657 = vsub.s32 0, %v7656
    %v7658 = vrot.slane %v5718, %v7657
    %v7659 = vlaneseq
    %v7660 = vshrl.u32 %v7659, 7
    %v7661 = vsub.s32 1, %v7660
    %v7662 = vrot.slane %v5718, %v7661
    %7665 = vmatprep.subr.mxu0 %v5686
    %7666 = vmatpush1.msra.mxu0 %v5685
    %7667 = vmatprep.subr.mxu0 %v5688
    %7668 = vmatpush1.msra.mxu0 %v5687
    %7669 = vmatprep.subr.mxu0 %v5690
    %7670 = vmatpush1.msra.mxu0 %v5689
    %7671 = vmatprep.subr.mxu0 %v5692
    %7672 = vmatpush1.msra.mxu0 %v5691
    %7673 = vmatprep.subr.mxu0 %v5694
    %7674 = vmatpush1.msra.mxu0 %v5693
    %7675 = vmatprep.subr.mxu0 %v5696
    %7676 = vmatpush1.msra.mxu0 %v5695
    %7677 = vmatprep.subr.mxu0 %v5698
    %7678 = vmatpush1.msra.mxu0 %v5697
    %7679 = vmatprep.subr.mxu0 %v5700
    %7680 = vmatpush1.msra.mxu0 %v5699
    %7681 = vmatprep.subr.mxu0 %v5702
    %7682 = vmatpush1.msra.mxu0 %v5701
    %7683 = vmatprep.subr.mxu0 %v5704
    %7684 = vmatpush1.msra.mxu0 %v5703
    %7685 = vmatprep.subr.mxu0 %v5706
    %7686 = vmatpush1.msra.mxu0 %v5705
    %7687 = vmatprep.subr.mxu0 %v5708
    %7688 = vmatpush1.msra.mxu0 %v5707
    %7689 = vmatprep.subr.mxu0 %v5710
    %7690 = vmatpush1.msra.mxu0 %v5709
    %7691 = vmatprep.subr.mxu0 %v5712
    %7692 = vmatpush1.msra.mxu0 %v5711
    %7693 = vmatprep.subr.mxu0 %v5714
    %7694 = vmatpush1.msra.mxu0 %v5713
    %7695 = vmatprep.subr.mxu0 %v5716
    %7696 = vmatpush1.msra.mxu0 %v5715
    %7697 = vmatprep.subr.mxu0 0.0
    %7698 = vmatpush1.msra.mxu0 0.0
    %7699 = vmatprep.subr.mxu0 0.0
    %7700 = vmatpush1.msra.mxu0 0.0
    %7701 = vmatprep.subr.mxu0 0.0
    %7702 = vmatpush1.msra.mxu0 0.0
    %7703 = vmatprep.subr.mxu0 0.0
    %7704 = vmatpush1.msra.mxu0 0.0
    %7705 = vmatprep.subr.mxu0 0.0
    %7706 = vmatpush1.msra.mxu0 0.0
    %7707 = vmatprep.subr.mxu0 0.0
    %7708 = vmatpush1.msra.mxu0 0.0
    %7709 = vmatprep.subr.mxu0 0.0
    %7710 = vmatpush1.msra.mxu0 0.0
    %7711 = vmatprep.subr.mxu0 0.0
    %7712 = vmatpush1.msra.mxu0 0.0
    %7713 = vmatprep.subr.mxu0 0.0
    %7714 = vmatpush1.msra.mxu0 0.0
    %7715 = vmatprep.subr.mxu0 0.0
    %7716 = vmatpush1.msra.mxu0 0.0
    %7717 = vmatprep.subr.mxu0 0.0
    %7718 = vmatpush1.msra.mxu0 0.0
    %7719 = vmatprep.subr.mxu0 0.0
    %7720 = vmatpush1.msra.mxu0 0.0
    %7721 = vmatprep.subr.mxu0 0.0
    %7722 = vmatpush1.msra.mxu0 0.0
    %7723 = vmatprep.subr.mxu0 0.0
    %7724 = vmatpush1.msra.mxu0 0.0
    %7725 = vmatprep.subr.mxu0 0.0
    %7726 = vmatpush1.msra.mxu0 0.0
    %7727 = vmatprep.subr.mxu0 0.0
    %7728 = vmatpush1.msra.mxu0 0.0
    %7729 = vmatprep.mubr.f32.mxu0 0.0
    %7730 = vmatmul.mubr.f32.gmra.mrb[0].mxu0 %v7652
    %v7731 = vpop.f32.mrb[0].mxu0
    %v7732 = vadd.f32 %v7658, %v7731
    %v7733 = vpop.f32.mrb[0].mxu0
    %v7734 = vadd.f32 %v7662, %v7733
    %7735 = vmatprep.mubr.f32.mxu0 0.0
    %7736 = vmatmul.mubr.f32.gmra.mrb[0].mxu0 %v7653
    %v7737 = vpop.f32.mrb[0].mxu0
    %v7738 = vadd.f32 %v7658, %v7737
    %v7739 = vpop.f32.mrb[0].mxu0
    %v7740 = vadd.f32 %v7662, %v7739
    %7741 = vdwg.mxu0
    %v7742 = vmax.f32 %v7732, 0.0
    %v7743 = vmax.f32 %v7734, 0.0
    %v7744 = vmax.f32 %v7738, 0.0
    %v7745 = vmax.f32 %v7740, 0.0
    %v7746 = vlaneseq
    %v7747 = vshrl.u32 %v7746, 7
    %v7748 = vsub.s32 3, %v7747
    %v7749 = vrot.slane %v5753, %v7748
    %7750 = vmatprep.subr.mxu0 0.0
    %7751 = vmatpush1.msra.mxu0 %v5720
    %7752 = vmatprep.subr.mxu0 0.0
    %7753 = vmatpush1.msra.mxu0 %v5721
    %7754 = vmatprep.subr.mxu0 0.0
    %7755 = vmatpush1.msra.mxu0 %v5722
    %7756 = vmatprep.subr.mxu0 0.0
    %7757 = vmatpush1.msra.mxu0 %v5723
    %7758 = vmatprep.subr.mxu0 0.0
    %7759 = vmatpush1.msra.mxu0 %v5724
    %7760 = vmatprep.subr.mxu0 0.0
    %7761 = vmatpush1.msra.mxu0 %v5725
    %7762 = vmatprep.subr.mxu0 0.0
    %7763 = vmatpush1.msra.mxu0 %v5726
    %7764 = vmatprep.subr.mxu0 0.0
    %7765 = vmatpush1.msra.mxu0 %v5727
    %7766 = vmatprep.subr.mxu0 0.0
    %7767 = vmatpush1.msra.mxu0 %v5728
    %7768 = vmatprep.subr.mxu0 0.0
    %7769 = vmatpush1.msra.mxu0 %v5729
    %7770 = vmatprep.subr.mxu0 0.0
    %7771 = vmatpush1.msra.mxu0 %v5730
    %7772 = vmatprep.subr.mxu0 0.0
    %7773 = vmatpush1.msra.mxu0 %v5731
    %7774 = vmatprep.subr.mxu0 0.0
    %7775 = vmatpush1.msra.mxu0 %v5732
    %7776 = vmatprep.subr.mxu0 0.0
    %7777 = vmatpush1.msra.mxu0 %v5733
    %7778 = vmatprep.subr.mxu0 0.0
    %7779 = vmatpush1.msra.mxu0 %v5734
    %7780 = vmatprep.subr.mxu0 0.0
    %7781 = vmatpush1.msra.mxu0 %v5735
    %7782 = vmatprep.subr.mxu0 0.0
    %7783 = vmatpush1.msra.mxu0 %v5736
    %7784 = vmatprep.subr.mxu0 0.0
    %7785 = vmatpush1.msra.mxu0 %v5737
    %7786 = vmatprep.subr.mxu0 0.0
    %7787 = vmatpush1.msra.mxu0 %v5738
    %7788 = vmatprep.subr.mxu0 0.0
    %7789 = vmatpush1.msra.mxu0 %v5739
    %7790 = vmatprep.subr.mxu0 0.0
    %7791 = vmatpush1.msra.mxu0 %v5740
    %7792 = vmatprep.subr.mxu0 0.0
    %7793 = vmatpush1.msra.mxu0 %v5741
    %7794 = vmatprep.subr.mxu0 0.0
    %7795 = vmatpush1.msra.mxu0 %v5742
    %7796 = vmatprep.subr.mxu0 0.0
    %7797 = vmatpush1.msra.mxu0 %v5743
    %7798 = vmatprep.subr.mxu0 0.0
    %7799 = vmatpush1.msra.mxu0 %v5744
    %7800 = vmatprep.subr.mxu0 0.0
    %7801 = vmatpush1.msra.mxu0 %v5745
    %7802 = vmatprep.subr.mxu0 0.0
    %7803 = vmatpush1.msra.mxu0 %v5746
    %7804 = vmatprep.subr.mxu0 0.0
    %7805 = vmatpush1.msra.mxu0 %v5747
    %7806 = vmatprep.subr.mxu0 0.0
    %7807 = vmatpush1.msra.mxu0 %v5748
    %7808 = vmatprep.subr.mxu0 0.0
    %7809 = vmatpush1.msra.mxu0 %v5749
    %7810 = vmatprep.subr.mxu0 0.0
    %7811 = vmatpush1.msra.mxu0 %v5750
    %7812 = vmatprep.subr.mxu0 0.0
    %7813 = vmatpush1.msra.mxu0 %v5751
    %7814 = vmatprep.mubr.f32.mxu0 %v7743
    %7815 = vmatmul.mubr.f32.gmra.mrb[0].mxu0 %v7742
    %v7816 = vpop.f32.mrb[0].mxu0
    %v7817 = vadd.f32 %v7749, %v7816
    %v7818 = vpop.f32.mrb[0].mxu0
    %7819 = vmatprep.mubr.f32.mxu0 %v7745
    %7820 = vmatmul.mubr.f32.gmra.mrb[0].mxu0 %v7744
    %v7821 = vpop.f32.mrb[0].mxu0
    %v7822 = vadd.f32 %v7749, %v7821
    %v7823 = vpop.f32.mrb[0].mxu0
    %7824 = vdwg.mxu0
    %v7825 = vadd.f32 %v7652, %v7817
    %v7826 = vadd.f32 %v7653, %v7822
    %7827 = vadd.xlane.f32.xlu0 %v7825
    %v7828 = vpop.xlane.xlu0 %7827
    %7829 = vadd.xlane.f32.xlu0 %v7826
    %v7830 = vpop.xlane.xlu0 %7829
    %v7831 = vmul.f32 %v7828, %v2480
    %v7832 = vmul.f32 %v7830, %v2480
    %v7833 = vsub.f32 %v7825, %v7831
    %v7834 = vsub.f32 %v7826, %v7832
    %v7835 = vmul.f32 %v7833, %v7833
    %v7836 = vmul.f32 %v7834, %v7834
    %7837 = vadd.xlane.f32.xlu0 %v7835
    %v7838 = vpop.xlane.xlu0 %7837
    %7839 = vadd.xlane.f32.xlu0 %v7836
    %v7840 = vpop.xlane.xlu0 %7839
    %v7841 = vmul.f32 %v7838, %v2480
    %v7842 = vmul.f32 %v7840, %v2480
    %v7843 = vadd.f32 %v7841, 1e-05
    %v7844 = vadd.f32 %v7842, 1e-05
    %v7845 = vrsqrt.pop %v7843
    %v7846 = vrsqrt.pop %v7844
    %v7847 = vmul.f32 %v7833, %v7845
    %v7848 = vmul.f32 %v7834, %v7846
    %v7849 = vlaneseq
    %v7850 = vshrl.u32 %v7849, 7
    %v7851 = vsub.s32 4, %v7850
    %v7852 = vrot.slane %v5753, %v7851
    %v7853 = vmul.f32 %v7847, %v7852
    %v7854 = vmul.f32 %v7848, %v7852
    %v7855 = vlaneseq
    %v7856 = vshrl.u32 %v7855, 7
    %v7857 = vsub.s32 5, %v7856
    %v7858 = vrot.slane %v5753, %v7857
    %v7859 = vadd.f32 %v7853, %v7858
    %v7860 = vadd.f32 %v7854, %v7858
    %s7861 = scalar_lea.vmem [#allocation3], 1152
    %v7862 = vld [vmem:[%s7861] sm:$0xff]
    %v7863 = vld [vmem:[%s7861 + $0x8] sm:$0xff]
    %v7864 = vld [vmem:[%s7861 + $0x10] sm:$0xff]
    %v7865 = vld [vmem:[%s7861 + $0x18] sm:$0xff]
    %v7866 = vld [vmem:[%s7861 + $0x20] sm:$0xff]
    %v7867 = vld [vmem:[%s7861 + $0x28] sm:$0xff]
    %v7868 = vld [vmem:[%s7861 + $0x30] sm:$0xff]
    %v7869 = vld [vmem:[%s7861 + $0x38] sm:$0xff]
    %v7870 = vld [vmem:[%s7861 + $0x40] sm:$0xff]
    %v7871 = vld [vmem:[%s7861 + $0x48] sm:$0xff]
    %v7872 = vld [vmem:[%s7861 + $0x50] sm:$0xff]
    %v7873 = vld [vmem:[%s7861 + $0x58] sm:$0xff]
    %v7874 = vld [vmem:[%s7861 + $0x60] sm:$0xff]
    %v7875 = vld [vmem:[%s7861 + $0x68] sm:$0xff]
    %v7876 = vld [vmem:[%s7861 + $0x70] sm:$0xff]
    %v7877 = vld [vmem:[%s7861 + $0x78] sm:$0xff]
    %v7878 = vld [vmem:[%s7861 + $0x80] sm:$0xff]
    %v7879 = vld [vmem:[%s7861 + $0x88] sm:$0xff]
    %v7880 = vld [vmem:[%s7861 + $0x90] sm:$0xff]
    %v7881 = vld [vmem:[%s7861 + $0x98] sm:$0xff]
    %v7882 = vld [vmem:[%s7861 + $0xa0] sm:$0xff]
    %v7883 = vld [vmem:[%s7861 + $0xa8] sm:$0xff]
    %v7884 = vld [vmem:[%s7861 + $0xb0] sm:$0xff]
    %v7885 = vld [vmem:[%s7861 + $0xb8] sm:$0xff]
    %v7886 = vld [vmem:[%s7861 + $0xc0] sm:$0xff]
    %v7887 = vld [vmem:[%s7861 + $0xc8] sm:$0xff]
    %v7888 = vld [vmem:[%s7861 + $0xd0] sm:$0xff]
    %v7889 = vld [vmem:[%s7861 + $0xd8] sm:$0xff]
    %v7890 = vld [vmem:[%s7861 + $0xe0] sm:$0xff]
    %v7891 = vld [vmem:[%s7861 + $0xe8] sm:$0xff]
    %v7892 = vld [vmem:[%s7861 + $0xf0] sm:$0xff]
    %v7893 = vld [vmem:[%s7861 + $0xf8] sm:$0xff]
    %v7894 = vld [vmem:[%s7861 + $0x100] sm:$0xff]
    %v7895 = vld [vmem:[%s7861 + $0x108] sm:$0xff]
    %v7896 = vld [vmem:[%s7861 + $0x110] sm:$0xff]
    %v7897 = vld [vmem:[%s7861 + $0x118] sm:$0xff]
    %v7898 = vld [vmem:[%s7861 + $0x120] sm:$0xff]
    %v7899 = vld [vmem:[%s7861 + $0x128] sm:$0xff]
    %v7900 = vld [vmem:[%s7861 + $0x130] sm:$0xff]
    %v7901 = vld [vmem:[%s7861 + $0x138] sm:$0xff]
    %v7902 = vld [vmem:[%s7861 + $0x140] sm:$0xff]
    %v7903 = vld [vmem:[%s7861 + $0x148] sm:$0xff]
    %v7904 = vld [vmem:[%s7861 + $0x150] sm:$0xff]
    %v7905 = vld [vmem:[%s7861 + $0x158] sm:$0xff]
    %v7906 = vld [vmem:[%s7861 + $0x160] sm:$0xff]
    %v7907 = vld [vmem:[%s7861 + $0x168] sm:$0xff]
    %v7908 = vld [vmem:[%s7861 + $0x170] sm:$0xff]
    %v7909 = vld [vmem:[%s7861 + $0x178] sm:$0xff]
    %s7910 = scalar_lea.vmem %s5, 9
    %v7911 = vld [vmem:[%s7910] sm:$0x7]
    %s7912 = scalar_lea.vmem %s6, 384
    %v7913 = vld [vmem:[%s7912] sm:$0xff]
    %v7914 = vld [vmem:[%s7912 + $0x8] sm:$0xff]
    %v7915 = vld [vmem:[%s7912 + $0x10] sm:$0xff]
    %v7916 = vld [vmem:[%s7912 + $0x18] sm:$0xff]
    %v7917 = vld [vmem:[%s7912 + $0x20] sm:$0xff]
    %v7918 = vld [vmem:[%s7912 + $0x28] sm:$0xff]
    %v7919 = vld [vmem:[%s7912 + $0x30] sm:$0xff]
    %v7920 = vld [vmem:[%s7912 + $0x38] sm:$0xff]
    %v7921 = vld [vmem:[%s7912 + $0x40] sm:$0xff]
    %v7922 = vld [vmem:[%s7912 + $0x48] sm:$0xff]
    %v7923 = vld [vmem:[%s7912 + $0x50] sm:$0xff]
    %v7924 = vld [vmem:[%s7912 + $0x58] sm:$0xff]
    %v7925 = vld [vmem:[%s7912 + $0x60] sm:$0xff]
    %v7926 = vld [vmem:[%s7912 + $0x68] sm:$0xff]
    %v7927 = vld [vmem:[%s7912 + $0x70] sm:$0xff]
    %v7928 = vld [vmem:[%s7912 + $0x78] sm:$0xff]
    %s7929 = scalar_lea.vmem [#allocation5], 768
    %v7930 = vld [vmem:[%s7929] sm:$0xff]
    %v7931 = vld [vmem:[%s7929 + $0x8] sm:$0xff]
    %v7932 = vld [vmem:[%s7929 + $0x10] sm:$0xff]
    %v7933 = vld [vmem:[%s7929 + $0x18] sm:$0xff]
    %v7934 = vld [vmem:[%s7929 + $0x20] sm:$0xff]
    %v7935 = vld [vmem:[%s7929 + $0x28] sm:$0xff]
    %v7936 = vld [vmem:[%s7929 + $0x30] sm:$0xff]
    %v7937 = vld [vmem:[%s7929 + $0x38] sm:$0xff]
    %v7938 = vld [vmem:[%s7929 + $0x40] sm:$0xff]
    %v7939 = vld [vmem:[%s7929 + $0x48] sm:$0xff]
    %v7940 = vld [vmem:[%s7929 + $0x50] sm:$0xff]
    %v7941 = vld [vmem:[%s7929 + $0x58] sm:$0xff]
    %v7942 = vld [vmem:[%s7929 + $0x60] sm:$0xff]
    %v7943 = vld [vmem:[%s7929 + $0x68] sm:$0xff]
    %v7944 = vld [vmem:[%s7929 + $0x70] sm:$0xff]
    %v7945 = vld [vmem:[%s7929 + $0x78] sm:$0xff]
    %v7946 = vld [vmem:[%s7929 + $0x80] sm:$0xff]
    %v7947 = vld [vmem:[%s7929 + $0x88] sm:$0xff]
    %v7948 = vld [vmem:[%s7929 + $0x90] sm:$0xff]
    %v7949 = vld [vmem:[%s7929 + $0x98] sm:$0xff]
    %v7950 = vld [vmem:[%s7929 + $0xa0] sm:$0xff]
    %v7951 = vld [vmem:[%s7929 + $0xa8] sm:$0xff]
    %v7952 = vld [vmem:[%s7929 + $0xb0] sm:$0xff]
    %v7953 = vld [vmem:[%s7929 + $0xb8] sm:$0xff]
    %v7954 = vld [vmem:[%s7929 + $0xc0] sm:$0xff]
    %v7955 = vld [vmem:[%s7929 + $0xc8] sm:$0xff]
    %v7956 = vld [vmem:[%s7929 + $0xd0] sm:$0xff]
    %v7957 = vld [vmem:[%s7929 + $0xd8] sm:$0xff]
    %v7958 = vld [vmem:[%s7929 + $0xe0] sm:$0xff]
    %v7959 = vld [vmem:[%s7929 + $0xe8] sm:$0xff]
    %v7960 = vld [vmem:[%s7929 + $0xf0] sm:$0xff]
    %v7961 = vld [vmem:[%s7929 + $0xf8] sm:$0xff]
    %s7962 = scalar_lea.vmem %s8, 6
    %v7963 = vld [vmem:[%s7962] sm:$0x3]
    %s7964 = scalar_lea.vmem [#allocation7], 768
    %v7965 = vld [vmem:[%s7964] sm:$0xff]
    %v7966 = vld [vmem:[%s7964 + $0x8] sm:$0xff]
    %v7967 = vld [vmem:[%s7964 + $0x10] sm:$0xff]
    %v7968 = vld [vmem:[%s7964 + $0x18] sm:$0xff]
    %v7969 = vld [vmem:[%s7964 + $0x20] sm:$0xff]
    %v7970 = vld [vmem:[%s7964 + $0x28] sm:$0xff]
    %v7971 = vld [vmem:[%s7964 + $0x30] sm:$0xff]
    %v7972 = vld [vmem:[%s7964 + $0x38] sm:$0xff]
    %v7973 = vld [vmem:[%s7964 + $0x40] sm:$0xff]
    %v7974 = vld [vmem:[%s7964 + $0x48] sm:$0xff]
    %v7975 = vld [vmem:[%s7964 + $0x50] sm:$0xff]
    %v7976 = vld [vmem:[%s7964 + $0x58] sm:$0xff]
    %v7977 = vld [vmem:[%s7964 + $0x60] sm:$0xff]
    %v7978 = vld [vmem:[%s7964 + $0x68] sm:$0xff]
    %v7979 = vld [vmem:[%s7964 + $0x70] sm:$0xff]
    %v7980 = vld [vmem:[%s7964 + $0x78] sm:$0xff]
    %v7981 = vld [vmem:[%s7964 + $0x80] sm:$0xff]
    %v7982 = vld [vmem:[%s7964 + $0x88] sm:$0xff]
    %v7983 = vld [vmem:[%s7964 + $0x90] sm:$0xff]
    %v7984 = vld [vmem:[%s7964 + $0x98] sm:$0xff]
    %v7985 = vld [vmem:[%s7964 + $0xa0] sm:$0xff]
    %v7986 = vld [vmem:[%s7964 + $0xa8] sm:$0xff]
    %v7987 = vld [vmem:[%s7964 + $0xb0] sm:$0xff]
    %v7988 = vld [vmem:[%s7964 + $0xb8] sm:$0xff]
    %v7989 = vld [vmem:[%s7964 + $0xc0] sm:$0xff]
    %v7990 = vld [vmem:[%s7964 + $0xc8] sm:$0xff]
    %v7991 = vld [vmem:[%s7964 + $0xd0] sm:$0xff]
    %v7992 = vld [vmem:[%s7964 + $0xd8] sm:$0xff]
    %v7993 = vld [vmem:[%s7964 + $0xe0] sm:$0xff]
    %v7994 = vld [vmem:[%s7964 + $0xe8] sm:$0xff]
    %v7995 = vld [vmem:[%s7964 + $0xf0] sm:$0xff]
    %v7996 = vld [vmem:[%s7964 + $0xf8] sm:$0xff]
    %s7997 = scalar_lea.vmem %s10, 24
    %v7998 = vld [vmem:[%s7997] sm:$0x3f]
    %v8000 = vlaneseq
    %v8001 = vshrl.u32 %v8000, 7
    %v8002 = vsub.s32 0, %v8001
    %v8003 = vrot.slane %v7911, %v8002
    %v8004 = vlaneseq
    %v8005 = vshrl.u32 %v8004, 7
    %v8006 = vsub.s32 1, %v8005
    %v8007 = vrot.slane %v7911, %v8006
    %v8008 = vlaneseq
    %v8009 = vshrl.u32 %v8008, 7
    %v8010 = vsub.s32 2, %v8009
    %v8011 = vrot.slane %v7911, %v8010
    %8015 = vmatprep.subr.mxu0 %v7863
    %8016 = vmatpush1.msra.mxu0 %v7862
    %8017 = vmatprep.subr.mxu0 %v7866
    %8018 = vmatpush1.msra.mxu0 %v7865
    %8019 = vmatprep.subr.mxu0 %v7869
    %8020 = vmatpush1.msra.mxu0 %v7868
    %8021 = vmatprep.subr.mxu0 %v7872
    %8022 = vmatpush1.msra.mxu0 %v7871
    %8023 = vmatprep.subr.mxu0 %v7875
    %8024 = vmatpush1.msra.mxu0 %v7874
    %8025 = vmatprep.subr.mxu0 %v7878
    %8026 = vmatpush1.msra.mxu0 %v7877
    %8027 = vmatprep.subr.mxu0 %v7881
    %8028 = vmatpush1.msra.mxu0 %v7880
    %8029 = vmatprep.subr.mxu0 %v7884
    %8030 = vmatpush1.msra.mxu0 %v7883
    %8031 = vmatprep.subr.mxu0 %v7887
    %8032 = vmatpush1.msra.mxu0 %v7886
    %8033 = vmatprep.subr.mxu0 %v7890
    %8034 = vmatpush1.msra.mxu0 %v7889
    %8035 = vmatprep.subr.mxu0 %v7893
    %8036 = vmatpush1.msra.mxu0 %v7892
    %8037 = vmatprep.subr.mxu0 %v7896
    %8038 = vmatpush1.msra.mxu0 %v7895
    %8039 = vmatprep.subr.mxu0 %v7899
    %8040 = vmatpush1.msra.mxu0 %v7898
    %8041 = vmatprep.subr.mxu0 %v7902
    %8042 = vmatpush1.msra.mxu0 %v7901
    %8043 = vmatprep.subr.mxu0 %v7905
    %8044 = vmatpush1.msra.mxu0 %v7904
    %8045 = vmatprep.subr.mxu0 %v7908
    %8046 = vmatpush1.msra.mxu0 %v7907
    %8047 = vmatprep.subr.mxu0 0.0
    %8048 = vmatpush1.msra.mxu0 0.0
    %8049 = vmatprep.subr.mxu0 0.0
    %8050 = vmatpush1.msra.mxu0 0.0
    %8051 = vmatprep.subr.mxu0 0.0
    %8052 = vmatpush1.msra.mxu0 0.0
    %8053 = vmatprep.subr.mxu0 0.0
    %8054 = vmatpush1.msra.mxu0 0.0
    %8055 = vmatprep.subr.mxu0 0.0
    %8056 = vmatpush1.msra.mxu0 0.0
    %8057 = vmatprep.subr.mxu0 0.0
    %8058 = vmatpush1.msra.mxu0 0.0
    %8059 = vmatprep.subr.mxu0 0.0
    %8060 = vmatpush1.msra.mxu0 0.0
    %8061 = vmatprep.subr.mxu0 0.0
    %8062 = vmatpush1.msra.mxu0 0.0
    %8063 = vmatprep.subr.mxu0 0.0
    %8064 = vmatpush1.msra.mxu0 0.0
    %8065 = vmatprep.subr.mxu0 0.0
    %8066 = vmatpush1.msra.mxu0 0.0
    %8067 = vmatprep.subr.mxu0 0.0
    %8068 = vmatpush1.msra.mxu0 0.0
    %8069 = vmatprep.subr.mxu0 0.0
    %8070 = vmatpush1.msra.mxu0 0.0
    %8071 = vmatprep.subr.mxu0 0.0
    %8072 = vmatpush1.msra.mxu0 0.0
    %8073 = vmatprep.subr.mxu0 0.0
    %8074 = vmatpush1.msra.mxu0 0.0
    %8075 = vmatprep.subr.mxu0 0.0
    %8076 = vmatpush1.msra.mxu0 0.0
    %8077 = vmatprep.subr.mxu0 0.0
    %8078 = vmatpush1.msra.mxu0 0.0
    %8079 = vmatprep.mubr.f32.mxu0 0.0
    %8080 = vmatmul.mubr.f32.gmra.mrb[0].mxu0 %v7859
    %v8081 = vpop.f32.mrb[0].mxu0
    %v8082 = vadd.f32 %v8003, %v8081
    %v8083 = vpop.f32.mrb[0].mxu0
    %v8084 = vadd.f32 %v8007, %v8083
    %8085 = vmatprep.mubr.f32.mxu0 0.0
    %8086 = vmatmul.mubr.f32.gmra.mrb[0].mxu0 %v7860
    %v8087 = vpop.f32.mrb[0].mxu0
    %v8088 = vadd.f32 %v8003, %v8087
    %v8089 = vpop.f32.mrb[0].mxu0
    %v8090 = vadd.f32 %v8007, %v8089
    %8091 = vdwg.mxu0
    %8092 = vmatprep.subr.mxu0 0.0
    %8093 = vmatpush1.msra.mxu0 %v7864
    %8094 = vmatprep.subr.mxu0 0.0
    %8095 = vmatpush1.msra.mxu0 %v7867
    %8096 = vmatprep.subr.mxu0 0.0
    %8097 = vmatpush1.msra.mxu0 %v7870
    %8098 = vmatprep.subr.mxu0 0.0
    %8099 = vmatpush1.msra.mxu0 %v7873
    %8100 = vmatprep.subr.mxu0 0.0
    %8101 = vmatpush1.msra.mxu0 %v7876
    %8102 = vmatprep.subr.mxu0 0.0
    %8103 = vmatpush1.msra.mxu0 %v7879
    %8104 = vmatprep.subr.mxu0 0.0
    %8105 = vmatpush1.msra.mxu0 %v7882
    %8106 = vmatprep.subr.mxu0 0.0
    %8107 = vmatpush1.msra.mxu0 %v7885
    %8108 = vmatprep.subr.mxu0 0.0
    %8109 = vmatpush1.msra.mxu0 %v7888
    %8110 = vmatprep.subr.mxu0 0.0
    %8111 = vmatpush1.msra.mxu0 %v7891
    %8112 = vmatprep.subr.mxu0 0.0
    %8113 = vmatpush1.msra.mxu0 %v7894
    %8114 = vmatprep.subr.mxu0 0.0
    %8115 = vmatpush1.msra.mxu0 %v7897
    %8116 = vmatprep.subr.mxu0 0.0
    %8117 = vmatpush1.msra.mxu0 %v7900
    %8118 = vmatprep.subr.mxu0 0.0
    %8119 = vmatpush1.msra.mxu0 %v7903
    %8120 = vmatprep.subr.mxu0 0.0
    %8121 = vmatpush1.msra.mxu0 %v7906
    %8122 = vmatprep.subr.mxu0 0.0
    %8123 = vmatpush1.msra.mxu0 %v7909
    %8124 = vmatprep.subr.mxu0 0.0
    %8125 = vmatpush1.msra.mxu0 0.0
    %8126 = vmatprep.subr.mxu0 0.0
    %8127 = vmatpush1.msra.mxu0 0.0
    %8128 = vmatprep.subr.mxu0 0.0
    %8129 = vmatpush1.msra.mxu0 0.0
    %8130 = vmatprep.subr.mxu0 0.0
    %8131 = vmatpush1.msra.mxu0 0.0
    %8132 = vmatprep.subr.mxu0 0.0
    %8133 = vmatpush1.msra.mxu0 0.0
    %8134 = vmatprep.subr.mxu0 0.0
    %8135 = vmatpush1.msra.mxu0 0.0
    %8136 = vmatprep.subr.mxu0 0.0
    %8137 = vmatpush1.msra.mxu0 0.0
    %8138 = vmatprep.subr.mxu0 0.0
    %8139 = vmatpush1.msra.mxu0 0.0
    %8140 = vmatprep.subr.mxu0 0.0
    %8141 = vmatpush1.msra.mxu0 0.0
    %8142 = vmatprep.subr.mxu0 0.0
    %8143 = vmatpush1.msra.mxu0 0.0
    %8144 = vmatprep.subr.mxu0 0.0
    %8145 = vmatpush1.msra.mxu0 0.0
    %8146 = vmatprep.subr.mxu0 0.0
    %8147 = vmatpush1.msra.mxu0 0.0
    %8148 = vmatprep.subr.mxu0 0.0
    %8149 = vmatpush1.msra.mxu0 0.0
    %8150 = vmatprep.subr.mxu0 0.0
    %8151 = vmatpush1.msra.mxu0 0.0
    %8152 = vmatprep.subr.mxu0 0.0
    %8153 = vmatpush1.msra.mxu0 0.0
    %8154 = vmatprep.subr.mxu0 0.0
    %8155 = vmatpush1.msra.mxu0 0.0
    %8156 = vmatprep.mubr.f32.mxu0 0.0
    %8157 = vmatmul.mubr.f32.gmra.mrb[0].mxu0 %v7859
    %v8158 = vpop.f32.mrb[0].mxu0
    %v8159 = vadd.f32 %v8011, %v8158
    %v8160 = vpop.f32.mrb[0].mxu0
    %8161 = vmatprep.mubr.f32.mxu0 0.0
    %8162 = vmatmul.mubr.f32.gmra.mrb[0].mxu0 %v7860
    %v8163 = vpop.f32.mrb[0].mxu0
    %v8164 = vadd.f32 %v8011, %v8163
    %v8165 = vpop.f32.mrb[0].mxu0
    %8166 = vdwg.mxu0
    %v8168 = vsel %vm436, %v8082, 0
    %v8171 = vsel %vm436, %v8084, 0
    %8173 = vmatprep.subr.mxu0 0.0
    %8174 = vmatpush1.xpose.msra.mxu0 %v8171
    %8175 = vmatprep.subr.mxu0 0.0
    %8176 = vmatpush1.xpose.msra.mxu0 0.0
    %8177 = vmatprep.subr.mxu0 0.0
    %8178 = vmatpush1.xpose.msra.mxu0 0.0
    %8179 = vmatprep.subr.mxu0 0.0
    %8180 = vmatpush1.xpose.msra.mxu0 0.0
    %8181 = vmatprep.subr.mxu0 0.0
    %8182 = vmatpush1.xpose.msra.mxu0 0.0
    %8183 = vmatprep.subr.mxu0 0.0
    %8184 = vmatpush1.xpose.msra.mxu0 0.0
    %8185 = vmatprep.subr.mxu0 0.0
    %8186 = vmatpush1.xpose.msra.mxu0 0.0
    %8187 = vmatprep.subr.mxu0 0.0
    %8188 = vmatpush1.xpose.msra.mxu0 0.0
    %8189 = vmatprep.subr.mxu0 0.0
    %8190 = vmatpush1.xpose.msra.mxu0 0.0
    %8191 = vmatprep.subr.mxu0 0.0
    %8192 = vmatpush1.xpose.msra.mxu0 0.0
    %8193 = vmatprep.subr.mxu0 0.0
    %8194 = vmatpush1.xpose.msra.mxu0 0.0
    %8195 = vmatprep.subr.mxu0 0.0
    %8196 = vmatpush1.xpose.msra.mxu0 0.0
    %8197 = vmatprep.subr.mxu0 0.0
    %8198 = vmatpush1.xpose.msra.mxu0 0.0
    %8199 = vmatprep.subr.mxu0 0.0
    %8200 = vmatpush1.xpose.msra.mxu0 0.0
    %8201 = vmatprep.subr.mxu0 0.0
    %8202 = vmatpush1.xpose.msra.mxu0 0.0
    %8203 = vmatprep.subr.mxu0 0.0
    %8204 = vmatpush1.xpose.msra.mxu0 0.0
    %8205 = vmatprep.subr.mxu0 0.0
    %8206 = vmatpush1.xpose.msra.mxu0 0.0
    %8207 = vmatprep.subr.mxu0 0.0
    %8208 = vmatpush1.xpose.msra.mxu0 0.0
    %8209 = vmatprep.subr.mxu0 0.0
    %8210 = vmatpush1.xpose.msra.mxu0 0.0
    %8211 = vmatprep.subr.mxu0 0.0
    %8212 = vmatpush1.xpose.msra.mxu0 0.0
    %8213 = vmatprep.subr.mxu0 0.0
    %8214 = vmatpush1.xpose.msra.mxu0 0.0
    %8215 = vmatprep.subr.mxu0 0.0
    %8216 = vmatpush1.xpose.msra.mxu0 0.0
    %8217 = vmatprep.subr.mxu0 0.0
    %8218 = vmatpush1.xpose.msra.mxu0 0.0
    %8219 = vmatprep.subr.mxu0 0.0
    %8220 = vmatpush1.xpose.msra.mxu0 0.0
    %8221 = vmatprep.subr.mxu0 0.0
    %8222 = vmatpush1.xpose.msra.mxu0 0.0
    %8223 = vmatprep.subr.mxu0 0.0
    %8224 = vmatpush1.xpose.msra.mxu0 0.0
    %8225 = vmatprep.subr.mxu0 0.0
    %8226 = vmatpush1.xpose.msra.mxu0 0.0
    %8227 = vmatprep.subr.mxu0 0.0
    %8228 = vmatpush1.xpose.msra.mxu0 0.0
    %8229 = vmatprep.subr.mxu0 0.0
    %8230 = vmatpush1.xpose.msra.mxu0 0.0
    %8231 = vmatprep.subr.mxu0 0.0
    %8232 = vmatpush1.xpose.msra.mxu0 0.0
    %8233 = vmatprep.subr.mxu0 0.0
    %8234 = vmatpush1.xpose.msra.mxu0 0.0
    %8235 = vmatprep.subr.mxu0 0.0
    %8236 = vmatpush1.xpose.msra.mxu0 0.0
    %8237 = vmatprep.mubr.f32.mxu0 0.0
    %8238 = vmatmul.mubr.f32.gmra.mrb[0].mxu0 %v8168
    %v8239 = vpop.f32.mrb[0].mxu0
    %v8240 = vadd.f32 0.0, %v8239
    %v8241 = vpop.f32.mrb[0].mxu0
    %8242 = vdwg.mxu0
    %v8244 = vsel %vm436, %v8088, 0
    %v8247 = vsel %vm436, %v8090, 0
    %8249 = vmatprep.subr.mxu0 0.0
    %8250 = vmatpush1.xpose.msra.mxu0 %v8247
    %8251 = vmatprep.subr.mxu0 0.0
    %8252 = vmatpush1.xpose.msra.mxu0 0.0
    %8253 = vmatprep.subr.mxu0 0.0
    %8254 = vmatpush1.xpose.msra.mxu0 0.0
    %8255 = vmatprep.subr.mxu0 0.0
    %8256 = vmatpush1.xpose.msra.mxu0 0.0
    %8257 = vmatprep.subr.mxu0 0.0
    %8258 = vmatpush1.xpose.msra.mxu0 0.0
    %8259 = vmatprep.subr.mxu0 0.0
    %8260 = vmatpush1.xpose.msra.mxu0 0.0
    %8261 = vmatprep.subr.mxu0 0.0
    %8262 = vmatpush1.xpose.msra.mxu0 0.0
    %8263 = vmatprep.subr.mxu0 0.0
    %8264 = vmatpush1.xpose.msra.mxu0 0.0
    %8265 = vmatprep.subr.mxu0 0.0
    %8266 = vmatpush1.xpose.msra.mxu0 0.0
    %8267 = vmatprep.subr.mxu0 0.0
    %8268 = vmatpush1.xpose.msra.mxu0 0.0
    %8269 = vmatprep.subr.mxu0 0.0
    %8270 = vmatpush1.xpose.msra.mxu0 0.0
    %8271 = vmatprep.subr.mxu0 0.0
    %8272 = vmatpush1.xpose.msra.mxu0 0.0
    %8273 = vmatprep.subr.mxu0 0.0
    %8274 = vmatpush1.xpose.msra.mxu0 0.0
    %8275 = vmatprep.subr.mxu0 0.0
    %8276 = vmatpush1.xpose.msra.mxu0 0.0
    %8277 = vmatprep.subr.mxu0 0.0
    %8278 = vmatpush1.xpose.msra.mxu0 0.0
    %8279 = vmatprep.subr.mxu0 0.0
    %8280 = vmatpush1.xpose.msra.mxu0 0.0
    %8281 = vmatprep.subr.mxu0 0.0
    %8282 = vmatpush1.xpose.msra.mxu0 0.0
    %8283 = vmatprep.subr.mxu0 0.0
    %8284 = vmatpush1.xpose.msra.mxu0 0.0
    %8285 = vmatprep.subr.mxu0 0.0
    %8286 = vmatpush1.xpose.msra.mxu0 0.0
    %8287 = vmatprep.subr.mxu0 0.0
    %8288 = vmatpush1.xpose.msra.mxu0 0.0
    %8289 = vmatprep.subr.mxu0 0.0
    %8290 = vmatpush1.xpose.msra.mxu0 0.0
    %8291 = vmatprep.subr.mxu0 0.0
    %8292 = vmatpush1.xpose.msra.mxu0 0.0
    %8293 = vmatprep.subr.mxu0 0.0
    %8294 = vmatpush1.xpose.msra.mxu0 0.0
    %8295 = vmatprep.subr.mxu0 0.0
    %8296 = vmatpush1.xpose.msra.mxu0 0.0
    %8297 = vmatprep.subr.mxu0 0.0
    %8298 = vmatpush1.xpose.msra.mxu0 0.0
    %8299 = vmatprep.subr.mxu0 0.0
    %8300 = vmatpush1.xpose.msra.mxu0 0.0
    %8301 = vmatprep.subr.mxu0 0.0
    %8302 = vmatpush1.xpose.msra.mxu0 0.0
    %8303 = vmatprep.subr.mxu0 0.0
    %8304 = vmatpush1.xpose.msra.mxu0 0.0
    %8305 = vmatprep.subr.mxu0 0.0
    %8306 = vmatpush1.xpose.msra.mxu0 0.0
    %8307 = vmatprep.subr.mxu0 0.0
    %8308 = vmatpush1.xpose.msra.mxu0 0.0
    %8309 = vmatprep.subr.mxu0 0.0
    %8310 = vmatpush1.xpose.msra.mxu0 0.0
    %8311 = vmatprep.subr.mxu0 0.0
    %8312 = vmatpush1.xpose.msra.mxu0 0.0
    %8313 = vmatprep.mubr.f32.mxu0 0.0
    %8314 = vmatmul.mubr.f32.gmra.mrb[0].mxu0 %v8244
    %v8315 = vpop.f32.mrb[0].mxu0
    %v8316 = vadd.f32 0.0, %v8315
    %v8317 = vpop.f32.mrb[0].mxu0
    %8318 = vdwg.mxu0
    %v8319 = vmul.f32 %v8240, 0.17677669
    %v8320 = vmul.f32 %v8316, 0.17677669
    %v8321 = vadd.f32 %v8319, %v6102
    %v8322 = vadd.f32 %v8320, %v6106
    %v8323 = vsel %vm6111, %v8321, -inf
    %8324 = vmax.xlane.f32.xlu0 %v8323
    %v8325 = vpop.xlane.xlu0 %8324
    %v8326 = vsel %vm6111, %v8322, -inf
    %8327 = vmax.xlane.f32.xlu0 %v8326
    %v8328 = vpop.xlane.xlu0 %8327
    %v8329 = vsub.f32 %v8321, %v8325
    %v8330 = vsub.f32 %v8322, %v8328
    %v8331 = vmul.f32 %v8329, 1.442695
    %v8332 = vpow.pop %v8331
    %v8333 = vmul.f32 %v8330, 1.442695
    %v8334 = vpow.pop %v8333
    %v8335 = vsel %vm6111, %v8332, 0.0
    %8336 = vadd.xlane.f32.xlu0 %v8335
    %v8337 = vpop.xlane.xlu0 %8336
    %v8338 = vsel %vm6111, %v8334, 0.0
    %8339 = vadd.xlane.f32.xlu0 %v8338
    %v8340 = vpop.xlane.xlu0 %8339
    %v8341 = vrcp.pop %v8337
    %v8342 = vrcp.pop %v8340
    %v8343 = vmul.f32 %v8332, %v8341
    %v8344 = vmul.f32 %v8334, %v8342
    %v8346 = vsel %vm6111, %v8343, 0
    %8348 = vmatprep.subr.mxu0 0.0
    %8349 = vmatpush1.msra.mxu0 %v8159
    %8350 = vmatprep.subr.mxu0 0.0
    %8351 = vmatpush1.msra.mxu0 0.0
    %8352 = vmatprep.subr.mxu0 0.0
    %8353 = vmatpush1.msra.mxu0 0.0
    %8354 = vmatprep.subr.mxu0 0.0
    %8355 = vmatpush1.msra.mxu0 0.0
    %8356 = vmatprep.subr.mxu0 0.0
    %8357 = vmatpush1.msra.mxu0 0.0
    %8358 = vmatprep.subr.mxu0 0.0
    %8359 = vmatpush1.msra.mxu0 0.0
    %8360 = vmatprep.subr.mxu0 0.0
    %8361 = vmatpush1.msra.mxu0 0.0
    %8362 = vmatprep.subr.mxu0 0.0
    %8363 = vmatpush1.msra.mxu0 0.0
    %8364 = vmatprep.subr.mxu0 0.0
    %8365 = vmatpush1.msra.mxu0 0.0
    %8366 = vmatprep.subr.mxu0 0.0
    %8367 = vmatpush1.msra.mxu0 0.0
    %8368 = vmatprep.subr.mxu0 0.0
    %8369 = vmatpush1.msra.mxu0 0.0
    %8370 = vmatprep.subr.mxu0 0.0
    %8371 = vmatpush1.msra.mxu0 0.0
    %8372 = vmatprep.subr.mxu0 0.0
    %8373 = vmatpush1.msra.mxu0 0.0
    %8374 = vmatprep.subr.mxu0 0.0
    %8375 = vmatpush1.msra.mxu0 0.0
    %8376 = vmatprep.subr.mxu0 0.0
    %8377 = vmatpush1.msra.mxu0 0.0
    %8378 = vmatprep.subr.mxu0 0.0
    %8379 = vmatpush1.msra.mxu0 0.0
    %8380 = vmatprep.subr.mxu0 0.0
    %8381 = vmatpush1.msra.mxu0 0.0
    %8382 = vmatprep.subr.mxu0 0.0
    %8383 = vmatpush1.msra.mxu0 0.0
    %8384 = vmatprep.subr.mxu0 0.0
    %8385 = vmatpush1.msra.mxu0 0.0
    %8386 = vmatprep.subr.mxu0 0.0
    %8387 = vmatpush1.msra.mxu0 0.0
    %8388 = vmatprep.subr.mxu0 0.0
    %8389 = vmatpush1.msra.mxu0 0.0
    %8390 = vmatprep.subr.mxu0 0.0
    %8391 = vmatpush1.msra.mxu0 0.0
    %8392 = vmatprep.subr.mxu0 0.0
    %8393 = vmatpush1.msra.mxu0 0.0
    %8394 = vmatprep.subr.mxu0 0.0
    %8395 = vmatpush1.msra.mxu0 0.0
    %8396 = vmatprep.subr.mxu0 0.0
    %8397 = vmatpush1.msra.mxu0 0.0
    %8398 = vmatprep.subr.mxu0 0.0
    %8399 = vmatpush1.msra.mxu0 0.0
    %8400 = vmatprep.subr.mxu0 0.0
    %8401 = vmatpush1.msra.mxu0 0.0
    %8402 = vmatprep.subr.mxu0 0.0
    %8403 = vmatpush1.msra.mxu0 0.0
    %8404 = vmatprep.subr.mxu0 0.0
    %8405 = vmatpush1.msra.mxu0 0.0
    %8406 = vmatprep.subr.mxu0 0.0
    %8407 = vmatpush1.msra.mxu0 0.0
    %8408 = vmatprep.subr.mxu0 0.0
    %8409 = vmatpush1.msra.mxu0 0.0
    %8410 = vmatprep.subr.mxu0 0.0
    %8411 = vmatpush1.msra.mxu0 0.0
    %8412 = vmatprep.mubr.f32.mxu0 0.0
    %8413 = vmatmul.mubr.f32.gmra.mrb[0].mxu0 %v8346
    %v8414 = vpop.f32.mrb[0].mxu0
    %v8415 = vadd.f32 0.0, %v8414
    %v8416 = vpop.f32.mrb[0].mxu0
    %8417 = vdwg.mxu0
    %v8419 = vsel %vm6111, %v8344, 0
    %8421 = vmatprep.subr.mxu0 0.0
    %8422 = vmatpush1.msra.mxu0 %v8164
    %8423 = vmatprep.subr.mxu0 0.0
    %8424 = vmatpush1.msra.mxu0 0.0
    %8425 = vmatprep.subr.mxu0 0.0
    %8426 = vmatpush1.msra.mxu0 0.0
    %8427 = vmatprep.subr.mxu0 0.0
    %8428 = vmatpush1.msra.mxu0 0.0
    %8429 = vmatprep.subr.mxu0 0.0
    %8430 = vmatpush1.msra.mxu0 0.0
    %8431 = vmatprep.subr.mxu0 0.0
    %8432 = vmatpush1.msra.mxu0 0.0
    %8433 = vmatprep.subr.mxu0 0.0
    %8434 = vmatpush1.msra.mxu0 0.0
    %8435 = vmatprep.subr.mxu0 0.0
    %8436 = vmatpush1.msra.mxu0 0.0
    %8437 = vmatprep.subr.mxu0 0.0
    %8438 = vmatpush1.msra.mxu0 0.0
    %8439 = vmatprep.subr.mxu0 0.0
    %8440 = vmatpush1.msra.mxu0 0.0
    %8441 = vmatprep.subr.mxu0 0.0
    %8442 = vmatpush1.msra.mxu0 0.0
    %8443 = vmatprep.subr.mxu0 0.0
    %8444 = vmatpush1.msra.mxu0 0.0
    %8445 = vmatprep.subr.mxu0 0.0
    %8446 = vmatpush1.msra.mxu0 0.0
    %8447 = vmatprep.subr.mxu0 0.0
    %8448 = vmatpush1.msra.mxu0 0.0
    %8449 = vmatprep.subr.mxu0 0.0
    %8450 = vmatpush1.msra.mxu0 0.0
    %8451 = vmatprep.subr.mxu0 0.0
    %8452 = vmatpush1.msra.mxu0 0.0
    %8453 = vmatprep.subr.mxu0 0.0
    %8454 = vmatpush1.msra.mxu0 0.0
    %8455 = vmatprep.subr.mxu0 0.0
    %8456 = vmatpush1.msra.mxu0 0.0
    %8457 = vmatprep.subr.mxu0 0.0
    %8458 = vmatpush1.msra.mxu0 0.0
    %8459 = vmatprep.subr.mxu0 0.0
    %8460 = vmatpush1.msra.mxu0 0.0
    %8461 = vmatprep.subr.mxu0 0.0
    %8462 = vmatpush1.msra.mxu0 0.0
    %8463 = vmatprep.subr.mxu0 0.0
    %8464 = vmatpush1.msra.mxu0 0.0
    %8465 = vmatprep.subr.mxu0 0.0
    %8466 = vmatpush1.msra.mxu0 0.0
    %8467 = vmatprep.subr.mxu0 0.0
    %8468 = vmatpush1.msra.mxu0 0.0
    %8469 = vmatprep.subr.mxu0 0.0
    %8470 = vmatpush1.msra.mxu0 0.0
    %8471 = vmatprep.subr.mxu0 0.0
    %8472 = vmatpush1.msra.mxu0 0.0
    %8473 = vmatprep.subr.mxu0 0.0
    %8474 = vmatpush1.msra.mxu0 0.0
    %8475 = vmatprep.subr.mxu0 0.0
    %8476 = vmatpush1.msra.mxu0 0.0
    %8477 = vmatprep.subr.mxu0 0.0
    %8478 = vmatpush1.msra.mxu0 0.0
    %8479 = vmatprep.subr.mxu0 0.0
    %8480 = vmatpush1.msra.mxu0 0.0
    %8481 = vmatprep.subr.mxu0 0.0
    %8482 = vmatpush1.msra.mxu0 0.0
    %8483 = vmatprep.subr.mxu0 0.0
    %8484 = vmatpush1.msra.mxu0 0.0
    %8485 = vmatprep.mubr.f32.mxu0 0.0
    %8486 = vmatmul.mubr.f32.gmra.mrb[0].mxu0 %v8419
    %v8487 = vpop.f32.mrb[0].mxu0
    %v8488 = vadd.f32 0.0, %v8487
    %v8489 = vpop.f32.mrb[0].mxu0
    %8490 = vdwg.mxu0
    %8491 = vrot.lane.b32.xlu0 %v8082, 96
    %v8492 = vpop.permute.xlu0 %8491
    %8493 = vrot.lane.b32.xlu0 %v8084, 96
    %v8494 = vpop.permute.xlu0 %8493
    %v8495 = vsel %vm436, %v8492, 0
    %v8497 = vsel %vm436, %v8494, 0
    %8499 = vmatprep.subr.mxu0 0.0
    %8500 = vmatpush1.xpose.msra.mxu0 %v8497
    %8501 = vmatprep.subr.mxu0 0.0
    %8502 = vmatpush1.xpose.msra.mxu0 0.0
    %8503 = vmatprep.subr.mxu0 0.0
    %8504 = vmatpush1.xpose.msra.mxu0 0.0
    %8505 = vmatprep.subr.mxu0 0.0
    %8506 = vmatpush1.xpose.msra.mxu0 0.0
    %8507 = vmatprep.subr.mxu0 0.0
    %8508 = vmatpush1.xpose.msra.mxu0 0.0
    %8509 = vmatprep.subr.mxu0 0.0
    %8510 = vmatpush1.xpose.msra.mxu0 0.0
    %8511 = vmatprep.subr.mxu0 0.0
    %8512 = vmatpush1.xpose.msra.mxu0 0.0
    %8513 = vmatprep.subr.mxu0 0.0
    %8514 = vmatpush1.xpose.msra.mxu0 0.0
    %8515 = vmatprep.subr.mxu0 0.0
    %8516 = vmatpush1.xpose.msra.mxu0 0.0
    %8517 = vmatprep.subr.mxu0 0.0
    %8518 = vmatpush1.xpose.msra.mxu0 0.0
    %8519 = vmatprep.subr.mxu0 0.0
    %8520 = vmatpush1.xpose.msra.mxu0 0.0
    %8521 = vmatprep.subr.mxu0 0.0
    %8522 = vmatpush1.xpose.msra.mxu0 0.0
    %8523 = vmatprep.subr.mxu0 0.0
    %8524 = vmatpush1.xpose.msra.mxu0 0.0
    %8525 = vmatprep.subr.mxu0 0.0
    %8526 = vmatpush1.xpose.msra.mxu0 0.0
    %8527 = vmatprep.subr.mxu0 0.0
    %8528 = vmatpush1.xpose.msra.mxu0 0.0
    %8529 = vmatprep.subr.mxu0 0.0
    %8530 = vmatpush1.xpose.msra.mxu0 0.0
    %8531 = vmatprep.subr.mxu0 0.0
    %8532 = vmatpush1.xpose.msra.mxu0 0.0
    %8533 = vmatprep.subr.mxu0 0.0
    %8534 = vmatpush1.xpose.msra.mxu0 0.0
    %8535 = vmatprep.subr.mxu0 0.0
    %8536 = vmatpush1.xpose.msra.mxu0 0.0
    %8537 = vmatprep.subr.mxu0 0.0
    %8538 = vmatpush1.xpose.msra.mxu0 0.0
    %8539 = vmatprep.subr.mxu0 0.0
    %8540 = vmatpush1.xpose.msra.mxu0 0.0
    %8541 = vmatprep.subr.mxu0 0.0
    %8542 = vmatpush1.xpose.msra.mxu0 0.0
    %8543 = vmatprep.subr.mxu0 0.0
    %8544 = vmatpush1.xpose.msra.mxu0 0.0
    %8545 = vmatprep.subr.mxu0 0.0
    %8546 = vmatpush1.xpose.msra.mxu0 0.0
    %8547 = vmatprep.subr.mxu0 0.0
    %8548 = vmatpush1.xpose.msra.mxu0 0.0
    %8549 = vmatprep.subr.mxu0 0.0
    %8550 = vmatpush1.xpose.msra.mxu0 0.0
    %8551 = vmatprep.subr.mxu0 0.0
    %8552 = vmatpush1.xpose.msra.mxu0 0.0
    %8553 = vmatprep.subr.mxu0 0.0
    %8554 = vmatpush1.xpose.msra.mxu0 0.0
    %8555 = vmatprep.subr.mxu0 0.0
    %8556 = vmatpush1.xpose.msra.mxu0 0.0
    %8557 = vmatprep.subr.mxu0 0.0
    %8558 = vmatpush1.xpose.msra.mxu0 0.0
    %8559 = vmatprep.subr.mxu0 0.0
    %8560 = vmatpush1.xpose.msra.mxu0 0.0
    %8561 = vmatprep.subr.mxu0 0.0
    %8562 = vmatpush1.xpose.msra.mxu0 0.0
    %8563 = vmatprep.mubr.f32.mxu0 0.0
    %8564 = vmatmul.mubr.f32.gmra.mrb[0].mxu0 %v8495
    %v8565 = vpop.f32.mrb[0].mxu0
    %v8566 = vadd.f32 0.0, %v8565
    %v8567 = vpop.f32.mrb[0].mxu0
    %8568 = vdwg.mxu0
    %8569 = vrot.lane.b32.xlu0 %v8088, 96
    %v8570 = vpop.permute.xlu0 %8569
    %8571 = vrot.lane.b32.xlu0 %v8090, 96
    %v8572 = vpop.permute.xlu0 %8571
    %v8573 = vsel %vm436, %v8570, 0
    %v8575 = vsel %vm436, %v8572, 0
    %8577 = vmatprep.subr.mxu0 0.0
    %8578 = vmatpush1.xpose.msra.mxu0 %v8575
    %8579 = vmatprep.subr.mxu0 0.0
    %8580 = vmatpush1.xpose.msra.mxu0 0.0
    %8581 = vmatprep.subr.mxu0 0.0
    %8582 = vmatpush1.xpose.msra.mxu0 0.0
    %8583 = vmatprep.subr.mxu0 0.0
    %8584 = vmatpush1.xpose.msra.mxu0 0.0
    %8585 = vmatprep.subr.mxu0 0.0
    %8586 = vmatpush1.xpose.msra.mxu0 0.0
    %8587 = vmatprep.subr.mxu0 0.0
    %8588 = vmatpush1.xpose.msra.mxu0 0.0
    %8589 = vmatprep.subr.mxu0 0.0
    %8590 = vmatpush1.xpose.msra.mxu0 0.0
    %8591 = vmatprep.subr.mxu0 0.0
    %8592 = vmatpush1.xpose.msra.mxu0 0.0
    %8593 = vmatprep.subr.mxu0 0.0
    %8594 = vmatpush1.xpose.msra.mxu0 0.0
    %8595 = vmatprep.subr.mxu0 0.0
    %8596 = vmatpush1.xpose.msra.mxu0 0.0
    %8597 = vmatprep.subr.mxu0 0.0
    %8598 = vmatpush1.xpose.msra.mxu0 0.0
    %8599 = vmatprep.subr.mxu0 0.0
    %8600 = vmatpush1.xpose.msra.mxu0 0.0
    %8601 = vmatprep.subr.mxu0 0.0
    %8602 = vmatpush1.xpose.msra.mxu0 0.0
    %8603 = vmatprep.subr.mxu0 0.0
    %8604 = vmatpush1.xpose.msra.mxu0 0.0
    %8605 = vmatprep.subr.mxu0 0.0
    %8606 = vmatpush1.xpose.msra.mxu0 0.0
    %8607 = vmatprep.subr.mxu0 0.0
    %8608 = vmatpush1.xpose.msra.mxu0 0.0
    %8609 = vmatprep.subr.mxu0 0.0
    %8610 = vmatpush1.xpose.msra.mxu0 0.0
    %8611 = vmatprep.subr.mxu0 0.0
    %8612 = vmatpush1.xpose.msra.mxu0 0.0
    %8613 = vmatprep.subr.mxu0 0.0
    %8614 = vmatpush1.xpose.msra.mxu0 0.0
    %8615 = vmatprep.subr.mxu0 0.0
    %8616 = vmatpush1.xpose.msra.mxu0 0.0
    %8617 = vmatprep.subr.mxu0 0.0
    %8618 = vmatpush1.xpose.msra.mxu0 0.0
    %8619 = vmatprep.subr.mxu0 0.0
    %8620 = vmatpush1.xpose.msra.mxu0 0.0
    %8621 = vmatprep.subr.mxu0 0.0
    %8622 = vmatpush1.xpose.msra.mxu0 0.0
    %8623 = vmatprep.subr.mxu0 0.0
    %8624 = vmatpush1.xpose.msra.mxu0 0.0
    %8625 = vmatprep.subr.mxu0 0.0
    %8626 = vmatpush1.xpose.msra.mxu0 0.0
    %8627 = vmatprep.subr.mxu0 0.0
    %8628 = vmatpush1.xpose.msra.mxu0 0.0
    %8629 = vmatprep.subr.mxu0 0.0
    %8630 = vmatpush1.xpose.msra.mxu0 0.0
    %8631 = vmatprep.subr.mxu0 0.0
    %8632 = vmatpush1.xpose.msra.mxu0 0.0
    %8633 = vmatprep.subr.mxu0 0.0
    %8634 = vmatpush1.xpose.msra.mxu0 0.0
    %8635 = vmatprep.subr.mxu0 0.0
    %8636 = vmatpush1.xpose.msra.mxu0 0.0
    %8637 = vmatprep.subr.mxu0 0.0
    %8638 = vmatpush1.xpose.msra.mxu0 0.0
    %8639 = vmatprep.subr.mxu0 0.0
    %8640 = vmatpush1.xpose.msra.mxu0 0.0
    %8641 = vmatprep.mubr.f32.mxu0 0.0
    %8642 = vmatmul.mubr.f32.gmra.mrb[0].mxu0 %v8573
    %v8643 = vpop.f32.mrb[0].mxu0
    %v8644 = vadd.f32 0.0, %v8643
    %v8645 = vpop.f32.mrb[0].mxu0
    %8646 = vdwg.mxu0
    %v8647 = vmul.f32 %v8566, 0.17677669
    %v8648 = vmul.f32 %v8644, 0.17677669
    %v8649 = vadd.f32 %v8647, %v6102
    %v8650 = vadd.f32 %v8648, %v6106
    %v8651 = vsel %vm6111, %v8649, -inf
    %8652 = vmax.xlane.f32.xlu0 %v8651
    %v8653 = vpop.xlane.xlu0 %8652
    %v8654 = vsel %vm6111, %v8650, -inf
    %8655 = vmax.xlane.f32.xlu0 %v8654
    %v8656 = vpop.xlane.xlu0 %8655
    %v8657 = vsub.f32 %v8649, %v8653
    %v8658 = vsub.f32 %v8650, %v8656
    %v8659 = vmul.f32 %v8657, 1.442695
    %v8660 = vpow.pop %v8659
    %v8661 = vmul.f32 %v8658, 1.442695
    %v8662 = vpow.pop %v8661
    %v8663 = vsel %vm6111, %v8660, 0.0
    %8664 = vadd.xlane.f32.xlu0 %v8663
    %v8665 = vpop.xlane.xlu0 %8664
    %v8666 = vsel %vm6111, %v8662, 0.0
    %8667 = vadd.xlane.f32.xlu0 %v8666
    %v8668 = vpop.xlane.xlu0 %8667
    %v8669 = vrcp.pop %v8665
    %v8670 = vrcp.pop %v8668
    %v8671 = vmul.f32 %v8660, %v8669
    %v8672 = vmul.f32 %v8662, %v8670
    %8674 = vrot.lane.b32.xlu0 %v8159, 96
    %v8675 = vpop.permute.xlu0 %8674
    %v8678 = vsel %vm6111, %v8671, 0
    %8680 = vmatprep.subr.mxu0 0.0
    %8681 = vmatpush1.msra.mxu0 %v8675
    %8682 = vmatprep.subr.mxu0 0.0
    %8683 = vmatpush1.msra.mxu0 0.0
    %8684 = vmatprep.subr.mxu0 0.0
    %8685 = vmatpush1.msra.mxu0 0.0
    %8686 = vmatprep.subr.mxu0 0.0
    %8687 = vmatpush1.msra.mxu0 0.0
    %8688 = vmatprep.subr.mxu0 0.0
    %8689 = vmatpush1.msra.mxu0 0.0
    %8690 = vmatprep.subr.mxu0 0.0
    %8691 = vmatpush1.msra.mxu0 0.0
    %8692 = vmatprep.subr.mxu0 0.0
    %8693 = vmatpush1.msra.mxu0 0.0
    %8694 = vmatprep.subr.mxu0 0.0
    %8695 = vmatpush1.msra.mxu0 0.0
    %8696 = vmatprep.subr.mxu0 0.0
    %8697 = vmatpush1.msra.mxu0 0.0
    %8698 = vmatprep.subr.mxu0 0.0
    %8699 = vmatpush1.msra.mxu0 0.0
    %8700 = vmatprep.subr.mxu0 0.0
    %8701 = vmatpush1.msra.mxu0 0.0
    %8702 = vmatprep.subr.mxu0 0.0
    %8703 = vmatpush1.msra.mxu0 0.0
    %8704 = vmatprep.subr.mxu0 0.0
    %8705 = vmatpush1.msra.mxu0 0.0
    %8706 = vmatprep.subr.mxu0 0.0
    %8707 = vmatpush1.msra.mxu0 0.0
    %8708 = vmatprep.subr.mxu0 0.0
    %8709 = vmatpush1.msra.mxu0 0.0
    %8710 = vmatprep.subr.mxu0 0.0
    %8711 = vmatpush1.msra.mxu0 0.0
    %8712 = vmatprep.subr.mxu0 0.0
    %8713 = vmatpush1.msra.mxu0 0.0
    %8714 = vmatprep.subr.mxu0 0.0
    %8715 = vmatpush1.msra.mxu0 0.0
    %8716 = vmatprep.subr.mxu0 0.0
    %8717 = vmatpush1.msra.mxu0 0.0
    %8718 = vmatprep.subr.mxu0 0.0
    %8719 = vmatpush1.msra.mxu0 0.0
    %8720 = vmatprep.subr.mxu0 0.0
    %8721 = vmatpush1.msra.mxu0 0.0
    %8722 = vmatprep.subr.mxu0 0.0
    %8723 = vmatpush1.msra.mxu0 0.0
    %8724 = vmatprep.subr.mxu0 0.0
    %8725 = vmatpush1.msra.mxu0 0.0
    %8726 = vmatprep.subr.mxu0 0.0
    %8727 = vmatpush1.msra.mxu0 0.0
    %8728 = vmatprep.subr.mxu0 0.0
    %8729 = vmatpush1.msra.mxu0 0.0
    %8730 = vmatprep.subr.mxu0 0.0
    %8731 = vmatpush1.msra.mxu0 0.0
    %8732 = vmatprep.subr.mxu0 0.0
    %8733 = vmatpush1.msra.mxu0 0.0
    %8734 = vmatprep.subr.mxu0 0.0
    %8735 = vmatpush1.msra.mxu0 0.0
    %8736 = vmatprep.subr.mxu0 0.0
    %8737 = vmatpush1.msra.mxu0 0.0
    %8738 = vmatprep.subr.mxu0 0.0
    %8739 = vmatpush1.msra.mxu0 0.0
    %8740 = vmatprep.subr.mxu0 0.0
    %8741 = vmatpush1.msra.mxu0 0.0
    %8742 = vmatprep.subr.mxu0 0.0
    %8743 = vmatpush1.msra.mxu0 0.0
    %8744 = vmatprep.mubr.f32.mxu0 0.0
    %8745 = vmatmul.mubr.f32.gmra.mrb[0].mxu0 %v8678
    %v8746 = vpop.f32.mrb[0].mxu0
    %v8747 = vadd.f32 0.0, %v8746
    %v8748 = vpop.f32.mrb[0].mxu0
    %8749 = vdwg.mxu0
    %8751 = vrot.lane.b32.xlu0 %v8164, 96
    %v8752 = vpop.permute.xlu0 %8751
    %v8755 = vsel %vm6111, %v8672, 0
    %8757 = vmatprep.subr.mxu0 0.0
    %8758 = vmatpush1.msra.mxu0 %v8752
    %8759 = vmatprep.subr.mxu0 0.0
    %8760 = vmatpush1.msra.mxu0 0.0
    %8761 = vmatprep.subr.mxu0 0.0
    %8762 = vmatpush1.msra.mxu0 0.0
    %8763 = vmatprep.subr.mxu0 0.0
    %8764 = vmatpush1.msra.mxu0 0.0
    %8765 = vmatprep.subr.mxu0 0.0
    %8766 = vmatpush1.msra.mxu0 0.0
    %8767 = vmatprep.subr.mxu0 0.0
    %8768 = vmatpush1.msra.mxu0 0.0
    %8769 = vmatprep.subr.mxu0 0.0
    %8770 = vmatpush1.msra.mxu0 0.0
    %8771 = vmatprep.subr.mxu0 0.0
    %8772 = vmatpush1.msra.mxu0 0.0
    %8773 = vmatprep.subr.mxu0 0.0
    %8774 = vmatpush1.msra.mxu0 0.0
    %8775 = vmatprep.subr.mxu0 0.0
    %8776 = vmatpush1.msra.mxu0 0.0
    %8777 = vmatprep.subr.mxu0 0.0
    %8778 = vmatpush1.msra.mxu0 0.0
    %8779 = vmatprep.subr.mxu0 0.0
    %8780 = vmatpush1.msra.mxu0 0.0
    %8781 = vmatprep.subr.mxu0 0.0
    %8782 = vmatpush1.msra.mxu0 0.0
    %8783 = vmatprep.subr.mxu0 0.0
    %8784 = vmatpush1.msra.mxu0 0.0
    %8785 = vmatprep.subr.mxu0 0.0
    %8786 = vmatpush1.msra.mxu0 0.0
    %8787 = vmatprep.subr.mxu0 0.0
    %8788 = vmatpush1.msra.mxu0 0.0
    %8789 = vmatprep.subr.mxu0 0.0
    %8790 = vmatpush1.msra.mxu0 0.0
    %8791 = vmatprep.subr.mxu0 0.0
    %8792 = vmatpush1.msra.mxu0 0.0
    %8793 = vmatprep.subr.mxu0 0.0
    %8794 = vmatpush1.msra.mxu0 0.0
    %8795 = vmatprep.subr.mxu0 0.0
    %8796 = vmatpush1.msra.mxu0 0.0
    %8797 = vmatprep.subr.mxu0 0.0
    %8798 = vmatpush1.msra.mxu0 0.0
    %8799 = vmatprep.subr.mxu0 0.0
    %8800 = vmatpush1.msra.mxu0 0.0
    %8801 = vmatprep.subr.mxu0 0.0
    %8802 = vmatpush1.msra.mxu0 0.0
    %8803 = vmatprep.subr.mxu0 0.0
    %8804 = vmatpush1.msra.mxu0 0.0
    %8805 = vmatprep.subr.mxu0 0.0
    %8806 = vmatpush1.msra.mxu0 0.0
    %8807 = vmatprep.subr.mxu0 0.0
    %8808 = vmatpush1.msra.mxu0 0.0
    %8809 = vmatprep.subr.mxu0 0.0
    %8810 = vmatpush1.msra.mxu0 0.0
    %8811 = vmatprep.subr.mxu0 0.0
    %8812 = vmatpush1.msra.mxu0 0.0
    %8813 = vmatprep.subr.mxu0 0.0
    %8814 = vmatpush1.msra.mxu0 0.0
    %8815 = vmatprep.subr.mxu0 0.0
    %8816 = vmatpush1.msra.mxu0 0.0
    %8817 = vmatprep.subr.mxu0 0.0
    %8818 = vmatpush1.msra.mxu0 0.0
    %8819 = vmatprep.subr.mxu0 0.0
    %8820 = vmatpush1.msra.mxu0 0.0
    %8821 = vmatprep.mubr.f32.mxu0 0.0
    %8822 = vmatmul.mubr.f32.gmra.mrb[0].mxu0 %v8755
    %v8823 = vpop.f32.mrb[0].mxu0
    %v8824 = vadd.f32 0.0, %v8823
    %v8825 = vpop.f32.mrb[0].mxu0
    %8826 = vdwg.mxu0
    %v8828 = vsel %vm436, %v8747, 0
    %v8831 = vsel %vm436, %v8824, 0
    %8833 = vmatprep.subr.mxu0 0.0
    %8834 = vmatpush1.msra.mxu0 %v7917
    %8835 = vmatprep.subr.mxu0 0.0
    %8836 = vmatpush1.msra.mxu0 %v7918
    %8837 = vmatprep.subr.mxu0 0.0
    %8838 = vmatpush1.msra.mxu0 %v7919
    %8839 = vmatprep.subr.mxu0 0.0
    %8840 = vmatpush1.msra.mxu0 %v7920
    %8841 = vmatprep.subr.mxu0 0.0
    %8842 = vmatpush1.msra.mxu0 0.0
    %8843 = vmatprep.subr.mxu0 0.0
    %8844 = vmatpush1.msra.mxu0 0.0
    %8845 = vmatprep.subr.mxu0 0.0
    %8846 = vmatpush1.msra.mxu0 0.0
    %8847 = vmatprep.subr.mxu0 0.0
    %8848 = vmatpush1.msra.mxu0 0.0
    %8849 = vmatprep.subr.mxu0 0.0
    %8850 = vmatpush1.msra.mxu0 0.0
    %8851 = vmatprep.subr.mxu0 0.0
    %8852 = vmatpush1.msra.mxu0 0.0
    %8853 = vmatprep.subr.mxu0 0.0
    %8854 = vmatpush1.msra.mxu0 0.0
    %8855 = vmatprep.subr.mxu0 0.0
    %8856 = vmatpush1.msra.mxu0 0.0
    %8857 = vmatprep.subr.mxu0 0.0
    %8858 = vmatpush1.msra.mxu0 0.0
    %8859 = vmatprep.subr.mxu0 0.0
    %8860 = vmatpush1.msra.mxu0 0.0
    %8861 = vmatprep.subr.mxu0 0.0
    %8862 = vmatpush1.msra.mxu0 0.0
    %8863 = vmatprep.subr.mxu0 0.0
    %8864 = vmatpush1.msra.mxu0 0.0
    %8865 = vmatprep.subr.mxu0 0.0
    %8866 = vmatpush1.msra.mxu0 0.0
    %8867 = vmatprep.subr.mxu0 0.0
    %8868 = vmatpush1.msra.mxu0 0.0
    %8869 = vmatprep.subr.mxu0 0.0
    %8870 = vmatpush1.msra.mxu0 0.0
    %8871 = vmatprep.subr.mxu0 0.0
    %8872 = vmatpush1.msra.mxu0 0.0
    %8873 = vmatprep.subr.mxu0 0.0
    %8874 = vmatpush1.msra.mxu0 0.0
    %8875 = vmatprep.subr.mxu0 0.0
    %8876 = vmatpush1.msra.mxu0 0.0
    %8877 = vmatprep.subr.mxu0 0.0
    %8878 = vmatpush1.msra.mxu0 0.0
    %8879 = vmatprep.subr.mxu0 0.0
    %8880 = vmatpush1.msra.mxu0 0.0
    %8881 = vmatprep.subr.mxu0 0.0
    %8882 = vmatpush1.msra.mxu0 0.0
    %8883 = vmatprep.subr.mxu0 0.0
    %8884 = vmatpush1.msra.mxu0 0.0
    %8885 = vmatprep.subr.mxu0 0.0
    %8886 = vmatpush1.msra.mxu0 0.0
    %8887 = vmatprep.subr.mxu0 0.0
    %8888 = vmatpush1.msra.mxu0 0.0
    %8889 = vmatprep.subr.mxu0 0.0
    %8890 = vmatpush1.msra.mxu0 0.0
    %8891 = vmatprep.subr.mxu0 0.0
    %8892 = vmatpush1.msra.mxu0 0.0
    %8893 = vmatprep.subr.mxu0 0.0
    %8894 = vmatpush1.msra.mxu0 0.0
    %8895 = vmatprep.subr.mxu0 0.0
    %8896 = vmatpush1.msra.mxu0 0.0
    %8897 = vmatprep.mubr.f32.mxu0 0.0
    %8898 = vmatmul.mubr.f32.gmra.mrb[0].mxu0 %v8828
    %v8899 = vpop.f32.mrb[0].mxu0
    %v8900 = vadd.f32 0.0, %v8899
    %v8901 = vpop.f32.mrb[0].mxu0
    %8902 = vmatprep.mubr.f32.mxu0 0.0
    %8903 = vmatmul.mubr.f32.gmra.mrb[0].mxu0 %v8831
    %v8904 = vpop.f32.mrb[0].mxu0
    %v8905 = vadd.f32 0.0, %v8904
    %v8906 = vpop.f32.mrb[0].mxu0
    %8907 = vdwg.mxu0
    %v8909 = vsel %vm436, %v8415, 0
    %v8912 = vsel %vm436, %v8488, 0
    %8914 = vmatprep.subr.mxu0 0.0
    %8915 = vmatpush1.msra.mxu0 %v7913
    %8916 = vmatprep.subr.mxu0 0.0
    %8917 = vmatpush1.msra.mxu0 %v7914
    %8918 = vmatprep.subr.mxu0 0.0
    %8919 = vmatpush1.msra.mxu0 %v7915
    %8920 = vmatprep.subr.mxu0 0.0
    %8921 = vmatpush1.msra.mxu0 %v7916
    %8922 = vmatprep.subr.mxu0 0.0
    %8923 = vmatpush1.msra.mxu0 0.0
    %8924 = vmatprep.subr.mxu0 0.0
    %8925 = vmatpush1.msra.mxu0 0.0
    %8926 = vmatprep.subr.mxu0 0.0
    %8927 = vmatpush1.msra.mxu0 0.0
    %8928 = vmatprep.subr.mxu0 0.0
    %8929 = vmatpush1.msra.mxu0 0.0
    %8930 = vmatprep.subr.mxu0 0.0
    %8931 = vmatpush1.msra.mxu0 0.0
    %8932 = vmatprep.subr.mxu0 0.0
    %8933 = vmatpush1.msra.mxu0 0.0
    %8934 = vmatprep.subr.mxu0 0.0
    %8935 = vmatpush1.msra.mxu0 0.0
    %8936 = vmatprep.subr.mxu0 0.0
    %8937 = vmatpush1.msra.mxu0 0.0
    %8938 = vmatprep.subr.mxu0 0.0
    %8939 = vmatpush1.msra.mxu0 0.0
    %8940 = vmatprep.subr.mxu0 0.0
    %8941 = vmatpush1.msra.mxu0 0.0
    %8942 = vmatprep.subr.mxu0 0.0
    %8943 = vmatpush1.msra.mxu0 0.0
    %8944 = vmatprep.subr.mxu0 0.0
    %8945 = vmatpush1.msra.mxu0 0.0
    %8946 = vmatprep.subr.mxu0 0.0
    %8947 = vmatpush1.msra.mxu0 0.0
    %8948 = vmatprep.subr.mxu0 0.0
    %8949 = vmatpush1.msra.mxu0 0.0
    %8950 = vmatprep.subr.mxu0 0.0
    %8951 = vmatpush1.msra.mxu0 0.0
    %8952 = vmatprep.subr.mxu0 0.0
    %8953 = vmatpush1.msra.mxu0 0.0
    %8954 = vmatprep.subr.mxu0 0.0
    %8955 = vmatpush1.msra.mxu0 0.0
    %8956 = vmatprep.subr.mxu0 0.0
    %8957 = vmatpush1.msra.mxu0 0.0
    %8958 = vmatprep.subr.mxu0 0.0
    %8959 = vmatpush1.msra.mxu0 0.0
    %8960 = vmatprep.subr.mxu0 0.0
    %8961 = vmatpush1.msra.mxu0 0.0
    %8962 = vmatprep.subr.mxu0 0.0
    %8963 = vmatpush1.msra.mxu0 0.0
    %8964 = vmatprep.subr.mxu0 0.0
    %8965 = vmatpush1.msra.mxu0 0.0
    %8966 = vmatprep.subr.mxu0 0.0
    %8967 = vmatpush1.msra.mxu0 0.0
    %8968 = vmatprep.subr.mxu0 0.0
    %8969 = vmatpush1.msra.mxu0 0.0
    %8970 = vmatprep.subr.mxu0 0.0
    %8971 = vmatpush1.msra.mxu0 0.0
    %8972 = vmatprep.subr.mxu0 0.0
    %8973 = vmatpush1.msra.mxu0 0.0
    %8974 = vmatprep.subr.mxu0 0.0
    %8975 = vmatpush1.msra.mxu0 0.0
    %8976 = vmatprep.subr.mxu0 0.0
    %8977 = vmatpush1.msra.mxu0 0.0
    %8978 = vmatprep.mubr.f32.mxu0 0.0
    %8979 = vmatmul.mubr.f32.gmra.mrb[0].mxu0 %v8909
    %v8980 = vpop.f32.mrb[0].mxu0
    %v8981 = vadd.f32 %v8900, %v8980
    %v8982 = vpop.f32.mrb[0].mxu0
    %8983 = vmatprep.mubr.f32.mxu0 0.0
    %8984 = vmatmul.mubr.f32.gmra.mrb[0].mxu0 %v8912
    %v8985 = vpop.f32.mrb[0].mxu0
    %v8986 = vadd.f32 %v8905, %v8985
    %v8987 = vpop.f32.mrb[0].mxu0
    %8988 = vdwg.mxu0
    %8989 = vrot.lane.b32.xlu0 %v8082, 64
    %v8990 = vpop.permute.xlu0 %8989
    %8991 = vrot.lane.b32.xlu0 %v8084, 64
    %v8992 = vpop.permute.xlu0 %8991
    %v8993 = vsel %vm436, %v8990, 0
    %v8995 = vsel %vm436, %v8992, 0
    %8997 = vmatprep.subr.mxu0 0.0
    %8998 = vmatpush1.xpose.msra.mxu0 %v8995
    %8999 = vmatprep.subr.mxu0 0.0
    %9000 = vmatpush1.xpose.msra.mxu0 0.0
    %9001 = vmatprep.subr.mxu0 0.0
    %9002 = vmatpush1.xpose.msra.mxu0 0.0
    %9003 = vmatprep.subr.mxu0 0.0
    %9004 = vmatpush1.xpose.msra.mxu0 0.0
    %9005 = vmatprep.subr.mxu0 0.0
    %9006 = vmatpush1.xpose.msra.mxu0 0.0
    %9007 = vmatprep.subr.mxu0 0.0
    %9008 = vmatpush1.xpose.msra.mxu0 0.0
    %9009 = vmatprep.subr.mxu0 0.0
    %9010 = vmatpush1.xpose.msra.mxu0 0.0
    %9011 = vmatprep.subr.mxu0 0.0
    %9012 = vmatpush1.xpose.msra.mxu0 0.0
    %9013 = vmatprep.subr.mxu0 0.0
    %9014 = vmatpush1.xpose.msra.mxu0 0.0
    %9015 = vmatprep.subr.mxu0 0.0
    %9016 = vmatpush1.xpose.msra.mxu0 0.0
    %9017 = vmatprep.subr.mxu0 0.0
    %9018 = vmatpush1.xpose.msra.mxu0 0.0
    %9019 = vmatprep.subr.mxu0 0.0
    %9020 = vmatpush1.xpose.msra.mxu0 0.0
    %9021 = vmatprep.subr.mxu0 0.0
    %9022 = vmatpush1.xpose.msra.mxu0 0.0
    %9023 = vmatprep.subr.mxu0 0.0
    %9024 = vmatpush1.xpose.msra.mxu0 0.0
    %9025 = vmatprep.subr.mxu0 0.0
    %9026 = vmatpush1.xpose.msra.mxu0 0.0
    %9027 = vmatprep.subr.mxu0 0.0
    %9028 = vmatpush1.xpose.msra.mxu0 0.0
    %9029 = vmatprep.subr.mxu0 0.0
    %9030 = vmatpush1.xpose.msra.mxu0 0.0
    %9031 = vmatprep.subr.mxu0 0.0
    %9032 = vmatpush1.xpose.msra.mxu0 0.0
    %9033 = vmatprep.subr.mxu0 0.0
    %9034 = vmatpush1.xpose.msra.mxu0 0.0
    %9035 = vmatprep.subr.mxu0 0.0
    %9036 = vmatpush1.xpose.msra.mxu0 0.0
    %9037 = vmatprep.subr.mxu0 0.0
    %9038 = vmatpush1.xpose.msra.mxu0 0.0
    %9039 = vmatprep.subr.mxu0 0.0
    %9040 = vmatpush1.xpose.msra.mxu0 0.0
    %9041 = vmatprep.subr.mxu0 0.0
    %9042 = vmatpush1.xpose.msra.mxu0 0.0
    %9043 = vmatprep.subr.mxu0 0.0
    %9044 = vmatpush1.xpose.msra.mxu0 0.0
    %9045 = vmatprep.subr.mxu0 0.0
    %9046 = vmatpush1.xpose.msra.mxu0 0.0
    %9047 = vmatprep.subr.mxu0 0.0
    %9048 = vmatpush1.xpose.msra.mxu0 0.0
    %9049 = vmatprep.subr.mxu0 0.0
    %9050 = vmatpush1.xpose.msra.mxu0 0.0
    %9051 = vmatprep.subr.mxu0 0.0
    %9052 = vmatpush1.xpose.msra.mxu0 0.0
    %9053 = vmatprep.subr.mxu0 0.0
    %9054 = vmatpush1.xpose.msra.mxu0 0.0
    %9055 = vmatprep.subr.mxu0 0.0
    %9056 = vmatpush1.xpose.msra.mxu0 0.0
    %9057 = vmatprep.subr.mxu0 0.0
    %9058 = vmatpush1.xpose.msra.mxu0 0.0
    %9059 = vmatprep.subr.mxu0 0.0
    %9060 = vmatpush1.xpose.msra.mxu0 0.0
    %9061 = vmatprep.mubr.f32.mxu0 0.0
    %9062 = vmatmul.mubr.f32.gmra.mrb[0].mxu0 %v8993
    %v9063 = vpop.f32.mrb[0].mxu0
    %v9064 = vadd.f32 0.0, %v9063
    %v9065 = vpop.f32.mrb[0].mxu0
    %9066 = vdwg.mxu0
    %9067 = vrot.lane.b32.xlu0 %v8088, 64
    %v9068 = vpop.permute.xlu0 %9067
    %9069 = vrot.lane.b32.xlu0 %v8090, 64
    %v9070 = vpop.permute.xlu0 %9069
    %v9071 = vsel %vm436, %v9068, 0
    %v9073 = vsel %vm436, %v9070, 0
    %9075 = vmatprep.subr.mxu0 0.0
    %9076 = vmatpush1.xpose.msra.mxu0 %v9073
    %9077 = vmatprep.subr.mxu0 0.0
    %9078 = vmatpush1.xpose.msra.mxu0 0.0
    %9079 = vmatprep.subr.mxu0 0.0
    %9080 = vmatpush1.xpose.msra.mxu0 0.0
    %9081 = vmatprep.subr.mxu0 0.0
    %9082 = vmatpush1.xpose.msra.mxu0 0.0
    %9083 = vmatprep.subr.mxu0 0.0
    %9084 = vmatpush1.xpose.msra.mxu0 0.0
    %9085 = vmatprep.subr.mxu0 0.0
    %9086 = vmatpush1.xpose.msra.mxu0 0.0
    %9087 = vmatprep.subr.mxu0 0.0
    %9088 = vmatpush1.xpose.msra.mxu0 0.0
    %9089 = vmatprep.subr.mxu0 0.0
    %9090 = vmatpush1.xpose.msra.mxu0 0.0
    %9091 = vmatprep.subr.mxu0 0.0
    %9092 = vmatpush1.xpose.msra.mxu0 0.0
    %9093 = vmatprep.subr.mxu0 0.0
    %9094 = vmatpush1.xpose.msra.mxu0 0.0
    %9095 = vmatprep.subr.mxu0 0.0
    %9096 = vmatpush1.xpose.msra.mxu0 0.0
    %9097 = vmatprep.subr.mxu0 0.0
    %9098 = vmatpush1.xpose.msra.mxu0 0.0
    %9099 = vmatprep.subr.mxu0 0.0
    %9100 = vmatpush1.xpose.msra.mxu0 0.0
    %9101 = vmatprep.subr.mxu0 0.0
    %9102 = vmatpush1.xpose.msra.mxu0 0.0
    %9103 = vmatprep.subr.mxu0 0.0
    %9104 = vmatpush1.xpose.msra.mxu0 0.0
    %9105 = vmatprep.subr.mxu0 0.0
    %9106 = vmatpush1.xpose.msra.mxu0 0.0
    %9107 = vmatprep.subr.mxu0 0.0
    %9108 = vmatpush1.xpose.msra.mxu0 0.0
    %9109 = vmatprep.subr.mxu0 0.0
    %9110 = vmatpush1.xpose.msra.mxu0 0.0
    %9111 = vmatprep.subr.mxu0 0.0
    %9112 = vmatpush1.xpose.msra.mxu0 0.0
    %9113 = vmatprep.subr.mxu0 0.0
    %9114 = vmatpush1.xpose.msra.mxu0 0.0
    %9115 = vmatprep.subr.mxu0 0.0
    %9116 = vmatpush1.xpose.msra.mxu0 0.0
    %9117 = vmatprep.subr.mxu0 0.0
    %9118 = vmatpush1.xpose.msra.mxu0 0.0
    %9119 = vmatprep.subr.mxu0 0.0
    %9120 = vmatpush1.xpose.msra.mxu0 0.0
    %9121 = vmatprep.subr.mxu0 0.0
    %9122 = vmatpush1.xpose.msra.mxu0 0.0
    %9123 = vmatprep.subr.mxu0 0.0
    %9124 = vmatpush1.xpose.msra.mxu0 0.0
    %9125 = vmatprep.subr.mxu0 0.0
    %9126 = vmatpush1.xpose.msra.mxu0 0.0
    %9127 = vmatprep.subr.mxu0 0.0
    %9128 = vmatpush1.xpose.msra.mxu0 0.0
    %9129 = vmatprep.subr.mxu0 0.0
    %9130 = vmatpush1.xpose.msra.mxu0 0.0
    %9131 = vmatprep.subr.mxu0 0.0
    %9132 = vmatpush1.xpose.msra.mxu0 0.0
    %9133 = vmatprep.subr.mxu0 0.0
    %9134 = vmatpush1.xpose.msra.mxu0 0.0
    %9135 = vmatprep.subr.mxu0 0.0
    %9136 = vmatpush1.xpose.msra.mxu0 0.0
    %9137 = vmatprep.subr.mxu0 0.0
    %9138 = vmatpush1.xpose.msra.mxu0 0.0
    %9139 = vmatprep.mubr.f32.mxu0 0.0
    %9140 = vmatmul.mubr.f32.gmra.mrb[0].mxu0 %v9071
    %v9141 = vpop.f32.mrb[0].mxu0
    %v9142 = vadd.f32 0.0, %v9141
    %v9143 = vpop.f32.mrb[0].mxu0
    %9144 = vdwg.mxu0
    %v9145 = vmul.f32 %v9064, 0.17677669
    %v9146 = vmul.f32 %v9142, 0.17677669
    %v9147 = vadd.f32 %v9145, %v6102
    %v9148 = vadd.f32 %v9146, %v6106
    %v9149 = vsel %vm6111, %v9147, -inf
    %9150 = vmax.xlane.f32.xlu0 %v9149
    %v9151 = vpop.xlane.xlu0 %9150
    %v9152 = vsel %vm6111, %v9148, -inf
    %9153 = vmax.xlane.f32.xlu0 %v9152
    %v9154 = vpop.xlane.xlu0 %9153
    %v9155 = vsub.f32 %v9147, %v9151
    %v9156 = vsub.f32 %v9148, %v9154
    %v9157 = vmul.f32 %v9155, 1.442695
    %v9158 = vpow.pop %v9157
    %v9159 = vmul.f32 %v9156, 1.442695
    %v9160 = vpow.pop %v9159
    %v9161 = vsel %vm6111, %v9158, 0.0
    %9162 = vadd.xlane.f32.xlu0 %v9161
    %v9163 = vpop.xlane.xlu0 %9162
    %v9164 = vsel %vm6111, %v9160, 0.0
    %9165 = vadd.xlane.f32.xlu0 %v9164
    %v9166 = vpop.xlane.xlu0 %9165
    %v9167 = vrcp.pop %v9163
    %v9168 = vrcp.pop %v9166
    %v9169 = vmul.f32 %v9158, %v9167
    %v9170 = vmul.f32 %v9160, %v9168
    %9171 = vrot.lane.b32.xlu0 %v8159, 64
    %v9172 = vpop.permute.xlu0 %9171
    %v9175 = vsel %vm6111, %v9169, 0
    %9177 = vmatprep.subr.mxu0 0.0
    %9178 = vmatpush1.msra.mxu0 %v9172
    %9179 = vmatprep.subr.mxu0 0.0
    %9180 = vmatpush1.msra.mxu0 0.0
    %9181 = vmatprep.subr.mxu0 0.0
    %9182 = vmatpush1.msra.mxu0 0.0
    %9183 = vmatprep.subr.mxu0 0.0
    %9184 = vmatpush1.msra.mxu0 0.0
    %9185 = vmatprep.subr.mxu0 0.0
    %9186 = vmatpush1.msra.mxu0 0.0
    %9187 = vmatprep.subr.mxu0 0.0
    %9188 = vmatpush1.msra.mxu0 0.0
    %9189 = vmatprep.subr.mxu0 0.0
    %9190 = vmatpush1.msra.mxu0 0.0
    %9191 = vmatprep.subr.mxu0 0.0
    %9192 = vmatpush1.msra.mxu0 0.0
    %9193 = vmatprep.subr.mxu0 0.0
    %9194 = vmatpush1.msra.mxu0 0.0
    %9195 = vmatprep.subr.mxu0 0.0
    %9196 = vmatpush1.msra.mxu0 0.0
    %9197 = vmatprep.subr.mxu0 0.0
    %9198 = vmatpush1.msra.mxu0 0.0
    %9199 = vmatprep.subr.mxu0 0.0
    %9200 = vmatpush1.msra.mxu0 0.0
    %9201 = vmatprep.subr.mxu0 0.0
    %9202 = vmatpush1.msra.mxu0 0.0
    %9203 = vmatprep.subr.mxu0 0.0
    %9204 = vmatpush1.msra.mxu0 0.0
    %9205 = vmatprep.subr.mxu0 0.0
    %9206 = vmatpush1.msra.mxu0 0.0
    %9207 = vmatprep.subr.mxu0 0.0
    %9208 = vmatpush1.msra.mxu0 0.0
    %9209 = vmatprep.subr.mxu0 0.0
    %9210 = vmatpush1.msra.mxu0 0.0
    %9211 = vmatprep.subr.mxu0 0.0
    %9212 = vmatpush1.msra.mxu0 0.0
    %9213 = vmatprep.subr.mxu0 0.0
    %9214 = vmatpush1.msra.mxu0 0.0
    %9215 = vmatprep.subr.mxu0 0.0
    %9216 = vmatpush1.msra.mxu0 0.0
    %9217 = vmatprep.subr.mxu0 0.0
    %9218 = vmatpush1.msra.mxu0 0.0
    %9219 = vmatprep.subr.mxu0 0.0
    %9220 = vmatpush1.msra.mxu0 0.0
    %9221 = vmatprep.subr.mxu0 0.0
    %9222 = vmatpush1.msra.mxu0 0.0
    %9223 = vmatprep.subr.mxu0 0.0
    %9224 = vmatpush1.msra.mxu0 0.0
    %9225 = vmatprep.subr.mxu0 0.0
    %9226 = vmatpush1.msra.mxu0 0.0
    %9227 = vmatprep.subr.mxu0 0.0
    %9228 = vmatpush1.msra.mxu0 0.0
    %9229 = vmatprep.subr.mxu0 0.0
    %9230 = vmatpush1.msra.mxu0 0.0
    %9231 = vmatprep.subr.mxu0 0.0
    %9232 = vmatpush1.msra.mxu0 0.0
    %9233 = vmatprep.subr.mxu0 0.0
    %9234 = vmatpush1.msra.mxu0 0.0
    %9235 = vmatprep.subr.mxu0 0.0
    %9236 = vmatpush1.msra.mxu0 0.0
    %9237 = vmatprep.subr.mxu0 0.0
    %9238 = vmatpush1.msra.mxu0 0.0
    %9239 = vmatprep.subr.mxu0 0.0
    %9240 = vmatpush1.msra.mxu0 0.0
    %9241 = vmatprep.mubr.f32.mxu0 0.0
    %9242 = vmatmul.mubr.f32.gmra.mrb[0].mxu0 %v9175
    %v9243 = vpop.f32.mrb[0].mxu0
    %v9244 = vadd.f32 0.0, %v9243
    %v9245 = vpop.f32.mrb[0].mxu0
    %9246 = vdwg.mxu0
    %9247 = vrot.lane.b32.xlu0 %v8164, 64
    %v9248 = vpop.permute.xlu0 %9247
    %v9251 = vsel %vm6111, %v9170, 0
    %9253 = vmatprep.subr.mxu0 0.0
    %9254 = vmatpush1.msra.mxu0 %v9248
    %9255 = vmatprep.subr.mxu0 0.0
    %9256 = vmatpush1.msra.mxu0 0.0
    %9257 = vmatprep.subr.mxu0 0.0
    %9258 = vmatpush1.msra.mxu0 0.0
    %9259 = vmatprep.subr.mxu0 0.0
    %9260 = vmatpush1.msra.mxu0 0.0
    %9261 = vmatprep.subr.mxu0 0.0
    %9262 = vmatpush1.msra.mxu0 0.0
    %9263 = vmatprep.subr.mxu0 0.0
    %9264 = vmatpush1.msra.mxu0 0.0
    %9265 = vmatprep.subr.mxu0 0.0
    %9266 = vmatpush1.msra.mxu0 0.0
    %9267 = vmatprep.subr.mxu0 0.0
    %9268 = vmatpush1.msra.mxu0 0.0
    %9269 = vmatprep.subr.mxu0 0.0
    %9270 = vmatpush1.msra.mxu0 0.0
    %9271 = vmatprep.subr.mxu0 0.0
    %9272 = vmatpush1.msra.mxu0 0.0
    %9273 = vmatprep.subr.mxu0 0.0
    %9274 = vmatpush1.msra.mxu0 0.0
    %9275 = vmatprep.subr.mxu0 0.0
    %9276 = vmatpush1.msra.mxu0 0.0
    %9277 = vmatprep.subr.mxu0 0.0
    %9278 = vmatpush1.msra.mxu0 0.0
    %9279 = vmatprep.subr.mxu0 0.0
    %9280 = vmatpush1.msra.mxu0 0.0
    %9281 = vmatprep.subr.mxu0 0.0
    %9282 = vmatpush1.msra.mxu0 0.0
    %9283 = vmatprep.subr.mxu0 0.0
    %9284 = vmatpush1.msra.mxu0 0.0
    %9285 = vmatprep.subr.mxu0 0.0
    %9286 = vmatpush1.msra.mxu0 0.0
    %9287 = vmatprep.subr.mxu0 0.0
    %9288 = vmatpush1.msra.mxu0 0.0
    %9289 = vmatprep.subr.mxu0 0.0
    %9290 = vmatpush1.msra.mxu0 0.0
    %9291 = vmatprep.subr.mxu0 0.0
    %9292 = vmatpush1.msra.mxu0 0.0
    %9293 = vmatprep.subr.mxu0 0.0
    %9294 = vmatpush1.msra.mxu0 0.0
    %9295 = vmatprep.subr.mxu0 0.0
    %9296 = vmatpush1.msra.mxu0 0.0
    %9297 = vmatprep.subr.mxu0 0.0
    %9298 = vmatpush1.msra.mxu0 0.0
    %9299 = vmatprep.subr.mxu0 0.0
    %9300 = vmatpush1.msra.mxu0 0.0
    %9301 = vmatprep.subr.mxu0 0.0
    %9302 = vmatpush1.msra.mxu0 0.0
    %9303 = vmatprep.subr.mxu0 0.0
    %9304 = vmatpush1.msra.mxu0 0.0
    %9305 = vmatprep.subr.mxu0 0.0
    %9306 = vmatpush1.msra.mxu0 0.0
    %9307 = vmatprep.subr.mxu0 0.0
    %9308 = vmatpush1.msra.mxu0 0.0
    %9309 = vmatprep.subr.mxu0 0.0
    %9310 = vmatpush1.msra.mxu0 0.0
    %9311 = vmatprep.subr.mxu0 0.0
    %9312 = vmatpush1.msra.mxu0 0.0
    %9313 = vmatprep.subr.mxu0 0.0
    %9314 = vmatpush1.msra.mxu0 0.0
    %9315 = vmatprep.subr.mxu0 0.0
    %9316 = vmatpush1.msra.mxu0 0.0
    %9317 = vmatprep.mubr.f32.mxu0 0.0
    %9318 = vmatmul.mubr.f32.gmra.mrb[0].mxu0 %v9251
    %v9319 = vpop.f32.mrb[0].mxu0
    %v9320 = vadd.f32 0.0, %v9319
    %v9321 = vpop.f32.mrb[0].mxu0
    %9322 = vdwg.mxu0
    %v9324 = vsel %vm436, %v9244, 0
    %v9327 = vsel %vm436, %v9320, 0
    %9329 = vmatprep.subr.mxu0 0.0
    %9330 = vmatpush1.msra.mxu0 %v7921
    %9331 = vmatprep.subr.mxu0 0.0
    %9332 = vmatpush1.msra.mxu0 %v7922
    %9333 = vmatprep.subr.mxu0 0.0
    %9334 = vmatpush1.msra.mxu0 %v7923
    %9335 = vmatprep.subr.mxu0 0.0
    %9336 = vmatpush1.msra.mxu0 %v7924
    %9337 = vmatprep.subr.mxu0 0.0
    %9338 = vmatpush1.msra.mxu0 0.0
    %9339 = vmatprep.subr.mxu0 0.0
    %9340 = vmatpush1.msra.mxu0 0.0
    %9341 = vmatprep.subr.mxu0 0.0
    %9342 = vmatpush1.msra.mxu0 0.0
    %9343 = vmatprep.subr.mxu0 0.0
    %9344 = vmatpush1.msra.mxu0 0.0
    %9345 = vmatprep.subr.mxu0 0.0
    %9346 = vmatpush1.msra.mxu0 0.0
    %9347 = vmatprep.subr.mxu0 0.0
    %9348 = vmatpush1.msra.mxu0 0.0
    %9349 = vmatprep.subr.mxu0 0.0
    %9350 = vmatpush1.msra.mxu0 0.0
    %9351 = vmatprep.subr.mxu0 0.0
    %9352 = vmatpush1.msra.mxu0 0.0
    %9353 = vmatprep.subr.mxu0 0.0
    %9354 = vmatpush1.msra.mxu0 0.0
    %9355 = vmatprep.subr.mxu0 0.0
    %9356 = vmatpush1.msra.mxu0 0.0
    %9357 = vmatprep.subr.mxu0 0.0
    %9358 = vmatpush1.msra.mxu0 0.0
    %9359 = vmatprep.subr.mxu0 0.0
    %9360 = vmatpush1.msra.mxu0 0.0
    %9361 = vmatprep.subr.mxu0 0.0
    %9362 = vmatpush1.msra.mxu0 0.0
    %9363 = vmatprep.subr.mxu0 0.0
    %9364 = vmatpush1.msra.mxu0 0.0
    %9365 = vmatprep.subr.mxu0 0.0
    %9366 = vmatpush1.msra.mxu0 0.0
    %9367 = vmatprep.subr.mxu0 0.0
    %9368 = vmatpush1.msra.mxu0 0.0
    %9369 = vmatprep.subr.mxu0 0.0
    %9370 = vmatpush1.msra.mxu0 0.0
    %9371 = vmatprep.subr.mxu0 0.0
    %9372 = vmatpush1.msra.mxu0 0.0
    %9373 = vmatprep.subr.mxu0 0.0
    %9374 = vmatpush1.msra.mxu0 0.0
    %9375 = vmatprep.subr.mxu0 0.0
    %9376 = vmatpush1.msra.mxu0 0.0
    %9377 = vmatprep.subr.mxu0 0.0
    %9378 = vmatpush1.msra.mxu0 0.0
    %9379 = vmatprep.subr.mxu0 0.0
    %9380 = vmatpush1.msra.mxu0 0.0
    %9381 = vmatprep.subr.mxu0 0.0
    %9382 = vmatpush1.msra.mxu0 0.0
    %9383 = vmatprep.subr.mxu0 0.0
    %9384 = vmatpush1.msra.mxu0 0.0
    %9385 = vmatprep.subr.mxu0 0.0
    %9386 = vmatpush1.msra.mxu0 0.0
    %9387 = vmatprep.subr.mxu0 0.0
    %9388 = vmatpush1.msra.mxu0 0.0
    %9389 = vmatprep.subr.mxu0 0.0
    %9390 = vmatpush1.msra.mxu0 0.0
    %9391 = vmatprep.subr.mxu0 0.0
    %9392 = vmatpush1.msra.mxu0 0.0
    %9393 = vmatprep.mubr.f32.mxu0 0.0
    %9394 = vmatmul.mubr.f32.gmra.mrb[0].mxu0 %v9324
    %v9395 = vpop.f32.mrb[0].mxu0
    %v9396 = vadd.f32 0.0, %v9395
    %v9397 = vpop.f32.mrb[0].mxu0
    %9398 = vmatprep.mubr.f32.mxu0 0.0
    %9399 = vmatmul.mubr.f32.gmra.mrb[0].mxu0 %v9327
    %v9400 = vpop.f32.mrb[0].mxu0
    %v9401 = vadd.f32 0.0, %v9400
    %v9402 = vpop.f32.mrb[0].mxu0
    %9403 = vdwg.mxu0
    %v9404 = vadd.f32 %v8981, %v9396
    %v9405 = vadd.f32 %v8986, %v9401
    %9406 = vrot.lane.b32.xlu0 %v8082, 32
    %v9407 = vpop.permute.xlu0 %9406
    %9408 = vrot.lane.b32.xlu0 %v8084, 32
    %v9409 = vpop.permute.xlu0 %9408
    %v9410 = vsel %vm436, %v9407, 0
    %v9412 = vsel %vm436, %v9409, 0
    %9414 = vmatprep.subr.mxu0 0.0
    %9415 = vmatpush1.xpose.msra.mxu0 %v9412
    %9416 = vmatprep.subr.mxu0 0.0
    %9417 = vmatpush1.xpose.msra.mxu0 0.0
    %9418 = vmatprep.subr.mxu0 0.0
    %9419 = vmatpush1.xpose.msra.mxu0 0.0
    %9420 = vmatprep.subr.mxu0 0.0
    %9421 = vmatpush1.xpose.msra.mxu0 0.0
    %9422 = vmatprep.subr.mxu0 0.0
    %9423 = vmatpush1.xpose.msra.mxu0 0.0
    %9424 = vmatprep.subr.mxu0 0.0
    %9425 = vmatpush1.xpose.msra.mxu0 0.0
    %9426 = vmatprep.subr.mxu0 0.0
    %9427 = vmatpush1.xpose.msra.mxu0 0.0
    %9428 = vmatprep.subr.mxu0 0.0
    %9429 = vmatpush1.xpose.msra.mxu0 0.0
    %9430 = vmatprep.subr.mxu0 0.0
    %9431 = vmatpush1.xpose.msra.mxu0 0.0
    %9432 = vmatprep.subr.mxu0 0.0
    %9433 = vmatpush1.xpose.msra.mxu0 0.0
    %9434 = vmatprep.subr.mxu0 0.0
    %9435 = vmatpush1.xpose.msra.mxu0 0.0
    %9436 = vmatprep.subr.mxu0 0.0
    %9437 = vmatpush1.xpose.msra.mxu0 0.0
    %9438 = vmatprep.subr.mxu0 0.0
    %9439 = vmatpush1.xpose.msra.mxu0 0.0
    %9440 = vmatprep.subr.mxu0 0.0
    %9441 = vmatpush1.xpose.msra.mxu0 0.0
    %9442 = vmatprep.subr.mxu0 0.0
    %9443 = vmatpush1.xpose.msra.mxu0 0.0
    %9444 = vmatprep.subr.mxu0 0.0
    %9445 = vmatpush1.xpose.msra.mxu0 0.0
    %9446 = vmatprep.subr.mxu0 0.0
    %9447 = vmatpush1.xpose.msra.mxu0 0.0
    %9448 = vmatprep.subr.mxu0 0.0
    %9449 = vmatpush1.xpose.msra.mxu0 0.0
    %9450 = vmatprep.subr.mxu0 0.0
    %9451 = vmatpush1.xpose.msra.mxu0 0.0
    %9452 = vmatprep.subr.mxu0 0.0
    %9453 = vmatpush1.xpose.msra.mxu0 0.0
    %9454 = vmatprep.subr.mxu0 0.0
    %9455 = vmatpush1.xpose.msra.mxu0 0.0
    %9456 = vmatprep.subr.mxu0 0.0
    %9457 = vmatpush1.xpose.msra.mxu0 0.0
    %9458 = vmatprep.subr.mxu0 0.0
    %9459 = vmatpush1.xpose.msra.mxu0 0.0
    %9460 = vmatprep.subr.mxu0 0.0
    %9461 = vmatpush1.xpose.msra.mxu0 0.0
    %9462 = vmatprep.subr.mxu0 0.0
    %9463 = vmatpush1.xpose.msra.mxu0 0.0
    %9464 = vmatprep.subr.mxu0 0.0
    %9465 = vmatpush1.xpose.msra.mxu0 0.0
    %9466 = vmatprep.subr.mxu0 0.0
    %9467 = vmatpush1.xpose.msra.mxu0 0.0
    %9468 = vmatprep.subr.mxu0 0.0
    %9469 = vmatpush1.xpose.msra.mxu0 0.0
    %9470 = vmatprep.subr.mxu0 0.0
    %9471 = vmatpush1.xpose.msra.mxu0 0.0
    %9472 = vmatprep.subr.mxu0 0.0
    %9473 = vmatpush1.xpose.msra.mxu0 0.0
    %9474 = vmatprep.subr.mxu0 0.0
    %9475 = vmatpush1.xpose.msra.mxu0 0.0
    %9476 = vmatprep.subr.mxu0 0.0
    %9477 = vmatpush1.xpose.msra.mxu0 0.0
    %9478 = vmatprep.mubr.f32.mxu0 0.0
    %9479 = vmatmul.mubr.f32.gmra.mrb[0].mxu0 %v9410
    %v9480 = vpop.f32.mrb[0].mxu0
    %v9481 = vadd.f32 0.0, %v9480
    %v9482 = vpop.f32.mrb[0].mxu0
    %9483 = vdwg.mxu0
    %9484 = vrot.lane.b32.xlu0 %v8088, 32
    %v9485 = vpop.permute.xlu0 %9484
    %9486 = vrot.lane.b32.xlu0 %v8090, 32
    %v9487 = vpop.permute.xlu0 %9486
    %v9488 = vsel %vm436, %v9485, 0
    %v9490 = vsel %vm436, %v9487, 0
    %9492 = vmatprep.subr.mxu0 0.0
    %9493 = vmatpush1.xpose.msra.mxu0 %v9490
    %9494 = vmatprep.subr.mxu0 0.0
    %9495 = vmatpush1.xpose.msra.mxu0 0.0
    %9496 = vmatprep.subr.mxu0 0.0
    %9497 = vmatpush1.xpose.msra.mxu0 0.0
    %9498 = vmatprep.subr.mxu0 0.0
    %9499 = vmatpush1.xpose.msra.mxu0 0.0
    %9500 = vmatprep.subr.mxu0 0.0
    %9501 = vmatpush1.xpose.msra.mxu0 0.0
    %9502 = vmatprep.subr.mxu0 0.0
    %9503 = vmatpush1.xpose.msra.mxu0 0.0
    %9504 = vmatprep.subr.mxu0 0.0
    %9505 = vmatpush1.xpose.msra.mxu0 0.0
    %9506 = vmatprep.subr.mxu0 0.0
    %9507 = vmatpush1.xpose.msra.mxu0 0.0
    %9508 = vmatprep.subr.mxu0 0.0
    %9509 = vmatpush1.xpose.msra.mxu0 0.0
    %9510 = vmatprep.subr.mxu0 0.0
    %9511 = vmatpush1.xpose.msra.mxu0 0.0
    %9512 = vmatprep.subr.mxu0 0.0
    %9513 = vmatpush1.xpose.msra.mxu0 0.0
    %9514 = vmatprep.subr.mxu0 0.0
    %9515 = vmatpush1.xpose.msra.mxu0 0.0
    %9516 = vmatprep.subr.mxu0 0.0
    %9517 = vmatpush1.xpose.msra.mxu0 0.0
    %9518 = vmatprep.subr.mxu0 0.0
    %9519 = vmatpush1.xpose.msra.mxu0 0.0
    %9520 = vmatprep.subr.mxu0 0.0
    %9521 = vmatpush1.xpose.msra.mxu0 0.0
    %9522 = vmatprep.subr.mxu0 0.0
    %9523 = vmatpush1.xpose.msra.mxu0 0.0
    %9524 = vmatprep.subr.mxu0 0.0
    %9525 = vmatpush1.xpose.msra.mxu0 0.0
    %9526 = vmatprep.subr.mxu0 0.0
    %9527 = vmatpush1.xpose.msra.mxu0 0.0
    %9528 = vmatprep.subr.mxu0 0.0
    %9529 = vmatpush1.xpose.msra.mxu0 0.0
    %9530 = vmatprep.subr.mxu0 0.0
    %9531 = vmatpush1.xpose.msra.mxu0 0.0
    %9532 = vmatprep.subr.mxu0 0.0
    %9533 = vmatpush1.xpose.msra.mxu0 0.0
    %9534 = vmatprep.subr.mxu0 0.0
    %9535 = vmatpush1.xpose.msra.mxu0 0.0
    %9536 = vmatprep.subr.mxu0 0.0
    %9537 = vmatpush1.xpose.msra.mxu0 0.0
    %9538 = vmatprep.subr.mxu0 0.0
    %9539 = vmatpush1.xpose.msra.mxu0 0.0
    %9540 = vmatprep.subr.mxu0 0.0
    %9541 = vmatpush1.xpose.msra.mxu0 0.0
    %9542 = vmatprep.subr.mxu0 0.0
    %9543 = vmatpush1.xpose.msra.mxu0 0.0
    %9544 = vmatprep.subr.mxu0 0.0
    %9545 = vmatpush1.xpose.msra.mxu0 0.0
    %9546 = vmatprep.subr.mxu0 0.0
    %9547 = vmatpush1.xpose.msra.mxu0 0.0
    %9548 = vmatprep.subr.mxu0 0.0
    %9549 = vmatpush1.xpose.msra.mxu0 0.0
    %9550 = vmatprep.subr.mxu0 0.0
    %9551 = vmatpush1.xpose.msra.mxu0 0.0
    %9552 = vmatprep.subr.mxu0 0.0
    %9553 = vmatpush1.xpose.msra.mxu0 0.0
    %9554 = vmatprep.subr.mxu0 0.0
    %9555 = vmatpush1.xpose.msra.mxu0 0.0
    %9556 = vmatprep.mubr.f32.mxu0 0.0
    %9557 = vmatmul.mubr.f32.gmra.mrb[0].mxu0 %v9488
    %v9558 = vpop.f32.mrb[0].mxu0
    %v9559 = vadd.f32 0.0, %v9558
    %v9560 = vpop.f32.mrb[0].mxu0
    %9561 = vdwg.mxu0
    %v9562 = vmul.f32 %v9481, 0.17677669
    %v9563 = vmul.f32 %v9559, 0.17677669
    %v9564 = vadd.f32 %v9562, %v6102
    %v9565 = vadd.f32 %v9563, %v6106
    %v9566 = vsel %vm6111, %v9564, -inf
    %9567 = vmax.xlane.f32.xlu0 %v9566
    %v9568 = vpop.xlane.xlu0 %9567
    %v9569 = vsel %vm6111, %v9565, -inf
    %9570 = vmax.xlane.f32.xlu0 %v9569
    %v9571 = vpop.xlane.xlu0 %9570
    %v9572 = vsub.f32 %v9564, %v9568
    %v9573 = vsub.f32 %v9565, %v9571
    %v9574 = vmul.f32 %v9572, 1.442695
    %v9575 = vpow.pop %v9574
    %v9576 = vmul.f32 %v9573, 1.442695
    %v9577 = vpow.pop %v9576
    %v9578 = vsel %vm6111, %v9575, 0.0
    %9579 = vadd.xlane.f32.xlu0 %v9578
    %v9580 = vpop.xlane.xlu0 %9579
    %v9581 = vsel %vm6111, %v9577, 0.0
    %9582 = vadd.xlane.f32.xlu0 %v9581
    %v9583 = vpop.xlane.xlu0 %9582
    %v9584 = vrcp.pop %v9580
    %v9585 = vrcp.pop %v9583
    %v9586 = vmul.f32 %v9575, %v9584
    %v9587 = vmul.f32 %v9577, %v9585
    %9588 = vrot.lane.b32.xlu0 %v8159, 32
    %v9589 = vpop.permute.xlu0 %9588
    %v9592 = vsel %vm6111, %v9586, 0
    %9594 = vmatprep.subr.mxu0 0.0
    %9595 = vmatpush1.msra.mxu0 %v9589
    %9596 = vmatprep.subr.mxu0 0.0
    %9597 = vmatpush1.msra.mxu0 0.0
    %9598 = vmatprep.subr.mxu0 0.0
    %9599 = vmatpush1.msra.mxu0 0.0
    %9600 = vmatprep.subr.mxu0 0.0
    %9601 = vmatpush1.msra.mxu0 0.0
    %9602 = vmatprep.subr.mxu0 0.0
    %9603 = vmatpush1.msra.mxu0 0.0
    %9604 = vmatprep.subr.mxu0 0.0
    %9605 = vmatpush1.msra.mxu0 0.0
    %9606 = vmatprep.subr.mxu0 0.0
    %9607 = vmatpush1.msra.mxu0 0.0
    %9608 = vmatprep.subr.mxu0 0.0
    %9609 = vmatpush1.msra.mxu0 0.0
    %9610 = vmatprep.subr.mxu0 0.0
    %9611 = vmatpush1.msra.mxu0 0.0
    %9612 = vmatprep.subr.mxu0 0.0
    %9613 = vmatpush1.msra.mxu0 0.0
    %9614 = vmatprep.subr.mxu0 0.0
    %9615 = vmatpush1.msra.mxu0 0.0
    %9616 = vmatprep.subr.mxu0 0.0
    %9617 = vmatpush1.msra.mxu0 0.0
    %9618 = vmatprep.subr.mxu0 0.0
    %9619 = vmatpush1.msra.mxu0 0.0
    %9620 = vmatprep.subr.mxu0 0.0
    %9621 = vmatpush1.msra.mxu0 0.0
    %9622 = vmatprep.subr.mxu0 0.0
    %9623 = vmatpush1.msra.mxu0 0.0
    %9624 = vmatprep.subr.mxu0 0.0
    %9625 = vmatpush1.msra.mxu0 0.0
    %9626 = vmatprep.subr.mxu0 0.0
    %9627 = vmatpush1.msra.mxu0 0.0
    %9628 = vmatprep.subr.mxu0 0.0
    %9629 = vmatpush1.msra.mxu0 0.0
    %9630 = vmatprep.subr.mxu0 0.0
    %9631 = vmatpush1.msra.mxu0 0.0
    %9632 = vmatprep.subr.mxu0 0.0
    %9633 = vmatpush1.msra.mxu0 0.0
    %9634 = vmatprep.subr.mxu0 0.0
    %9635 = vmatpush1.msra.mxu0 0.0
    %9636 = vmatprep.subr.mxu0 0.0
    %9637 = vmatpush1.msra.mxu0 0.0
    %9638 = vmatprep.subr.mxu0 0.0
    %9639 = vmatpush1.msra.mxu0 0.0
    %9640 = vmatprep.subr.mxu0 0.0
    %9641 = vmatpush1.msra.mxu0 0.0
    %9642 = vmatprep.subr.mxu0 0.0
    %9643 = vmatpush1.msra.mxu0 0.0
    %9644 = vmatprep.subr.mxu0 0.0
    %9645 = vmatpush1.msra.mxu0 0.0
    %9646 = vmatprep.subr.mxu0 0.0
    %9647 = vmatpush1.msra.mxu0 0.0
    %9648 = vmatprep.subr.mxu0 0.0
    %9649 = vmatpush1.msra.mxu0 0.0
    %9650 = vmatprep.subr.mxu0 0.0
    %9651 = vmatpush1.msra.mxu0 0.0
    %9652 = vmatprep.subr.mxu0 0.0
    %9653 = vmatpush1.msra.mxu0 0.0
    %9654 = vmatprep.subr.mxu0 0.0
    %9655 = vmatpush1.msra.mxu0 0.0
    %9656 = vmatprep.subr.mxu0 0.0
    %9657 = vmatpush1.msra.mxu0 0.0
    %9658 = vmatprep.mubr.f32.mxu0 0.0
    %9659 = vmatmul.mubr.f32.gmra.mrb[0].mxu0 %v9592
    %v9660 = vpop.f32.mrb[0].mxu0
    %v9661 = vadd.f32 0.0, %v9660
    %v9662 = vpop.f32.mrb[0].mxu0
    %9663 = vdwg.mxu0
    %9664 = vrot.lane.b32.xlu0 %v8164, 32
    %v9665 = vpop.permute.xlu0 %9664
    %v9668 = vsel %vm6111, %v9587, 0
    %9670 = vmatprep.subr.mxu0 0.0
    %9671 = vmatpush1.msra.mxu0 %v9665
    %9672 = vmatprep.subr.mxu0 0.0
    %9673 = vmatpush1.msra.mxu0 0.0
    %9674 = vmatprep.subr.mxu0 0.0
    %9675 = vmatpush1.msra.mxu0 0.0
    %9676 = vmatprep.subr.mxu0 0.0
    %9677 = vmatpush1.msra.mxu0 0.0
    %9678 = vmatprep.subr.mxu0 0.0
    %9679 = vmatpush1.msra.mxu0 0.0
    %9680 = vmatprep.subr.mxu0 0.0
    %9681 = vmatpush1.msra.mxu0 0.0
    %9682 = vmatprep.subr.mxu0 0.0
    %9683 = vmatpush1.msra.mxu0 0.0
    %9684 = vmatprep.subr.mxu0 0.0
    %9685 = vmatpush1.msra.mxu0 0.0
    %9686 = vmatprep.subr.mxu0 0.0
    %9687 = vmatpush1.msra.mxu0 0.0
    %9688 = vmatprep.subr.mxu0 0.0
    %9689 = vmatpush1.msra.mxu0 0.0
    %9690 = vmatprep.subr.mxu0 0.0
    %9691 = vmatpush1.msra.mxu0 0.0
    %9692 = vmatprep.subr.mxu0 0.0
    %9693 = vmatpush1.msra.mxu0 0.0
    %9694 = vmatprep.subr.mxu0 0.0
    %9695 = vmatpush1.msra.mxu0 0.0
    %9696 = vmatprep.subr.mxu0 0.0
    %9697 = vmatpush1.msra.mxu0 0.0
    %9698 = vmatprep.subr.mxu0 0.0
    %9699 = vmatpush1.msra.mxu0 0.0
    %9700 = vmatprep.subr.mxu0 0.0
    %9701 = vmatpush1.msra.mxu0 0.0
    %9702 = vmatprep.subr.mxu0 0.0
    %9703 = vmatpush1.msra.mxu0 0.0
    %9704 = vmatprep.subr.mxu0 0.0
    %9705 = vmatpush1.msra.mxu0 0.0
    %9706 = vmatprep.subr.mxu0 0.0
    %9707 = vmatpush1.msra.mxu0 0.0
    %9708 = vmatprep.subr.mxu0 0.0
    %9709 = vmatpush1.msra.mxu0 0.0
    %9710 = vmatprep.subr.mxu0 0.0
    %9711 = vmatpush1.msra.mxu0 0.0
    %9712 = vmatprep.subr.mxu0 0.0
    %9713 = vmatpush1.msra.mxu0 0.0
    %9714 = vmatprep.subr.mxu0 0.0
    %9715 = vmatpush1.msra.mxu0 0.0
    %9716 = vmatprep.subr.mxu0 0.0
    %9717 = vmatpush1.msra.mxu0 0.0
    %9718 = vmatprep.subr.mxu0 0.0
    %9719 = vmatpush1.msra.mxu0 0.0
    %9720 = vmatprep.subr.mxu0 0.0
    %9721 = vmatpush1.msra.mxu0 0.0
    %9722 = vmatprep.subr.mxu0 0.0
    %9723 = vmatpush1.msra.mxu0 0.0
    %9724 = vmatprep.subr.mxu0 0.0
    %9725 = vmatpush1.msra.mxu0 0.0
    %9726 = vmatprep.subr.mxu0 0.0
    %9727 = vmatpush1.msra.mxu0 0.0
    %9728 = vmatprep.subr.mxu0 0.0
    %9729 = vmatpush1.msra.mxu0 0.0
    %9730 = vmatprep.subr.mxu0 0.0
    %9731 = vmatpush1.msra.mxu0 0.0
    %9732 = vmatprep.subr.mxu0 0.0
    %9733 = vmatpush1.msra.mxu0 0.0
    %9734 = vmatprep.mubr.f32.mxu0 0.0
    %9735 = vmatmul.mubr.f32.gmra.mrb[0].mxu0 %v9668
    %v9736 = vpop.f32.mrb[0].mxu0
    %v9737 = vadd.f32 0.0, %v9736
    %v9738 = vpop.f32.mrb[0].mxu0
    %9739 = vdwg.mxu0
    %v9741 = vsel %vm436, %v9661, 0
    %v9744 = vsel %vm436, %v9737, 0
    %9746 = vmatprep.subr.mxu0 0.0
    %9747 = vmatpush1.msra.mxu0 %v7925
    %9748 = vmatprep.subr.mxu0 0.0
    %9749 = vmatpush1.msra.mxu0 %v7926
    %9750 = vmatprep.subr.mxu0 0.0
    %9751 = vmatpush1.msra.mxu0 %v7927
    %9752 = vmatprep.subr.mxu0 0.0
    %9753 = vmatpush1.msra.mxu0 %v7928
    %9754 = vmatprep.subr.mxu0 0.0
    %9755 = vmatpush1.msra.mxu0 0.0
    %9756 = vmatprep.subr.mxu0 0.0
    %9757 = vmatpush1.msra.mxu0 0.0
    %9758 = vmatprep.subr.mxu0 0.0
    %9759 = vmatpush1.msra.mxu0 0.0
    %9760 = vmatprep.subr.mxu0 0.0
    %9761 = vmatpush1.msra.mxu0 0.0
    %9762 = vmatprep.subr.mxu0 0.0
    %9763 = vmatpush1.msra.mxu0 0.0
    %9764 = vmatprep.subr.mxu0 0.0
    %9765 = vmatpush1.msra.mxu0 0.0
    %9766 = vmatprep.subr.mxu0 0.0
    %9767 = vmatpush1.msra.mxu0 0.0
    %9768 = vmatprep.subr.mxu0 0.0
    %9769 = vmatpush1.msra.mxu0 0.0
    %9770 = vmatprep.subr.mxu0 0.0
    %9771 = vmatpush1.msra.mxu0 0.0
    %9772 = vmatprep.subr.mxu0 0.0
    %9773 = vmatpush1.msra.mxu0 0.0
    %9774 = vmatprep.subr.mxu0 0.0
    %9775 = vmatpush1.msra.mxu0 0.0
    %9776 = vmatprep.subr.mxu0 0.0
    %9777 = vmatpush1.msra.mxu0 0.0
    %9778 = vmatprep.subr.mxu0 0.0
    %9779 = vmatpush1.msra.mxu0 0.0
    %9780 = vmatprep.subr.mxu0 0.0
    %9781 = vmatpush1.msra.mxu0 0.0
    %9782 = vmatprep.subr.mxu0 0.0
    %9783 = vmatpush1.msra.mxu0 0.0
    %9784 = vmatprep.subr.mxu0 0.0
    %9785 = vmatpush1.msra.mxu0 0.0
    %9786 = vmatprep.subr.mxu0 0.0
    %9787 = vmatpush1.msra.mxu0 0.0
    %9788 = vmatprep.subr.mxu0 0.0
    %9789 = vmatpush1.msra.mxu0 0.0
    %9790 = vmatprep.subr.mxu0 0.0
    %9791 = vmatpush1.msra.mxu0 0.0
    %9792 = vmatprep.subr.mxu0 0.0
    %9793 = vmatpush1.msra.mxu0 0.0
    %9794 = vmatprep.subr.mxu0 0.0
    %9795 = vmatpush1.msra.mxu0 0.0
    %9796 = vmatprep.subr.mxu0 0.0
    %9797 = vmatpush1.msra.mxu0 0.0
    %9798 = vmatprep.subr.mxu0 0.0
    %9799 = vmatpush1.msra.mxu0 0.0
    %9800 = vmatprep.subr.mxu0 0.0
    %9801 = vmatpush1.msra.mxu0 0.0
    %9802 = vmatprep.subr.mxu0 0.0
    %9803 = vmatpush1.msra.mxu0 0.0
    %9804 = vmatprep.subr.mxu0 0.0
    %9805 = vmatpush1.msra.mxu0 0.0
    %9806 = vmatprep.subr.mxu0 0.0
    %9807 = vmatpush1.msra.mxu0 0.0
    %9808 = vmatprep.subr.mxu0 0.0
    %9809 = vmatpush1.msra.mxu0 0.0
    %9810 = vmatprep.mubr.f32.mxu0 0.0
    %9811 = vmatmul.mubr.f32.gmra.mrb[0].mxu0 %v9741
    %v9812 = vpop.f32.mrb[0].mxu0
    %v9813 = vadd.f32 0.0, %v9812
    %v9814 = vpop.f32.mrb[0].mxu0
    %9815 = vmatprep.mubr.f32.mxu0 0.0
    %9816 = vmatmul.mubr.f32.gmra.mrb[0].mxu0 %v9744
    %v9817 = vpop.f32.mrb[0].mxu0
    %v9818 = vadd.f32 0.0, %v9817
    %v9819 = vpop.f32.mrb[0].mxu0
    %9820 = vdwg.mxu0
    %v9821 = vadd.f32 %v9404, %v9813
    %v9822 = vadd.f32 %v9405, %v9818
    %v9823 = vlaneseq
    %v9824 = vshrl.u32 %v9823, 7
    %v9825 = vsub.s32 0, %v9824
    %v9826 = vrot.slane %v7998, %v9825
    %v9827 = vadd.f32 %v9821, %v9826
    %v9828 = vadd.f32 %v9822, %v9826
    %v9829 = vadd.f32 %v7859, %v9827
    %v9830 = vadd.f32 %v7860, %v9828
    %9831 = vadd.xlane.f32.xlu0 %v9829
    %v9832 = vpop.xlane.xlu0 %9831
    %9833 = vadd.xlane.f32.xlu0 %v9830
    %v9834 = vpop.xlane.xlu0 %9833
    %v9835 = vmul.f32 %v9832, %v2480
    %v9836 = vmul.f32 %v9834, %v2480
    %v9837 = vsub.f32 %v9829, %v9835
    %v9838 = vsub.f32 %v9830, %v9836
    %v9839 = vmul.f32 %v9837, %v9837
    %v9840 = vmul.f32 %v9838, %v9838
    %9841 = vadd.xlane.f32.xlu0 %v9839
    %v9842 = vpop.xlane.xlu0 %9841
    %9843 = vadd.xlane.f32.xlu0 %v9840
    %v9844 = vpop.xlane.xlu0 %9843
    %v9845 = vmul.f32 %v9842, %v2480
    %v9846 = vmul.f32 %v9844, %v2480
    %v9847 = vadd.f32 %v9845, 1e-05
    %v9848 = vadd.f32 %v9846, 1e-05
    %v9849 = vrsqrt.pop %v9847
    %v9850 = vrsqrt.pop %v9848
    %v9851 = vmul.f32 %v9837, %v9849
    %v9852 = vmul.f32 %v9838, %v9850
    %v9853 = vlaneseq
    %v9854 = vshrl.u32 %v9853, 7
    %v9855 = vsub.s32 1, %v9854
    %v9856 = vrot.slane %v7998, %v9855
    %v9857 = vmul.f32 %v9851, %v9856
    %v9858 = vmul.f32 %v9852, %v9856
    %v9859 = vlaneseq
    %v9860 = vshrl.u32 %v9859, 7
    %v9861 = vsub.s32 2, %v9860
    %v9862 = vrot.slane %v7998, %v9861
    %v9863 = vadd.f32 %v9857, %v9862
    %v9864 = vadd.f32 %v9858, %v9862
    %v9866 = vlaneseq
    %v9867 = vshrl.u32 %v9866, 7
    %v9868 = vsub.s32 0, %v9867
    %v9869 = vrot.slane %v7963, %v9868
    %v9870 = vlaneseq
    %v9871 = vshrl.u32 %v9870, 7
    %v9872 = vsub.s32 1, %v9871
    %v9873 = vrot.slane %v7963, %v9872
    %9876 = vmatprep.subr.mxu0 %v7931
    %9877 = vmatpush1.msra.mxu0 %v7930
    %9878 = vmatprep.subr.mxu0 %v7933
    %9879 = vmatpush1.msra.mxu0 %v7932
    %9880 = vmatprep.subr.mxu0 %v7935
    %9881 = vmatpush1.msra.mxu0 %v7934
    %9882 = vmatprep.subr.mxu0 %v7937
    %9883 = vmatpush1.msra.mxu0 %v7936
    %9884 = vmatprep.subr.mxu0 %v7939
    %9885 = vmatpush1.msra.mxu0 %v7938
    %9886 = vmatprep.subr.mxu0 %v7941
    %9887 = vmatpush1.msra.mxu0 %v7940
    %9888 = vmatprep.subr.mxu0 %v7943
    %9889 = vmatpush1.msra.mxu0 %v7942
    %9890 = vmatprep.subr.mxu0 %v7945
    %9891 = vmatpush1.msra.mxu0 %v7944
    %9892 = vmatprep.subr.mxu0 %v7947
    %9893 = vmatpush1.msra.mxu0 %v7946
    %9894 = vmatprep.subr.mxu0 %v7949
    %9895 = vmatpush1.msra.mxu0 %v7948
    %9896 = vmatprep.subr.mxu0 %v7951
    %9897 = vmatpush1.msra.mxu0 %v7950
    %9898 = vmatprep.subr.mxu0 %v7953
    %9899 = vmatpush1.msra.mxu0 %v7952
    %9900 = vmatprep.subr.mxu0 %v7955
    %9901 = vmatpush1.msra.mxu0 %v7954
    %9902 = vmatprep.subr.mxu0 %v7957
    %9903 = vmatpush1.msra.mxu0 %v7956
    %9904 = vmatprep.subr.mxu0 %v7959
    %9905 = vmatpush1.msra.mxu0 %v7958
    %9906 = vmatprep.subr.mxu0 %v7961
    %9907 = vmatpush1.msra.mxu0 %v7960
    %9908 = vmatprep.subr.mxu0 0.0
    %9909 = vmatpush1.msra.mxu0 0.0
    %9910 = vmatprep.subr.mxu0 0.0
    %9911 = vmatpush1.msra.mxu0 0.0
    %9912 = vmatprep.subr.mxu0 0.0
    %9913 = vmatpush1.msra.mxu0 0.0
    %9914 = vmatprep.subr.mxu0 0.0
    %9915 = vmatpush1.msra.mxu0 0.0
    %9916 = vmatprep.subr.mxu0 0.0
    %9917 = vmatpush1.msra.mxu0 0.0
    %9918 = vmatprep.subr.mxu0 0.0
    %9919 = vmatpush1.msra.mxu0 0.0
    %9920 = vmatprep.subr.mxu0 0.0
    %9921 = vmatpush1.msra.mxu0 0.0
    %9922 = vmatprep.subr.mxu0 0.0
    %9923 = vmatpush1.msra.mxu0 0.0
    %9924 = vmatprep.subr.mxu0 0.0
    %9925 = vmatpush1.msra.mxu0 0.0
    %9926 = vmatprep.subr.mxu0 0.0
    %9927 = vmatpush1.msra.mxu0 0.0
    %9928 = vmatprep.subr.mxu0 0.0
    %9929 = vmatpush1.msra.mxu0 0.0
    %9930 = vmatprep.subr.mxu0 0.0
    %9931 = vmatpush1.msra.mxu0 0.0
    %9932 = vmatprep.subr.mxu0 0.0
    %9933 = vmatpush1.msra.mxu0 0.0
    %9934 = vmatprep.subr.mxu0 0.0
    %9935 = vmatpush1.msra.mxu0 0.0
    %9936 = vmatprep.subr.mxu0 0.0
    %9937 = vmatpush1.msra.mxu0 0.0
    %9938 = vmatprep.subr.mxu0 0.0
    %9939 = vmatpush1.msra.mxu0 0.0
    %9940 = vmatprep.mubr.f32.mxu0 0.0
    %9941 = vmatmul.mubr.f32.gmra.mrb[0].mxu0 %v9863
    %v9942 = vpop.f32.mrb[0].mxu0
    %v9943 = vadd.f32 %v9869, %v9942
    %v9944 = vpop.f32.mrb[0].mxu0
    %v9945 = vadd.f32 %v9873, %v9944
    %9946 = vmatprep.mubr.f32.mxu0 0.0
    %9947 = vmatmul.mubr.f32.gmra.mrb[0].mxu0 %v9864
    %v9948 = vpop.f32.mrb[0].mxu0
    %v9949 = vadd.f32 %v9869, %v9948
    %v9950 = vpop.f32.mrb[0].mxu0
    %v9951 = vadd.f32 %v9873, %v9950
    %9952 = vdwg.mxu0
    %v9953 = vmax.f32 %v9943, 0.0
    %v9954 = vmax.f32 %v9945, 0.0
    %v9955 = vmax.f32 %v9949, 0.0
    %v9956 = vmax.f32 %v9951, 0.0
    %v9957 = vlaneseq
    %v9958 = vshrl.u32 %v9957, 7
    %v9959 = vsub.s32 3, %v9958
    %v9960 = vrot.slane %v7998, %v9959
    %9961 = vmatprep.subr.mxu0 0.0
    %9962 = vmatpush1.msra.mxu0 %v7965
    %9963 = vmatprep.subr.mxu0 0.0
    %9964 = vmatpush1.msra.mxu0 %v7966
    %9965 = vmatprep.subr.mxu0 0.0
    %9966 = vmatpush1.msra.mxu0 %v7967
    %9967 = vmatprep.subr.mxu0 0.0
    %9968 = vmatpush1.msra.mxu0 %v7968
    %9969 = vmatprep.subr.mxu0 0.0
    %9970 = vmatpush1.msra.mxu0 %v7969
    %9971 = vmatprep.subr.mxu0 0.0
    %9972 = vmatpush1.msra.mxu0 %v7970
    %9973 = vmatprep.subr.mxu0 0.0
    %9974 = vmatpush1.msra.mxu0 %v7971
    %9975 = vmatprep.subr.mxu0 0.0
    %9976 = vmatpush1.msra.mxu0 %v7972
    %9977 = vmatprep.subr.mxu0 0.0
    %9978 = vmatpush1.msra.mxu0 %v7973
    %9979 = vmatprep.subr.mxu0 0.0
    %9980 = vmatpush1.msra.mxu0 %v7974
    %9981 = vmatprep.subr.mxu0 0.0
    %9982 = vmatpush1.msra.mxu0 %v7975
    %9983 = vmatprep.subr.mxu0 0.0
    %9984 = vmatpush1.msra.mxu0 %v7976
    %9985 = vmatprep.subr.mxu0 0.0
    %9986 = vmatpush1.msra.mxu0 %v7977
    %9987 = vmatprep.subr.mxu0 0.0
    %9988 = vmatpush1.msra.mxu0 %v7978
    %9989 = vmatprep.subr.mxu0 0.0
    %9990 = vmatpush1.msra.mxu0 %v7979
    %9991 = vmatprep.subr.mxu0 0.0
    %9992 = vmatpush1.msra.mxu0 %v7980
    %9993 = vmatprep.subr.mxu0 0.0
    %9994 = vmatpush1.msra.mxu0 %v7981
    %9995 = vmatprep.subr.mxu0 0.0
    %9996 = vmatpush1.msra.mxu0 %v7982
    %9997 = vmatprep.subr.mxu0 0.0
    %9998 = vmatpush1.msra.mxu0 %v7983
    %9999 = vmatprep.subr.mxu0 0.0
    %10000 = vmatpush1.msra.mxu0 %v7984
    %10001 = vmatprep.subr.mxu0 0.0
    %10002 = vmatpush1.msra.mxu0 %v7985
    %10003 = vmatprep.subr.mxu0 0.0
    %10004 = vmatpush1.msra.mxu0 %v7986
    %10005 = vmatprep.subr.mxu0 0.0
    %10006 = vmatpush1.msra.mxu0 %v7987
    %10007 = vmatprep.subr.mxu0 0.0
    %10008 = vmatpush1.msra.mxu0 %v7988
    %10009 = vmatprep.subr.mxu0 0.0
    %10010 = vmatpush1.msra.mxu0 %v7989
    %10011 = vmatprep.subr.mxu0 0.0
    %10012 = vmatpush1.msra.mxu0 %v7990
    %10013 = vmatprep.subr.mxu0 0.0
    %10014 = vmatpush1.msra.mxu0 %v7991
    %10015 = vmatprep.subr.mxu0 0.0
    %10016 = vmatpush1.msra.mxu0 %v7992
    %10017 = vmatprep.subr.mxu0 0.0
    %10018 = vmatpush1.msra.mxu0 %v7993
    %10019 = vmatprep.subr.mxu0 0.0
    %10020 = vmatpush1.msra.mxu0 %v7994
    %10021 = vmatprep.subr.mxu0 0.0
    %10022 = vmatpush1.msra.mxu0 %v7995
    %10023 = vmatprep.subr.mxu0 0.0
    %10024 = vmatpush1.msra.mxu0 %v7996
    %10025 = vmatprep.mubr.f32.mxu0 %v9954
    %10026 = vmatmul.mubr.f32.gmra.mrb[0].mxu0 %v9953
    %v10027 = vpop.f32.mrb[0].mxu0
    %v10028 = vadd.f32 %v9960, %v10027
    %v10029 = vpop.f32.mrb[0].mxu0
    %10030 = vmatprep.mubr.f32.mxu0 %v9956
    %10031 = vmatmul.mubr.f32.gmra.mrb[0].mxu0 %v9955
    %v10032 = vpop.f32.mrb[0].mxu0
    %v10033 = vadd.f32 %v9960, %v10032
    %v10034 = vpop.f32.mrb[0].mxu0
    %10035 = vdwg.mxu0
    %v10036 = vadd.f32 %v9863, %v10028
    %v10037 = vadd.f32 %v9864, %v10033
    %10038 = vadd.xlane.f32.xlu0 %v10036
    %v10039 = vpop.xlane.xlu0 %10038
    %10040 = vadd.xlane.f32.xlu0 %v10037
    %v10041 = vpop.xlane.xlu0 %10040
    %v10042 = vmul.f32 %v10039, %v2480
    %v10043 = vmul.f32 %v10041, %v2480
    %v10044 = vsub.f32 %v10036, %v10042
    %v10045 = vsub.f32 %v10037, %v10043
    %v10046 = vmul.f32 %v10044, %v10044
    %v10047 = vmul.f32 %v10045, %v10045
    %10048 = vadd.xlane.f32.xlu0 %v10046
    %v10049 = vpop.xlane.xlu0 %10048
    %10050 = vadd.xlane.f32.xlu0 %v10047
    %v10051 = vpop.xlane.xlu0 %10050
    %v10052 = vmul.f32 %v10049, %v2480
    %v10053 = vmul.f32 %v10051, %v2480
    %v10054 = vadd.f32 %v10052, 1e-05
    %v10055 = vadd.f32 %v10053, 1e-05
    %v10056 = vrsqrt.pop %v10054
    %v10057 = vrsqrt.pop %v10055
    %v10058 = vmul.f32 %v10044, %v10056
    %v10059 = vmul.f32 %v10045, %v10057
    %v10060 = vlaneseq
    %v10061 = vshrl.u32 %v10060, 7
    %v10062 = vsub.s32 4, %v10061
    %v10063 = vrot.slane %v7998, %v10062
    %v10064 = vmul.f32 %v10058, %v10063
    %v10065 = vmul.f32 %v10059, %v10063
    %v10066 = vlaneseq
    %v10067 = vshrl.u32 %v10066, 7
    %v10068 = vsub.s32 5, %v10067
    %v10069 = vrot.slane %v7998, %v10068
    %v10070 = vadd.f32 %v10064, %v10069
    %v10071 = vadd.f32 %v10065, %v10069
    %v10072 = vld [vmem:[%s11] sm:$0x1]
    %v10074 = vlaneseq
    %v10075 = vshrl.u32 %v10074, 7
    %v10076 = vsub.s32 0, %v10075
    %v10077 = vrot.slane %v10072, %v10076
    %v10079 = vmul.f32 %v10070, %v10077
    %v10080 = vmul.f32 %v10071, %v10077
    %10081 = vadd.xlane.f32.xlu0 %v10079
    %v10082 = vpop.xlane.xlu0 %10081
    %10083 = vadd.xlane.f32.xlu0 %v10080
    %v10084 = vpop.xlane.xlu0 %10083
    %v10085 = vld [vmem:[#allocation2] sm:$0x1]
    %v10087 = vlaneseq
    %v10088 = vshrl.u32 %v10087, 7
    %v10089 = vsub.s32 0, %v10088
    %v10090 = vrot.slane %v10085, %v10089
    %v10092 = vadd.f32 %v10082, %v10090
    %v10093 = vadd.f32 %v10084, %v10090
    %10095 = vset.pattern.permute.xlu0 0
    %10096 = vperm.xlu0 %10095, %v10092
    %v10097 = vpop.permute.xlu0 %10096
    %10100 = vset.pattern.permute.xlu0 0
    %10101 = vperm.xlu0 %10100, %v10093
    %v10102 = vpop.permute.xlu0 %10101
    %10104 = vst [vmem:[%s13] sm:$0xff] %v10097
    %10105 = vst [vmem:[%s13 + $0x8] sm:$0xff] %v10102
    // Predicated region
    $region66: #{ext_bert_summ_forward.1} parent=1 // pred_check
      _
    $region67: #{ext_bert_summ_forward.1} parent=1 // pred_check_branch
      %10107 = sbr.rel (0) target = $region69
    $region68: #{ext_bert_summ_forward.1} parent=1 // pred_region
      _
    $region69: #{ext_bert_summ_forward.1} parent=1 // pred_fallthru
      _
    // Predicated region
    $region70: #{ext_bert_summ_forward.1} parent=1 // pred_check
      _
    $region71: #{ext_bert_summ_forward.1} parent=1 // pred_check_branch
      %10109 = sbr.rel (0) target = $region73
    $region72: #{ext_bert_summ_forward.1} parent=1 // pred_region
      _
    $region73: #{ext_bert_summ_forward.1} parent=1 // pred_fallthru
      _
    %10110 = vsyncpa [#allocation4], 1
    %10111 = vsyncpa [#allocation6], 1

</llo_original>
